<compile_context>
chip_gen: v7x
topology: tpu7x:2x2x1
jax: 0.10.0
libtpu: 0.0.40
codegen_flags: <defaults>
</compile_context>

<pallas_src>
import math

import jax
import jax.numpy as jnp
from jax import lax
from jax.experimental import pallas as pl
from jax.experimental.pallas import tpu as pltpu


LAYER_NAMES = ('wqkv', 'bqkv', 'wo', 'vecs', 'w1', 'b1', 'w2')
HEAD_NAMES = ('hw1', 'hb1', 'hw2', 'hb2')

# rows of the packed per-layer (8, d_model) vector slab
_VEC_BO, _VEC_LN1G, _VEC_LN1B, _VEC_B2, _VEC_LN2G, _VEC_LN2B = range(6)


# ----------------------------------------------------------------------------
# Fused kernel: all encoder layers (static unroll, weights resident) + MLP heads.
# ----------------------------------------------------------------------------
def _make_kernel(num_heads, num_layers):
    H = num_heads
    L = num_layers

    def kernel(x_ref, kbias_ref,
               wqkv_ref, bqkv_ref, wo_ref, vecs_ref, w1_ref, b1_ref, w2_ref,
               hw1_ref, hb1_ref, hw2_ref, hb2_ref,
               out_ref):
        bb, S, D = x_ref.shape
        Dh = D // H
        rows = bb * S
        scale = 1.0 / math.sqrt(Dh)
        eps = 1e-5

        def layer_norm(v, g, b):
            mu = jnp.mean(v, axis=-1, keepdims=True)
            var = jnp.mean((v - mu) ** 2, axis=-1, keepdims=True)
            return (v - mu) * lax.rsqrt(var + eps) * g + b

        # key-padding bias, replicated per head (head-major fold of the batch axis);
        # hoisted out of the layer loop (JAX does not CSE broadcasts).
        kb = kbias_ref[...]                                       # (bb, 1, S) f32
        kb_all = jnp.concatenate([kb] * H, axis=0)                # (H*bb, 1, S)

        x = x_ref[...].reshape(rows, D)                           # carried activation, f32

        for l in range(L):   # static unroll: all L layers' weights resident in VMEM
            vr = vecs_ref[l]                                      # (8, D) packed vectors

            # ---- fused QKV projection (bf16 MXU, f32 accumulation) ----
            qkv = jnp.dot(x.astype(jnp.bfloat16), wqkv_ref[l],
                          preferred_element_type=jnp.float32) + bqkv_ref[l]   # (rows, 3D)
            qkv = qkv.reshape(bb, S, 3 * D).astype(jnp.bfloat16)

            # ---- head-batched attention: fold (head, batch) into one rank-3 batch axis
            q = jnp.concatenate(
                [qkv[:, :, h * Dh:(h + 1) * Dh] for h in range(H)], axis=0)
            k = jnp.concatenate(
                [qkv[:, :, D + h * Dh:D + (h + 1) * Dh] for h in range(H)], axis=0)
            v = jnp.concatenate(
                [qkv[:, :, 2 * D + h * Dh:2 * D + (h + 1) * Dh] for h in range(H)], axis=0)
            # q/k/v: (H*bb, S, Dh) bf16

            s = jnp.einsum('bqd,bkd->bqk', q, k,
                           preferred_element_type=jnp.float32) * scale + kb_all
            m = jnp.max(s, axis=-1, keepdims=True)
            p = jnp.exp(s - m)
            p = p * pl.reciprocal(jnp.sum(p, axis=-1, keepdims=True), approx=True)
            ctx = jnp.einsum('bqk,bkd->bqd', p.astype(jnp.bfloat16), v,
                             preferred_element_type=jnp.float32)  # (H*bb, S, Dh) f32

            # re-assemble heads on the lane axis -> ONE (rows, D) @ (D, D) out-projection
            ctx_rows = jnp.concatenate(
                [ctx[h * bb:(h + 1) * bb].reshape(rows, Dh) for h in range(H)], axis=-1)
            attn = jnp.dot(ctx_rows.astype(jnp.bfloat16), wo_ref[l],
                           preferred_element_type=jnp.float32) + vr[_VEC_BO:_VEC_BO + 1, :]

            # ---- residual + LayerNorm 1 (biased variance, eps=1e-5) ----
            y = layer_norm(x + attn,
                           vr[_VEC_LN1G:_VEC_LN1G + 1, :], vr[_VEC_LN1B:_VEC_LN1B + 1, :])

            # ---- FFN (bf16 weights on MXU, f32 accumulation / elementwise) ----
            hdn = jnp.dot(y.astype(jnp.bfloat16), w1_ref[l],
                          preferred_element_type=jnp.float32) + b1_ref[l]
            hdn = jnp.maximum(hdn, 0.0)
            ff = jnp.dot(hdn.astype(jnp.bfloat16), w2_ref[l],
                         preferred_element_type=jnp.float32) + vr[_VEC_B2:_VEC_B2 + 1, :]

            # ---- residual + LayerNorm 2 ----
            x = layer_norm(y + ff,
                           vr[_VEC_LN2G:_VEC_LN2G + 1, :], vr[_VEC_LN2B:_VEC_LN2B + 1, :])

        # ---- fused MLP heads: lane-dense (rows, 128) slab, store token-0 row only ----
        h1 = jnp.dot(x.astype(jnp.bfloat16), hw1_ref[...],
                     preferred_element_type=jnp.float32) + hb1_ref[...]
        h1 = jnp.maximum(h1, 0.0)
        heads = jnp.dot(h1.astype(jnp.bfloat16), hw2_ref[...],
                        preferred_element_type=jnp.float32) + hb2_ref[...]
        out_ref[...] = heads.reshape(bb, S, 128)[:, 0:1, :]

    return kernel


# ----------------------------------------------------------------------------
# Generation-aware batch split + VMEM guardrail.
# ----------------------------------------------------------------------------
def _num_tensorcores():
    # v7x exposes 2 TensorCores per device (megacore); v5e/v6e have 1.
    try:
        kind = jax.devices()[0].device_kind.lower()
    except Exception:
        return 1
    return 2 if any(t in kind for t in ('v7', '7x', 'v4', 'v5p')) else 1


def _pick_batch_blocks(B, S):
    n = 1
    if B % 2 == 0 and (_num_tensorcores() >= 2 or (B // 2) * S >= 512):
        n = 2
    # VMEM guardrail: keep the f32 (rows, ffn_dim) FFN intermediate bounded
    # (v7x has 64 MiB physical VMEM vs 128 MiB on v5e/v6e).
    while B % (n * 2) == 0 and (B // n) * S > 1024:
        n *= 2
    return n


def fused_forward(x, kbias, layers, heads, *, num_heads):
    B, S, D = x.shape
    L = layers['wqkv'].shape[0]
    n_blocks = _pick_batch_blocks(B, S)
    bb = B // n_blocks

    bmap = lambda b: (b, 0, 0)                 # per-batch-block arrays

    def const_spec(arr):                       # whole array resident, constant index
        nd = arr.ndim
        return pl.BlockSpec(arr.shape, lambda b, nd=nd: (0,) * nd)

    in_specs = [pl.BlockSpec((bb, S, D), bmap),
                pl.BlockSpec((bb, 1, S), bmap)]
    in_specs += [const_spec(layers[n]) for n in LAYER_NAMES]
    in_specs += [const_spec(heads[n]) for n in HEAD_NAMES]

    args = (x, kbias) + tuple(layers[n] for n in LAYER_NAMES) \
                      + tuple(heads[n] for n in HEAD_NAMES)

    return pl.pallas_call(
        _make_kernel(num_heads, L),
        out_shape=jax.ShapeDtypeStruct((B, 1, 128), jnp.float32),
        grid_spec=pltpu.PrefetchScalarGridSpec(
            num_scalar_prefetch=0,
            grid=(n_blocks,),
            in_specs=in_specs,
            out_specs=pl.BlockSpec((bb, 1, 128), bmap)),
        compiler_params=pltpu.CompilerParams(
            dimension_semantics=("parallel",),
            vmem_limit_bytes=32 * 1024 * 1024),
    )(*args)


# ----------------------------------------------------------------------------
# Parameter init (deterministic, matches the module's init_weights scheme:
# xavier-uniform weights, zero biases, LayerNorm gamma=1 / beta=0).
# Weights are pre-transposed, stacked along a leading layer axis, and cast to
# bfloat16 (MXU-native); small per-layer vectors are packed into one slab.
# ----------------------------------------------------------------------------
def xavier(key, shape):
    fan_out, fan_in = shape[0], shape[1]
    bound = math.sqrt(6.0 / (fan_in + fan_out))
    return jax.random.uniform(key, shape, jnp.float32, -bound, bound)


def init_params(key, *, num_classes, hidden, d_model, num_heads, num_layers,
                ffn_dim, col_reg, max_len=64):
    ks = iter(jax.random.split(key, 2 + 4 * num_layers + 4))
    p = {'num_heads': num_heads, 'col_reg': col_reg}
    p['embedding'] = xavier(next(ks), (num_classes, hidden))     # nn.Embedding (xavier'd)
    p['pe'] = xavier(next(ks), (max_len, d_model))               # learnable pos. encoding

    per = {n: [] for n in LAYER_NAMES}
    for _ in range(num_layers):
        in_proj = xavier(next(ks), (3 * d_model, d_model))       # q|k|v = x @ in_proj.T
        per['wqkv'].append(in_proj.T.astype(jnp.bfloat16))       # (D, 3D) bf16
        per['bqkv'].append(jnp.zeros((1, 3 * d_model), jnp.float32))
        per['wo'].append(xavier(next(ks), (d_model, d_model)).T.astype(jnp.bfloat16))
        per['w1'].append(xavier(next(ks), (ffn_dim, d_model)).T.astype(jnp.bfloat16))
        per['b1'].append(jnp.zeros((1, ffn_dim), jnp.float32))
        per['w2'].append(xavier(next(ks), (d_model, ffn_dim)).T.astype(jnp.bfloat16))
        # packed per-layer (8, D) slab: [bo, ln1_g, ln1_b, ffn_b2, ln2_g, ln2_b, 0, 0]
        vec = jnp.zeros((8, d_model), jnp.float32)
        vec = vec.at[_VEC_LN1G].set(1.0).at[_VEC_LN2G].set(1.0)
        per['vecs'].append(vec)
    p['layers'] = {n: jnp.stack(per[n]) for n in LAYER_NAMES}    # leading layer axis

    # Two MLP heads fused into one lane-dense pair of matmuls:
    #   hw1 = [Wm1.T | Wi1.T]  (D, 256),   hw2 = block-diagonal -> (256, 128) slab.
    wm1 = xavier(next(ks), (128, d_model))        # mlp: Linear(D, 128)
    wm2 = xavier(next(ks), (col_reg, 128))        # mlp: Linear(128, col_reg)
    wi1 = xavier(next(ks), (128, d_model))        # mlp_intent: Linear(D, 128)
    wi2 = xavier(next(ks), (7, 128))              # mlp_intent: Linear(128, 7)
    hw1 = jnp.concatenate([wm1.T, wi1.T], axis=1).astype(jnp.bfloat16)   # (D, 256)
    hw2 = jnp.zeros((256, 128), jnp.float32)
    hw2 = hw2.at[:128, :col_reg].set(wm2.T)
    hw2 = hw2.at[128:, col_reg:col_reg + 7].set(wi2.T)
    p['heads'] = dict(hw1=hw1, hb1=jnp.zeros((1, 256), jnp.float32),
                      hw2=hw2.astype(jnp.bfloat16), hb2=jnp.zeros((1, 128), jnp.float32))
    return p


# ----------------------------------------------------------------------------
# Forward pass (glue in plain JAX: embedding gather, PE add, output slicing).
# The PyTorch model permutes to (seq, batch, d_model) for nn.TransformerEncoder;
# attention math is identical in batch-major layout, so we keep (B, S, D).
# ----------------------------------------------------------------------------
def forward(params, tokens, masks):
    B, S, _ = tokens.shape
    d_model = params['pe'].shape[1]

    # embedding(x).view(B, S, d_model) + learnable positional encoding (JAX glue)
    emb = jnp.take(params['embedding'], tokens, axis=0)          # (B, S, data_dim, hidden)
    x = emb.reshape(B, S, d_model).astype(jnp.float32)
    x = x + params['pe'][:S][None]

    # src_key_padding_mask (True = ignore) -> additive bias on the key axis
    kbias = jnp.where(masks, -1e9, 0.0).astype(jnp.float32)[:, None, :]   # (B, 1, S)

    slab = fused_forward(x, kbias, params['layers'], params['heads'],
                         num_heads=params['num_heads'])          # (B, 1, 128)
    x0 = slab[:, 0, :]                                           # first-token head slab
    cr = params['col_reg']
    x_seq = jnp.maximum(x0[:, :cr], 0.0)                         # final ReLU (seq head)
    x_int = x0[:, cr:cr + 7]
    return x_seq, x_int


if __name__ == "__main__":
    # Small shapes consistent with the module's forward.
    batch, seq_len = 2, 8
    col_dim, reg_dim, hidden_size = 2, 2, 8
    num_classes = 10
    num_heads, num_layers = 4, 2
    d_model = col_dim * reg_dim * hidden_size                    # 32
    data_dim = col_dim * reg_dim                                 # 4
    ffn_dim = 2048                                               # nn.TransformerEncoderLayer default

    key = jax.random.PRNGKey(0)
    k_params, k_tok = jax.random.split(key)
    params = init_params(k_params, num_classes=num_classes, hidden=hidden_size,
                         d_model=d_model, num_heads=num_heads, num_layers=num_layers,
                         ffn_dim=ffn_dim, col_reg=col_dim * reg_dim)

    tokens = jax.random.randint(k_tok, (batch, seq_len, data_dim), 0, num_classes)
    masks = jnp.zeros((batch, seq_len), dtype=bool).at[1, seq_len - 2:].set(True)

    x_seq, x_int = forward(params, tokens, masks)
    jax.block_until_ready((x_seq, x_int))

    assert x_seq.shape == (batch, col_dim * reg_dim)
    assert x_int.shape == (batch, 7)
    assert not bool(jnp.any(jnp.isnan(x_seq))) and not bool(jnp.any(jnp.isnan(x_int)))
    print("KERNEL_OK")
</pallas_src>

<mosaic_0001>
module attributes {stable_mosaic.version = 11 : i64} {
  func.func @kernel(%arg0: i32, %arg1: memref<2x8x32xf32, #tpu.memory_space<vmem>>, %arg2: memref<2x1x8xf32, #tpu.memory_space<vmem>>, %arg3: memref<2x32x96xbf16, #tpu.memory_space<vmem>>, %arg4: memref<2x1x96xf32, #tpu.memory_space<vmem>>, %arg5: memref<2x32x32xbf16, #tpu.memory_space<vmem>>, %arg6: memref<2x8x32xf32, #tpu.memory_space<vmem>>, %arg7: memref<2x32x2048xbf16, #tpu.memory_space<vmem>>, %arg8: memref<2x1x2048xf32, #tpu.memory_space<vmem>>, %arg9: memref<2x2048x32xbf16, #tpu.memory_space<vmem>>, %arg10: memref<32x256xbf16, #tpu.memory_space<vmem>>, %arg11: memref<1x256xf32, #tpu.memory_space<vmem>>, %arg12: memref<256x128xbf16, #tpu.memory_space<vmem>>, %arg13: memref<1x128xf32, #tpu.memory_space<vmem>>, %arg14: memref<2x1x128xf32, #tpu.memory_space<vmem>>) attributes {dimension_semantics = [#tpu.dimension_semantics<parallel>], iteration_bounds = array<i64: 1>, scalar_prefetch = 0 : i64, scratch_operands = 0 : i64, tpu.core_type = #tpu.core_type<tc>, window_params = [{transform_indices = @transform_0, window_bounds = array<i64: 2, 8, 32>}, {transform_indices = @transform_1, window_bounds = array<i64: 2, 1, 8>}, {pipeline_mode = #tpu.pipeline_mode<synchronous>, transform_indices = @transform_2, window_bounds = array<i64: 2, 32, 96>}, {pipeline_mode = #tpu.pipeline_mode<synchronous>, transform_indices = @transform_3, window_bounds = array<i64: 2, 1, 96>}, {pipeline_mode = #tpu.pipeline_mode<synchronous>, transform_indices = @transform_4, window_bounds = array<i64: 2, 32, 32>}, {pipeline_mode = #tpu.pipeline_mode<synchronous>, transform_indices = @transform_5, window_bounds = array<i64: 2, 8, 32>}, {pipeline_mode = #tpu.pipeline_mode<synchronous>, transform_indices = @transform_6, window_bounds = array<i64: 2, 32, 2048>}, {pipeline_mode = #tpu.pipeline_mode<synchronous>, transform_indices = @transform_7, window_bounds = array<i64: 2, 1, 2048>}, {pipeline_mode = #tpu.pipeline_mode<synchronous>, transform_indices = @transform_8, window_bounds = array<i64: 2, 2048, 32>}, {pipeline_mode = #tpu.pipeline_mode<synchronous>, transform_indices = @transform_9, window_bounds = array<i64: 32, 256>}, {pipeline_mode = #tpu.pipeline_mode<synchronous>, transform_indices = @transform_10, window_bounds = array<i64: 1, 256>}, {pipeline_mode = #tpu.pipeline_mode<synchronous>, transform_indices = @transform_11, window_bounds = array<i64: 256, 128>}, {pipeline_mode = #tpu.pipeline_mode<synchronous>, transform_indices = @transform_12, window_bounds = array<i64: 1, 128>}, {transform_indices = @transform_13, window_bounds = array<i64: 2, 1, 128>}]} {
    %c0 = arith.constant 0 : index
    %c0_0 = arith.constant 0 : index
    %c0_1 = arith.constant 0 : index
    %0 = vector.load %arg2[%c0, %c0_0, %c0_1] : memref<2x1x8xf32, #tpu.memory_space<vmem>>, vector<2x1x8xf32>
    %1 = tpu.concatenate %0, %0, %0, %0 in 0 : vector<2x1x8xf32>, vector<2x1x8xf32>, vector<2x1x8xf32>, vector<2x1x8xf32> -> vector<8x1x8xf32>
    %c0_2 = arith.constant 0 : index
    %c0_3 = arith.constant 0 : index
    %c0_4 = arith.constant 0 : index
    %2 = vector.load %arg1[%c0_2, %c0_3, %c0_4] : memref<2x8x32xf32, #tpu.memory_space<vmem>>, vector<2x8x32xf32>
    %3 = vector.shape_cast %2 : vector<2x8x32xf32> to vector<16x32xf32>
    %c0_5 = arith.constant 0 : index
    %c0_6 = arith.constant 0 : index
    %c0_7 = arith.constant 0 : index
    %4 = vector.load %arg6[%c0_5, %c0_6, %c0_7] : memref<2x8x32xf32, #tpu.memory_space<vmem>>, vector<1x8x32xf32>
    %5 = vector.shape_cast %4 : vector<1x8x32xf32> to vector<8x32xf32>
    %6 = arith.truncf %3 : vector<16x32xf32> to vector<16x32xbf16>
    %c0_8 = arith.constant 0 : index
    %c0_9 = arith.constant 0 : index
    %c0_10 = arith.constant 0 : index
    %7 = vector.load %arg3[%c0_8, %c0_9, %c0_10] : memref<2x32x96xbf16, #tpu.memory_space<vmem>>, vector<1x32x96xbf16>
    %8 = vector.shape_cast %7 : vector<1x32x96xbf16> to vector<32x96xbf16>
    %cst = arith.constant dense<0.000000e+00> : vector<16x96xf32>
    %9 = tpu.matmul %6, %8, %cst {dimension_numbers = #tpu.dot_dimension_numbers<[1], [0], [0], [1], [0, 0, 1, 1], [], []>} : vector<16x32xbf16>, vector<32x96xbf16>, vector<16x96xf32> -> vector<16x96xf32>
    %c0_11 = arith.constant 0 : index
    %c0_12 = arith.constant 0 : index
    %c0_13 = arith.constant 0 : index
    %10 = vector.load %arg4[%c0_11, %c0_12, %c0_13] : memref<2x1x96xf32, #tpu.memory_space<vmem>>, vector<1x1x96xf32>
    %11 = vector.shape_cast %10 : vector<1x1x96xf32> to vector<1x96xf32>
    %12 = vector.broadcast %11 : vector<1x96xf32> to vector<16x96xf32>
    %13 = arith.addf %9, %12 : vector<16x96xf32>
    %14 = vector.shape_cast %13 : vector<16x96xf32> to vector<2x8x96xf32>
    %15 = arith.truncf %14 : vector<2x8x96xf32> to vector<2x8x96xbf16>
    %16 = vector.extract_strided_slice %15 {offsets = [0, 0, 0], sizes = [2, 8, 8], strides = [1, 1, 1]} : vector<2x8x96xbf16> to vector<2x8x8xbf16>
    %17 = vector.extract_strided_slice %15 {offsets = [0, 0, 8], sizes = [2, 8, 8], strides = [1, 1, 1]} : vector<2x8x96xbf16> to vector<2x8x8xbf16>
    %18 = vector.extract_strided_slice %15 {offsets = [0, 0, 16], sizes = [2, 8, 8], strides = [1, 1, 1]} : vector<2x8x96xbf16> to vector<2x8x8xbf16>
    %19 = vector.extract_strided_slice %15 {offsets = [0, 0, 24], sizes = [2, 8, 8], strides = [1, 1, 1]} : vector<2x8x96xbf16> to vector<2x8x8xbf16>
    %20 = tpu.concatenate %16, %17, %18, %19 in 0 : vector<2x8x8xbf16>, vector<2x8x8xbf16>, vector<2x8x8xbf16>, vector<2x8x8xbf16> -> vector<8x8x8xbf16>
    %21 = vector.extract_strided_slice %15 {offsets = [0, 0, 32], sizes = [2, 8, 8], strides = [1, 1, 1]} : vector<2x8x96xbf16> to vector<2x8x8xbf16>
    %22 = vector.extract_strided_slice %15 {offsets = [0, 0, 40], sizes = [2, 8, 8], strides = [1, 1, 1]} : vector<2x8x96xbf16> to vector<2x8x8xbf16>
    %23 = vector.extract_strided_slice %15 {offsets = [0, 0, 48], sizes = [2, 8, 8], strides = [1, 1, 1]} : vector<2x8x96xbf16> to vector<2x8x8xbf16>
    %24 = vector.extract_strided_slice %15 {offsets = [0, 0, 56], sizes = [2, 8, 8], strides = [1, 1, 1]} : vector<2x8x96xbf16> to vector<2x8x8xbf16>
    %25 = tpu.concatenate %21, %22, %23, %24 in 0 : vector<2x8x8xbf16>, vector<2x8x8xbf16>, vector<2x8x8xbf16>, vector<2x8x8xbf16> -> vector<8x8x8xbf16>
    %26 = vector.extract_strided_slice %15 {offsets = [0, 0, 64], sizes = [2, 8, 8], strides = [1, 1, 1]} : vector<2x8x96xbf16> to vector<2x8x8xbf16>
    %27 = vector.extract_strided_slice %15 {offsets = [0, 0, 72], sizes = [2, 8, 8], strides = [1, 1, 1]} : vector<2x8x96xbf16> to vector<2x8x8xbf16>
    %28 = vector.extract_strided_slice %15 {offsets = [0, 0, 80], sizes = [2, 8, 8], strides = [1, 1, 1]} : vector<2x8x96xbf16> to vector<2x8x8xbf16>
    %29 = vector.extract_strided_slice %15 {offsets = [0, 0, 88], sizes = [2, 8, 8], strides = [1, 1, 1]} : vector<2x8x96xbf16> to vector<2x8x8xbf16>
    %30 = tpu.concatenate %26, %27, %28, %29 in 0 : vector<2x8x8xbf16>, vector<2x8x8xbf16>, vector<2x8x8xbf16>, vector<2x8x8xbf16> -> vector<8x8x8xbf16>
    "tpu.trace_start"() <{level = 10 : i32, message = "bqd,bkd->bqk"}> : () -> ()
    %cst_14 = arith.constant dense<0.000000e+00> : vector<8x8x8xf32>
    %31 = tpu.matmul %20, %25, %cst_14 {dimension_numbers = #tpu.dot_dimension_numbers<[2], [2], [1], [1], [0, 0, 0, 1, 1, 1], [0], [0]>} : vector<8x8x8xbf16>, vector<8x8x8xbf16>, vector<8x8x8xf32> -> vector<8x8x8xf32>
    "tpu.trace_stop"() : () -> ()
    %cst_15 = arith.constant 0.353553385 : f32
    %32 = vector.broadcast %cst_15 : f32 to vector<8x8x8xf32>
    %33 = arith.mulf %31, %32 : vector<8x8x8xf32>
    %34 = vector.broadcast %1 : vector<8x1x8xf32> to vector<8x8x8xf32>
    %35 = arith.addf %33, %34 : vector<8x8x8xf32>
    %cst_16 = arith.constant dense<0xFF800000> : vector<8x8xf32>
    %36 = vector.multi_reduction <maximumf>, %35, %cst_16 [2] : vector<8x8x8xf32> to vector<8x8xf32>
    %37 = vector.shape_cast %36 : vector<8x8xf32> to vector<8x8x1xf32>
    %38 = vector.broadcast %37 : vector<8x8x1xf32> to vector<8x8x8xf32>
    %39 = arith.subf %35, %38 : vector<8x8x8xf32>
    %40 = math.exp %39 : vector<8x8x8xf32>
    %cst_17 = arith.constant dense<0.000000e+00> : vector<8x8xf32>
    %41 = vector.multi_reduction <add>, %40, %cst_17 [2] : vector<8x8x8xf32> to vector<8x8xf32>
    %42 = vector.shape_cast %41 : vector<8x8xf32> to vector<8x8x1xf32>
    %43 = tpu.reciprocal %42 {approx = true} : vector<8x8x1xf32> -> vector<8x8x1xf32>
    %44 = vector.broadcast %43 : vector<8x8x1xf32> to vector<8x8x8xf32>
    %45 = arith.mulf %40, %44 : vector<8x8x8xf32>
    %46 = arith.truncf %45 : vector<8x8x8xf32> to vector<8x8x8xbf16>
    "tpu.trace_start"() <{level = 10 : i32, message = "bqk,bkd->bqd"}> : () -> ()
    %cst_18 = arith.constant dense<0.000000e+00> : vector<8x8x8xf32>
    %47 = tpu.matmul %46, %30, %cst_18 {dimension_numbers = #tpu.dot_dimension_numbers<[2], [1], [1], [2], [0, 0, 0, 1, 1, 2], [0], [0]>} : vector<8x8x8xbf16>, vector<8x8x8xbf16>, vector<8x8x8xf32> -> vector<8x8x8xf32>
    "tpu.trace_stop"() : () -> ()
    %48 = vector.extract_strided_slice %47 {offsets = [0, 0, 0], sizes = [2, 8, 8], strides = [1, 1, 1]} : vector<8x8x8xf32> to vector<2x8x8xf32>
    %49 = vector.shape_cast %48 : vector<2x8x8xf32> to vector<16x8xf32>
    %50 = vector.extract_strided_slice %47 {offsets = [2, 0, 0], sizes = [2, 8, 8], strides = [1, 1, 1]} : vector<8x8x8xf32> to vector<2x8x8xf32>
    %51 = vector.shape_cast %50 : vector<2x8x8xf32> to vector<16x8xf32>
    %52 = vector.extract_strided_slice %47 {offsets = [4, 0, 0], sizes = [2, 8, 8], strides = [1, 1, 1]} : vector<8x8x8xf32> to vector<2x8x8xf32>
    %53 = vector.shape_cast %52 : vector<2x8x8xf32> to vector<16x8xf32>
    %54 = vector.extract_strided_slice %47 {offsets = [6, 0, 0], sizes = [2, 8, 8], strides = [1, 1, 1]} : vector<8x8x8xf32> to vector<2x8x8xf32>
    %55 = vector.shape_cast %54 : vector<2x8x8xf32> to vector<16x8xf32>
    %56 = tpu.concatenate %49, %51, %53, %55 in 1 : vector<16x8xf32>, vector<16x8xf32>, vector<16x8xf32>, vector<16x8xf32> -> vector<16x32xf32>
    %57 = arith.truncf %56 : vector<16x32xf32> to vector<16x32xbf16>
    %c0_19 = arith.constant 0 : index
    %c0_20 = arith.constant 0 : index
    %c0_21 = arith.constant 0 : index
    %58 = vector.load %arg5[%c0_19, %c0_20, %c0_21] : memref<2x32x32xbf16, #tpu.memory_space<vmem>>, vector<1x32x32xbf16>
    %59 = vector.shape_cast %58 : vector<1x32x32xbf16> to vector<32x32xbf16>
    %cst_22 = arith.constant dense<0.000000e+00> : vector<16x32xf32>
    %60 = tpu.matmul %57, %59, %cst_22 {dimension_numbers = #tpu.dot_dimension_numbers<[1], [0], [0], [1], [0, 0, 1, 1], [], []>} : vector<16x32xbf16>, vector<32x32xbf16>, vector<16x32xf32> -> vector<16x32xf32>
    %61 = vector.extract_strided_slice %5 {offsets = [0, 0], sizes = [1, 32], strides = [1, 1]} : vector<8x32xf32> to vector<1x32xf32>
    %62 = vector.broadcast %61 : vector<1x32xf32> to vector<16x32xf32>
    %63 = arith.addf %60, %62 : vector<16x32xf32>
    %64 = arith.addf %3, %63 : vector<16x32xf32>
    %65 = vector.extract_strided_slice %5 {offsets = [1, 0], sizes = [1, 32], strides = [1, 1]} : vector<8x32xf32> to vector<1x32xf32>
    %66 = vector.extract_strided_slice %5 {offsets = [2, 0], sizes = [1, 32], strides = [1, 1]} : vector<8x32xf32> to vector<1x32xf32>
    %cst_23 = arith.constant dense<0.000000e+00> : vector<16xf32>
    %67 = vector.multi_reduction <add>, %64, %cst_23 [1] : vector<16x32xf32> to vector<16xf32>
    %68 = vector.shape_cast %67 : vector<16xf32> to vector<16x1xf32>
    %cst_24 = arith.constant 3.200000e+01 : f32
    %69 = vector.broadcast %cst_24 : f32 to vector<16x1xf32>
    %70 = arith.divf %68, %69 : vector<16x1xf32>
    %71 = vector.broadcast %70 : vector<16x1xf32> to vector<16x32xf32>
    %72 = arith.subf %64, %71 : vector<16x32xf32>
    %73 = arith.mulf %72, %72 : vector<16x32xf32>
    %cst_25 = arith.constant dense<0.000000e+00> : vector<16xf32>
    %74 = vector.multi_reduction <add>, %73, %cst_25 [1] : vector<16x32xf32> to vector<16xf32>
    %75 = vector.shape_cast %74 : vector<16xf32> to vector<16x1xf32>
    %cst_26 = arith.constant 3.200000e+01 : f32
    %76 = vector.broadcast %cst_26 : f32 to vector<16x1xf32>
    %77 = arith.divf %75, %76 : vector<16x1xf32>
    %78 = vector.broadcast %70 : vector<16x1xf32> to vector<16x32xf32>
    %79 = arith.subf %64, %78 : vector<16x32xf32>
    %cst_27 = arith.constant 9.99999974E-6 : f32
    %80 = vector.broadcast %cst_27 : f32 to vector<16x1xf32>
    %81 = arith.addf %77, %80 : vector<16x1xf32>
    %82 = math.rsqrt %81 : vector<16x1xf32>
    %83 = vector.broadcast %82 : vector<16x1xf32> to vector<16x32xf32>
    %84 = arith.mulf %79, %83 : vector<16x32xf32>
    %85 = vector.broadcast %65 : vector<1x32xf32> to vector<16x32xf32>
    %86 = arith.mulf %84, %85 : vector<16x32xf32>
    %87 = vector.broadcast %66 : vector<1x32xf32> to vector<16x32xf32>
    %88 = arith.addf %86, %87 : vector<16x32xf32>
    %89 = arith.truncf %88 : vector<16x32xf32> to vector<16x32xbf16>
    %c0_28 = arith.constant 0 : index
    %c0_29 = arith.constant 0 : index
    %c0_30 = arith.constant 0 : index
    %90 = vector.load %arg7[%c0_28, %c0_29, %c0_30] : memref<2x32x2048xbf16, #tpu.memory_space<vmem>>, vector<1x32x2048xbf16>
    %91 = vector.shape_cast %90 : vector<1x32x2048xbf16> to vector<32x2048xbf16>
    %cst_31 = arith.constant dense<0.000000e+00> : vector<16x2048xf32>
    %92 = tpu.matmul %89, %91, %cst_31 {dimension_numbers = #tpu.dot_dimension_numbers<[1], [0], [0], [1], [0, 0, 1, 1], [], []>} : vector<16x32xbf16>, vector<32x2048xbf16>, vector<16x2048xf32> -> vector<16x2048xf32>
    %c0_32 = arith.constant 0 : index
    %c0_33 = arith.constant 0 : index
    %c0_34 = arith.constant 0 : index
    %93 = vector.load %arg8[%c0_32, %c0_33, %c0_34] : memref<2x1x2048xf32, #tpu.memory_space<vmem>>, vector<1x1x2048xf32>
    %94 = vector.shape_cast %93 : vector<1x1x2048xf32> to vector<1x2048xf32>
    %95 = vector.broadcast %94 : vector<1x2048xf32> to vector<16x2048xf32>
    %96 = arith.addf %92, %95 : vector<16x2048xf32>
    %cst_35 = arith.constant 0.000000e+00 : f32
    %97 = vector.broadcast %cst_35 : f32 to vector<16x2048xf32>
    %98 = arith.maximumf %96, %97 : vector<16x2048xf32>
    %99 = arith.truncf %98 : vector<16x2048xf32> to vector<16x2048xbf16>
    %c0_36 = arith.constant 0 : index
    %c0_37 = arith.constant 0 : index
    %c0_38 = arith.constant 0 : index
    %100 = vector.load %arg9[%c0_36, %c0_37, %c0_38] : memref<2x2048x32xbf16, #tpu.memory_space<vmem>>, vector<1x2048x32xbf16>
    %101 = vector.shape_cast %100 : vector<1x2048x32xbf16> to vector<2048x32xbf16>
    %cst_39 = arith.constant dense<0.000000e+00> : vector<16x32xf32>
    %102 = tpu.matmul %99, %101, %cst_39 {dimension_numbers = #tpu.dot_dimension_numbers<[1], [0], [0], [1], [0, 0, 1, 1], [], []>} : vector<16x2048xbf16>, vector<2048x32xbf16>, vector<16x32xf32> -> vector<16x32xf32>
    %103 = vector.extract_strided_slice %5 {offsets = [3, 0], sizes = [1, 32], strides = [1, 1]} : vector<8x32xf32> to vector<1x32xf32>
    %104 = vector.broadcast %103 : vector<1x32xf32> to vector<16x32xf32>
    %105 = arith.addf %102, %104 : vector<16x32xf32>
    %106 = arith.addf %88, %105 : vector<16x32xf32>
    %107 = vector.extract_strided_slice %5 {offsets = [4, 0], sizes = [1, 32], strides = [1, 1]} : vector<8x32xf32> to vector<1x32xf32>
    %108 = vector.extract_strided_slice %5 {offsets = [5, 0], sizes = [1, 32], strides = [1, 1]} : vector<8x32xf32> to vector<1x32xf32>
    %cst_40 = arith.constant dense<0.000000e+00> : vector<16xf32>
    %109 = vector.multi_reduction <add>, %106, %cst_40 [1] : vector<16x32xf32> to vector<16xf32>
    %110 = vector.shape_cast %109 : vector<16xf32> to vector<16x1xf32>
    %cst_41 = arith.constant 3.200000e+01 : f32
    %111 = vector.broadcast %cst_41 : f32 to vector<16x1xf32>
    %112 = arith.divf %110, %111 : vector<16x1xf32>
    %113 = vector.broadcast %112 : vector<16x1xf32> to vector<16x32xf32>
    %114 = arith.subf %106, %113 : vector<16x32xf32>
    %115 = arith.mulf %114, %114 : vector<16x32xf32>
    %cst_42 = arith.constant dense<0.000000e+00> : vector<16xf32>
    %116 = vector.multi_reduction <add>, %115, %cst_42 [1] : vector<16x32xf32> to vector<16xf32>
    %117 = vector.shape_cast %116 : vector<16xf32> to vector<16x1xf32>
    %cst_43 = arith.constant 3.200000e+01 : f32
    %118 = vector.broadcast %cst_43 : f32 to vector<16x1xf32>
    %119 = arith.divf %117, %118 : vector<16x1xf32>
    %120 = vector.broadcast %112 : vector<16x1xf32> to vector<16x32xf32>
    %121 = arith.subf %106, %120 : vector<16x32xf32>
    %cst_44 = arith.constant 9.99999974E-6 : f32
    %122 = vector.broadcast %cst_44 : f32 to vector<16x1xf32>
    %123 = arith.addf %119, %122 : vector<16x1xf32>
    %124 = math.rsqrt %123 : vector<16x1xf32>
    %125 = vector.broadcast %124 : vector<16x1xf32> to vector<16x32xf32>
    %126 = arith.mulf %121, %125 : vector<16x32xf32>
    %127 = vector.broadcast %107 : vector<1x32xf32> to vector<16x32xf32>
    %128 = arith.mulf %126, %127 : vector<16x32xf32>
    %129 = vector.broadcast %108 : vector<1x32xf32> to vector<16x32xf32>
    %130 = arith.addf %128, %129 : vector<16x32xf32>
    %c1 = arith.constant 1 : index
    %c0_45 = arith.constant 0 : index
    %c0_46 = arith.constant 0 : index
    %131 = vector.load %arg6[%c1, %c0_45, %c0_46] : memref<2x8x32xf32, #tpu.memory_space<vmem>>, vector<1x8x32xf32>
    %132 = vector.shape_cast %131 : vector<1x8x32xf32> to vector<8x32xf32>
    %133 = arith.truncf %130 : vector<16x32xf32> to vector<16x32xbf16>
    %c1_47 = arith.constant 1 : index
    %c0_48 = arith.constant 0 : index
    %c0_49 = arith.constant 0 : index
    %134 = vector.load %arg3[%c1_47, %c0_48, %c0_49] : memref<2x32x96xbf16, #tpu.memory_space<vmem>>, vector<1x32x96xbf16>
    %135 = vector.shape_cast %134 : vector<1x32x96xbf16> to vector<32x96xbf16>
    %cst_50 = arith.constant dense<0.000000e+00> : vector<16x96xf32>
    %136 = tpu.matmul %133, %135, %cst_50 {dimension_numbers = #tpu.dot_dimension_numbers<[1], [0], [0], [1], [0, 0, 1, 1], [], []>} : vector<16x32xbf16>, vector<32x96xbf16>, vector<16x96xf32> -> vector<16x96xf32>
    %c1_51 = arith.constant 1 : index
    %c0_52 = arith.constant 0 : index
    %c0_53 = arith.constant 0 : index
    %137 = vector.load %arg4[%c1_51, %c0_52, %c0_53] : memref<2x1x96xf32, #tpu.memory_space<vmem>>, vector<1x1x96xf32>
    %138 = vector.shape_cast %137 : vector<1x1x96xf32> to vector<1x96xf32>
    %139 = vector.broadcast %138 : vector<1x96xf32> to vector<16x96xf32>
    %140 = arith.addf %136, %139 : vector<16x96xf32>
    %141 = vector.shape_cast %140 : vector<16x96xf32> to vector<2x8x96xf32>
    %142 = arith.truncf %141 : vector<2x8x96xf32> to vector<2x8x96xbf16>
    %143 = vector.extract_strided_slice %142 {offsets = [0, 0, 0], sizes = [2, 8, 8], strides = [1, 1, 1]} : vector<2x8x96xbf16> to vector<2x8x8xbf16>
    %144 = vector.extract_strided_slice %142 {offsets = [0, 0, 8], sizes = [2, 8, 8], strides = [1, 1, 1]} : vector<2x8x96xbf16> to vector<2x8x8xbf16>
    %145 = vector.extract_strided_slice %142 {offsets = [0, 0, 16], sizes = [2, 8, 8], strides = [1, 1, 1]} : vector<2x8x96xbf16> to vector<2x8x8xbf16>
    %146 = vector.extract_strided_slice %142 {offsets = [0, 0, 24], sizes = [2, 8, 8], strides = [1, 1, 1]} : vector<2x8x96xbf16> to vector<2x8x8xbf16>
    %147 = tpu.concatenate %143, %144, %145, %146 in 0 : vector<2x8x8xbf16>, vector<2x8x8xbf16>, vector<2x8x8xbf16>, vector<2x8x8xbf16> -> vector<8x8x8xbf16>
    %148 = vector.extract_strided_slice %142 {offsets = [0, 0, 32], sizes = [2, 8, 8], strides = [1, 1, 1]} : vector<2x8x96xbf16> to vector<2x8x8xbf16>
    %149 = vector.extract_strided_slice %142 {offsets = [0, 0, 40], sizes = [2, 8, 8], strides = [1, 1, 1]} : vector<2x8x96xbf16> to vector<2x8x8xbf16>
    %150 = vector.extract_strided_slice %142 {offsets = [0, 0, 48], sizes = [2, 8, 8], strides = [1, 1, 1]} : vector<2x8x96xbf16> to vector<2x8x8xbf16>
    %151 = vector.extract_strided_slice %142 {offsets = [0, 0, 56], sizes = [2, 8, 8], strides = [1, 1, 1]} : vector<2x8x96xbf16> to vector<2x8x8xbf16>
    %152 = tpu.concatenate %148, %149, %150, %151 in 0 : vector<2x8x8xbf16>, vector<2x8x8xbf16>, vector<2x8x8xbf16>, vector<2x8x8xbf16> -> vector<8x8x8xbf16>
    %153 = vector.extract_strided_slice %142 {offsets = [0, 0, 64], sizes = [2, 8, 8], strides = [1, 1, 1]} : vector<2x8x96xbf16> to vector<2x8x8xbf16>
    %154 = vector.extract_strided_slice %142 {offsets = [0, 0, 72], sizes = [2, 8, 8], strides = [1, 1, 1]} : vector<2x8x96xbf16> to vector<2x8x8xbf16>
    %155 = vector.extract_strided_slice %142 {offsets = [0, 0, 80], sizes = [2, 8, 8], strides = [1, 1, 1]} : vector<2x8x96xbf16> to vector<2x8x8xbf16>
    %156 = vector.extract_strided_slice %142 {offsets = [0, 0, 88], sizes = [2, 8, 8], strides = [1, 1, 1]} : vector<2x8x96xbf16> to vector<2x8x8xbf16>
    %157 = tpu.concatenate %153, %154, %155, %156 in 0 : vector<2x8x8xbf16>, vector<2x8x8xbf16>, vector<2x8x8xbf16>, vector<2x8x8xbf16> -> vector<8x8x8xbf16>
    "tpu.trace_start"() <{level = 10 : i32, message = "bqd,bkd->bqk"}> : () -> ()
    %cst_54 = arith.constant dense<0.000000e+00> : vector<8x8x8xf32>
    %158 = tpu.matmul %147, %152, %cst_54 {dimension_numbers = #tpu.dot_dimension_numbers<[2], [2], [1], [1], [0, 0, 0, 1, 1, 1], [0], [0]>} : vector<8x8x8xbf16>, vector<8x8x8xbf16>, vector<8x8x8xf32> -> vector<8x8x8xf32>
    "tpu.trace_stop"() : () -> ()
    %cst_55 = arith.constant 0.353553385 : f32
    %159 = vector.broadcast %cst_55 : f32 to vector<8x8x8xf32>
    %160 = arith.mulf %158, %159 : vector<8x8x8xf32>
    %161 = vector.broadcast %1 : vector<8x1x8xf32> to vector<8x8x8xf32>
    %162 = arith.addf %160, %161 : vector<8x8x8xf32>
    %cst_56 = arith.constant dense<0xFF800000> : vector<8x8xf32>
    %163 = vector.multi_reduction <maximumf>, %162, %cst_56 [2] : vector<8x8x8xf32> to vector<8x8xf32>
    %164 = vector.shape_cast %163 : vector<8x8xf32> to vector<8x8x1xf32>
    %165 = vector.broadcast %164 : vector<8x8x1xf32> to vector<8x8x8xf32>
    %166 = arith.subf %162, %165 : vector<8x8x8xf32>
    %167 = math.exp %166 : vector<8x8x8xf32>
    %cst_57 = arith.constant dense<0.000000e+00> : vector<8x8xf32>
    %168 = vector.multi_reduction <add>, %167, %cst_57 [2] : vector<8x8x8xf32> to vector<8x8xf32>
    %169 = vector.shape_cast %168 : vector<8x8xf32> to vector<8x8x1xf32>
    %170 = tpu.reciprocal %169 {approx = true} : vector<8x8x1xf32> -> vector<8x8x1xf32>
    %171 = vector.broadcast %170 : vector<8x8x1xf32> to vector<8x8x8xf32>
    %172 = arith.mulf %167, %171 : vector<8x8x8xf32>
    %173 = arith.truncf %172 : vector<8x8x8xf32> to vector<8x8x8xbf16>
    "tpu.trace_start"() <{level = 10 : i32, message = "bqk,bkd->bqd"}> : () -> ()
    %cst_58 = arith.constant dense<0.000000e+00> : vector<8x8x8xf32>
    %174 = tpu.matmul %173, %157, %cst_58 {dimension_numbers = #tpu.dot_dimension_numbers<[2], [1], [1], [2], [0, 0, 0, 1, 1, 2], [0], [0]>} : vector<8x8x8xbf16>, vector<8x8x8xbf16>, vector<8x8x8xf32> -> vector<8x8x8xf32>
    "tpu.trace_stop"() : () -> ()
    %175 = vector.extract_strided_slice %174 {offsets = [0, 0, 0], sizes = [2, 8, 8], strides = [1, 1, 1]} : vector<8x8x8xf32> to vector<2x8x8xf32>
    %176 = vector.shape_cast %175 : vector<2x8x8xf32> to vector<16x8xf32>
    %177 = vector.extract_strided_slice %174 {offsets = [2, 0, 0], sizes = [2, 8, 8], strides = [1, 1, 1]} : vector<8x8x8xf32> to vector<2x8x8xf32>
    %178 = vector.shape_cast %177 : vector<2x8x8xf32> to vector<16x8xf32>
    %179 = vector.extract_strided_slice %174 {offsets = [4, 0, 0], sizes = [2, 8, 8], strides = [1, 1, 1]} : vector<8x8x8xf32> to vector<2x8x8xf32>
    %180 = vector.shape_cast %179 : vector<2x8x8xf32> to vector<16x8xf32>
    %181 = vector.extract_strided_slice %174 {offsets = [6, 0, 0], sizes = [2, 8, 8], strides = [1, 1, 1]} : vector<8x8x8xf32> to vector<2x8x8xf32>
    %182 = vector.shape_cast %181 : vector<2x8x8xf32> to vector<16x8xf32>
    %183 = tpu.concatenate %176, %178, %180, %182 in 1 : vector<16x8xf32>, vector<16x8xf32>, vector<16x8xf32>, vector<16x8xf32> -> vector<16x32xf32>
    %184 = arith.truncf %183 : vector<16x32xf32> to vector<16x32xbf16>
    %c1_59 = arith.constant 1 : index
    %c0_60 = arith.constant 0 : index
    %c0_61 = arith.constant 0 : index
    %185 = vector.load %arg5[%c1_59, %c0_60, %c0_61] : memref<2x32x32xbf16, #tpu.memory_space<vmem>>, vector<1x32x32xbf16>
    %186 = vector.shape_cast %185 : vector<1x32x32xbf16> to vector<32x32xbf16>
    %cst_62 = arith.constant dense<0.000000e+00> : vector<16x32xf32>
    %187 = tpu.matmul %184, %186, %cst_62 {dimension_numbers = #tpu.dot_dimension_numbers<[1], [0], [0], [1], [0, 0, 1, 1], [], []>} : vector<16x32xbf16>, vector<32x32xbf16>, vector<16x32xf32> -> vector<16x32xf32>
    %188 = vector.extract_strided_slice %132 {offsets = [0, 0], sizes = [1, 32], strides = [1, 1]} : vector<8x32xf32> to vector<1x32xf32>
    %189 = vector.broadcast %188 : vector<1x32xf32> to vector<16x32xf32>
    %190 = arith.addf %187, %189 : vector<16x32xf32>
    %191 = arith.addf %130, %190 : vector<16x32xf32>
    %192 = vector.extract_strided_slice %132 {offsets = [1, 0], sizes = [1, 32], strides = [1, 1]} : vector<8x32xf32> to vector<1x32xf32>
    %193 = vector.extract_strided_slice %132 {offsets = [2, 0], sizes = [1, 32], strides = [1, 1]} : vector<8x32xf32> to vector<1x32xf32>
    %cst_63 = arith.constant dense<0.000000e+00> : vector<16xf32>
    %194 = vector.multi_reduction <add>, %191, %cst_63 [1] : vector<16x32xf32> to vector<16xf32>
    %195 = vector.shape_cast %194 : vector<16xf32> to vector<16x1xf32>
    %cst_64 = arith.constant 3.200000e+01 : f32
    %196 = vector.broadcast %cst_64 : f32 to vector<16x1xf32>
    %197 = arith.divf %195, %196 : vector<16x1xf32>
    %198 = vector.broadcast %197 : vector<16x1xf32> to vector<16x32xf32>
    %199 = arith.subf %191, %198 : vector<16x32xf32>
    %200 = arith.mulf %199, %199 : vector<16x32xf32>
    %cst_65 = arith.constant dense<0.000000e+00> : vector<16xf32>
    %201 = vector.multi_reduction <add>, %200, %cst_65 [1] : vector<16x32xf32> to vector<16xf32>
    %202 = vector.shape_cast %201 : vector<16xf32> to vector<16x1xf32>
    %cst_66 = arith.constant 3.200000e+01 : f32
    %203 = vector.broadcast %cst_66 : f32 to vector<16x1xf32>
    %204 = arith.divf %202, %203 : vector<16x1xf32>
    %205 = vector.broadcast %197 : vector<16x1xf32> to vector<16x32xf32>
    %206 = arith.subf %191, %205 : vector<16x32xf32>
    %cst_67 = arith.constant 9.99999974E-6 : f32
    %207 = vector.broadcast %cst_67 : f32 to vector<16x1xf32>
    %208 = arith.addf %204, %207 : vector<16x1xf32>
    %209 = math.rsqrt %208 : vector<16x1xf32>
    %210 = vector.broadcast %209 : vector<16x1xf32> to vector<16x32xf32>
    %211 = arith.mulf %206, %210 : vector<16x32xf32>
    %212 = vector.broadcast %192 : vector<1x32xf32> to vector<16x32xf32>
    %213 = arith.mulf %211, %212 : vector<16x32xf32>
    %214 = vector.broadcast %193 : vector<1x32xf32> to vector<16x32xf32>
    %215 = arith.addf %213, %214 : vector<16x32xf32>
    %216 = arith.truncf %215 : vector<16x32xf32> to vector<16x32xbf16>
    %c1_68 = arith.constant 1 : index
    %c0_69 = arith.constant 0 : index
    %c0_70 = arith.constant 0 : index
    %217 = vector.load %arg7[%c1_68, %c0_69, %c0_70] : memref<2x32x2048xbf16, #tpu.memory_space<vmem>>, vector<1x32x2048xbf16>
    %218 = vector.shape_cast %217 : vector<1x32x2048xbf16> to vector<32x2048xbf16>
    %cst_71 = arith.constant dense<0.000000e+00> : vector<16x2048xf32>
    %219 = tpu.matmul %216, %218, %cst_71 {dimension_numbers = #tpu.dot_dimension_numbers<[1], [0], [0], [1], [0, 0, 1, 1], [], []>} : vector<16x32xbf16>, vector<32x2048xbf16>, vector<16x2048xf32> -> vector<16x2048xf32>
    %c1_72 = arith.constant 1 : index
    %c0_73 = arith.constant 0 : index
    %c0_74 = arith.constant 0 : index
    %220 = vector.load %arg8[%c1_72, %c0_73, %c0_74] : memref<2x1x2048xf32, #tpu.memory_space<vmem>>, vector<1x1x2048xf32>
    %221 = vector.shape_cast %220 : vector<1x1x2048xf32> to vector<1x2048xf32>
    %222 = vector.broadcast %221 : vector<1x2048xf32> to vector<16x2048xf32>
    %223 = arith.addf %219, %222 : vector<16x2048xf32>
    %cst_75 = arith.constant 0.000000e+00 : f32
    %224 = vector.broadcast %cst_75 : f32 to vector<16x2048xf32>
    %225 = arith.maximumf %223, %224 : vector<16x2048xf32>
    %226 = arith.truncf %225 : vector<16x2048xf32> to vector<16x2048xbf16>
    %c1_76 = arith.constant 1 : index
    %c0_77 = arith.constant 0 : index
    %c0_78 = arith.constant 0 : index
    %227 = vector.load %arg9[%c1_76, %c0_77, %c0_78] : memref<2x2048x32xbf16, #tpu.memory_space<vmem>>, vector<1x2048x32xbf16>
    %228 = vector.shape_cast %227 : vector<1x2048x32xbf16> to vector<2048x32xbf16>
    %cst_79 = arith.constant dense<0.000000e+00> : vector<16x32xf32>
    %229 = tpu.matmul %226, %228, %cst_79 {dimension_numbers = #tpu.dot_dimension_numbers<[1], [0], [0], [1], [0, 0, 1, 1], [], []>} : vector<16x2048xbf16>, vector<2048x32xbf16>, vector<16x32xf32> -> vector<16x32xf32>
    %230 = vector.extract_strided_slice %132 {offsets = [3, 0], sizes = [1, 32], strides = [1, 1]} : vector<8x32xf32> to vector<1x32xf32>
    %231 = vector.broadcast %230 : vector<1x32xf32> to vector<16x32xf32>
    %232 = arith.addf %229, %231 : vector<16x32xf32>
    %233 = arith.addf %215, %232 : vector<16x32xf32>
    %234 = vector.extract_strided_slice %132 {offsets = [4, 0], sizes = [1, 32], strides = [1, 1]} : vector<8x32xf32> to vector<1x32xf32>
    %235 = vector.extract_strided_slice %132 {offsets = [5, 0], sizes = [1, 32], strides = [1, 1]} : vector<8x32xf32> to vector<1x32xf32>
    %cst_80 = arith.constant dense<0.000000e+00> : vector<16xf32>
    %236 = vector.multi_reduction <add>, %233, %cst_80 [1] : vector<16x32xf32> to vector<16xf32>
    %237 = vector.shape_cast %236 : vector<16xf32> to vector<16x1xf32>
    %cst_81 = arith.constant 3.200000e+01 : f32
    %238 = vector.broadcast %cst_81 : f32 to vector<16x1xf32>
    %239 = arith.divf %237, %238 : vector<16x1xf32>
    %240 = vector.broadcast %239 : vector<16x1xf32> to vector<16x32xf32>
    %241 = arith.subf %233, %240 : vector<16x32xf32>
    %242 = arith.mulf %241, %241 : vector<16x32xf32>
    %cst_82 = arith.constant dense<0.000000e+00> : vector<16xf32>
    %243 = vector.multi_reduction <add>, %242, %cst_82 [1] : vector<16x32xf32> to vector<16xf32>
    %244 = vector.shape_cast %243 : vector<16xf32> to vector<16x1xf32>
    %cst_83 = arith.constant 3.200000e+01 : f32
    %245 = vector.broadcast %cst_83 : f32 to vector<16x1xf32>
    %246 = arith.divf %244, %245 : vector<16x1xf32>
    %247 = vector.broadcast %239 : vector<16x1xf32> to vector<16x32xf32>
    %248 = arith.subf %233, %247 : vector<16x32xf32>
    %cst_84 = arith.constant 9.99999974E-6 : f32
    %249 = vector.broadcast %cst_84 : f32 to vector<16x1xf32>
    %250 = arith.addf %246, %249 : vector<16x1xf32>
    %251 = math.rsqrt %250 : vector<16x1xf32>
    %252 = vector.broadcast %251 : vector<16x1xf32> to vector<16x32xf32>
    %253 = arith.mulf %248, %252 : vector<16x32xf32>
    %254 = vector.broadcast %234 : vector<1x32xf32> to vector<16x32xf32>
    %255 = arith.mulf %253, %254 : vector<16x32xf32>
    %256 = vector.broadcast %235 : vector<1x32xf32> to vector<16x32xf32>
    %257 = arith.addf %255, %256 : vector<16x32xf32>
    %258 = arith.truncf %257 : vector<16x32xf32> to vector<16x32xbf16>
    %c0_85 = arith.constant 0 : index
    %c0_86 = arith.constant 0 : index
    %259 = vector.load %arg10[%c0_85, %c0_86] : memref<32x256xbf16, #tpu.memory_space<vmem>>, vector<32x256xbf16>
    %cst_87 = arith.constant dense<0.000000e+00> : vector<16x256xf32>
    %260 = tpu.matmul %258, %259, %cst_87 {dimension_numbers = #tpu.dot_dimension_numbers<[1], [0], [0], [1], [0, 0, 1, 1], [], []>} : vector<16x32xbf16>, vector<32x256xbf16>, vector<16x256xf32> -> vector<16x256xf32>
    %c0_88 = arith.constant 0 : index
    %c0_89 = arith.constant 0 : index
    %261 = vector.load %arg11[%c0_88, %c0_89] : memref<1x256xf32, #tpu.memory_space<vmem>>, vector<1x256xf32>
    %262 = vector.broadcast %261 : vector<1x256xf32> to vector<16x256xf32>
    %263 = arith.addf %260, %262 : vector<16x256xf32>
    %cst_90 = arith.constant 0.000000e+00 : f32
    %264 = vector.broadcast %cst_90 : f32 to vector<16x256xf32>
    %265 = arith.maximumf %263, %264 : vector<16x256xf32>
    %266 = arith.truncf %265 : vector<16x256xf32> to vector<16x256xbf16>
    %c0_91 = arith.constant 0 : index
    %c0_92 = arith.constant 0 : index
    %267 = vector.load %arg12[%c0_91, %c0_92] : memref<256x128xbf16, #tpu.memory_space<vmem>>, vector<256x128xbf16>
    %cst_93 = arith.constant dense<0.000000e+00> : vector<16x128xf32>
    %268 = tpu.matmul %266, %267, %cst_93 {dimension_numbers = #tpu.dot_dimension_numbers<[1], [0], [0], [1], [0, 0, 1, 1], [], []>} : vector<16x256xbf16>, vector<256x128xbf16>, vector<16x128xf32> -> vector<16x128xf32>
    %c0_94 = arith.constant 0 : index
    %c0_95 = arith.constant 0 : index
    %269 = vector.load %arg13[%c0_94, %c0_95] : memref<1x128xf32, #tpu.memory_space<vmem>>, vector<1x128xf32>
    %270 = vector.broadcast %269 : vector<1x128xf32> to vector<16x128xf32>
    %271 = arith.addf %268, %270 : vector<16x128xf32>
    %272 = vector.shape_cast %271 : vector<16x128xf32> to vector<2x8x128xf32>
    %273 = vector.extract_strided_slice %272 {offsets = [0, 0, 0], sizes = [2, 1, 128], strides = [1, 1, 1]} : vector<2x8x128xf32> to vector<2x1x128xf32>
    %c0_96 = arith.constant 0 : index
    %c0_97 = arith.constant 0 : index
    %c0_98 = arith.constant 0 : index
    %274 = vector.load %arg14[%c0_96, %c0_97, %c0_98] : memref<2x1x128xf32, #tpu.memory_space<vmem>>, vector<2x1x128xf32>
    tpu.vector_store %arg14[%c0_96, %c0_97, %c0_98], %273 {strides = array<i32>} : memref<2x1x128xf32, #tpu.memory_space<vmem>>, vector<2x1x128xf32>,
    return
  }
  func.func @transform_0(%arg0: i32) -> (i32, i32, i32) {
    %c0_i32 = arith.constant 0 : i32
    %c0_i32_0 = arith.constant 0 : i32
    %c0_i32_1 = arith.constant 0 : i32
    return %arg0, %c0_i32, %c0_i32_0 : i32, i32, i32
  }
  func.func @transform_1(%arg0: i32) -> (i32, i32, i32) {
    %c0_i32 = arith.constant 0 : i32
    %c0_i32_0 = arith.constant 0 : i32
    %c0_i32_1 = arith.constant 0 : i32
    return %arg0, %c0_i32, %c0_i32_0 : i32, i32, i32
  }
  func.func @transform_2(%arg0: i32) -> (i32, i32, i32) {
    %c0_i32 = arith.constant 0 : i32
    %c0_i32_0 = arith.constant 0 : i32
    %c0_i32_1 = arith.constant 0 : i32
    %c0_i32_2 = arith.constant 0 : i32
    return %c0_i32, %c0_i32_0, %c0_i32_1 : i32, i32, i32
  }
  func.func @transform_3(%arg0: i32) -> (i32, i32, i32) {
    %c0_i32 = arith.constant 0 : i32
    %c0_i32_0 = arith.constant 0 : i32
    %c0_i32_1 = arith.constant 0 : i32
    %c0_i32_2 = arith.constant 0 : i32
    return %c0_i32, %c0_i32_0, %c0_i32_1 : i32, i32, i32
  }
  func.func @transform_4(%arg0: i32) -> (i32, i32, i32) {
    %c0_i32 = arith.constant 0 : i32
    %c0_i32_0 = arith.constant 0 : i32
    %c0_i32_1 = arith.constant 0 : i32
    %c0_i32_2 = arith.constant 0 : i32
    return %c0_i32, %c0_i32_0, %c0_i32_1 : i32, i32, i32
  }
  func.func @transform_5(%arg0: i32) -> (i32, i32, i32) {
    %c0_i32 = arith.constant 0 : i32
    %c0_i32_0 = arith.constant 0 : i32
    %c0_i32_1 = arith.constant 0 : i32
    %c0_i32_2 = arith.constant 0 : i32
    return %c0_i32, %c0_i32_0, %c0_i32_1 : i32, i32, i32
  }
  func.func @transform_6(%arg0: i32) -> (i32, i32, i32) {
    %c0_i32 = arith.constant 0 : i32
    %c0_i32_0 = arith.constant 0 : i32
    %c0_i32_1 = arith.constant 0 : i32
    %c0_i32_2 = arith.constant 0 : i32
    return %c0_i32, %c0_i32_0, %c0_i32_1 : i32, i32, i32
  }
  func.func @transform_7(%arg0: i32) -> (i32, i32, i32) {
    %c0_i32 = arith.constant 0 : i32
    %c0_i32_0 = arith.constant 0 : i32
    %c0_i32_1 = arith.constant 0 : i32
    %c0_i32_2 = arith.constant 0 : i32
    return %c0_i32, %c0_i32_0, %c0_i32_1 : i32, i32, i32
  }
  func.func @transform_8(%arg0: i32) -> (i32, i32, i32) {
    %c0_i32 = arith.constant 0 : i32
    %c0_i32_0 = arith.constant 0 : i32
    %c0_i32_1 = arith.constant 0 : i32
    %c0_i32_2 = arith.constant 0 : i32
    return %c0_i32, %c0_i32_0, %c0_i32_1 : i32, i32, i32
  }
  func.func @transform_9(%arg0: i32) -> (i32, i32) {
    %c0_i32 = arith.constant 0 : i32
    %c0_i32_0 = arith.constant 0 : i32
    %c0_i32_1 = arith.constant 0 : i32
    return %c0_i32, %c0_i32_0 : i32, i32
  }
  func.func @transform_10(%arg0: i32) -> (i32, i32) {
    %c0_i32 = arith.constant 0 : i32
    %c0_i32_0 = arith.constant 0 : i32
    %c0_i32_1 = arith.constant 0 : i32
    return %c0_i32, %c0_i32_0 : i32, i32
  }
  func.func @transform_11(%arg0: i32) -> (i32, i32) {
    %c0_i32 = arith.constant 0 : i32
    %c0_i32_0 = arith.constant 0 : i32
    %c0_i32_1 = arith.constant 0 : i32
    return %c0_i32, %c0_i32_0 : i32, i32
  }
  func.func @transform_12(%arg0: i32) -> (i32, i32) {
    %c0_i32 = arith.constant 0 : i32
    %c0_i32_0 = arith.constant 0 : i32
    %c0_i32_1 = arith.constant 0 : i32
    return %c0_i32, %c0_i32_0 : i32, i32
  }
  func.func @transform_13(%arg0: i32) -> (i32, i32, i32) {
    %c0_i32 = arith.constant 0 : i32
    %c0_i32_0 = arith.constant 0 : i32
    %c0_i32_1 = arith.constant 0 : i32
    return %arg0, %c0_i32, %c0_i32_0 : i32, i32, i32
  }
}

</mosaic_0001>

<llo_original>
// kernel: tpu_custom_call.1
$region0: #{tpu_custom_call.1}
  #allocation0 [shape = 'u32[]', space=smem, size = 0x4, offset = 0x4, fixed_abs, tag = 'smem constant byte address 0x4 - core index']
  #allocation1 [shape = 'u32[144,128]{1,0:T(1,128)}', space=vmem, size = 0x12000, scoped, tag = 'internal scratch']
  %s0 = inlined_call_operand.vmem [shape: f32[2,8,32], index: 0, kind: input, shape index: {}]
  %s1 = inlined_call_operand.vmem [shape: f32[2,1,8], index: 1, kind: input, shape index: {}]
  %s2 = inlined_call_operand.vmem [shape: bf16[2,32,96], index: 2, kind: input, shape index: {}]
  %s3 = inlined_call_operand.vmem [shape: f32[2,1,96], index: 3, kind: input, shape index: {}]
  %s4 = inlined_call_operand.vmem [shape: bf16[2,32,32], index: 4, kind: input, shape index: {}]
  %s5 = inlined_call_operand.vmem [shape: f32[2,8,32], index: 5, kind: input, shape index: {}]
  %s6 = inlined_call_operand.vmem [shape: bf16[2,32,2048], index: 6, kind: input, shape index: {}]
  %s7 = inlined_call_operand.vmem [shape: f32[2,1,2048], index: 7, kind: input, shape index: {}]
  %s8 = inlined_call_operand.vmem [shape: bf16[2,2048,32], index: 8, kind: input, shape index: {}]
  %s9 = inlined_call_operand.vmem [shape: bf16[32,256], index: 9, kind: input, shape index: {}]
  %s10 = inlined_call_operand.vmem [shape: f32[1,256], index: 10, kind: input, shape index: {}]
  %s11 = inlined_call_operand.vmem [shape: bf16[256,128], index: 11, kind: input, shape index: {}]
  %s12 = inlined_call_operand.vmem [shape: f32[1,128], index: 12, kind: input, shape index: {}]
  %s13 = inlined_call_operand.hbm [shape: f32[2,1,128], index: 13, kind: output, shape index: {}]
  %s14 = sld [smem:[#allocation0]]
  $region62: #{tpu_custom_call.1} parent=0
    _
  %s16 = ssub.s32 1, %s14
  %s17 = scalar_select 0, %s16, %s14
  $region1: #{tpu_custom_call.1} parent=0
    #allocation2 [shape = 'u8[1024]{0}', space=vmem, size = 0x400, scoped, tag = 'output window, operand 0, single buffered']
    #allocation3 [shape = 's32[1]{0}', space=sflag, size = 0x4, scoped, tag = 'scoped memory for tpu_custom_call.1']
    %18 = vsyncpa [#allocation3], 0
    // Predicated region
    $region2: #{tpu_custom_call.1} parent=1 // pred_check
      _
    $region3: #{tpu_custom_call.1} parent=1 // pred_check_branch
      %20 = sbr.rel (0) target = $region5
    $region4: #{tpu_custom_call.1} parent=1 // pred_region
      _
    $region5: #{tpu_custom_call.1} parent=1 // pred_fallthru
      _
    // Predicated region
    $region6: #{tpu_custom_call.1} parent=1 // pred_check
      _
    $region7: #{tpu_custom_call.1} parent=1 // pred_check_branch
      %22 = sbr.rel (0) target = $region9
    $region8: #{tpu_custom_call.1} parent=1 // pred_region
      _
    $region9: #{tpu_custom_call.1} parent=1 // pred_fallthru
      _
    // Predicated region
    $region10: #{tpu_custom_call.1} parent=1 // pred_check
      _
    $region11: #{tpu_custom_call.1} parent=1 // pred_check_branch
      %24 = sbr.rel (0) target = $region13
    $region12: #{tpu_custom_call.1} parent=1 // pred_region
      _
    $region13: #{tpu_custom_call.1} parent=1 // pred_fallthru
      _
    // Predicated region
    $region14: #{tpu_custom_call.1} parent=1 // pred_check
      _
    $region15: #{tpu_custom_call.1} parent=1 // pred_check_branch
      %26 = sbr.rel (0) target = $region17
    $region16: #{tpu_custom_call.1} parent=1 // pred_region
      _
    $region17: #{tpu_custom_call.1} parent=1 // pred_fallthru
      _
    // Predicated region
    $region18: #{tpu_custom_call.1} parent=1 // pred_check
      _
    $region19: #{tpu_custom_call.1} parent=1 // pred_check_branch
      %28 = sbr.rel (0) target = $region21
    $region20: #{tpu_custom_call.1} parent=1 // pred_region
      _
    $region21: #{tpu_custom_call.1} parent=1 // pred_fallthru
      _
    // Predicated region
    $region22: #{tpu_custom_call.1} parent=1 // pred_check
      _
    $region23: #{tpu_custom_call.1} parent=1 // pred_check_branch
      %30 = sbr.rel (0) target = $region25
    $region24: #{tpu_custom_call.1} parent=1 // pred_region
      _
    $region25: #{tpu_custom_call.1} parent=1 // pred_fallthru
      _
    // Predicated region
    $region26: #{tpu_custom_call.1} parent=1 // pred_check
      _
    $region27: #{tpu_custom_call.1} parent=1 // pred_check_branch
      %32 = sbr.rel (0) target = $region29
    $region28: #{tpu_custom_call.1} parent=1 // pred_region
      _
    $region29: #{tpu_custom_call.1} parent=1 // pred_fallthru
      _
    // Predicated region
    $region30: #{tpu_custom_call.1} parent=1 // pred_check
      _
    $region31: #{tpu_custom_call.1} parent=1 // pred_check_branch
      %34 = sbr.rel (0) target = $region33
    $region32: #{tpu_custom_call.1} parent=1 // pred_region
      _
    $region33: #{tpu_custom_call.1} parent=1 // pred_fallthru
      _
    // Predicated region
    $region34: #{tpu_custom_call.1} parent=1 // pred_check
      _
    $region35: #{tpu_custom_call.1} parent=1 // pred_check_branch
      %36 = sbr.rel (0) target = $region37
    $region36: #{tpu_custom_call.1} parent=1 // pred_region
      _
    $region37: #{tpu_custom_call.1} parent=1 // pred_fallthru
      _
    // Predicated region
    $region38: #{tpu_custom_call.1} parent=1 // pred_check
      _
    $region39: #{tpu_custom_call.1} parent=1 // pred_check_branch
      %38 = sbr.rel (0) target = $region41
    $region40: #{tpu_custom_call.1} parent=1 // pred_region
      _
    $region41: #{tpu_custom_call.1} parent=1 // pred_fallthru
      _
    // Predicated region
    $region42: #{tpu_custom_call.1} parent=1 // pred_check
      _
    $region43: #{tpu_custom_call.1} parent=1 // pred_check_branch
      %40 = sbr.rel (0) target = $region45
    $region44: #{tpu_custom_call.1} parent=1 // pred_region
      _
    $region45: #{tpu_custom_call.1} parent=1 // pred_fallthru
      _
    // Predicated region
    $region46: #{tpu_custom_call.1} parent=1 // pred_check
      _
    $region47: #{tpu_custom_call.1} parent=1 // pred_check_branch
      %42 = sbr.rel (0) target = $region49
    $region48: #{tpu_custom_call.1} parent=1 // pred_region
      _
    $region49: #{tpu_custom_call.1} parent=1 // pred_fallthru
      _
    // Predicated region
    $region50: #{tpu_custom_call.1} parent=1 // pred_check
      _
    $region51: #{tpu_custom_call.1} parent=1 // pred_check_branch
      %44 = sbr.rel (0) target = $region53
    $region52: #{tpu_custom_call.1} parent=1 // pred_region
      _
    $region53: #{tpu_custom_call.1} parent=1 // pred_fallthru
      _
    %v46 = vld [vmem:[%s1] sm:$0x1]
    %v47 = vld [vmem:[%s1 + $0x1] sm:$0x1]
    %v48 = vld [vmem:[%s0] sm:$0xff]
    %v49 = vld [vmem:[%s0 + $0x8] sm:$0xff]
    %v50 = vld [vmem:[%s5] sm:$0xff]
    %v51 = vpack.c.bf16 %v49, %v48
    %v52 = vld [vmem:[%s2] sm:$0xf]
    %v53 = vld [vmem:[%s2 + $0x4] sm:$0xf]
    %v54 = vld [vmem:[%s2 + $0x8] sm:$0xf]
    %v55 = vld [vmem:[%s2 + $0xc] sm:$0xf]
    %v56 = vld [vmem:[%s3] sm:$0x1]
    %v58 = vlaneseq
    %v59 = vshrl.u32 %v58, 7
    %v60 = vsub.s32 0, %v59
    %v61 = vrot.slane %v56, %v60
    %v67 = vunpack.c.l.b16 %v52
    %v68 = vunpack.c.l.b16 %v53
    %v69 = vunpack.c.l.b16 %v54
    %v70 = vunpack.c.l.b16 %v55
    %v71 = vpack.c.b16 %v68, %v67
    %v72 = vpack.c.b16 %v70, %v69
    %vm75 = vcmask 261120
    %v77 = vsel %vm75, %v51, 0
    %79 = vmatprep.subr.bf16.mxu0 0
    %80 = vmatpush1.bf16.msra.mxu0 %v71
    %81 = vmatprep.subr.bf16.mxu0 0
    %82 = vmatpush1.bf16.msra.mxu0 %v72
    %83 = vmatprep.subr.bf16.mxu0 0
    %84 = vmatpush1.bf16.msra.mxu0 0
    %85 = vmatprep.subr.bf16.mxu0 0
    %86 = vmatpush1.bf16.msra.mxu0 0
    %87 = vmatprep.subr.bf16.mxu0 0
    %88 = vmatpush1.bf16.msra.mxu0 0
    %89 = vmatprep.subr.bf16.mxu0 0
    %90 = vmatpush1.bf16.msra.mxu0 0
    %91 = vmatprep.subr.bf16.mxu0 0
    %92 = vmatpush1.bf16.msra.mxu0 0
    %93 = vmatprep.subr.bf16.mxu0 0
    %94 = vmatpush1.bf16.msra.mxu0 0
    %95 = vmatprep.subr.bf16.mxu0 0
    %96 = vmatpush1.bf16.msra.mxu0 0
    %97 = vmatprep.subr.bf16.mxu0 0
    %98 = vmatpush1.bf16.msra.mxu0 0
    %99 = vmatprep.subr.bf16.mxu0 0
    %100 = vmatpush1.bf16.msra.mxu0 0
    %101 = vmatprep.subr.bf16.mxu0 0
    %102 = vmatpush1.bf16.msra.mxu0 0
    %103 = vmatprep.subr.bf16.mxu0 0
    %104 = vmatpush1.bf16.msra.mxu0 0
    %105 = vmatprep.subr.bf16.mxu0 0
    %106 = vmatpush1.bf16.msra.mxu0 0
    %107 = vmatprep.subr.bf16.mxu0 0
    %108 = vmatpush1.bf16.msra.mxu0 0
    %109 = vmatprep.subr.bf16.mxu0 0
    %110 = vmatpush1.bf16.msra.mxu0 0
    %111 = vmatprep.mubr.bf16.mxu0 0
    %112 = vmatmul.mubr.bf16.gmra.mrb[0].mxu0 %v77
    %v113 = vpop.f32.mrb[0].mxu0
    %v114 = vadd.f32 %v61, %v113
    %v115 = vpop.f32.mrb[0].mxu0
    %v116 = vpop.f32.mrb[0].mxu0
    %v117 = vadd.f32 %v61, %v116
    %v118 = vpop.f32.mrb[0].mxu0
    %119 = vdwg.mxu0
    %v120 = vpack.c.bf16 %v114, %v114
    %v121 = vpack.c.bf16 %v117, %v117
    %124 = vrot.lane.b32.xlu0 %v120, 120
    %v125 = vpop.permute.xlu0 %124
    %126 = vrot.lane.b32.xlu0 %v121, 120
    %v127 = vpop.permute.xlu0 %126
    %128 = vrot.lane.b32.xlu0 %v120, 112
    %v129 = vpop.permute.xlu0 %128
    %130 = vrot.lane.b32.xlu0 %v121, 112
    %v131 = vpop.permute.xlu0 %130
    %132 = vrot.lane.b32.xlu0 %v120, 104
    %v133 = vpop.permute.xlu0 %132
    %134 = vrot.lane.b32.xlu0 %v121, 104
    %v135 = vpop.permute.xlu0 %134
    %136 = vrot.lane.b32.xlu0 %v120, 96
    %v137 = vpop.permute.xlu0 %136
    %vm138 = vcmask 64512
    %v140 = vsel %vm138, %v120, 0
    %v143 = vsel %vm138, %v137, 0
    %145 = vmatprep.subr.bf16.mxu0 0
    %146 = vmatpush1.bf16.xpose.msra.mxu0 %v143
    %147 = vmatprep.subr.bf16.mxu0 0
    %148 = vmatpush1.bf16.xpose.msra.mxu0 0
    %149 = vmatprep.subr.bf16.mxu0 0
    %150 = vmatpush1.bf16.xpose.msra.mxu0 0
    %151 = vmatprep.subr.bf16.mxu0 0
    %152 = vmatpush1.bf16.xpose.msra.mxu0 0
    %153 = vmatprep.subr.bf16.mxu0 0
    %154 = vmatpush1.bf16.xpose.msra.mxu0 0
    %155 = vmatprep.subr.bf16.mxu0 0
    %156 = vmatpush1.bf16.xpose.msra.mxu0 0
    %157 = vmatprep.subr.bf16.mxu0 0
    %158 = vmatpush1.bf16.xpose.msra.mxu0 0
    %159 = vmatprep.subr.bf16.mxu0 0
    %160 = vmatpush1.bf16.xpose.msra.mxu0 0
    %161 = vmatprep.subr.bf16.mxu0 0
    %162 = vmatpush1.bf16.xpose.msra.mxu0 0
    %163 = vmatprep.subr.bf16.mxu0 0
    %164 = vmatpush1.bf16.xpose.msra.mxu0 0
    %165 = vmatprep.subr.bf16.mxu0 0
    %166 = vmatpush1.bf16.xpose.msra.mxu0 0
    %167 = vmatprep.subr.bf16.mxu0 0
    %168 = vmatpush1.bf16.xpose.msra.mxu0 0
    %169 = vmatprep.subr.bf16.mxu0 0
    %170 = vmatpush1.bf16.xpose.msra.mxu0 0
    %171 = vmatprep.subr.bf16.mxu0 0
    %172 = vmatpush1.bf16.xpose.msra.mxu0 0
    %173 = vmatprep.subr.bf16.mxu0 0
    %174 = vmatpush1.bf16.xpose.msra.mxu0 0
    %175 = vmatprep.subr.bf16.mxu0 0
    %176 = vmatpush1.bf16.xpose.msra.mxu0 0
    %177 = vmatprep.mubr.bf16.mxu0 0
    %178 = vmatmul.mubr.bf16.gmra.mrb[0].mxu0 %v140
    %v179 = vpop.f32.mrb[0].mxu0
    %v180 = vadd.f32 0.0, %v179
    %v181 = vpop.f32.mrb[0].mxu0
    %v182 = vpop.f32.mrb[0].mxu0
    %v183 = vpop.f32.mrb[0].mxu0
    %184 = vdwg.mxu0
    %185 = vrot.lane.b32.xlu0 %v121, 96
    %v186 = vpop.permute.xlu0 %185
    %v188 = vsel %vm138, %v121, 0
    %v191 = vsel %vm138, %v186, 0
    %193 = vmatprep.subr.bf16.mxu0 0
    %194 = vmatpush1.bf16.xpose.msra.mxu0 %v191
    %195 = vmatprep.subr.bf16.mxu0 0
    %196 = vmatpush1.bf16.xpose.msra.mxu0 0
    %197 = vmatprep.subr.bf16.mxu0 0
    %198 = vmatpush1.bf16.xpose.msra.mxu0 0
    %199 = vmatprep.subr.bf16.mxu0 0
    %200 = vmatpush1.bf16.xpose.msra.mxu0 0
    %201 = vmatprep.subr.bf16.mxu0 0
    %202 = vmatpush1.bf16.xpose.msra.mxu0 0
    %203 = vmatprep.subr.bf16.mxu0 0
    %204 = vmatpush1.bf16.xpose.msra.mxu0 0
    %205 = vmatprep.subr.bf16.mxu0 0
    %206 = vmatpush1.bf16.xpose.msra.mxu0 0
    %207 = vmatprep.subr.bf16.mxu0 0
    %208 = vmatpush1.bf16.xpose.msra.mxu0 0
    %209 = vmatprep.subr.bf16.mxu0 0
    %210 = vmatpush1.bf16.xpose.msra.mxu0 0
    %211 = vmatprep.subr.bf16.mxu0 0
    %212 = vmatpush1.bf16.xpose.msra.mxu0 0
    %213 = vmatprep.subr.bf16.mxu0 0
    %214 = vmatpush1.bf16.xpose.msra.mxu0 0
    %215 = vmatprep.subr.bf16.mxu0 0
    %216 = vmatpush1.bf16.xpose.msra.mxu0 0
    %217 = vmatprep.subr.bf16.mxu0 0
    %218 = vmatpush1.bf16.xpose.msra.mxu0 0
    %219 = vmatprep.subr.bf16.mxu0 0
    %220 = vmatpush1.bf16.xpose.msra.mxu0 0
    %221 = vmatprep.subr.bf16.mxu0 0
    %222 = vmatpush1.bf16.xpose.msra.mxu0 0
    %223 = vmatprep.subr.bf16.mxu0 0
    %224 = vmatpush1.bf16.xpose.msra.mxu0 0
    %225 = vmatprep.mubr.bf16.mxu0 0
    %226 = vmatmul.mubr.bf16.gmra.mrb[0].mxu0 %v188
    %v227 = vpop.f32.mrb[0].mxu0
    %v228 = vadd.f32 0.0, %v227
    %v229 = vpop.f32.mrb[0].mxu0
    %v230 = vpop.f32.mrb[0].mxu0
    %v231 = vpop.f32.mrb[0].mxu0
    %232 = vdwg.mxu0
    %233 = vrot.lane.b32.xlu0 %v125, 96
    %v234 = vpop.permute.xlu0 %233
    %v236 = vsel %vm138, %v125, 0
    %v239 = vsel %vm138, %v234, 0
    %241 = vmatprep.subr.bf16.mxu0 0
    %242 = vmatpush1.bf16.xpose.msra.mxu0 %v239
    %243 = vmatprep.subr.bf16.mxu0 0
    %244 = vmatpush1.bf16.xpose.msra.mxu0 0
    %245 = vmatprep.subr.bf16.mxu0 0
    %246 = vmatpush1.bf16.xpose.msra.mxu0 0
    %247 = vmatprep.subr.bf16.mxu0 0
    %248 = vmatpush1.bf16.xpose.msra.mxu0 0
    %249 = vmatprep.subr.bf16.mxu0 0
    %250 = vmatpush1.bf16.xpose.msra.mxu0 0
    %251 = vmatprep.subr.bf16.mxu0 0
    %252 = vmatpush1.bf16.xpose.msra.mxu0 0
    %253 = vmatprep.subr.bf16.mxu0 0
    %254 = vmatpush1.bf16.xpose.msra.mxu0 0
    %255 = vmatprep.subr.bf16.mxu0 0
    %256 = vmatpush1.bf16.xpose.msra.mxu0 0
    %257 = vmatprep.subr.bf16.mxu0 0
    %258 = vmatpush1.bf16.xpose.msra.mxu0 0
    %259 = vmatprep.subr.bf16.mxu0 0
    %260 = vmatpush1.bf16.xpose.msra.mxu0 0
    %261 = vmatprep.subr.bf16.mxu0 0
    %262 = vmatpush1.bf16.xpose.msra.mxu0 0
    %263 = vmatprep.subr.bf16.mxu0 0
    %264 = vmatpush1.bf16.xpose.msra.mxu0 0
    %265 = vmatprep.subr.bf16.mxu0 0
    %266 = vmatpush1.bf16.xpose.msra.mxu0 0
    %267 = vmatprep.subr.bf16.mxu0 0
    %268 = vmatpush1.bf16.xpose.msra.mxu0 0
    %269 = vmatprep.subr.bf16.mxu0 0
    %270 = vmatpush1.bf16.xpose.msra.mxu0 0
    %271 = vmatprep.subr.bf16.mxu0 0
    %272 = vmatpush1.bf16.xpose.msra.mxu0 0
    %273 = vmatprep.mubr.bf16.mxu0 0
    %274 = vmatmul.mubr.bf16.gmra.mrb[0].mxu0 %v236
    %v275 = vpop.f32.mrb[0].mxu0
    %v276 = vadd.f32 0.0, %v275
    %v277 = vpop.f32.mrb[0].mxu0
    %v278 = vpop.f32.mrb[0].mxu0
    %v279 = vpop.f32.mrb[0].mxu0
    %280 = vdwg.mxu0
    %281 = vrot.lane.b32.xlu0 %v127, 96
    %v282 = vpop.permute.xlu0 %281
    %v284 = vsel %vm138, %v127, 0
    %v287 = vsel %vm138, %v282, 0
    %289 = vmatprep.subr.bf16.mxu0 0
    %290 = vmatpush1.bf16.xpose.msra.mxu0 %v287
    %291 = vmatprep.subr.bf16.mxu0 0
    %292 = vmatpush1.bf16.xpose.msra.mxu0 0
    %293 = vmatprep.subr.bf16.mxu0 0
    %294 = vmatpush1.bf16.xpose.msra.mxu0 0
    %295 = vmatprep.subr.bf16.mxu0 0
    %296 = vmatpush1.bf16.xpose.msra.mxu0 0
    %297 = vmatprep.subr.bf16.mxu0 0
    %298 = vmatpush1.bf16.xpose.msra.mxu0 0
    %299 = vmatprep.subr.bf16.mxu0 0
    %300 = vmatpush1.bf16.xpose.msra.mxu0 0
    %301 = vmatprep.subr.bf16.mxu0 0
    %302 = vmatpush1.bf16.xpose.msra.mxu0 0
    %303 = vmatprep.subr.bf16.mxu0 0
    %304 = vmatpush1.bf16.xpose.msra.mxu0 0
    %305 = vmatprep.subr.bf16.mxu0 0
    %306 = vmatpush1.bf16.xpose.msra.mxu0 0
    %307 = vmatprep.subr.bf16.mxu0 0
    %308 = vmatpush1.bf16.xpose.msra.mxu0 0
    %309 = vmatprep.subr.bf16.mxu0 0
    %310 = vmatpush1.bf16.xpose.msra.mxu0 0
    %311 = vmatprep.subr.bf16.mxu0 0
    %312 = vmatpush1.bf16.xpose.msra.mxu0 0
    %313 = vmatprep.subr.bf16.mxu0 0
    %314 = vmatpush1.bf16.xpose.msra.mxu0 0
    %315 = vmatprep.subr.bf16.mxu0 0
    %316 = vmatpush1.bf16.xpose.msra.mxu0 0
    %317 = vmatprep.subr.bf16.mxu0 0
    %318 = vmatpush1.bf16.xpose.msra.mxu0 0
    %319 = vmatprep.subr.bf16.mxu0 0
    %320 = vmatpush1.bf16.xpose.msra.mxu0 0
    %321 = vmatprep.mubr.bf16.mxu0 0
    %322 = vmatmul.mubr.bf16.gmra.mrb[0].mxu0 %v284
    %v323 = vpop.f32.mrb[0].mxu0
    %v324 = vadd.f32 0.0, %v323
    %v325 = vpop.f32.mrb[0].mxu0
    %v326 = vpop.f32.mrb[0].mxu0
    %v327 = vpop.f32.mrb[0].mxu0
    %328 = vdwg.mxu0
    %329 = vrot.lane.b32.xlu0 %v129, 96
    %v330 = vpop.permute.xlu0 %329
    %v332 = vsel %vm138, %v129, 0
    %v335 = vsel %vm138, %v330, 0
    %337 = vmatprep.subr.bf16.mxu0 0
    %338 = vmatpush1.bf16.xpose.msra.mxu0 %v335
    %339 = vmatprep.subr.bf16.mxu0 0
    %340 = vmatpush1.bf16.xpose.msra.mxu0 0
    %341 = vmatprep.subr.bf16.mxu0 0
    %342 = vmatpush1.bf16.xpose.msra.mxu0 0
    %343 = vmatprep.subr.bf16.mxu0 0
    %344 = vmatpush1.bf16.xpose.msra.mxu0 0
    %345 = vmatprep.subr.bf16.mxu0 0
    %346 = vmatpush1.bf16.xpose.msra.mxu0 0
    %347 = vmatprep.subr.bf16.mxu0 0
    %348 = vmatpush1.bf16.xpose.msra.mxu0 0
    %349 = vmatprep.subr.bf16.mxu0 0
    %350 = vmatpush1.bf16.xpose.msra.mxu0 0
    %351 = vmatprep.subr.bf16.mxu0 0
    %352 = vmatpush1.bf16.xpose.msra.mxu0 0
    %353 = vmatprep.subr.bf16.mxu0 0
    %354 = vmatpush1.bf16.xpose.msra.mxu0 0
    %355 = vmatprep.subr.bf16.mxu0 0
    %356 = vmatpush1.bf16.xpose.msra.mxu0 0
    %357 = vmatprep.subr.bf16.mxu0 0
    %358 = vmatpush1.bf16.xpose.msra.mxu0 0
    %359 = vmatprep.subr.bf16.mxu0 0
    %360 = vmatpush1.bf16.xpose.msra.mxu0 0
    %361 = vmatprep.subr.bf16.mxu0 0
    %362 = vmatpush1.bf16.xpose.msra.mxu0 0
    %363 = vmatprep.subr.bf16.mxu0 0
    %364 = vmatpush1.bf16.xpose.msra.mxu0 0
    %365 = vmatprep.subr.bf16.mxu0 0
    %366 = vmatpush1.bf16.xpose.msra.mxu0 0
    %367 = vmatprep.subr.bf16.mxu0 0
    %368 = vmatpush1.bf16.xpose.msra.mxu0 0
    %369 = vmatprep.mubr.bf16.mxu0 0
    %370 = vmatmul.mubr.bf16.gmra.mrb[0].mxu0 %v332
    %v371 = vpop.f32.mrb[0].mxu0
    %v372 = vadd.f32 0.0, %v371
    %v373 = vpop.f32.mrb[0].mxu0
    %v374 = vpop.f32.mrb[0].mxu0
    %v375 = vpop.f32.mrb[0].mxu0
    %376 = vdwg.mxu0
    %377 = vrot.lane.b32.xlu0 %v131, 96
    %v378 = vpop.permute.xlu0 %377
    %v380 = vsel %vm138, %v131, 0
    %v383 = vsel %vm138, %v378, 0
    %385 = vmatprep.subr.bf16.mxu0 0
    %386 = vmatpush1.bf16.xpose.msra.mxu0 %v383
    %387 = vmatprep.subr.bf16.mxu0 0
    %388 = vmatpush1.bf16.xpose.msra.mxu0 0
    %389 = vmatprep.subr.bf16.mxu0 0
    %390 = vmatpush1.bf16.xpose.msra.mxu0 0
    %391 = vmatprep.subr.bf16.mxu0 0
    %392 = vmatpush1.bf16.xpose.msra.mxu0 0
    %393 = vmatprep.subr.bf16.mxu0 0
    %394 = vmatpush1.bf16.xpose.msra.mxu0 0
    %395 = vmatprep.subr.bf16.mxu0 0
    %396 = vmatpush1.bf16.xpose.msra.mxu0 0
    %397 = vmatprep.subr.bf16.mxu0 0
    %398 = vmatpush1.bf16.xpose.msra.mxu0 0
    %399 = vmatprep.subr.bf16.mxu0 0
    %400 = vmatpush1.bf16.xpose.msra.mxu0 0
    %401 = vmatprep.subr.bf16.mxu0 0
    %402 = vmatpush1.bf16.xpose.msra.mxu0 0
    %403 = vmatprep.subr.bf16.mxu0 0
    %404 = vmatpush1.bf16.xpose.msra.mxu0 0
    %405 = vmatprep.subr.bf16.mxu0 0
    %406 = vmatpush1.bf16.xpose.msra.mxu0 0
    %407 = vmatprep.subr.bf16.mxu0 0
    %408 = vmatpush1.bf16.xpose.msra.mxu0 0
    %409 = vmatprep.subr.bf16.mxu0 0
    %410 = vmatpush1.bf16.xpose.msra.mxu0 0
    %411 = vmatprep.subr.bf16.mxu0 0
    %412 = vmatpush1.bf16.xpose.msra.mxu0 0
    %413 = vmatprep.subr.bf16.mxu0 0
    %414 = vmatpush1.bf16.xpose.msra.mxu0 0
    %415 = vmatprep.subr.bf16.mxu0 0
    %416 = vmatpush1.bf16.xpose.msra.mxu0 0
    %417 = vmatprep.mubr.bf16.mxu0 0
    %418 = vmatmul.mubr.bf16.gmra.mrb[0].mxu0 %v380
    %v419 = vpop.f32.mrb[0].mxu0
    %v420 = vadd.f32 0.0, %v419
    %v421 = vpop.f32.mrb[0].mxu0
    %v422 = vpop.f32.mrb[0].mxu0
    %v423 = vpop.f32.mrb[0].mxu0
    %424 = vdwg.mxu0
    %425 = vrot.lane.b32.xlu0 %v133, 96
    %v426 = vpop.permute.xlu0 %425
    %v428 = vsel %vm138, %v133, 0
    %v431 = vsel %vm138, %v426, 0
    %433 = vmatprep.subr.bf16.mxu0 0
    %434 = vmatpush1.bf16.xpose.msra.mxu0 %v431
    %435 = vmatprep.subr.bf16.mxu0 0
    %436 = vmatpush1.bf16.xpose.msra.mxu0 0
    %437 = vmatprep.subr.bf16.mxu0 0
    %438 = vmatpush1.bf16.xpose.msra.mxu0 0
    %439 = vmatprep.subr.bf16.mxu0 0
    %440 = vmatpush1.bf16.xpose.msra.mxu0 0
    %441 = vmatprep.subr.bf16.mxu0 0
    %442 = vmatpush1.bf16.xpose.msra.mxu0 0
    %443 = vmatprep.subr.bf16.mxu0 0
    %444 = vmatpush1.bf16.xpose.msra.mxu0 0
    %445 = vmatprep.subr.bf16.mxu0 0
    %446 = vmatpush1.bf16.xpose.msra.mxu0 0
    %447 = vmatprep.subr.bf16.mxu0 0
    %448 = vmatpush1.bf16.xpose.msra.mxu0 0
    %449 = vmatprep.subr.bf16.mxu0 0
    %450 = vmatpush1.bf16.xpose.msra.mxu0 0
    %451 = vmatprep.subr.bf16.mxu0 0
    %452 = vmatpush1.bf16.xpose.msra.mxu0 0
    %453 = vmatprep.subr.bf16.mxu0 0
    %454 = vmatpush1.bf16.xpose.msra.mxu0 0
    %455 = vmatprep.subr.bf16.mxu0 0
    %456 = vmatpush1.bf16.xpose.msra.mxu0 0
    %457 = vmatprep.subr.bf16.mxu0 0
    %458 = vmatpush1.bf16.xpose.msra.mxu0 0
    %459 = vmatprep.subr.bf16.mxu0 0
    %460 = vmatpush1.bf16.xpose.msra.mxu0 0
    %461 = vmatprep.subr.bf16.mxu0 0
    %462 = vmatpush1.bf16.xpose.msra.mxu0 0
    %463 = vmatprep.subr.bf16.mxu0 0
    %464 = vmatpush1.bf16.xpose.msra.mxu0 0
    %465 = vmatprep.mubr.bf16.mxu0 0
    %466 = vmatmul.mubr.bf16.gmra.mrb[0].mxu0 %v428
    %v467 = vpop.f32.mrb[0].mxu0
    %v468 = vadd.f32 0.0, %v467
    %v469 = vpop.f32.mrb[0].mxu0
    %v470 = vpop.f32.mrb[0].mxu0
    %v471 = vpop.f32.mrb[0].mxu0
    %472 = vdwg.mxu0
    %473 = vrot.lane.b32.xlu0 %v135, 96
    %v474 = vpop.permute.xlu0 %473
    %v476 = vsel %vm138, %v135, 0
    %v479 = vsel %vm138, %v474, 0
    %481 = vmatprep.subr.bf16.mxu0 0
    %482 = vmatpush1.bf16.xpose.msra.mxu0 %v479
    %483 = vmatprep.subr.bf16.mxu0 0
    %484 = vmatpush1.bf16.xpose.msra.mxu0 0
    %485 = vmatprep.subr.bf16.mxu0 0
    %486 = vmatpush1.bf16.xpose.msra.mxu0 0
    %487 = vmatprep.subr.bf16.mxu0 0
    %488 = vmatpush1.bf16.xpose.msra.mxu0 0
    %489 = vmatprep.subr.bf16.mxu0 0
    %490 = vmatpush1.bf16.xpose.msra.mxu0 0
    %491 = vmatprep.subr.bf16.mxu0 0
    %492 = vmatpush1.bf16.xpose.msra.mxu0 0
    %493 = vmatprep.subr.bf16.mxu0 0
    %494 = vmatpush1.bf16.xpose.msra.mxu0 0
    %495 = vmatprep.subr.bf16.mxu0 0
    %496 = vmatpush1.bf16.xpose.msra.mxu0 0
    %497 = vmatprep.subr.bf16.mxu0 0
    %498 = vmatpush1.bf16.xpose.msra.mxu0 0
    %499 = vmatprep.subr.bf16.mxu0 0
    %500 = vmatpush1.bf16.xpose.msra.mxu0 0
    %501 = vmatprep.subr.bf16.mxu0 0
    %502 = vmatpush1.bf16.xpose.msra.mxu0 0
    %503 = vmatprep.subr.bf16.mxu0 0
    %504 = vmatpush1.bf16.xpose.msra.mxu0 0
    %505 = vmatprep.subr.bf16.mxu0 0
    %506 = vmatpush1.bf16.xpose.msra.mxu0 0
    %507 = vmatprep.subr.bf16.mxu0 0
    %508 = vmatpush1.bf16.xpose.msra.mxu0 0
    %509 = vmatprep.subr.bf16.mxu0 0
    %510 = vmatpush1.bf16.xpose.msra.mxu0 0
    %511 = vmatprep.subr.bf16.mxu0 0
    %512 = vmatpush1.bf16.xpose.msra.mxu0 0
    %513 = vmatprep.mubr.bf16.mxu0 0
    %514 = vmatmul.mubr.bf16.gmra.mrb[0].mxu0 %v476
    %v515 = vpop.f32.mrb[0].mxu0
    %v516 = vadd.f32 0.0, %v515
    %v517 = vpop.f32.mrb[0].mxu0
    %v518 = vpop.f32.mrb[0].mxu0
    %v519 = vpop.f32.mrb[0].mxu0
    %520 = vdwg.mxu0
    %v521 = vmul.f32 %v180, 0.35355338
    %v522 = vmul.f32 %v228, 0.35355338
    %v523 = vmul.f32 %v276, 0.35355338
    %v524 = vmul.f32 %v324, 0.35355338
    %v525 = vmul.f32 %v372, 0.35355338
    %v526 = vmul.f32 %v420, 0.35355338
    %v527 = vmul.f32 %v468, 0.35355338
    %v528 = vmul.f32 %v516, 0.35355338
    %v531 = vlaneseq
    %v532 = vshrl.u32 %v531, 7
    %v533 = vsub.s32 0, %v532
    %v534 = vrot.slane %v46, %v533
    %v535 = vlaneseq
    %v536 = vshrl.u32 %v535, 7
    %v537 = vsub.s32 0, %v536
    %v538 = vrot.slane %v47, %v537
    %v541 = vadd.f32 %v521, %v534
    %v542 = vadd.f32 %v522, %v538
    %v543 = vadd.f32 %v523, %v534
    %v544 = vadd.f32 %v524, %v538
    %v545 = vadd.f32 %v525, %v534
    %v546 = vadd.f32 %v526, %v538
    %v547 = vadd.f32 %v527, %v534
    %v548 = vadd.f32 %v528, %v538
    %v549 = vsel %vm138, %v541, -inf
    %550 = vmax.xlane.f32.xlu0 %v549
    %v551 = vpop.xlane.xlu0 %550
    %v552 = vsel %vm138, %v542, -inf
    %553 = vmax.xlane.f32.xlu0 %v552
    %v554 = vpop.xlane.xlu0 %553
    %v555 = vsel %vm138, %v543, -inf
    %556 = vmax.xlane.f32.xlu0 %v555
    %v557 = vpop.xlane.xlu0 %556
    %v558 = vsel %vm138, %v544, -inf
    %559 = vmax.xlane.f32.xlu0 %v558
    %v560 = vpop.xlane.xlu0 %559
    %v561 = vsel %vm138, %v545, -inf
    %562 = vmax.xlane.f32.xlu0 %v561
    %v563 = vpop.xlane.xlu0 %562
    %v564 = vsel %vm138, %v546, -inf
    %565 = vmax.xlane.f32.xlu0 %v564
    %v566 = vpop.xlane.xlu0 %565
    %v567 = vsel %vm138, %v547, -inf
    %568 = vmax.xlane.f32.xlu0 %v567
    %v569 = vpop.xlane.xlu0 %568
    %v570 = vsel %vm138, %v548, -inf
    %571 = vmax.xlane.f32.xlu0 %v570
    %v572 = vpop.xlane.xlu0 %571
    %v573 = vsub.f32 %v541, %v551
    %v574 = vsub.f32 %v542, %v554
    %v575 = vsub.f32 %v543, %v557
    %v576 = vsub.f32 %v544, %v560
    %v577 = vsub.f32 %v545, %v563
    %v578 = vsub.f32 %v546, %v566
    %v579 = vsub.f32 %v547, %v569
    %v580 = vsub.f32 %v548, %v572
    %v581 = vmul.f32 %v573, 1.442695
    %v582 = vpow.pop %v581
    %v583 = vmul.f32 %v574, 1.442695
    %v584 = vpow.pop %v583
    %v585 = vmul.f32 %v575, 1.442695
    %v586 = vpow.pop %v585
    %v587 = vmul.f32 %v576, 1.442695
    %v588 = vpow.pop %v587
    %v589 = vmul.f32 %v577, 1.442695
    %v590 = vpow.pop %v589
    %v591 = vmul.f32 %v578, 1.442695
    %v592 = vpow.pop %v591
    %v593 = vmul.f32 %v579, 1.442695
    %v594 = vpow.pop %v593
    %v595 = vmul.f32 %v580, 1.442695
    %v596 = vpow.pop %v595
    %v597 = vsel %vm138, %v582, 0.0
    %598 = vadd.xlane.f32.xlu0 %v597
    %v599 = vpop.xlane.xlu0 %598
    %v600 = vsel %vm138, %v584, 0.0
    %601 = vadd.xlane.f32.xlu0 %v600
    %v602 = vpop.xlane.xlu0 %601
    %v603 = vsel %vm138, %v586, 0.0
    %604 = vadd.xlane.f32.xlu0 %v603
    %v605 = vpop.xlane.xlu0 %604
    %v606 = vsel %vm138, %v588, 0.0
    %607 = vadd.xlane.f32.xlu0 %v606
    %v608 = vpop.xlane.xlu0 %607
    %v609 = vsel %vm138, %v590, 0.0
    %610 = vadd.xlane.f32.xlu0 %v609
    %v611 = vpop.xlane.xlu0 %610
    %v612 = vsel %vm138, %v592, 0.0
    %613 = vadd.xlane.f32.xlu0 %v612
    %v614 = vpop.xlane.xlu0 %613
    %v615 = vsel %vm138, %v594, 0.0
    %616 = vadd.xlane.f32.xlu0 %v615
    %v617 = vpop.xlane.xlu0 %616
    %v618 = vsel %vm138, %v596, 0.0
    %619 = vadd.xlane.f32.xlu0 %v618
    %v620 = vpop.xlane.xlu0 %619
    %v621 = vrcp.pop %v599
    %v622 = vrcp.pop %v602
    %v623 = vrcp.pop %v605
    %v624 = vrcp.pop %v608
    %v625 = vrcp.pop %v611
    %v626 = vrcp.pop %v614
    %v627 = vrcp.pop %v617
    %v628 = vrcp.pop %v620
    %v629 = vmul.f32 %v582, %v621
    %v630 = vmul.f32 %v584, %v622
    %v631 = vmul.f32 %v586, %v623
    %v632 = vmul.f32 %v588, %v624
    %v633 = vmul.f32 %v590, %v625
    %v634 = vmul.f32 %v592, %v626
    %v635 = vmul.f32 %v594, %v627
    %v636 = vmul.f32 %v596, %v628
    %v637 = vpack.c.bf16 %v629, %v629
    %v638 = vpack.c.bf16 %v630, %v630
    %v639 = vpack.c.bf16 %v631, %v631
    %v640 = vpack.c.bf16 %v632, %v632
    %v641 = vpack.c.bf16 %v633, %v633
    %v642 = vpack.c.bf16 %v634, %v634
    %v643 = vpack.c.bf16 %v635, %v635
    %v644 = vpack.c.bf16 %v636, %v636
    %645 = vrot.lane.b32.xlu0 %v120, 64
    %v646 = vpop.permute.xlu0 %645
    %v648 = vsel %vm138, %v637, 0
    %vm650 = vcmask 1043456
    %v652 = vsel %vm650, %v646, 0
    %654 = vmatprep.subr.bf16.mxu0 0
    %655 = vmatpush1.bf16.msra.mxu0 %v652
    %656 = vmatprep.subr.bf16.mxu0 0
    %657 = vmatpush1.bf16.msra.mxu0 0
    %658 = vmatprep.subr.bf16.mxu0 0
    %659 = vmatpush1.bf16.msra.mxu0 0
    %660 = vmatprep.subr.bf16.mxu0 0
    %661 = vmatpush1.bf16.msra.mxu0 0
    %662 = vmatprep.subr.bf16.mxu0 0
    %663 = vmatpush1.bf16.msra.mxu0 0
    %664 = vmatprep.subr.bf16.mxu0 0
    %665 = vmatpush1.bf16.msra.mxu0 0
    %666 = vmatprep.subr.bf16.mxu0 0
    %667 = vmatpush1.bf16.msra.mxu0 0
    %668 = vmatprep.subr.bf16.mxu0 0
    %669 = vmatpush1.bf16.msra.mxu0 0
    %670 = vmatprep.subr.bf16.mxu0 0
    %671 = vmatpush1.bf16.msra.mxu0 0
    %672 = vmatprep.subr.bf16.mxu0 0
    %673 = vmatpush1.bf16.msra.mxu0 0
    %674 = vmatprep.subr.bf16.mxu0 0
    %675 = vmatpush1.bf16.msra.mxu0 0
    %676 = vmatprep.subr.bf16.mxu0 0
    %677 = vmatpush1.bf16.msra.mxu0 0
    %678 = vmatprep.subr.bf16.mxu0 0
    %679 = vmatpush1.bf16.msra.mxu0 0
    %680 = vmatprep.subr.bf16.mxu0 0
    %681 = vmatpush1.bf16.msra.mxu0 0
    %682 = vmatprep.subr.bf16.mxu0 0
    %683 = vmatpush1.bf16.msra.mxu0 0
    %684 = vmatprep.subr.bf16.mxu0 0
    %685 = vmatpush1.bf16.msra.mxu0 0
    %686 = vmatprep.mubr.bf16.mxu0 0
    %687 = vmatmul.mubr.bf16.gmra.mrb[0].mxu0 %v648
    %v688 = vpop.f32.mrb[0].mxu0
    %v689 = vadd.f32 0.0, %v688
    %v690 = vpop.f32.mrb[0].mxu0
    %v691 = vpop.f32.mrb[0].mxu0
    %v692 = vpop.f32.mrb[0].mxu0
    %693 = vdwg.mxu0
    %694 = vrot.lane.b32.xlu0 %v121, 64
    %v695 = vpop.permute.xlu0 %694
    %v697 = vsel %vm138, %v638, 0
    %v700 = vsel %vm650, %v695, 0
    %702 = vmatprep.subr.bf16.mxu0 0
    %703 = vmatpush1.bf16.msra.mxu0 %v700
    %704 = vmatprep.subr.bf16.mxu0 0
    %705 = vmatpush1.bf16.msra.mxu0 0
    %706 = vmatprep.subr.bf16.mxu0 0
    %707 = vmatpush1.bf16.msra.mxu0 0
    %708 = vmatprep.subr.bf16.mxu0 0
    %709 = vmatpush1.bf16.msra.mxu0 0
    %710 = vmatprep.subr.bf16.mxu0 0
    %711 = vmatpush1.bf16.msra.mxu0 0
    %712 = vmatprep.subr.bf16.mxu0 0
    %713 = vmatpush1.bf16.msra.mxu0 0
    %714 = vmatprep.subr.bf16.mxu0 0
    %715 = vmatpush1.bf16.msra.mxu0 0
    %716 = vmatprep.subr.bf16.mxu0 0
    %717 = vmatpush1.bf16.msra.mxu0 0
    %718 = vmatprep.subr.bf16.mxu0 0
    %719 = vmatpush1.bf16.msra.mxu0 0
    %720 = vmatprep.subr.bf16.mxu0 0
    %721 = vmatpush1.bf16.msra.mxu0 0
    %722 = vmatprep.subr.bf16.mxu0 0
    %723 = vmatpush1.bf16.msra.mxu0 0
    %724 = vmatprep.subr.bf16.mxu0 0
    %725 = vmatpush1.bf16.msra.mxu0 0
    %726 = vmatprep.subr.bf16.mxu0 0
    %727 = vmatpush1.bf16.msra.mxu0 0
    %728 = vmatprep.subr.bf16.mxu0 0
    %729 = vmatpush1.bf16.msra.mxu0 0
    %730 = vmatprep.subr.bf16.mxu0 0
    %731 = vmatpush1.bf16.msra.mxu0 0
    %732 = vmatprep.subr.bf16.mxu0 0
    %733 = vmatpush1.bf16.msra.mxu0 0
    %734 = vmatprep.mubr.bf16.mxu0 0
    %735 = vmatmul.mubr.bf16.gmra.mrb[0].mxu0 %v697
    %v736 = vpop.f32.mrb[0].mxu0
    %v737 = vadd.f32 0.0, %v736
    %v738 = vpop.f32.mrb[0].mxu0
    %v739 = vpop.f32.mrb[0].mxu0
    %v740 = vpop.f32.mrb[0].mxu0
    %741 = vdwg.mxu0
    %742 = vrot.lane.b32.xlu0 %v125, 64
    %v743 = vpop.permute.xlu0 %742
    %v745 = vsel %vm138, %v639, 0
    %v748 = vsel %vm650, %v743, 0
    %750 = vmatprep.subr.bf16.mxu0 0
    %751 = vmatpush1.bf16.msra.mxu0 %v748
    %752 = vmatprep.subr.bf16.mxu0 0
    %753 = vmatpush1.bf16.msra.mxu0 0
    %754 = vmatprep.subr.bf16.mxu0 0
    %755 = vmatpush1.bf16.msra.mxu0 0
    %756 = vmatprep.subr.bf16.mxu0 0
    %757 = vmatpush1.bf16.msra.mxu0 0
    %758 = vmatprep.subr.bf16.mxu0 0
    %759 = vmatpush1.bf16.msra.mxu0 0
    %760 = vmatprep.subr.bf16.mxu0 0
    %761 = vmatpush1.bf16.msra.mxu0 0
    %762 = vmatprep.subr.bf16.mxu0 0
    %763 = vmatpush1.bf16.msra.mxu0 0
    %764 = vmatprep.subr.bf16.mxu0 0
    %765 = vmatpush1.bf16.msra.mxu0 0
    %766 = vmatprep.subr.bf16.mxu0 0
    %767 = vmatpush1.bf16.msra.mxu0 0
    %768 = vmatprep.subr.bf16.mxu0 0
    %769 = vmatpush1.bf16.msra.mxu0 0
    %770 = vmatprep.subr.bf16.mxu0 0
    %771 = vmatpush1.bf16.msra.mxu0 0
    %772 = vmatprep.subr.bf16.mxu0 0
    %773 = vmatpush1.bf16.msra.mxu0 0
    %774 = vmatprep.subr.bf16.mxu0 0
    %775 = vmatpush1.bf16.msra.mxu0 0
    %776 = vmatprep.subr.bf16.mxu0 0
    %777 = vmatpush1.bf16.msra.mxu0 0
    %778 = vmatprep.subr.bf16.mxu0 0
    %779 = vmatpush1.bf16.msra.mxu0 0
    %780 = vmatprep.subr.bf16.mxu0 0
    %781 = vmatpush1.bf16.msra.mxu0 0
    %782 = vmatprep.mubr.bf16.mxu0 0
    %783 = vmatmul.mubr.bf16.gmra.mrb[0].mxu0 %v745
    %v784 = vpop.f32.mrb[0].mxu0
    %v785 = vadd.f32 0.0, %v784
    %v786 = vpop.f32.mrb[0].mxu0
    %v787 = vpop.f32.mrb[0].mxu0
    %v788 = vpop.f32.mrb[0].mxu0
    %789 = vdwg.mxu0
    %790 = vrot.lane.b32.xlu0 %v127, 64
    %v791 = vpop.permute.xlu0 %790
    %v793 = vsel %vm138, %v640, 0
    %v796 = vsel %vm650, %v791, 0
    %798 = vmatprep.subr.bf16.mxu0 0
    %799 = vmatpush1.bf16.msra.mxu0 %v796
    %800 = vmatprep.subr.bf16.mxu0 0
    %801 = vmatpush1.bf16.msra.mxu0 0
    %802 = vmatprep.subr.bf16.mxu0 0
    %803 = vmatpush1.bf16.msra.mxu0 0
    %804 = vmatprep.subr.bf16.mxu0 0
    %805 = vmatpush1.bf16.msra.mxu0 0
    %806 = vmatprep.subr.bf16.mxu0 0
    %807 = vmatpush1.bf16.msra.mxu0 0
    %808 = vmatprep.subr.bf16.mxu0 0
    %809 = vmatpush1.bf16.msra.mxu0 0
    %810 = vmatprep.subr.bf16.mxu0 0
    %811 = vmatpush1.bf16.msra.mxu0 0
    %812 = vmatprep.subr.bf16.mxu0 0
    %813 = vmatpush1.bf16.msra.mxu0 0
    %814 = vmatprep.subr.bf16.mxu0 0
    %815 = vmatpush1.bf16.msra.mxu0 0
    %816 = vmatprep.subr.bf16.mxu0 0
    %817 = vmatpush1.bf16.msra.mxu0 0
    %818 = vmatprep.subr.bf16.mxu0 0
    %819 = vmatpush1.bf16.msra.mxu0 0
    %820 = vmatprep.subr.bf16.mxu0 0
    %821 = vmatpush1.bf16.msra.mxu0 0
    %822 = vmatprep.subr.bf16.mxu0 0
    %823 = vmatpush1.bf16.msra.mxu0 0
    %824 = vmatprep.subr.bf16.mxu0 0
    %825 = vmatpush1.bf16.msra.mxu0 0
    %826 = vmatprep.subr.bf16.mxu0 0
    %827 = vmatpush1.bf16.msra.mxu0 0
    %828 = vmatprep.subr.bf16.mxu0 0
    %829 = vmatpush1.bf16.msra.mxu0 0
    %830 = vmatprep.mubr.bf16.mxu0 0
    %831 = vmatmul.mubr.bf16.gmra.mrb[0].mxu0 %v793
    %v832 = vpop.f32.mrb[0].mxu0
    %v833 = vadd.f32 0.0, %v832
    %v834 = vpop.f32.mrb[0].mxu0
    %v835 = vpop.f32.mrb[0].mxu0
    %v836 = vpop.f32.mrb[0].mxu0
    %837 = vdwg.mxu0
    %838 = vrot.lane.b32.xlu0 %v129, 64
    %v839 = vpop.permute.xlu0 %838
    %v841 = vsel %vm138, %v641, 0
    %v844 = vsel %vm650, %v839, 0
    %846 = vmatprep.subr.bf16.mxu0 0
    %847 = vmatpush1.bf16.msra.mxu0 %v844
    %848 = vmatprep.subr.bf16.mxu0 0
    %849 = vmatpush1.bf16.msra.mxu0 0
    %850 = vmatprep.subr.bf16.mxu0 0
    %851 = vmatpush1.bf16.msra.mxu0 0
    %852 = vmatprep.subr.bf16.mxu0 0
    %853 = vmatpush1.bf16.msra.mxu0 0
    %854 = vmatprep.subr.bf16.mxu0 0
    %855 = vmatpush1.bf16.msra.mxu0 0
    %856 = vmatprep.subr.bf16.mxu0 0
    %857 = vmatpush1.bf16.msra.mxu0 0
    %858 = vmatprep.subr.bf16.mxu0 0
    %859 = vmatpush1.bf16.msra.mxu0 0
    %860 = vmatprep.subr.bf16.mxu0 0
    %861 = vmatpush1.bf16.msra.mxu0 0
    %862 = vmatprep.subr.bf16.mxu0 0
    %863 = vmatpush1.bf16.msra.mxu0 0
    %864 = vmatprep.subr.bf16.mxu0 0
    %865 = vmatpush1.bf16.msra.mxu0 0
    %866 = vmatprep.subr.bf16.mxu0 0
    %867 = vmatpush1.bf16.msra.mxu0 0
    %868 = vmatprep.subr.bf16.mxu0 0
    %869 = vmatpush1.bf16.msra.mxu0 0
    %870 = vmatprep.subr.bf16.mxu0 0
    %871 = vmatpush1.bf16.msra.mxu0 0
    %872 = vmatprep.subr.bf16.mxu0 0
    %873 = vmatpush1.bf16.msra.mxu0 0
    %874 = vmatprep.subr.bf16.mxu0 0
    %875 = vmatpush1.bf16.msra.mxu0 0
    %876 = vmatprep.subr.bf16.mxu0 0
    %877 = vmatpush1.bf16.msra.mxu0 0
    %878 = vmatprep.mubr.bf16.mxu0 0
    %879 = vmatmul.mubr.bf16.gmra.mrb[0].mxu0 %v841
    %v880 = vpop.f32.mrb[0].mxu0
    %v881 = vadd.f32 0.0, %v880
    %v882 = vpop.f32.mrb[0].mxu0
    %v883 = vpop.f32.mrb[0].mxu0
    %v884 = vpop.f32.mrb[0].mxu0
    %885 = vdwg.mxu0
    %886 = vrot.lane.b32.xlu0 %v131, 64
    %v887 = vpop.permute.xlu0 %886
    %v889 = vsel %vm138, %v642, 0
    %v892 = vsel %vm650, %v887, 0
    %894 = vmatprep.subr.bf16.mxu0 0
    %895 = vmatpush1.bf16.msra.mxu0 %v892
    %896 = vmatprep.subr.bf16.mxu0 0
    %897 = vmatpush1.bf16.msra.mxu0 0
    %898 = vmatprep.subr.bf16.mxu0 0
    %899 = vmatpush1.bf16.msra.mxu0 0
    %900 = vmatprep.subr.bf16.mxu0 0
    %901 = vmatpush1.bf16.msra.mxu0 0
    %902 = vmatprep.subr.bf16.mxu0 0
    %903 = vmatpush1.bf16.msra.mxu0 0
    %904 = vmatprep.subr.bf16.mxu0 0
    %905 = vmatpush1.bf16.msra.mxu0 0
    %906 = vmatprep.subr.bf16.mxu0 0
    %907 = vmatpush1.bf16.msra.mxu0 0
    %908 = vmatprep.subr.bf16.mxu0 0
    %909 = vmatpush1.bf16.msra.mxu0 0
    %910 = vmatprep.subr.bf16.mxu0 0
    %911 = vmatpush1.bf16.msra.mxu0 0
    %912 = vmatprep.subr.bf16.mxu0 0
    %913 = vmatpush1.bf16.msra.mxu0 0
    %914 = vmatprep.subr.bf16.mxu0 0
    %915 = vmatpush1.bf16.msra.mxu0 0
    %916 = vmatprep.subr.bf16.mxu0 0
    %917 = vmatpush1.bf16.msra.mxu0 0
    %918 = vmatprep.subr.bf16.mxu0 0
    %919 = vmatpush1.bf16.msra.mxu0 0
    %920 = vmatprep.subr.bf16.mxu0 0
    %921 = vmatpush1.bf16.msra.mxu0 0
    %922 = vmatprep.subr.bf16.mxu0 0
    %923 = vmatpush1.bf16.msra.mxu0 0
    %924 = vmatprep.subr.bf16.mxu0 0
    %925 = vmatpush1.bf16.msra.mxu0 0
    %926 = vmatprep.mubr.bf16.mxu0 0
    %927 = vmatmul.mubr.bf16.gmra.mrb[0].mxu0 %v889
    %v928 = vpop.f32.mrb[0].mxu0
    %v929 = vadd.f32 0.0, %v928
    %v930 = vpop.f32.mrb[0].mxu0
    %v931 = vpop.f32.mrb[0].mxu0
    %v932 = vpop.f32.mrb[0].mxu0
    %933 = vdwg.mxu0
    %934 = vrot.lane.b32.xlu0 %v133, 64
    %v935 = vpop.permute.xlu0 %934
    %v937 = vsel %vm138, %v643, 0
    %v940 = vsel %vm650, %v935, 0
    %942 = vmatprep.subr.bf16.mxu0 0
    %943 = vmatpush1.bf16.msra.mxu0 %v940
    %944 = vmatprep.subr.bf16.mxu0 0
    %945 = vmatpush1.bf16.msra.mxu0 0
    %946 = vmatprep.subr.bf16.mxu0 0
    %947 = vmatpush1.bf16.msra.mxu0 0
    %948 = vmatprep.subr.bf16.mxu0 0
    %949 = vmatpush1.bf16.msra.mxu0 0
    %950 = vmatprep.subr.bf16.mxu0 0
    %951 = vmatpush1.bf16.msra.mxu0 0
    %952 = vmatprep.subr.bf16.mxu0 0
    %953 = vmatpush1.bf16.msra.mxu0 0
    %954 = vmatprep.subr.bf16.mxu0 0
    %955 = vmatpush1.bf16.msra.mxu0 0
    %956 = vmatprep.subr.bf16.mxu0 0
    %957 = vmatpush1.bf16.msra.mxu0 0
    %958 = vmatprep.subr.bf16.mxu0 0
    %959 = vmatpush1.bf16.msra.mxu0 0
    %960 = vmatprep.subr.bf16.mxu0 0
    %961 = vmatpush1.bf16.msra.mxu0 0
    %962 = vmatprep.subr.bf16.mxu0 0
    %963 = vmatpush1.bf16.msra.mxu0 0
    %964 = vmatprep.subr.bf16.mxu0 0
    %965 = vmatpush1.bf16.msra.mxu0 0
    %966 = vmatprep.subr.bf16.mxu0 0
    %967 = vmatpush1.bf16.msra.mxu0 0
    %968 = vmatprep.subr.bf16.mxu0 0
    %969 = vmatpush1.bf16.msra.mxu0 0
    %970 = vmatprep.subr.bf16.mxu0 0
    %971 = vmatpush1.bf16.msra.mxu0 0
    %972 = vmatprep.subr.bf16.mxu0 0
    %973 = vmatpush1.bf16.msra.mxu0 0
    %974 = vmatprep.mubr.bf16.mxu0 0
    %975 = vmatmul.mubr.bf16.gmra.mrb[0].mxu0 %v937
    %v976 = vpop.f32.mrb[0].mxu0
    %v977 = vadd.f32 0.0, %v976
    %v978 = vpop.f32.mrb[0].mxu0
    %v979 = vpop.f32.mrb[0].mxu0
    %v980 = vpop.f32.mrb[0].mxu0
    %981 = vdwg.mxu0
    %982 = vrot.lane.b32.xlu0 %v135, 64
    %v983 = vpop.permute.xlu0 %982
    %v985 = vsel %vm138, %v644, 0
    %v988 = vsel %vm650, %v983, 0
    %990 = vmatprep.subr.bf16.mxu0 0
    %991 = vmatpush1.bf16.msra.mxu0 %v988
    %992 = vmatprep.subr.bf16.mxu0 0
    %993 = vmatpush1.bf16.msra.mxu0 0
    %994 = vmatprep.subr.bf16.mxu0 0
    %995 = vmatpush1.bf16.msra.mxu0 0
    %996 = vmatprep.subr.bf16.mxu0 0
    %997 = vmatpush1.bf16.msra.mxu0 0
    %998 = vmatprep.subr.bf16.mxu0 0
    %999 = vmatpush1.bf16.msra.mxu0 0
    %1000 = vmatprep.subr.bf16.mxu0 0
    %1001 = vmatpush1.bf16.msra.mxu0 0
    %1002 = vmatprep.subr.bf16.mxu0 0
    %1003 = vmatpush1.bf16.msra.mxu0 0
    %1004 = vmatprep.subr.bf16.mxu0 0
    %1005 = vmatpush1.bf16.msra.mxu0 0
    %1006 = vmatprep.subr.bf16.mxu0 0
    %1007 = vmatpush1.bf16.msra.mxu0 0
    %1008 = vmatprep.subr.bf16.mxu0 0
    %1009 = vmatpush1.bf16.msra.mxu0 0
    %1010 = vmatprep.subr.bf16.mxu0 0
    %1011 = vmatpush1.bf16.msra.mxu0 0
    %1012 = vmatprep.subr.bf16.mxu0 0
    %1013 = vmatpush1.bf16.msra.mxu0 0
    %1014 = vmatprep.subr.bf16.mxu0 0
    %1015 = vmatpush1.bf16.msra.mxu0 0
    %1016 = vmatprep.subr.bf16.mxu0 0
    %1017 = vmatpush1.bf16.msra.mxu0 0
    %1018 = vmatprep.subr.bf16.mxu0 0
    %1019 = vmatpush1.bf16.msra.mxu0 0
    %1020 = vmatprep.subr.bf16.mxu0 0
    %1021 = vmatpush1.bf16.msra.mxu0 0
    %1022 = vmatprep.mubr.bf16.mxu0 0
    %1023 = vmatmul.mubr.bf16.gmra.mrb[0].mxu0 %v985
    %v1024 = vpop.f32.mrb[0].mxu0
    %v1025 = vadd.f32 0.0, %v1024
    %v1026 = vpop.f32.mrb[0].mxu0
    %v1027 = vpop.f32.mrb[0].mxu0
    %v1028 = vpop.f32.mrb[0].mxu0
    %1029 = vdwg.mxu0
    %1032 = vrot.lane.b32.xlu0 %v785, 8
    %v1033 = vpop.permute.xlu0 %1032
    %1034 = vrot.lane.b32.xlu0 %v833, 8
    %v1035 = vpop.permute.xlu0 %1034
    %1040 = vrot.lane.b32.xlu0 %v881, 16
    %v1041 = vpop.permute.xlu0 %1040
    %1042 = vrot.lane.b32.xlu0 %v929, 16
    %v1043 = vpop.permute.xlu0 %1042
    %1048 = vrot.lane.b32.xlu0 %v977, 24
    %v1049 = vpop.permute.xlu0 %1048
    %1050 = vrot.lane.b32.xlu0 %v1025, 24
    %v1051 = vpop.permute.xlu0 %1050
    %v1054 = vsel %vm138, %v689, %v1033
    %v1055 = vsel %vm138, %v737, %v1035
    %vm1056 = vcmask 130048
    %v1057 = vsel %vm1056, %v1054, %v1041
    %v1058 = vsel %vm1056, %v1055, %v1043
    %vm1059 = vcmask 195584
    %v1060 = vsel %vm1059, %v1057, %v1049
    %v1061 = vsel %vm1059, %v1058, %v1051
    %v1062 = vpack.c.bf16 %v1061, %v1060
    %v1063 = vld [vmem:[%s4] sm:$0xf]
    %v1064 = vld [vmem:[%s4 + $0x4] sm:$0xf]
    %v1065 = vld [vmem:[%s4 + $0x8] sm:$0xf]
    %v1066 = vld [vmem:[%s4 + $0xc] sm:$0xf]
    %v1067 = vlaneseq
    %v1068 = vshrl.u32 %v1067, 7
    %v1069 = vsub.s32 0, %v1068
    %v1070 = vrot.slane %v50, %v1069
    %v1075 = vunpack.c.l.b16 %v1063
    %v1076 = vunpack.c.l.b16 %v1064
    %v1077 = vunpack.c.l.b16 %v1065
    %v1078 = vunpack.c.l.b16 %v1066
    %v1079 = vpack.c.b16 %v1076, %v1075
    %v1080 = vpack.c.b16 %v1078, %v1077
    %v1084 = vsel %vm75, %v1062, 0
    %1086 = vmatprep.subr.bf16.mxu0 0
    %1087 = vmatpush1.bf16.msra.mxu0 %v1079
    %1088 = vmatprep.subr.bf16.mxu0 0
    %1089 = vmatpush1.bf16.msra.mxu0 %v1080
    %1090 = vmatprep.subr.bf16.mxu0 0
    %1091 = vmatpush1.bf16.msra.mxu0 0
    %1092 = vmatprep.subr.bf16.mxu0 0
    %1093 = vmatpush1.bf16.msra.mxu0 0
    %1094 = vmatprep.subr.bf16.mxu0 0
    %1095 = vmatpush1.bf16.msra.mxu0 0
    %1096 = vmatprep.subr.bf16.mxu0 0
    %1097 = vmatpush1.bf16.msra.mxu0 0
    %1098 = vmatprep.subr.bf16.mxu0 0
    %1099 = vmatpush1.bf16.msra.mxu0 0
    %1100 = vmatprep.subr.bf16.mxu0 0
    %1101 = vmatpush1.bf16.msra.mxu0 0
    %1102 = vmatprep.subr.bf16.mxu0 0
    %1103 = vmatpush1.bf16.msra.mxu0 0
    %1104 = vmatprep.subr.bf16.mxu0 0
    %1105 = vmatpush1.bf16.msra.mxu0 0
    %1106 = vmatprep.subr.bf16.mxu0 0
    %1107 = vmatpush1.bf16.msra.mxu0 0
    %1108 = vmatprep.subr.bf16.mxu0 0
    %1109 = vmatpush1.bf16.msra.mxu0 0
    %1110 = vmatprep.subr.bf16.mxu0 0
    %1111 = vmatpush1.bf16.msra.mxu0 0
    %1112 = vmatprep.subr.bf16.mxu0 0
    %1113 = vmatpush1.bf16.msra.mxu0 0
    %1114 = vmatprep.subr.bf16.mxu0 0
    %1115 = vmatpush1.bf16.msra.mxu0 0
    %1116 = vmatprep.subr.bf16.mxu0 0
    %1117 = vmatpush1.bf16.msra.mxu0 0
    %1118 = vmatprep.mubr.bf16.mxu0 0
    %1119 = vmatmul.mubr.bf16.gmra.mrb[0].mxu0 %v1084
    %v1120 = vpop.f32.mrb[0].mxu0
    %v1121 = vadd.f32 %v1070, %v1120
    %v1122 = vpop.f32.mrb[0].mxu0
    %v1123 = vpop.f32.mrb[0].mxu0
    %v1124 = vadd.f32 %v1070, %v1123
    %v1125 = vpop.f32.mrb[0].mxu0
    %1126 = vdwg.mxu0
    %v1127 = vadd.f32 %v48, %v1121
    %v1128 = vadd.f32 %v49, %v1124
    %v1129 = vsel %vm75, %v1127, 0.0
    %1130 = vadd.xlane.f32.xlu0 %v1129
    %v1131 = vpop.xlane.xlu0 %1130
    %v1132 = vsel %vm75, %v1128, 0.0
    %1133 = vadd.xlane.f32.xlu0 %v1132
    %v1134 = vpop.xlane.xlu0 %1133
    %v1135 = vrcp.pop 32.0
    %v1136 = vmul.f32 %v1131, %v1135
    %v1137 = vmul.f32 %v1134, %v1135
    %v1138 = vsub.f32 %v1127, %v1136
    %v1139 = vsub.f32 %v1128, %v1137
    %v1140 = vmul.f32 %v1138, %v1138
    %v1141 = vmul.f32 %v1139, %v1139
    %v1142 = vsel %vm75, %v1140, 0.0
    %1143 = vadd.xlane.f32.xlu0 %v1142
    %v1144 = vpop.xlane.xlu0 %1143
    %v1145 = vsel %vm75, %v1141, 0.0
    %1146 = vadd.xlane.f32.xlu0 %v1145
    %v1147 = vpop.xlane.xlu0 %1146
    %v1148 = vmul.f32 %v1144, %v1135
    %v1149 = vmul.f32 %v1147, %v1135
    %v1150 = vadd.f32 %v1148, 1e-05
    %v1151 = vadd.f32 %v1149, 1e-05
    %v1152 = vrsqrt.pop %v1150
    %v1153 = vrsqrt.pop %v1151
    %v1154 = vmul.f32 %v1138, %v1152
    %v1155 = vmul.f32 %v1139, %v1153
    %v1156 = vlaneseq
    %v1157 = vshrl.u32 %v1156, 7
    %v1158 = vsub.s32 1, %v1157
    %v1159 = vrot.slane %v50, %v1158
    %v1160 = vmul.f32 %v1154, %v1159
    %v1161 = vmul.f32 %v1155, %v1159
    %v1162 = vlaneseq
    %v1163 = vshrl.u32 %v1162, 7
    %v1164 = vsub.s32 2, %v1163
    %v1165 = vrot.slane %v50, %v1164
    %v1166 = vadd.f32 %v1160, %v1165
    %v1167 = vadd.f32 %v1161, %v1165
    %v1168 = vpack.c.bf16 %v1167, %v1166
    %v1169 = vld [vmem:[%s6] sm:$0xff]
    %v1170 = vld [vmem:[%s6 + $0x8] sm:$0xff]
    %v1171 = vld [vmem:[%s6 + $0x10] sm:$0xff]
    %v1172 = vld [vmem:[%s6 + $0x18] sm:$0xff]
    %v1173 = vld [vmem:[%s6 + $0x20] sm:$0xff]
    %v1174 = vld [vmem:[%s6 + $0x28] sm:$0xff]
    %v1175 = vld [vmem:[%s6 + $0x30] sm:$0xff]
    %v1176 = vld [vmem:[%s6 + $0x38] sm:$0xff]
    %v1177 = vld [vmem:[%s6 + $0x40] sm:$0xff]
    %v1178 = vld [vmem:[%s6 + $0x48] sm:$0xff]
    %v1179 = vld [vmem:[%s6 + $0x50] sm:$0xff]
    %v1180 = vld [vmem:[%s6 + $0x58] sm:$0xff]
    %v1181 = vld [vmem:[%s6 + $0x60] sm:$0xff]
    %v1182 = vld [vmem:[%s6 + $0x68] sm:$0xff]
    %v1183 = vld [vmem:[%s6 + $0x70] sm:$0xff]
    %v1184 = vld [vmem:[%s6 + $0x78] sm:$0xff]
    %v1185 = vld [vmem:[%s6 + $0x80] sm:$0xff]
    %v1186 = vld [vmem:[%s6 + $0x88] sm:$0xff]
    %v1187 = vld [vmem:[%s6 + $0x90] sm:$0xff]
    %v1188 = vld [vmem:[%s6 + $0x98] sm:$0xff]
    %v1189 = vld [vmem:[%s6 + $0xa0] sm:$0xff]
    %v1190 = vld [vmem:[%s6 + $0xa8] sm:$0xff]
    %v1191 = vld [vmem:[%s6 + $0xb0] sm:$0xff]
    %v1192 = vld [vmem:[%s6 + $0xb8] sm:$0xff]
    %v1193 = vld [vmem:[%s6 + $0xc0] sm:$0xff]
    %v1194 = vld [vmem:[%s6 + $0xc8] sm:$0xff]
    %v1195 = vld [vmem:[%s6 + $0xd0] sm:$0xff]
    %v1196 = vld [vmem:[%s6 + $0xd8] sm:$0xff]
    %v1197 = vld [vmem:[%s6 + $0xe0] sm:$0xff]
    %v1198 = vld [vmem:[%s6 + $0xe8] sm:$0xff]
    %v1199 = vld [vmem:[%s6 + $0xf0] sm:$0xff]
    %v1200 = vld [vmem:[%s6 + $0xf8] sm:$0xff]
    %v1201 = vld [vmem:[%s7] sm:$0xff]
    %v1202 = vld [vmem:[%s7 + $0x8] sm:$0xff]
    %v1205 = vlaneseq
    %v1206 = vshrl.u32 %v1205, 7
    %v1207 = vsub.s32 0, %v1206
    %v1208 = vrot.slane %v1201, %v1207
    %v1209 = vlaneseq
    %v1210 = vshrl.u32 %v1209, 7
    %v1211 = vsub.s32 1, %v1210
    %v1212 = vrot.slane %v1201, %v1211
    %v1213 = vlaneseq
    %v1214 = vshrl.u32 %v1213, 7
    %v1215 = vsub.s32 2, %v1214
    %v1216 = vrot.slane %v1201, %v1215
    %v1217 = vlaneseq
    %v1218 = vshrl.u32 %v1217, 7
    %v1219 = vsub.s32 3, %v1218
    %v1220 = vrot.slane %v1201, %v1219
    %v1221 = vlaneseq
    %v1222 = vshrl.u32 %v1221, 7
    %v1223 = vsub.s32 4, %v1222
    %v1224 = vrot.slane %v1201, %v1223
    %v1225 = vlaneseq
    %v1226 = vshrl.u32 %v1225, 7
    %v1227 = vsub.s32 5, %v1226
    %v1228 = vrot.slane %v1201, %v1227
    %v1229 = vlaneseq
    %v1230 = vshrl.u32 %v1229, 7
    %v1231 = vsub.s32 6, %v1230
    %v1232 = vrot.slane %v1201, %v1231
    %v1233 = vlaneseq
    %v1234 = vshrl.u32 %v1233, 7
    %v1235 = vsub.s32 7, %v1234
    %v1236 = vrot.slane %v1201, %v1235
    %v1237 = vlaneseq
    %v1238 = vshrl.u32 %v1237, 7
    %v1239 = vsub.s32 0, %v1238
    %v1240 = vrot.slane %v1202, %v1239
    %v1241 = vlaneseq
    %v1242 = vshrl.u32 %v1241, 7
    %v1243 = vsub.s32 1, %v1242
    %v1244 = vrot.slane %v1202, %v1243
    %v1245 = vlaneseq
    %v1246 = vshrl.u32 %v1245, 7
    %v1247 = vsub.s32 2, %v1246
    %v1248 = vrot.slane %v1202, %v1247
    %v1249 = vlaneseq
    %v1250 = vshrl.u32 %v1249, 7
    %v1251 = vsub.s32 3, %v1250
    %v1252 = vrot.slane %v1202, %v1251
    %v1253 = vlaneseq
    %v1254 = vshrl.u32 %v1253, 7
    %v1255 = vsub.s32 4, %v1254
    %v1256 = vrot.slane %v1202, %v1255
    %v1257 = vlaneseq
    %v1258 = vshrl.u32 %v1257, 7
    %v1259 = vsub.s32 5, %v1258
    %v1260 = vrot.slane %v1202, %v1259
    %v1261 = vlaneseq
    %v1262 = vshrl.u32 %v1261, 7
    %v1263 = vsub.s32 6, %v1262
    %v1264 = vrot.slane %v1202, %v1263
    %v1265 = vlaneseq
    %v1266 = vshrl.u32 %v1265, 7
    %v1267 = vsub.s32 7, %v1266
    %v1268 = vrot.slane %v1202, %v1267
    %v1317 = vunpack.c.l.b16 %v1169
    %v1318 = vunpack.c.h.b16 %v1169
    %v1319 = vunpack.c.l.b16 %v1170
    %v1320 = vunpack.c.h.b16 %v1170
    %v1321 = vunpack.c.l.b16 %v1171
    %v1322 = vunpack.c.h.b16 %v1171
    %v1323 = vunpack.c.l.b16 %v1172
    %v1324 = vunpack.c.h.b16 %v1172
    %v1325 = vunpack.c.l.b16 %v1173
    %v1326 = vunpack.c.h.b16 %v1173
    %v1327 = vunpack.c.l.b16 %v1174
    %v1328 = vunpack.c.h.b16 %v1174
    %v1329 = vunpack.c.l.b16 %v1175
    %v1330 = vunpack.c.h.b16 %v1175
    %v1331 = vunpack.c.l.b16 %v1176
    %v1332 = vunpack.c.h.b16 %v1176
    %v1333 = vunpack.c.l.b16 %v1177
    %v1334 = vunpack.c.h.b16 %v1177
    %v1335 = vunpack.c.l.b16 %v1178
    %v1336 = vunpack.c.h.b16 %v1178
    %v1337 = vunpack.c.l.b16 %v1179
    %v1338 = vunpack.c.h.b16 %v1179
    %v1339 = vunpack.c.l.b16 %v1180
    %v1340 = vunpack.c.h.b16 %v1180
    %v1341 = vunpack.c.l.b16 %v1181
    %v1342 = vunpack.c.h.b16 %v1181
    %v1343 = vunpack.c.l.b16 %v1182
    %v1344 = vunpack.c.h.b16 %v1182
    %v1345 = vunpack.c.l.b16 %v1183
    %v1346 = vunpack.c.h.b16 %v1183
    %v1347 = vunpack.c.l.b16 %v1184
    %v1348 = vunpack.c.h.b16 %v1184
    %v1349 = vunpack.c.l.b16 %v1185
    %v1350 = vunpack.c.h.b16 %v1185
    %v1351 = vunpack.c.l.b16 %v1186
    %v1352 = vunpack.c.h.b16 %v1186
    %v1353 = vunpack.c.l.b16 %v1187
    %v1354 = vunpack.c.h.b16 %v1187
    %v1355 = vunpack.c.l.b16 %v1188
    %v1356 = vunpack.c.h.b16 %v1188
    %v1357 = vunpack.c.l.b16 %v1189
    %v1358 = vunpack.c.h.b16 %v1189
    %v1359 = vunpack.c.l.b16 %v1190
    %v1360 = vunpack.c.h.b16 %v1190
    %v1361 = vunpack.c.l.b16 %v1191
    %v1362 = vunpack.c.h.b16 %v1191
    %v1363 = vunpack.c.l.b16 %v1192
    %v1364 = vunpack.c.h.b16 %v1192
    %v1365 = vunpack.c.l.b16 %v1193
    %v1366 = vunpack.c.h.b16 %v1193
    %v1367 = vunpack.c.l.b16 %v1194
    %v1368 = vunpack.c.h.b16 %v1194
    %v1369 = vunpack.c.l.b16 %v1195
    %v1370 = vunpack.c.h.b16 %v1195
    %v1371 = vunpack.c.l.b16 %v1196
    %v1372 = vunpack.c.h.b16 %v1196
    %v1373 = vunpack.c.l.b16 %v1197
    %v1374 = vunpack.c.h.b16 %v1197
    %v1375 = vunpack.c.l.b16 %v1198
    %v1376 = vunpack.c.h.b16 %v1198
    %v1377 = vunpack.c.l.b16 %v1199
    %v1378 = vunpack.c.h.b16 %v1199
    %v1379 = vunpack.c.l.b16 %v1200
    %v1380 = vunpack.c.h.b16 %v1200
    %v1381 = vpack.c.b16 %v1333, %v1317
    %v1382 = vpack.c.b16 %v1334, %v1318
    %v1383 = vpack.c.b16 %v1335, %v1319
    %v1384 = vpack.c.b16 %v1336, %v1320
    %v1385 = vpack.c.b16 %v1337, %v1321
    %v1386 = vpack.c.b16 %v1338, %v1322
    %v1387 = vpack.c.b16 %v1339, %v1323
    %v1388 = vpack.c.b16 %v1340, %v1324
    %v1389 = vpack.c.b16 %v1341, %v1325
    %v1390 = vpack.c.b16 %v1342, %v1326
    %v1391 = vpack.c.b16 %v1343, %v1327
    %v1392 = vpack.c.b16 %v1344, %v1328
    %v1393 = vpack.c.b16 %v1345, %v1329
    %v1394 = vpack.c.b16 %v1346, %v1330
    %v1395 = vpack.c.b16 %v1347, %v1331
    %v1396 = vpack.c.b16 %v1348, %v1332
    %v1397 = vpack.c.b16 %v1365, %v1349
    %v1398 = vpack.c.b16 %v1366, %v1350
    %v1399 = vpack.c.b16 %v1367, %v1351
    %v1400 = vpack.c.b16 %v1368, %v1352
    %v1401 = vpack.c.b16 %v1369, %v1353
    %v1402 = vpack.c.b16 %v1370, %v1354
    %v1403 = vpack.c.b16 %v1371, %v1355
    %v1404 = vpack.c.b16 %v1372, %v1356
    %v1405 = vpack.c.b16 %v1373, %v1357
    %v1406 = vpack.c.b16 %v1374, %v1358
    %v1407 = vpack.c.b16 %v1375, %v1359
    %v1408 = vpack.c.b16 %v1376, %v1360
    %v1409 = vpack.c.b16 %v1377, %v1361
    %v1410 = vpack.c.b16 %v1378, %v1362
    %v1411 = vpack.c.b16 %v1379, %v1363
    %v1412 = vpack.c.b16 %v1380, %v1364
    %v1446 = vsel %vm75, %v1168, 0
    %1448 = vmatprep.subr.bf16.mxu0 %v1382
    %1449 = vmatpush1.bf16.msra.mxu0 %v1381
    %1450 = vmatprep.subr.bf16.mxu0 %v1398
    %1451 = vmatpush1.bf16.msra.mxu0 %v1397
    %1452 = vmatprep.subr.bf16.mxu0 0
    %1453 = vmatpush1.bf16.msra.mxu0 0
    %1454 = vmatprep.subr.bf16.mxu0 0
    %1455 = vmatpush1.bf16.msra.mxu0 0
    %1456 = vmatprep.subr.bf16.mxu0 0
    %1457 = vmatpush1.bf16.msra.mxu0 0
    %1458 = vmatprep.subr.bf16.mxu0 0
    %1459 = vmatpush1.bf16.msra.mxu0 0
    %1460 = vmatprep.subr.bf16.mxu0 0
    %1461 = vmatpush1.bf16.msra.mxu0 0
    %1462 = vmatprep.subr.bf16.mxu0 0
    %1463 = vmatpush1.bf16.msra.mxu0 0
    %1464 = vmatprep.subr.bf16.mxu0 0
    %1465 = vmatpush1.bf16.msra.mxu0 0
    %1466 = vmatprep.subr.bf16.mxu0 0
    %1467 = vmatpush1.bf16.msra.mxu0 0
    %1468 = vmatprep.subr.bf16.mxu0 0
    %1469 = vmatpush1.bf16.msra.mxu0 0
    %1470 = vmatprep.subr.bf16.mxu0 0
    %1471 = vmatpush1.bf16.msra.mxu0 0
    %1472 = vmatprep.subr.bf16.mxu0 0
    %1473 = vmatpush1.bf16.msra.mxu0 0
    %1474 = vmatprep.subr.bf16.mxu0 0
    %1475 = vmatpush1.bf16.msra.mxu0 0
    %1476 = vmatprep.subr.bf16.mxu0 0
    %1477 = vmatpush1.bf16.msra.mxu0 0
    %1478 = vmatprep.subr.bf16.mxu0 0
    %1479 = vmatpush1.bf16.msra.mxu0 0
    %1480 = vmatprep.mubr.bf16.mxu0 0
    %1481 = vmatmul.mubr.bf16.gmra.mrb[0].mxu0 %v1446
    %v1482 = vpop.f32.mrb[0].mxu0
    %v1483 = vadd.f32 %v1208, %v1482
    %v1484 = vpop.f32.mrb[0].mxu0
    %v1485 = vadd.f32 %v1212, %v1484
    %v1486 = vpop.f32.mrb[0].mxu0
    %v1487 = vadd.f32 %v1208, %v1486
    %v1488 = vpop.f32.mrb[0].mxu0
    %v1489 = vadd.f32 %v1212, %v1488
    %1490 = vdwg.mxu0
    %1491 = vmatprep.subr.bf16.mxu0 %v1384
    %1492 = vmatpush1.bf16.msra.mxu0 %v1383
    %1493 = vmatprep.subr.bf16.mxu0 %v1400
    %1494 = vmatpush1.bf16.msra.mxu0 %v1399
    %1495 = vmatprep.subr.bf16.mxu0 0
    %1496 = vmatpush1.bf16.msra.mxu0 0
    %1497 = vmatprep.subr.bf16.mxu0 0
    %1498 = vmatpush1.bf16.msra.mxu0 0
    %1499 = vmatprep.subr.bf16.mxu0 0
    %1500 = vmatpush1.bf16.msra.mxu0 0
    %1501 = vmatprep.subr.bf16.mxu0 0
    %1502 = vmatpush1.bf16.msra.mxu0 0
    %1503 = vmatprep.subr.bf16.mxu0 0
    %1504 = vmatpush1.bf16.msra.mxu0 0
    %1505 = vmatprep.subr.bf16.mxu0 0
    %1506 = vmatpush1.bf16.msra.mxu0 0
    %1507 = vmatprep.subr.bf16.mxu0 0
    %1508 = vmatpush1.bf16.msra.mxu0 0
    %1509 = vmatprep.subr.bf16.mxu0 0
    %1510 = vmatpush1.bf16.msra.mxu0 0
    %1511 = vmatprep.subr.bf16.mxu0 0
    %1512 = vmatpush1.bf16.msra.mxu0 0
    %1513 = vmatprep.subr.bf16.mxu0 0
    %1514 = vmatpush1.bf16.msra.mxu0 0
    %1515 = vmatprep.subr.bf16.mxu0 0
    %1516 = vmatpush1.bf16.msra.mxu0 0
    %1517 = vmatprep.subr.bf16.mxu0 0
    %1518 = vmatpush1.bf16.msra.mxu0 0
    %1519 = vmatprep.subr.bf16.mxu0 0
    %1520 = vmatpush1.bf16.msra.mxu0 0
    %1521 = vmatprep.subr.bf16.mxu0 0
    %1522 = vmatpush1.bf16.msra.mxu0 0
    %1523 = vmatprep.mubr.bf16.mxu0 0
    %1524 = vmatmul.mubr.bf16.gmra.mrb[0].mxu0 %v1446
    %v1525 = vpop.f32.mrb[0].mxu0
    %v1526 = vadd.f32 %v1216, %v1525
    %v1527 = vpop.f32.mrb[0].mxu0
    %v1528 = vadd.f32 %v1220, %v1527
    %v1529 = vpop.f32.mrb[0].mxu0
    %v1530 = vadd.f32 %v1216, %v1529
    %v1531 = vpop.f32.mrb[0].mxu0
    %v1532 = vadd.f32 %v1220, %v1531
    %1533 = vdwg.mxu0
    %1534 = vmatprep.subr.bf16.mxu0 %v1386
    %1535 = vmatpush1.bf16.msra.mxu0 %v1385
    %1536 = vmatprep.subr.bf16.mxu0 %v1402
    %1537 = vmatpush1.bf16.msra.mxu0 %v1401
    %1538 = vmatprep.subr.bf16.mxu0 0
    %1539 = vmatpush1.bf16.msra.mxu0 0
    %1540 = vmatprep.subr.bf16.mxu0 0
    %1541 = vmatpush1.bf16.msra.mxu0 0
    %1542 = vmatprep.subr.bf16.mxu0 0
    %1543 = vmatpush1.bf16.msra.mxu0 0
    %1544 = vmatprep.subr.bf16.mxu0 0
    %1545 = vmatpush1.bf16.msra.mxu0 0
    %1546 = vmatprep.subr.bf16.mxu0 0
    %1547 = vmatpush1.bf16.msra.mxu0 0
    %1548 = vmatprep.subr.bf16.mxu0 0
    %1549 = vmatpush1.bf16.msra.mxu0 0
    %1550 = vmatprep.subr.bf16.mxu0 0
    %1551 = vmatpush1.bf16.msra.mxu0 0
    %1552 = vmatprep.subr.bf16.mxu0 0
    %1553 = vmatpush1.bf16.msra.mxu0 0
    %1554 = vmatprep.subr.bf16.mxu0 0
    %1555 = vmatpush1.bf16.msra.mxu0 0
    %1556 = vmatprep.subr.bf16.mxu0 0
    %1557 = vmatpush1.bf16.msra.mxu0 0
    %1558 = vmatprep.subr.bf16.mxu0 0
    %1559 = vmatpush1.bf16.msra.mxu0 0
    %1560 = vmatprep.subr.bf16.mxu0 0
    %1561 = vmatpush1.bf16.msra.mxu0 0
    %1562 = vmatprep.subr.bf16.mxu0 0
    %1563 = vmatpush1.bf16.msra.mxu0 0
    %1564 = vmatprep.subr.bf16.mxu0 0
    %1565 = vmatpush1.bf16.msra.mxu0 0
    %1566 = vmatprep.mubr.bf16.mxu0 0
    %1567 = vmatmul.mubr.bf16.gmra.mrb[0].mxu0 %v1446
    %v1568 = vpop.f32.mrb[0].mxu0
    %v1569 = vadd.f32 %v1224, %v1568
    %v1570 = vpop.f32.mrb[0].mxu0
    %v1571 = vadd.f32 %v1228, %v1570
    %v1572 = vpop.f32.mrb[0].mxu0
    %v1573 = vadd.f32 %v1224, %v1572
    %v1574 = vpop.f32.mrb[0].mxu0
    %v1575 = vadd.f32 %v1228, %v1574
    %1576 = vdwg.mxu0
    %1577 = vmatprep.subr.bf16.mxu0 %v1388
    %1578 = vmatpush1.bf16.msra.mxu0 %v1387
    %1579 = vmatprep.subr.bf16.mxu0 %v1404
    %1580 = vmatpush1.bf16.msra.mxu0 %v1403
    %1581 = vmatprep.subr.bf16.mxu0 0
    %1582 = vmatpush1.bf16.msra.mxu0 0
    %1583 = vmatprep.subr.bf16.mxu0 0
    %1584 = vmatpush1.bf16.msra.mxu0 0
    %1585 = vmatprep.subr.bf16.mxu0 0
    %1586 = vmatpush1.bf16.msra.mxu0 0
    %1587 = vmatprep.subr.bf16.mxu0 0
    %1588 = vmatpush1.bf16.msra.mxu0 0
    %1589 = vmatprep.subr.bf16.mxu0 0
    %1590 = vmatpush1.bf16.msra.mxu0 0
    %1591 = vmatprep.subr.bf16.mxu0 0
    %1592 = vmatpush1.bf16.msra.mxu0 0
    %1593 = vmatprep.subr.bf16.mxu0 0
    %1594 = vmatpush1.bf16.msra.mxu0 0
    %1595 = vmatprep.subr.bf16.mxu0 0
    %1596 = vmatpush1.bf16.msra.mxu0 0
    %1597 = vmatprep.subr.bf16.mxu0 0
    %1598 = vmatpush1.bf16.msra.mxu0 0
    %1599 = vmatprep.subr.bf16.mxu0 0
    %1600 = vmatpush1.bf16.msra.mxu0 0
    %1601 = vmatprep.subr.bf16.mxu0 0
    %1602 = vmatpush1.bf16.msra.mxu0 0
    %1603 = vmatprep.subr.bf16.mxu0 0
    %1604 = vmatpush1.bf16.msra.mxu0 0
    %1605 = vmatprep.subr.bf16.mxu0 0
    %1606 = vmatpush1.bf16.msra.mxu0 0
    %1607 = vmatprep.subr.bf16.mxu0 0
    %1608 = vmatpush1.bf16.msra.mxu0 0
    %1609 = vmatprep.mubr.bf16.mxu0 0
    %1610 = vmatmul.mubr.bf16.gmra.mrb[0].mxu0 %v1446
    %v1611 = vpop.f32.mrb[0].mxu0
    %v1612 = vadd.f32 %v1232, %v1611
    %v1613 = vpop.f32.mrb[0].mxu0
    %v1614 = vadd.f32 %v1236, %v1613
    %v1615 = vpop.f32.mrb[0].mxu0
    %v1616 = vadd.f32 %v1232, %v1615
    %v1617 = vpop.f32.mrb[0].mxu0
    %v1618 = vadd.f32 %v1236, %v1617
    %1619 = vdwg.mxu0
    %1620 = vmatprep.subr.bf16.mxu0 %v1390
    %1621 = vmatpush1.bf16.msra.mxu0 %v1389
    %1622 = vmatprep.subr.bf16.mxu0 %v1406
    %1623 = vmatpush1.bf16.msra.mxu0 %v1405
    %1624 = vmatprep.subr.bf16.mxu0 0
    %1625 = vmatpush1.bf16.msra.mxu0 0
    %1626 = vmatprep.subr.bf16.mxu0 0
    %1627 = vmatpush1.bf16.msra.mxu0 0
    %1628 = vmatprep.subr.bf16.mxu0 0
    %1629 = vmatpush1.bf16.msra.mxu0 0
    %1630 = vmatprep.subr.bf16.mxu0 0
    %1631 = vmatpush1.bf16.msra.mxu0 0
    %1632 = vmatprep.subr.bf16.mxu0 0
    %1633 = vmatpush1.bf16.msra.mxu0 0
    %1634 = vmatprep.subr.bf16.mxu0 0
    %1635 = vmatpush1.bf16.msra.mxu0 0
    %1636 = vmatprep.subr.bf16.mxu0 0
    %1637 = vmatpush1.bf16.msra.mxu0 0
    %1638 = vmatprep.subr.bf16.mxu0 0
    %1639 = vmatpush1.bf16.msra.mxu0 0
    %1640 = vmatprep.subr.bf16.mxu0 0
    %1641 = vmatpush1.bf16.msra.mxu0 0
    %1642 = vmatprep.subr.bf16.mxu0 0
    %1643 = vmatpush1.bf16.msra.mxu0 0
    %1644 = vmatprep.subr.bf16.mxu0 0
    %1645 = vmatpush1.bf16.msra.mxu0 0
    %1646 = vmatprep.subr.bf16.mxu0 0
    %1647 = vmatpush1.bf16.msra.mxu0 0
    %1648 = vmatprep.subr.bf16.mxu0 0
    %1649 = vmatpush1.bf16.msra.mxu0 0
    %1650 = vmatprep.subr.bf16.mxu0 0
    %1651 = vmatpush1.bf16.msra.mxu0 0
    %1652 = vmatprep.mubr.bf16.mxu0 0
    %1653 = vmatmul.mubr.bf16.gmra.mrb[0].mxu0 %v1446
    %v1654 = vpop.f32.mrb[0].mxu0
    %v1655 = vadd.f32 %v1240, %v1654
    %v1656 = vpop.f32.mrb[0].mxu0
    %v1657 = vadd.f32 %v1244, %v1656
    %v1658 = vpop.f32.mrb[0].mxu0
    %v1659 = vadd.f32 %v1240, %v1658
    %v1660 = vpop.f32.mrb[0].mxu0
    %v1661 = vadd.f32 %v1244, %v1660
    %1662 = vdwg.mxu0
    %1663 = vmatprep.subr.bf16.mxu0 %v1392
    %1664 = vmatpush1.bf16.msra.mxu0 %v1391
    %1665 = vmatprep.subr.bf16.mxu0 %v1408
    %1666 = vmatpush1.bf16.msra.mxu0 %v1407
    %1667 = vmatprep.subr.bf16.mxu0 0
    %1668 = vmatpush1.bf16.msra.mxu0 0
    %1669 = vmatprep.subr.bf16.mxu0 0
    %1670 = vmatpush1.bf16.msra.mxu0 0
    %1671 = vmatprep.subr.bf16.mxu0 0
    %1672 = vmatpush1.bf16.msra.mxu0 0
    %1673 = vmatprep.subr.bf16.mxu0 0
    %1674 = vmatpush1.bf16.msra.mxu0 0
    %1675 = vmatprep.subr.bf16.mxu0 0
    %1676 = vmatpush1.bf16.msra.mxu0 0
    %1677 = vmatprep.subr.bf16.mxu0 0
    %1678 = vmatpush1.bf16.msra.mxu0 0
    %1679 = vmatprep.subr.bf16.mxu0 0
    %1680 = vmatpush1.bf16.msra.mxu0 0
    %1681 = vmatprep.subr.bf16.mxu0 0
    %1682 = vmatpush1.bf16.msra.mxu0 0
    %1683 = vmatprep.subr.bf16.mxu0 0
    %1684 = vmatpush1.bf16.msra.mxu0 0
    %1685 = vmatprep.subr.bf16.mxu0 0
    %1686 = vmatpush1.bf16.msra.mxu0 0
    %1687 = vmatprep.subr.bf16.mxu0 0
    %1688 = vmatpush1.bf16.msra.mxu0 0
    %1689 = vmatprep.subr.bf16.mxu0 0
    %1690 = vmatpush1.bf16.msra.mxu0 0
    %1691 = vmatprep.subr.bf16.mxu0 0
    %1692 = vmatpush1.bf16.msra.mxu0 0
    %1693 = vmatprep.subr.bf16.mxu0 0
    %1694 = vmatpush1.bf16.msra.mxu0 0
    %1695 = vmatprep.mubr.bf16.mxu0 0
    %1696 = vmatmul.mubr.bf16.gmra.mrb[0].mxu0 %v1446
    %v1697 = vpop.f32.mrb[0].mxu0
    %v1698 = vadd.f32 %v1248, %v1697
    %v1699 = vpop.f32.mrb[0].mxu0
    %v1700 = vadd.f32 %v1252, %v1699
    %v1701 = vpop.f32.mrb[0].mxu0
    %v1702 = vadd.f32 %v1248, %v1701
    %v1703 = vpop.f32.mrb[0].mxu0
    %v1704 = vadd.f32 %v1252, %v1703
    %1705 = vdwg.mxu0
    %1706 = vmatprep.subr.bf16.mxu0 %v1394
    %1707 = vmatpush1.bf16.msra.mxu0 %v1393
    %1708 = vmatprep.subr.bf16.mxu0 %v1410
    %1709 = vmatpush1.bf16.msra.mxu0 %v1409
    %1710 = vmatprep.subr.bf16.mxu0 0
    %1711 = vmatpush1.bf16.msra.mxu0 0
    %1712 = vmatprep.subr.bf16.mxu0 0
    %1713 = vmatpush1.bf16.msra.mxu0 0
    %1714 = vmatprep.subr.bf16.mxu0 0
    %1715 = vmatpush1.bf16.msra.mxu0 0
    %1716 = vmatprep.subr.bf16.mxu0 0
    %1717 = vmatpush1.bf16.msra.mxu0 0
    %1718 = vmatprep.subr.bf16.mxu0 0
    %1719 = vmatpush1.bf16.msra.mxu0 0
    %1720 = vmatprep.subr.bf16.mxu0 0
    %1721 = vmatpush1.bf16.msra.mxu0 0
    %1722 = vmatprep.subr.bf16.mxu0 0
    %1723 = vmatpush1.bf16.msra.mxu0 0
    %1724 = vmatprep.subr.bf16.mxu0 0
    %1725 = vmatpush1.bf16.msra.mxu0 0
    %1726 = vmatprep.subr.bf16.mxu0 0
    %1727 = vmatpush1.bf16.msra.mxu0 0
    %1728 = vmatprep.subr.bf16.mxu0 0
    %1729 = vmatpush1.bf16.msra.mxu0 0
    %1730 = vmatprep.subr.bf16.mxu0 0
    %1731 = vmatpush1.bf16.msra.mxu0 0
    %1732 = vmatprep.subr.bf16.mxu0 0
    %1733 = vmatpush1.bf16.msra.mxu0 0
    %1734 = vmatprep.subr.bf16.mxu0 0
    %1735 = vmatpush1.bf16.msra.mxu0 0
    %1736 = vmatprep.subr.bf16.mxu0 0
    %1737 = vmatpush1.bf16.msra.mxu0 0
    %1738 = vmatprep.mubr.bf16.mxu0 0
    %1739 = vmatmul.mubr.bf16.gmra.mrb[0].mxu0 %v1446
    %v1740 = vpop.f32.mrb[0].mxu0
    %v1741 = vadd.f32 %v1256, %v1740
    %v1742 = vpop.f32.mrb[0].mxu0
    %v1743 = vadd.f32 %v1260, %v1742
    %v1744 = vpop.f32.mrb[0].mxu0
    %v1745 = vadd.f32 %v1256, %v1744
    %v1746 = vpop.f32.mrb[0].mxu0
    %v1747 = vadd.f32 %v1260, %v1746
    %1748 = vdwg.mxu0
    %1749 = vmatprep.subr.bf16.mxu0 %v1396
    %1750 = vmatpush1.bf16.msra.mxu0 %v1395
    %1751 = vmatprep.subr.bf16.mxu0 %v1412
    %1752 = vmatpush1.bf16.msra.mxu0 %v1411
    %1753 = vmatprep.subr.bf16.mxu0 0
    %1754 = vmatpush1.bf16.msra.mxu0 0
    %1755 = vmatprep.subr.bf16.mxu0 0
    %1756 = vmatpush1.bf16.msra.mxu0 0
    %1757 = vmatprep.subr.bf16.mxu0 0
    %1758 = vmatpush1.bf16.msra.mxu0 0
    %1759 = vmatprep.subr.bf16.mxu0 0
    %1760 = vmatpush1.bf16.msra.mxu0 0
    %1761 = vmatprep.subr.bf16.mxu0 0
    %1762 = vmatpush1.bf16.msra.mxu0 0
    %1763 = vmatprep.subr.bf16.mxu0 0
    %1764 = vmatpush1.bf16.msra.mxu0 0
    %1765 = vmatprep.subr.bf16.mxu0 0
    %1766 = vmatpush1.bf16.msra.mxu0 0
    %1767 = vmatprep.subr.bf16.mxu0 0
    %1768 = vmatpush1.bf16.msra.mxu0 0
    %1769 = vmatprep.subr.bf16.mxu0 0
    %1770 = vmatpush1.bf16.msra.mxu0 0
    %1771 = vmatprep.subr.bf16.mxu0 0
    %1772 = vmatpush1.bf16.msra.mxu0 0
    %1773 = vmatprep.subr.bf16.mxu0 0
    %1774 = vmatpush1.bf16.msra.mxu0 0
    %1775 = vmatprep.subr.bf16.mxu0 0
    %1776 = vmatpush1.bf16.msra.mxu0 0
    %1777 = vmatprep.subr.bf16.mxu0 0
    %1778 = vmatpush1.bf16.msra.mxu0 0
    %1779 = vmatprep.subr.bf16.mxu0 0
    %1780 = vmatpush1.bf16.msra.mxu0 0
    %1781 = vmatprep.mubr.bf16.mxu0 0
    %1782 = vmatmul.mubr.bf16.gmra.mrb[0].mxu0 %v1446
    %v1783 = vpop.f32.mrb[0].mxu0
    %v1784 = vadd.f32 %v1264, %v1783
    %v1785 = vpop.f32.mrb[0].mxu0
    %v1786 = vadd.f32 %v1268, %v1785
    %v1787 = vpop.f32.mrb[0].mxu0
    %v1788 = vadd.f32 %v1264, %v1787
    %v1789 = vpop.f32.mrb[0].mxu0
    %v1790 = vadd.f32 %v1268, %v1789
    %1791 = vdwg.mxu0
    %v1792 = vmax.f32 %v1483, 0.0
    %v1793 = vmax.f32 %v1485, 0.0
    %v1794 = vmax.f32 %v1526, 0.0
    %v1795 = vmax.f32 %v1528, 0.0
    %v1796 = vmax.f32 %v1569, 0.0
    %v1797 = vmax.f32 %v1571, 0.0
    %v1798 = vmax.f32 %v1612, 0.0
    %v1799 = vmax.f32 %v1614, 0.0
    %v1800 = vmax.f32 %v1655, 0.0
    %v1801 = vmax.f32 %v1657, 0.0
    %v1802 = vmax.f32 %v1698, 0.0
    %v1803 = vmax.f32 %v1700, 0.0
    %v1804 = vmax.f32 %v1741, 0.0
    %v1805 = vmax.f32 %v1743, 0.0
    %v1806 = vmax.f32 %v1784, 0.0
    %v1807 = vmax.f32 %v1786, 0.0
    %v1808 = vmax.f32 %v1487, 0.0
    %v1809 = vmax.f32 %v1489, 0.0
    %v1810 = vmax.f32 %v1530, 0.0
    %v1811 = vmax.f32 %v1532, 0.0
    %v1812 = vmax.f32 %v1573, 0.0
    %v1813 = vmax.f32 %v1575, 0.0
    %v1814 = vmax.f32 %v1616, 0.0
    %v1815 = vmax.f32 %v1618, 0.0
    %v1816 = vmax.f32 %v1659, 0.0
    %v1817 = vmax.f32 %v1661, 0.0
    %v1818 = vmax.f32 %v1702, 0.0
    %v1819 = vmax.f32 %v1704, 0.0
    %v1820 = vmax.f32 %v1745, 0.0
    %v1821 = vmax.f32 %v1747, 0.0
    %v1822 = vmax.f32 %v1788, 0.0
    %v1823 = vmax.f32 %v1790, 0.0
    %v1824 = vpack.c.bf16 %v1808, %v1792
    %v1825 = vpack.c.bf16 %v1809, %v1793
    %v1826 = vpack.c.bf16 %v1810, %v1794
    %v1827 = vpack.c.bf16 %v1811, %v1795
    %v1828 = vpack.c.bf16 %v1812, %v1796
    %v1829 = vpack.c.bf16 %v1813, %v1797
    %v1830 = vpack.c.bf16 %v1814, %v1798
    %v1831 = vpack.c.bf16 %v1815, %v1799
    %v1832 = vpack.c.bf16 %v1816, %v1800
    %v1833 = vpack.c.bf16 %v1817, %v1801
    %v1834 = vpack.c.bf16 %v1818, %v1802
    %v1835 = vpack.c.bf16 %v1819, %v1803
    %v1836 = vpack.c.bf16 %v1820, %v1804
    %v1837 = vpack.c.bf16 %v1821, %v1805
    %v1838 = vpack.c.bf16 %v1822, %v1806
    %v1839 = vpack.c.bf16 %v1823, %v1807
    %v1840 = vld [vmem:[%s8] sm:$0xf]
    %v1841 = vld [vmem:[%s8 + $0x4] sm:$0xf]
    %v1842 = vld [vmem:[%s8 + $0x8] sm:$0xf]
    %v1843 = vld [vmem:[%s8 + $0xc] sm:$0xf]
    %v1844 = vld [vmem:[%s8 + $0x10] sm:$0xf]
    %v1845 = vld [vmem:[%s8 + $0x14] sm:$0xf]
    %v1846 = vld [vmem:[%s8 + $0x18] sm:$0xf]
    %v1847 = vld [vmem:[%s8 + $0x1c] sm:$0xf]
    %v1848 = vld [vmem:[%s8 + $0x20] sm:$0xf]
    %v1849 = vld [vmem:[%s8 + $0x24] sm:$0xf]
    %v1850 = vld [vmem:[%s8 + $0x28] sm:$0xf]
    %v1851 = vld [vmem:[%s8 + $0x2c] sm:$0xf]
    %v1852 = vld [vmem:[%s8 + $0x30] sm:$0xf]
    %v1853 = vld [vmem:[%s8 + $0x34] sm:$0xf]
    %v1854 = vld [vmem:[%s8 + $0x38] sm:$0xf]
    %v1855 = vld [vmem:[%s8 + $0x3c] sm:$0xf]
    %v1856 = vld [vmem:[%s8 + $0x40] sm:$0xf]
    %v1857 = vld [vmem:[%s8 + $0x44] sm:$0xf]
    %v1858 = vld [vmem:[%s8 + $0x48] sm:$0xf]
    %v1859 = vld [vmem:[%s8 + $0x4c] sm:$0xf]
    %v1860 = vld [vmem:[%s8 + $0x50] sm:$0xf]
    %v1861 = vld [vmem:[%s8 + $0x54] sm:$0xf]
    %v1862 = vld [vmem:[%s8 + $0x58] sm:$0xf]
    %v1863 = vld [vmem:[%s8 + $0x5c] sm:$0xf]
    %v1864 = vld [vmem:[%s8 + $0x60] sm:$0xf]
    %v1865 = vld [vmem:[%s8 + $0x64] sm:$0xf]
    %v1866 = vld [vmem:[%s8 + $0x68] sm:$0xf]
    %v1867 = vld [vmem:[%s8 + $0x6c] sm:$0xf]
    %v1868 = vld [vmem:[%s8 + $0x70] sm:$0xf]
    %v1869 = vld [vmem:[%s8 + $0x74] sm:$0xf]
    %v1870 = vld [vmem:[%s8 + $0x78] sm:$0xf]
    %v1871 = vld [vmem:[%s8 + $0x7c] sm:$0xf]
    %v1872 = vld [vmem:[%s8 + $0x80] sm:$0xf]
    %v1873 = vld [vmem:[%s8 + $0x84] sm:$0xf]
    %v1874 = vld [vmem:[%s8 + $0x88] sm:$0xf]
    %v1875 = vld [vmem:[%s8 + $0x8c] sm:$0xf]
    %v1876 = vld [vmem:[%s8 + $0x90] sm:$0xf]
    %v1877 = vld [vmem:[%s8 + $0x94] sm:$0xf]
    %v1878 = vld [vmem:[%s8 + $0x98] sm:$0xf]
    %v1879 = vld [vmem:[%s8 + $0x9c] sm:$0xf]
    %v1880 = vld [vmem:[%s8 + $0xa0] sm:$0xf]
    %v1881 = vld [vmem:[%s8 + $0xa4] sm:$0xf]
    %v1882 = vld [vmem:[%s8 + $0xa8] sm:$0xf]
    %v1883 = vld [vmem:[%s8 + $0xac] sm:$0xf]
    %v1884 = vld [vmem:[%s8 + $0xb0] sm:$0xf]
    %v1885 = vld [vmem:[%s8 + $0xb4] sm:$0xf]
    %v1886 = vld [vmem:[%s8 + $0xb8] sm:$0xf]
    %v1887 = vld [vmem:[%s8 + $0xbc] sm:$0xf]
    %v1888 = vld [vmem:[%s8 + $0xc0] sm:$0xf]
    %v1889 = vld [vmem:[%s8 + $0xc4] sm:$0xf]
    %v1890 = vld [vmem:[%s8 + $0xc8] sm:$0xf]
    %v1891 = vld [vmem:[%s8 + $0xcc] sm:$0xf]
    %v1892 = vld [vmem:[%s8 + $0xd0] sm:$0xf]
    %v1893 = vld [vmem:[%s8 + $0xd4] sm:$0xf]
    %v1894 = vld [vmem:[%s8 + $0xd8] sm:$0xf]
    %v1895 = vld [vmem:[%s8 + $0xdc] sm:$0xf]
    %v1896 = vld [vmem:[%s8 + $0xe0] sm:$0xf]
    %v1897 = vld [vmem:[%s8 + $0xe4] sm:$0xf]
    %v1898 = vld [vmem:[%s8 + $0xe8] sm:$0xf]
    %v1899 = vld [vmem:[%s8 + $0xec] sm:$0xf]
    %v1900 = vld [vmem:[%s8 + $0xf0] sm:$0xf]
    %v1901 = vld [vmem:[%s8 + $0xf4] sm:$0xf]
    %v1902 = vld [vmem:[%s8 + $0xf8] sm:$0xf]
    %v1903 = vld [vmem:[%s8 + $0xfc] sm:$0xf]
    %v1904 = vld [vmem:[%s8 + $0x100] sm:$0xf]
    %v1905 = vld [vmem:[%s8 + $0x104] sm:$0xf]
    %v1906 = vld [vmem:[%s8 + $0x108] sm:$0xf]
    %v1907 = vld [vmem:[%s8 + $0x10c] sm:$0xf]
    %v1908 = vld [vmem:[%s8 + $0x110] sm:$0xf]
    %v1909 = vld [vmem:[%s8 + $0x114] sm:$0xf]
    %v1910 = vld [vmem:[%s8 + $0x118] sm:$0xf]
    %v1911 = vld [vmem:[%s8 + $0x11c] sm:$0xf]
    %v1912 = vld [vmem:[%s8 + $0x120] sm:$0xf]
    %v1913 = vld [vmem:[%s8 + $0x124] sm:$0xf]
    %v1914 = vld [vmem:[%s8 + $0x128] sm:$0xf]
    %v1915 = vld [vmem:[%s8 + $0x12c] sm:$0xf]
    %v1916 = vld [vmem:[%s8 + $0x130] sm:$0xf]
    %v1917 = vld [vmem:[%s8 + $0x134] sm:$0xf]
    %v1918 = vld [vmem:[%s8 + $0x138] sm:$0xf]
    %v1919 = vld [vmem:[%s8 + $0x13c] sm:$0xf]
    %v1920 = vld [vmem:[%s8 + $0x140] sm:$0xf]
    %v1921 = vld [vmem:[%s8 + $0x144] sm:$0xf]
    %v1922 = vld [vmem:[%s8 + $0x148] sm:$0xf]
    %v1923 = vld [vmem:[%s8 + $0x14c] sm:$0xf]
    %v1924 = vld [vmem:[%s8 + $0x150] sm:$0xf]
    %v1925 = vld [vmem:[%s8 + $0x154] sm:$0xf]
    %v1926 = vld [vmem:[%s8 + $0x158] sm:$0xf]
    %v1927 = vld [vmem:[%s8 + $0x15c] sm:$0xf]
    %v1928 = vld [vmem:[%s8 + $0x160] sm:$0xf]
    %v1929 = vld [vmem:[%s8 + $0x164] sm:$0xf]
    %v1930 = vld [vmem:[%s8 + $0x168] sm:$0xf]
    %v1931 = vld [vmem:[%s8 + $0x16c] sm:$0xf]
    %v1932 = vld [vmem:[%s8 + $0x170] sm:$0xf]
    %v1933 = vld [vmem:[%s8 + $0x174] sm:$0xf]
    %v1934 = vld [vmem:[%s8 + $0x178] sm:$0xf]
    %v1935 = vld [vmem:[%s8 + $0x17c] sm:$0xf]
    %v1936 = vld [vmem:[%s8 + $0x180] sm:$0xf]
    %v1937 = vld [vmem:[%s8 + $0x184] sm:$0xf]
    %v1938 = vld [vmem:[%s8 + $0x188] sm:$0xf]
    %v1939 = vld [vmem:[%s8 + $0x18c] sm:$0xf]
    %v1940 = vld [vmem:[%s8 + $0x190] sm:$0xf]
    %v1941 = vld [vmem:[%s8 + $0x194] sm:$0xf]
    %v1942 = vld [vmem:[%s8 + $0x198] sm:$0xf]
    %v1943 = vld [vmem:[%s8 + $0x19c] sm:$0xf]
    %v1944 = vld [vmem:[%s8 + $0x1a0] sm:$0xf]
    %v1945 = vld [vmem:[%s8 + $0x1a4] sm:$0xf]
    %v1946 = vld [vmem:[%s8 + $0x1a8] sm:$0xf]
    %v1947 = vld [vmem:[%s8 + $0x1ac] sm:$0xf]
    %v1948 = vld [vmem:[%s8 + $0x1b0] sm:$0xf]
    %v1949 = vld [vmem:[%s8 + $0x1b4] sm:$0xf]
    %v1950 = vld [vmem:[%s8 + $0x1b8] sm:$0xf]
    %v1951 = vld [vmem:[%s8 + $0x1bc] sm:$0xf]
    %v1952 = vld [vmem:[%s8 + $0x1c0] sm:$0xf]
    %v1953 = vld [vmem:[%s8 + $0x1c4] sm:$0xf]
    %v1954 = vld [vmem:[%s8 + $0x1c8] sm:$0xf]
    %v1955 = vld [vmem:[%s8 + $0x1cc] sm:$0xf]
    %v1956 = vld [vmem:[%s8 + $0x1d0] sm:$0xf]
    %v1957 = vld [vmem:[%s8 + $0x1d4] sm:$0xf]
    %v1958 = vld [vmem:[%s8 + $0x1d8] sm:$0xf]
    %v1959 = vld [vmem:[%s8 + $0x1dc] sm:$0xf]
    %v1960 = vld [vmem:[%s8 + $0x1e0] sm:$0xf]
    %v1961 = vld [vmem:[%s8 + $0x1e4] sm:$0xf]
    %v1962 = vld [vmem:[%s8 + $0x1e8] sm:$0xf]
    %v1963 = vld [vmem:[%s8 + $0x1ec] sm:$0xf]
    %v1964 = vld [vmem:[%s8 + $0x1f0] sm:$0xf]
    %v1965 = vld [vmem:[%s8 + $0x1f4] sm:$0xf]
    %v1966 = vld [vmem:[%s8 + $0x1f8] sm:$0xf]
    %v1967 = vld [vmem:[%s8 + $0x1fc] sm:$0xf]
    %v1968 = vld [vmem:[%s8 + $0x200] sm:$0xf]
    %v1969 = vld [vmem:[%s8 + $0x204] sm:$0xf]
    %v1970 = vld [vmem:[%s8 + $0x208] sm:$0xf]
    %v1971 = vld [vmem:[%s8 + $0x20c] sm:$0xf]
    %v1972 = vld [vmem:[%s8 + $0x210] sm:$0xf]
    %v1973 = vld [vmem:[%s8 + $0x214] sm:$0xf]
    %v1974 = vld [vmem:[%s8 + $0x218] sm:$0xf]
    %v1975 = vld [vmem:[%s8 + $0x21c] sm:$0xf]
    %v1976 = vld [vmem:[%s8 + $0x220] sm:$0xf]
    %v1977 = vld [vmem:[%s8 + $0x224] sm:$0xf]
    %v1978 = vld [vmem:[%s8 + $0x228] sm:$0xf]
    %v1979 = vld [vmem:[%s8 + $0x22c] sm:$0xf]
    %v1980 = vld [vmem:[%s8 + $0x230] sm:$0xf]
    %v1981 = vld [vmem:[%s8 + $0x234] sm:$0xf]
    %v1982 = vld [vmem:[%s8 + $0x238] sm:$0xf]
    %v1983 = vld [vmem:[%s8 + $0x23c] sm:$0xf]
    %v1984 = vld [vmem:[%s8 + $0x240] sm:$0xf]
    %v1985 = vld [vmem:[%s8 + $0x244] sm:$0xf]
    %v1986 = vld [vmem:[%s8 + $0x248] sm:$0xf]
    %v1987 = vld [vmem:[%s8 + $0x24c] sm:$0xf]
    %v1988 = vld [vmem:[%s8 + $0x250] sm:$0xf]
    %v1989 = vld [vmem:[%s8 + $0x254] sm:$0xf]
    %v1990 = vld [vmem:[%s8 + $0x258] sm:$0xf]
    %v1991 = vld [vmem:[%s8 + $0x25c] sm:$0xf]
    %v1992 = vld [vmem:[%s8 + $0x260] sm:$0xf]
    %v1993 = vld [vmem:[%s8 + $0x264] sm:$0xf]
    %v1994 = vld [vmem:[%s8 + $0x268] sm:$0xf]
    %v1995 = vld [vmem:[%s8 + $0x26c] sm:$0xf]
    %v1996 = vld [vmem:[%s8 + $0x270] sm:$0xf]
    %v1997 = vld [vmem:[%s8 + $0x274] sm:$0xf]
    %v1998 = vld [vmem:[%s8 + $0x278] sm:$0xf]
    %v1999 = vld [vmem:[%s8 + $0x27c] sm:$0xf]
    %v2000 = vld [vmem:[%s8 + $0x280] sm:$0xf]
    %v2001 = vld [vmem:[%s8 + $0x284] sm:$0xf]
    %v2002 = vld [vmem:[%s8 + $0x288] sm:$0xf]
    %v2003 = vld [vmem:[%s8 + $0x28c] sm:$0xf]
    %v2004 = vld [vmem:[%s8 + $0x290] sm:$0xf]
    %v2005 = vld [vmem:[%s8 + $0x294] sm:$0xf]
    %v2006 = vld [vmem:[%s8 + $0x298] sm:$0xf]
    %v2007 = vld [vmem:[%s8 + $0x29c] sm:$0xf]
    %v2008 = vld [vmem:[%s8 + $0x2a0] sm:$0xf]
    %v2009 = vld [vmem:[%s8 + $0x2a4] sm:$0xf]
    %v2010 = vld [vmem:[%s8 + $0x2a8] sm:$0xf]
    %v2011 = vld [vmem:[%s8 + $0x2ac] sm:$0xf]
    %v2012 = vld [vmem:[%s8 + $0x2b0] sm:$0xf]
    %v2013 = vld [vmem:[%s8 + $0x2b4] sm:$0xf]
    %v2014 = vld [vmem:[%s8 + $0x2b8] sm:$0xf]
    %v2015 = vld [vmem:[%s8 + $0x2bc] sm:$0xf]
    %v2016 = vld [vmem:[%s8 + $0x2c0] sm:$0xf]
    %v2017 = vld [vmem:[%s8 + $0x2c4] sm:$0xf]
    %v2018 = vld [vmem:[%s8 + $0x2c8] sm:$0xf]
    %v2019 = vld [vmem:[%s8 + $0x2cc] sm:$0xf]
    %v2020 = vld [vmem:[%s8 + $0x2d0] sm:$0xf]
    %v2021 = vld [vmem:[%s8 + $0x2d4] sm:$0xf]
    %v2022 = vld [vmem:[%s8 + $0x2d8] sm:$0xf]
    %v2023 = vld [vmem:[%s8 + $0x2dc] sm:$0xf]
    %v2024 = vld [vmem:[%s8 + $0x2e0] sm:$0xf]
    %v2025 = vld [vmem:[%s8 + $0x2e4] sm:$0xf]
    %v2026 = vld [vmem:[%s8 + $0x2e8] sm:$0xf]
    %v2027 = vld [vmem:[%s8 + $0x2ec] sm:$0xf]
    %v2028 = vld [vmem:[%s8 + $0x2f0] sm:$0xf]
    %v2029 = vld [vmem:[%s8 + $0x2f4] sm:$0xf]
    %v2030 = vld [vmem:[%s8 + $0x2f8] sm:$0xf]
    %v2031 = vld [vmem:[%s8 + $0x2fc] sm:$0xf]
    %v2032 = vld [vmem:[%s8 + $0x300] sm:$0xf]
    %v2033 = vld [vmem:[%s8 + $0x304] sm:$0xf]
    %v2034 = vld [vmem:[%s8 + $0x308] sm:$0xf]
    %v2035 = vld [vmem:[%s8 + $0x30c] sm:$0xf]
    %v2036 = vld [vmem:[%s8 + $0x310] sm:$0xf]
    %v2037 = vld [vmem:[%s8 + $0x314] sm:$0xf]
    %v2038 = vld [vmem:[%s8 + $0x318] sm:$0xf]
    %v2039 = vld [vmem:[%s8 + $0x31c] sm:$0xf]
    %v2040 = vld [vmem:[%s8 + $0x320] sm:$0xf]
    %v2041 = vld [vmem:[%s8 + $0x324] sm:$0xf]
    %v2042 = vld [vmem:[%s8 + $0x328] sm:$0xf]
    %v2043 = vld [vmem:[%s8 + $0x32c] sm:$0xf]
    %v2044 = vld [vmem:[%s8 + $0x330] sm:$0xf]
    %v2045 = vld [vmem:[%s8 + $0x334] sm:$0xf]
    %v2046 = vld [vmem:[%s8 + $0x338] sm:$0xf]
    %v2047 = vld [vmem:[%s8 + $0x33c] sm:$0xf]
    %v2048 = vld [vmem:[%s8 + $0x340] sm:$0xf]
    %v2049 = vld [vmem:[%s8 + $0x344] sm:$0xf]
    %v2050 = vld [vmem:[%s8 + $0x348] sm:$0xf]
    %v2051 = vld [vmem:[%s8 + $0x34c] sm:$0xf]
    %v2052 = vld [vmem:[%s8 + $0x350] sm:$0xf]
    %v2053 = vld [vmem:[%s8 + $0x354] sm:$0xf]
    %v2054 = vld [vmem:[%s8 + $0x358] sm:$0xf]
    %v2055 = vld [vmem:[%s8 + $0x35c] sm:$0xf]
    %v2056 = vld [vmem:[%s8 + $0x360] sm:$0xf]
    %v2057 = vld [vmem:[%s8 + $0x364] sm:$0xf]
    %v2058 = vld [vmem:[%s8 + $0x368] sm:$0xf]
    %v2059 = vld [vmem:[%s8 + $0x36c] sm:$0xf]
    %v2060 = vld [vmem:[%s8 + $0x370] sm:$0xf]
    %v2061 = vld [vmem:[%s8 + $0x374] sm:$0xf]
    %v2062 = vld [vmem:[%s8 + $0x378] sm:$0xf]
    %v2063 = vld [vmem:[%s8 + $0x37c] sm:$0xf]
    %v2064 = vld [vmem:[%s8 + $0x380] sm:$0xf]
    %v2065 = vld [vmem:[%s8 + $0x384] sm:$0xf]
    %v2066 = vld [vmem:[%s8 + $0x388] sm:$0xf]
    %v2067 = vld [vmem:[%s8 + $0x38c] sm:$0xf]
    %v2068 = vld [vmem:[%s8 + $0x390] sm:$0xf]
    %v2069 = vld [vmem:[%s8 + $0x394] sm:$0xf]
    %v2070 = vld [vmem:[%s8 + $0x398] sm:$0xf]
    %v2071 = vld [vmem:[%s8 + $0x39c] sm:$0xf]
    %v2072 = vld [vmem:[%s8 + $0x3a0] sm:$0xf]
    %v2073 = vld [vmem:[%s8 + $0x3a4] sm:$0xf]
    %v2074 = vld [vmem:[%s8 + $0x3a8] sm:$0xf]
    %v2075 = vld [vmem:[%s8 + $0x3ac] sm:$0xf]
    %v2076 = vld [vmem:[%s8 + $0x3b0] sm:$0xf]
    %v2077 = vld [vmem:[%s8 + $0x3b4] sm:$0xf]
    %v2078 = vld [vmem:[%s8 + $0x3b8] sm:$0xf]
    %v2079 = vld [vmem:[%s8 + $0x3bc] sm:$0xf]
    %v2080 = vld [vmem:[%s8 + $0x3c0] sm:$0xf]
    %v2081 = vld [vmem:[%s8 + $0x3c4] sm:$0xf]
    %v2082 = vld [vmem:[%s8 + $0x3c8] sm:$0xf]
    %v2083 = vld [vmem:[%s8 + $0x3cc] sm:$0xf]
    %v2084 = vld [vmem:[%s8 + $0x3d0] sm:$0xf]
    %v2085 = vld [vmem:[%s8 + $0x3d4] sm:$0xf]
    %v2086 = vld [vmem:[%s8 + $0x3d8] sm:$0xf]
    %v2087 = vld [vmem:[%s8 + $0x3dc] sm:$0xf]
    %v2088 = vld [vmem:[%s8 + $0x3e0] sm:$0xf]
    %v2089 = vld [vmem:[%s8 + $0x3e4] sm:$0xf]
    %v2090 = vld [vmem:[%s8 + $0x3e8] sm:$0xf]
    %v2091 = vld [vmem:[%s8 + $0x3ec] sm:$0xf]
    %v2092 = vld [vmem:[%s8 + $0x3f0] sm:$0xf]
    %v2093 = vld [vmem:[%s8 + $0x3f4] sm:$0xf]
    %v2094 = vld [vmem:[%s8 + $0x3f8] sm:$0xf]
    %v2095 = vld [vmem:[%s8 + $0x3fc] sm:$0xf]
    %v2096 = vlaneseq
    %v2097 = vshrl.u32 %v2096, 7
    %v2098 = vsub.s32 3, %v2097
    %v2099 = vrot.slane %v50, %v2098
    %v2356 = vunpack.c.l.b16 %v1840
    %v2357 = vunpack.c.l.b16 %v1841
    %v2358 = vunpack.c.l.b16 %v1842
    %v2359 = vunpack.c.l.b16 %v1843
    %v2360 = vunpack.c.l.b16 %v1844
    %v2361 = vunpack.c.l.b16 %v1845
    %v2362 = vunpack.c.l.b16 %v1846
    %v2363 = vunpack.c.l.b16 %v1847
    %v2364 = vunpack.c.l.b16 %v1848
    %v2365 = vunpack.c.l.b16 %v1849
    %v2366 = vunpack.c.l.b16 %v1850
    %v2367 = vunpack.c.l.b16 %v1851
    %v2368 = vunpack.c.l.b16 %v1852
    %v2369 = vunpack.c.l.b16 %v1853
    %v2370 = vunpack.c.l.b16 %v1854
    %v2371 = vunpack.c.l.b16 %v1855
    %v2372 = vunpack.c.l.b16 %v1856
    %v2373 = vunpack.c.l.b16 %v1857
    %v2374 = vunpack.c.l.b16 %v1858
    %v2375 = vunpack.c.l.b16 %v1859
    %v2376 = vunpack.c.l.b16 %v1860
    %v2377 = vunpack.c.l.b16 %v1861
    %v2378 = vunpack.c.l.b16 %v1862
    %v2379 = vunpack.c.l.b16 %v1863
    %v2380 = vunpack.c.l.b16 %v1864
    %v2381 = vunpack.c.l.b16 %v1865
    %v2382 = vunpack.c.l.b16 %v1866
    %v2383 = vunpack.c.l.b16 %v1867
    %v2384 = vunpack.c.l.b16 %v1868
    %v2385 = vunpack.c.l.b16 %v1869
    %v2386 = vunpack.c.l.b16 %v1870
    %v2387 = vunpack.c.l.b16 %v1871
    %v2388 = vunpack.c.l.b16 %v1872
    %v2389 = vunpack.c.l.b16 %v1873
    %v2390 = vunpack.c.l.b16 %v1874
    %v2391 = vunpack.c.l.b16 %v1875
    %v2392 = vunpack.c.l.b16 %v1876
    %v2393 = vunpack.c.l.b16 %v1877
    %v2394 = vunpack.c.l.b16 %v1878
    %v2395 = vunpack.c.l.b16 %v1879
    %v2396 = vunpack.c.l.b16 %v1880
    %v2397 = vunpack.c.l.b16 %v1881
    %v2398 = vunpack.c.l.b16 %v1882
    %v2399 = vunpack.c.l.b16 %v1883
    %v2400 = vunpack.c.l.b16 %v1884
    %v2401 = vunpack.c.l.b16 %v1885
    %v2402 = vunpack.c.l.b16 %v1886
    %v2403 = vunpack.c.l.b16 %v1887
    %v2404 = vunpack.c.l.b16 %v1888
    %v2405 = vunpack.c.l.b16 %v1889
    %v2406 = vunpack.c.l.b16 %v1890
    %v2407 = vunpack.c.l.b16 %v1891
    %v2408 = vunpack.c.l.b16 %v1892
    %v2409 = vunpack.c.l.b16 %v1893
    %v2410 = vunpack.c.l.b16 %v1894
    %v2411 = vunpack.c.l.b16 %v1895
    %v2412 = vunpack.c.l.b16 %v1896
    %v2413 = vunpack.c.l.b16 %v1897
    %v2414 = vunpack.c.l.b16 %v1898
    %v2415 = vunpack.c.l.b16 %v1899
    %v2416 = vunpack.c.l.b16 %v1900
    %v2417 = vunpack.c.l.b16 %v1901
    %v2418 = vunpack.c.l.b16 %v1902
    %v2419 = vunpack.c.l.b16 %v1903
    %v2420 = vunpack.c.l.b16 %v1904
    %v2421 = vunpack.c.l.b16 %v1905
    %v2422 = vunpack.c.l.b16 %v1906
    %v2423 = vunpack.c.l.b16 %v1907
    %v2424 = vunpack.c.l.b16 %v1908
    %v2425 = vunpack.c.l.b16 %v1909
    %v2426 = vunpack.c.l.b16 %v1910
    %v2427 = vunpack.c.l.b16 %v1911
    %v2428 = vunpack.c.l.b16 %v1912
    %v2429 = vunpack.c.l.b16 %v1913
    %v2430 = vunpack.c.l.b16 %v1914
    %v2431 = vunpack.c.l.b16 %v1915
    %v2432 = vunpack.c.l.b16 %v1916
    %v2433 = vunpack.c.l.b16 %v1917
    %v2434 = vunpack.c.l.b16 %v1918
    %v2435 = vunpack.c.l.b16 %v1919
    %v2436 = vunpack.c.l.b16 %v1920
    %v2437 = vunpack.c.l.b16 %v1921
    %v2438 = vunpack.c.l.b16 %v1922
    %v2439 = vunpack.c.l.b16 %v1923
    %v2440 = vunpack.c.l.b16 %v1924
    %v2441 = vunpack.c.l.b16 %v1925
    %v2442 = vunpack.c.l.b16 %v1926
    %v2443 = vunpack.c.l.b16 %v1927
    %v2444 = vunpack.c.l.b16 %v1928
    %v2445 = vunpack.c.l.b16 %v1929
    %v2446 = vunpack.c.l.b16 %v1930
    %v2447 = vunpack.c.l.b16 %v1931
    %v2448 = vunpack.c.l.b16 %v1932
    %v2449 = vunpack.c.l.b16 %v1933
    %v2450 = vunpack.c.l.b16 %v1934
    %v2451 = vunpack.c.l.b16 %v1935
    %v2452 = vunpack.c.l.b16 %v1936
    %v2453 = vunpack.c.l.b16 %v1937
    %v2454 = vunpack.c.l.b16 %v1938
    %v2455 = vunpack.c.l.b16 %v1939
    %v2456 = vunpack.c.l.b16 %v1940
    %v2457 = vunpack.c.l.b16 %v1941
    %v2458 = vunpack.c.l.b16 %v1942
    %v2459 = vunpack.c.l.b16 %v1943
    %v2460 = vunpack.c.l.b16 %v1944
    %v2461 = vunpack.c.l.b16 %v1945
    %v2462 = vunpack.c.l.b16 %v1946
    %v2463 = vunpack.c.l.b16 %v1947
    %v2464 = vunpack.c.l.b16 %v1948
    %v2465 = vunpack.c.l.b16 %v1949
    %v2466 = vunpack.c.l.b16 %v1950
    %v2467 = vunpack.c.l.b16 %v1951
    %v2468 = vunpack.c.l.b16 %v1952
    %v2469 = vunpack.c.l.b16 %v1953
    %v2470 = vunpack.c.l.b16 %v1954
    %v2471 = vunpack.c.l.b16 %v1955
    %v2472 = vunpack.c.l.b16 %v1956
    %v2473 = vunpack.c.l.b16 %v1957
    %v2474 = vunpack.c.l.b16 %v1958
    %v2475 = vunpack.c.l.b16 %v1959
    %v2476 = vunpack.c.l.b16 %v1960
    %v2477 = vunpack.c.l.b16 %v1961
    %v2478 = vunpack.c.l.b16 %v1962
    %v2479 = vunpack.c.l.b16 %v1963
    %v2480 = vunpack.c.l.b16 %v1964
    %v2481 = vunpack.c.l.b16 %v1965
    %v2482 = vunpack.c.l.b16 %v1966
    %v2483 = vunpack.c.l.b16 %v1967
    %v2484 = vunpack.c.l.b16 %v1968
    %v2485 = vunpack.c.l.b16 %v1969
    %v2486 = vunpack.c.l.b16 %v1970
    %v2487 = vunpack.c.l.b16 %v1971
    %v2488 = vunpack.c.l.b16 %v1972
    %v2489 = vunpack.c.l.b16 %v1973
    %v2490 = vunpack.c.l.b16 %v1974
    %v2491 = vunpack.c.l.b16 %v1975
    %v2492 = vunpack.c.l.b16 %v1976
    %v2493 = vunpack.c.l.b16 %v1977
    %v2494 = vunpack.c.l.b16 %v1978
    %v2495 = vunpack.c.l.b16 %v1979
    %v2496 = vunpack.c.l.b16 %v1980
    %v2497 = vunpack.c.l.b16 %v1981
    %v2498 = vunpack.c.l.b16 %v1982
    %v2499 = vunpack.c.l.b16 %v1983
    %v2500 = vunpack.c.l.b16 %v1984
    %v2501 = vunpack.c.l.b16 %v1985
    %v2502 = vunpack.c.l.b16 %v1986
    %v2503 = vunpack.c.l.b16 %v1987
    %v2504 = vunpack.c.l.b16 %v1988
    %v2505 = vunpack.c.l.b16 %v1989
    %v2506 = vunpack.c.l.b16 %v1990
    %v2507 = vunpack.c.l.b16 %v1991
    %v2508 = vunpack.c.l.b16 %v1992
    %v2509 = vunpack.c.l.b16 %v1993
    %v2510 = vunpack.c.l.b16 %v1994
    %v2511 = vunpack.c.l.b16 %v1995
    %v2512 = vunpack.c.l.b16 %v1996
    %v2513 = vunpack.c.l.b16 %v1997
    %v2514 = vunpack.c.l.b16 %v1998
    %v2515 = vunpack.c.l.b16 %v1999
    %v2516 = vunpack.c.l.b16 %v2000
    %v2517 = vunpack.c.l.b16 %v2001
    %v2518 = vunpack.c.l.b16 %v2002
    %v2519 = vunpack.c.l.b16 %v2003
    %v2520 = vunpack.c.l.b16 %v2004
    %v2521 = vunpack.c.l.b16 %v2005
    %v2522 = vunpack.c.l.b16 %v2006
    %v2523 = vunpack.c.l.b16 %v2007
    %v2524 = vunpack.c.l.b16 %v2008
    %v2525 = vunpack.c.l.b16 %v2009
    %v2526 = vunpack.c.l.b16 %v2010
    %v2527 = vunpack.c.l.b16 %v2011
    %v2528 = vunpack.c.l.b16 %v2012
    %v2529 = vunpack.c.l.b16 %v2013
    %v2530 = vunpack.c.l.b16 %v2014
    %v2531 = vunpack.c.l.b16 %v2015
    %v2532 = vunpack.c.l.b16 %v2016
    %v2533 = vunpack.c.l.b16 %v2017
    %v2534 = vunpack.c.l.b16 %v2018
    %v2535 = vunpack.c.l.b16 %v2019
    %v2536 = vunpack.c.l.b16 %v2020
    %v2537 = vunpack.c.l.b16 %v2021
    %v2538 = vunpack.c.l.b16 %v2022
    %v2539 = vunpack.c.l.b16 %v2023
    %v2540 = vunpack.c.l.b16 %v2024
    %v2541 = vunpack.c.l.b16 %v2025
    %v2542 = vunpack.c.l.b16 %v2026
    %v2543 = vunpack.c.l.b16 %v2027
    %v2544 = vunpack.c.l.b16 %v2028
    %v2545 = vunpack.c.l.b16 %v2029
    %v2546 = vunpack.c.l.b16 %v2030
    %v2547 = vunpack.c.l.b16 %v2031
    %v2548 = vunpack.c.l.b16 %v2032
    %v2549 = vunpack.c.l.b16 %v2033
    %v2550 = vunpack.c.l.b16 %v2034
    %v2551 = vunpack.c.l.b16 %v2035
    %v2552 = vunpack.c.l.b16 %v2036
    %v2553 = vunpack.c.l.b16 %v2037
    %v2554 = vunpack.c.l.b16 %v2038
    %v2555 = vunpack.c.l.b16 %v2039
    %v2556 = vunpack.c.l.b16 %v2040
    %v2557 = vunpack.c.l.b16 %v2041
    %v2558 = vunpack.c.l.b16 %v2042
    %v2559 = vunpack.c.l.b16 %v2043
    %v2560 = vunpack.c.l.b16 %v2044
    %v2561 = vunpack.c.l.b16 %v2045
    %v2562 = vunpack.c.l.b16 %v2046
    %v2563 = vunpack.c.l.b16 %v2047
    %v2564 = vunpack.c.l.b16 %v2048
    %v2565 = vunpack.c.l.b16 %v2049
    %v2566 = vunpack.c.l.b16 %v2050
    %v2567 = vunpack.c.l.b16 %v2051
    %v2568 = vunpack.c.l.b16 %v2052
    %v2569 = vunpack.c.l.b16 %v2053
    %v2570 = vunpack.c.l.b16 %v2054
    %v2571 = vunpack.c.l.b16 %v2055
    %v2572 = vunpack.c.l.b16 %v2056
    %v2573 = vunpack.c.l.b16 %v2057
    %v2574 = vunpack.c.l.b16 %v2058
    %v2575 = vunpack.c.l.b16 %v2059
    %v2576 = vunpack.c.l.b16 %v2060
    %v2577 = vunpack.c.l.b16 %v2061
    %v2578 = vunpack.c.l.b16 %v2062
    %v2579 = vunpack.c.l.b16 %v2063
    %v2580 = vunpack.c.l.b16 %v2064
    %v2581 = vunpack.c.l.b16 %v2065
    %v2582 = vunpack.c.l.b16 %v2066
    %v2583 = vunpack.c.l.b16 %v2067
    %v2584 = vunpack.c.l.b16 %v2068
    %v2585 = vunpack.c.l.b16 %v2069
    %v2586 = vunpack.c.l.b16 %v2070
    %v2587 = vunpack.c.l.b16 %v2071
    %v2588 = vunpack.c.l.b16 %v2072
    %v2589 = vunpack.c.l.b16 %v2073
    %v2590 = vunpack.c.l.b16 %v2074
    %v2591 = vunpack.c.l.b16 %v2075
    %v2592 = vunpack.c.l.b16 %v2076
    %v2593 = vunpack.c.l.b16 %v2077
    %v2594 = vunpack.c.l.b16 %v2078
    %v2595 = vunpack.c.l.b16 %v2079
    %v2596 = vunpack.c.l.b16 %v2080
    %v2597 = vunpack.c.l.b16 %v2081
    %v2598 = vunpack.c.l.b16 %v2082
    %v2599 = vunpack.c.l.b16 %v2083
    %v2600 = vunpack.c.l.b16 %v2084
    %v2601 = vunpack.c.l.b16 %v2085
    %v2602 = vunpack.c.l.b16 %v2086
    %v2603 = vunpack.c.l.b16 %v2087
    %v2604 = vunpack.c.l.b16 %v2088
    %v2605 = vunpack.c.l.b16 %v2089
    %v2606 = vunpack.c.l.b16 %v2090
    %v2607 = vunpack.c.l.b16 %v2091
    %v2608 = vunpack.c.l.b16 %v2092
    %v2609 = vunpack.c.l.b16 %v2093
    %v2610 = vunpack.c.l.b16 %v2094
    %v2611 = vunpack.c.l.b16 %v2095
    %v2612 = vpack.c.b16 %v2357, %v2356
    %v2613 = vpack.c.b16 %v2359, %v2358
    %v2614 = vpack.c.b16 %v2361, %v2360
    %v2615 = vpack.c.b16 %v2363, %v2362
    %v2616 = vpack.c.b16 %v2365, %v2364
    %v2617 = vpack.c.b16 %v2367, %v2366
    %v2618 = vpack.c.b16 %v2369, %v2368
    %v2619 = vpack.c.b16 %v2371, %v2370
    %v2620 = vpack.c.b16 %v2373, %v2372
    %v2621 = vpack.c.b16 %v2375, %v2374
    %v2622 = vpack.c.b16 %v2377, %v2376
    %v2623 = vpack.c.b16 %v2379, %v2378
    %v2624 = vpack.c.b16 %v2381, %v2380
    %v2625 = vpack.c.b16 %v2383, %v2382
    %v2626 = vpack.c.b16 %v2385, %v2384
    %v2627 = vpack.c.b16 %v2387, %v2386
    %v2628 = vpack.c.b16 %v2389, %v2388
    %v2629 = vpack.c.b16 %v2391, %v2390
    %v2630 = vpack.c.b16 %v2393, %v2392
    %v2631 = vpack.c.b16 %v2395, %v2394
    %v2632 = vpack.c.b16 %v2397, %v2396
    %v2633 = vpack.c.b16 %v2399, %v2398
    %v2634 = vpack.c.b16 %v2401, %v2400
    %v2635 = vpack.c.b16 %v2403, %v2402
    %v2636 = vpack.c.b16 %v2405, %v2404
    %v2637 = vpack.c.b16 %v2407, %v2406
    %v2638 = vpack.c.b16 %v2409, %v2408
    %v2639 = vpack.c.b16 %v2411, %v2410
    %v2640 = vpack.c.b16 %v2413, %v2412
    %v2641 = vpack.c.b16 %v2415, %v2414
    %v2642 = vpack.c.b16 %v2417, %v2416
    %v2643 = vpack.c.b16 %v2419, %v2418
    %v2644 = vpack.c.b16 %v2421, %v2420
    %v2645 = vpack.c.b16 %v2423, %v2422
    %v2646 = vpack.c.b16 %v2425, %v2424
    %v2647 = vpack.c.b16 %v2427, %v2426
    %v2648 = vpack.c.b16 %v2429, %v2428
    %v2649 = vpack.c.b16 %v2431, %v2430
    %v2650 = vpack.c.b16 %v2433, %v2432
    %v2651 = vpack.c.b16 %v2435, %v2434
    %v2652 = vpack.c.b16 %v2437, %v2436
    %v2653 = vpack.c.b16 %v2439, %v2438
    %v2654 = vpack.c.b16 %v2441, %v2440
    %v2655 = vpack.c.b16 %v2443, %v2442
    %v2656 = vpack.c.b16 %v2445, %v2444
    %v2657 = vpack.c.b16 %v2447, %v2446
    %v2658 = vpack.c.b16 %v2449, %v2448
    %v2659 = vpack.c.b16 %v2451, %v2450
    %v2660 = vpack.c.b16 %v2453, %v2452
    %v2661 = vpack.c.b16 %v2455, %v2454
    %v2662 = vpack.c.b16 %v2457, %v2456
    %v2663 = vpack.c.b16 %v2459, %v2458
    %v2664 = vpack.c.b16 %v2461, %v2460
    %v2665 = vpack.c.b16 %v2463, %v2462
    %v2666 = vpack.c.b16 %v2465, %v2464
    %v2667 = vpack.c.b16 %v2467, %v2466
    %v2668 = vpack.c.b16 %v2469, %v2468
    %v2669 = vpack.c.b16 %v2471, %v2470
    %v2670 = vpack.c.b16 %v2473, %v2472
    %v2671 = vpack.c.b16 %v2475, %v2474
    %v2672 = vpack.c.b16 %v2477, %v2476
    %v2673 = vpack.c.b16 %v2479, %v2478
    %v2674 = vpack.c.b16 %v2481, %v2480
    %v2675 = vpack.c.b16 %v2483, %v2482
    %v2676 = vpack.c.b16 %v2485, %v2484
    %v2677 = vpack.c.b16 %v2487, %v2486
    %v2678 = vpack.c.b16 %v2489, %v2488
    %v2679 = vpack.c.b16 %v2491, %v2490
    %v2680 = vpack.c.b16 %v2493, %v2492
    %v2681 = vpack.c.b16 %v2495, %v2494
    %v2682 = vpack.c.b16 %v2497, %v2496
    %v2683 = vpack.c.b16 %v2499, %v2498
    %v2684 = vpack.c.b16 %v2501, %v2500
    %v2685 = vpack.c.b16 %v2503, %v2502
    %v2686 = vpack.c.b16 %v2505, %v2504
    %v2687 = vpack.c.b16 %v2507, %v2506
    %v2688 = vpack.c.b16 %v2509, %v2508
    %v2689 = vpack.c.b16 %v2511, %v2510
    %v2690 = vpack.c.b16 %v2513, %v2512
    %v2691 = vpack.c.b16 %v2515, %v2514
    %v2692 = vpack.c.b16 %v2517, %v2516
    %v2693 = vpack.c.b16 %v2519, %v2518
    %v2694 = vpack.c.b16 %v2521, %v2520
    %v2695 = vpack.c.b16 %v2523, %v2522
    %v2696 = vpack.c.b16 %v2525, %v2524
    %v2697 = vpack.c.b16 %v2527, %v2526
    %v2698 = vpack.c.b16 %v2529, %v2528
    %v2699 = vpack.c.b16 %v2531, %v2530
    %v2700 = vpack.c.b16 %v2533, %v2532
    %v2701 = vpack.c.b16 %v2535, %v2534
    %v2702 = vpack.c.b16 %v2537, %v2536
    %v2703 = vpack.c.b16 %v2539, %v2538
    %v2704 = vpack.c.b16 %v2541, %v2540
    %v2705 = vpack.c.b16 %v2543, %v2542
    %v2706 = vpack.c.b16 %v2545, %v2544
    %v2707 = vpack.c.b16 %v2547, %v2546
    %v2708 = vpack.c.b16 %v2549, %v2548
    %v2709 = vpack.c.b16 %v2551, %v2550
    %v2710 = vpack.c.b16 %v2553, %v2552
    %v2711 = vpack.c.b16 %v2555, %v2554
    %v2712 = vpack.c.b16 %v2557, %v2556
    %v2713 = vpack.c.b16 %v2559, %v2558
    %v2714 = vpack.c.b16 %v2561, %v2560
    %v2715 = vpack.c.b16 %v2563, %v2562
    %v2716 = vpack.c.b16 %v2565, %v2564
    %v2717 = vpack.c.b16 %v2567, %v2566
    %v2718 = vpack.c.b16 %v2569, %v2568
    %v2719 = vpack.c.b16 %v2571, %v2570
    %v2720 = vpack.c.b16 %v2573, %v2572
    %v2721 = vpack.c.b16 %v2575, %v2574
    %v2722 = vpack.c.b16 %v2577, %v2576
    %v2723 = vpack.c.b16 %v2579, %v2578
    %v2724 = vpack.c.b16 %v2581, %v2580
    %v2725 = vpack.c.b16 %v2583, %v2582
    %v2726 = vpack.c.b16 %v2585, %v2584
    %v2727 = vpack.c.b16 %v2587, %v2586
    %v2728 = vpack.c.b16 %v2589, %v2588
    %v2729 = vpack.c.b16 %v2591, %v2590
    %v2730 = vpack.c.b16 %v2593, %v2592
    %v2731 = vpack.c.b16 %v2595, %v2594
    %v2732 = vpack.c.b16 %v2597, %v2596
    %v2733 = vpack.c.b16 %v2599, %v2598
    %v2734 = vpack.c.b16 %v2601, %v2600
    %v2735 = vpack.c.b16 %v2603, %v2602
    %v2736 = vpack.c.b16 %v2605, %v2604
    %v2737 = vpack.c.b16 %v2607, %v2606
    %v2738 = vpack.c.b16 %v2609, %v2608
    %v2739 = vpack.c.b16 %v2611, %v2610
    %2868 = vmatprep.subr.bf16.mxu0 0
    %2869 = vmatpush1.bf16.msra.mxu0 %v2612
    %2870 = vmatprep.subr.bf16.mxu0 0
    %2871 = vmatpush1.bf16.msra.mxu0 %v2613
    %2872 = vmatprep.subr.bf16.mxu0 0
    %2873 = vmatpush1.bf16.msra.mxu0 %v2614
    %2874 = vmatprep.subr.bf16.mxu0 0
    %2875 = vmatpush1.bf16.msra.mxu0 %v2615
    %2876 = vmatprep.subr.bf16.mxu0 0
    %2877 = vmatpush1.bf16.msra.mxu0 %v2616
    %2878 = vmatprep.subr.bf16.mxu0 0
    %2879 = vmatpush1.bf16.msra.mxu0 %v2617
    %2880 = vmatprep.subr.bf16.mxu0 0
    %2881 = vmatpush1.bf16.msra.mxu0 %v2618
    %2882 = vmatprep.subr.bf16.mxu0 0
    %2883 = vmatpush1.bf16.msra.mxu0 %v2619
    %2884 = vmatprep.subr.bf16.mxu0 0
    %2885 = vmatpush1.bf16.msra.mxu0 %v2620
    %2886 = vmatprep.subr.bf16.mxu0 0
    %2887 = vmatpush1.bf16.msra.mxu0 %v2621
    %2888 = vmatprep.subr.bf16.mxu0 0
    %2889 = vmatpush1.bf16.msra.mxu0 %v2622
    %2890 = vmatprep.subr.bf16.mxu0 0
    %2891 = vmatpush1.bf16.msra.mxu0 %v2623
    %2892 = vmatprep.subr.bf16.mxu0 0
    %2893 = vmatpush1.bf16.msra.mxu0 %v2624
    %2894 = vmatprep.subr.bf16.mxu0 0
    %2895 = vmatpush1.bf16.msra.mxu0 %v2625
    %2896 = vmatprep.subr.bf16.mxu0 0
    %2897 = vmatpush1.bf16.msra.mxu0 %v2626
    %2898 = vmatprep.subr.bf16.mxu0 0
    %2899 = vmatpush1.bf16.msra.mxu0 %v2627
    %2900 = vmatprep.mubr.bf16.mxu0 %v1825
    %2901 = vmatmul.mubr.bf16.gmra.mrb[0].mxu0 %v1824
    %v2902 = vpop.f32.mrb[0].mxu0
    %v2903 = vadd.f32 %v2099, %v2902
    %v2904 = vpop.f32.mrb[0].mxu0
    %v2905 = vpop.f32.mrb[0].mxu0
    %v2906 = vadd.f32 %v2099, %v2905
    %v2907 = vpop.f32.mrb[0].mxu0
    %2908 = vdwg.mxu0
    %2909 = vmatprep.subr.bf16.mxu0 0
    %2910 = vmatpush1.bf16.msra.mxu0 %v2628
    %2911 = vmatprep.subr.bf16.mxu0 0
    %2912 = vmatpush1.bf16.msra.mxu0 %v2629
    %2913 = vmatprep.subr.bf16.mxu0 0
    %2914 = vmatpush1.bf16.msra.mxu0 %v2630
    %2915 = vmatprep.subr.bf16.mxu0 0
    %2916 = vmatpush1.bf16.msra.mxu0 %v2631
    %2917 = vmatprep.subr.bf16.mxu0 0
    %2918 = vmatpush1.bf16.msra.mxu0 %v2632
    %2919 = vmatprep.subr.bf16.mxu0 0
    %2920 = vmatpush1.bf16.msra.mxu0 %v2633
    %2921 = vmatprep.subr.bf16.mxu0 0
    %2922 = vmatpush1.bf16.msra.mxu0 %v2634
    %2923 = vmatprep.subr.bf16.mxu0 0
    %2924 = vmatpush1.bf16.msra.mxu0 %v2635
    %2925 = vmatprep.subr.bf16.mxu0 0
    %2926 = vmatpush1.bf16.msra.mxu0 %v2636
    %2927 = vmatprep.subr.bf16.mxu0 0
    %2928 = vmatpush1.bf16.msra.mxu0 %v2637
    %2929 = vmatprep.subr.bf16.mxu0 0
    %2930 = vmatpush1.bf16.msra.mxu0 %v2638
    %2931 = vmatprep.subr.bf16.mxu0 0
    %2932 = vmatpush1.bf16.msra.mxu0 %v2639
    %2933 = vmatprep.subr.bf16.mxu0 0
    %2934 = vmatpush1.bf16.msra.mxu0 %v2640
    %2935 = vmatprep.subr.bf16.mxu0 0
    %2936 = vmatpush1.bf16.msra.mxu0 %v2641
    %2937 = vmatprep.subr.bf16.mxu0 0
    %2938 = vmatpush1.bf16.msra.mxu0 %v2642
    %2939 = vmatprep.subr.bf16.mxu0 0
    %2940 = vmatpush1.bf16.msra.mxu0 %v2643
    %2941 = vmatprep.mubr.bf16.mxu0 %v1827
    %2942 = vmatmul.mubr.bf16.gmra.mrb[0].mxu0 %v1826
    %v2943 = vpop.f32.mrb[0].mxu0
    %v2944 = vadd.f32 %v2903, %v2943
    %v2945 = vpop.f32.mrb[0].mxu0
    %v2946 = vpop.f32.mrb[0].mxu0
    %v2947 = vadd.f32 %v2906, %v2946
    %v2948 = vpop.f32.mrb[0].mxu0
    %2949 = vdwg.mxu0
    %2950 = vmatprep.subr.bf16.mxu0 0
    %2951 = vmatpush1.bf16.msra.mxu0 %v2644
    %2952 = vmatprep.subr.bf16.mxu0 0
    %2953 = vmatpush1.bf16.msra.mxu0 %v2645
    %2954 = vmatprep.subr.bf16.mxu0 0
    %2955 = vmatpush1.bf16.msra.mxu0 %v2646
    %2956 = vmatprep.subr.bf16.mxu0 0
    %2957 = vmatpush1.bf16.msra.mxu0 %v2647
    %2958 = vmatprep.subr.bf16.mxu0 0
    %2959 = vmatpush1.bf16.msra.mxu0 %v2648
    %2960 = vmatprep.subr.bf16.mxu0 0
    %2961 = vmatpush1.bf16.msra.mxu0 %v2649
    %2962 = vmatprep.subr.bf16.mxu0 0
    %2963 = vmatpush1.bf16.msra.mxu0 %v2650
    %2964 = vmatprep.subr.bf16.mxu0 0
    %2965 = vmatpush1.bf16.msra.mxu0 %v2651
    %2966 = vmatprep.subr.bf16.mxu0 0
    %2967 = vmatpush1.bf16.msra.mxu0 %v2652
    %2968 = vmatprep.subr.bf16.mxu0 0
    %2969 = vmatpush1.bf16.msra.mxu0 %v2653
    %2970 = vmatprep.subr.bf16.mxu0 0
    %2971 = vmatpush1.bf16.msra.mxu0 %v2654
    %2972 = vmatprep.subr.bf16.mxu0 0
    %2973 = vmatpush1.bf16.msra.mxu0 %v2655
    %2974 = vmatprep.subr.bf16.mxu0 0
    %2975 = vmatpush1.bf16.msra.mxu0 %v2656
    %2976 = vmatprep.subr.bf16.mxu0 0
    %2977 = vmatpush1.bf16.msra.mxu0 %v2657
    %2978 = vmatprep.subr.bf16.mxu0 0
    %2979 = vmatpush1.bf16.msra.mxu0 %v2658
    %2980 = vmatprep.subr.bf16.mxu0 0
    %2981 = vmatpush1.bf16.msra.mxu0 %v2659
    %2982 = vmatprep.mubr.bf16.mxu0 %v1829
    %2983 = vmatmul.mubr.bf16.gmra.mrb[0].mxu0 %v1828
    %v2984 = vpop.f32.mrb[0].mxu0
    %v2985 = vadd.f32 %v2944, %v2984
    %v2986 = vpop.f32.mrb[0].mxu0
    %v2987 = vpop.f32.mrb[0].mxu0
    %v2988 = vadd.f32 %v2947, %v2987
    %v2989 = vpop.f32.mrb[0].mxu0
    %2990 = vdwg.mxu0
    %2991 = vmatprep.subr.bf16.mxu0 0
    %2992 = vmatpush1.bf16.msra.mxu0 %v2660
    %2993 = vmatprep.subr.bf16.mxu0 0
    %2994 = vmatpush1.bf16.msra.mxu0 %v2661
    %2995 = vmatprep.subr.bf16.mxu0 0
    %2996 = vmatpush1.bf16.msra.mxu0 %v2662
    %2997 = vmatprep.subr.bf16.mxu0 0
    %2998 = vmatpush1.bf16.msra.mxu0 %v2663
    %2999 = vmatprep.subr.bf16.mxu0 0
    %3000 = vmatpush1.bf16.msra.mxu0 %v2664
    %3001 = vmatprep.subr.bf16.mxu0 0
    %3002 = vmatpush1.bf16.msra.mxu0 %v2665
    %3003 = vmatprep.subr.bf16.mxu0 0
    %3004 = vmatpush1.bf16.msra.mxu0 %v2666
    %3005 = vmatprep.subr.bf16.mxu0 0
    %3006 = vmatpush1.bf16.msra.mxu0 %v2667
    %3007 = vmatprep.subr.bf16.mxu0 0
    %3008 = vmatpush1.bf16.msra.mxu0 %v2668
    %3009 = vmatprep.subr.bf16.mxu0 0
    %3010 = vmatpush1.bf16.msra.mxu0 %v2669
    %3011 = vmatprep.subr.bf16.mxu0 0
    %3012 = vmatpush1.bf16.msra.mxu0 %v2670
    %3013 = vmatprep.subr.bf16.mxu0 0
    %3014 = vmatpush1.bf16.msra.mxu0 %v2671
    %3015 = vmatprep.subr.bf16.mxu0 0
    %3016 = vmatpush1.bf16.msra.mxu0 %v2672
    %3017 = vmatprep.subr.bf16.mxu0 0
    %3018 = vmatpush1.bf16.msra.mxu0 %v2673
    %3019 = vmatprep.subr.bf16.mxu0 0
    %3020 = vmatpush1.bf16.msra.mxu0 %v2674
    %3021 = vmatprep.subr.bf16.mxu0 0
    %3022 = vmatpush1.bf16.msra.mxu0 %v2675
    %3023 = vmatprep.mubr.bf16.mxu0 %v1831
    %3024 = vmatmul.mubr.bf16.gmra.mrb[0].mxu0 %v1830
    %v3025 = vpop.f32.mrb[0].mxu0
    %v3026 = vadd.f32 %v2985, %v3025
    %v3027 = vpop.f32.mrb[0].mxu0
    %v3028 = vpop.f32.mrb[0].mxu0
    %v3029 = vadd.f32 %v2988, %v3028
    %v3030 = vpop.f32.mrb[0].mxu0
    %3031 = vdwg.mxu0
    %3032 = vmatprep.subr.bf16.mxu0 0
    %3033 = vmatpush1.bf16.msra.mxu0 %v2676
    %3034 = vmatprep.subr.bf16.mxu0 0
    %3035 = vmatpush1.bf16.msra.mxu0 %v2677
    %3036 = vmatprep.subr.bf16.mxu0 0
    %3037 = vmatpush1.bf16.msra.mxu0 %v2678
    %3038 = vmatprep.subr.bf16.mxu0 0
    %3039 = vmatpush1.bf16.msra.mxu0 %v2679
    %3040 = vmatprep.subr.bf16.mxu0 0
    %3041 = vmatpush1.bf16.msra.mxu0 %v2680
    %3042 = vmatprep.subr.bf16.mxu0 0
    %3043 = vmatpush1.bf16.msra.mxu0 %v2681
    %3044 = vmatprep.subr.bf16.mxu0 0
    %3045 = vmatpush1.bf16.msra.mxu0 %v2682
    %3046 = vmatprep.subr.bf16.mxu0 0
    %3047 = vmatpush1.bf16.msra.mxu0 %v2683
    %3048 = vmatprep.subr.bf16.mxu0 0
    %3049 = vmatpush1.bf16.msra.mxu0 %v2684
    %3050 = vmatprep.subr.bf16.mxu0 0
    %3051 = vmatpush1.bf16.msra.mxu0 %v2685
    %3052 = vmatprep.subr.bf16.mxu0 0
    %3053 = vmatpush1.bf16.msra.mxu0 %v2686
    %3054 = vmatprep.subr.bf16.mxu0 0
    %3055 = vmatpush1.bf16.msra.mxu0 %v2687
    %3056 = vmatprep.subr.bf16.mxu0 0
    %3057 = vmatpush1.bf16.msra.mxu0 %v2688
    %3058 = vmatprep.subr.bf16.mxu0 0
    %3059 = vmatpush1.bf16.msra.mxu0 %v2689
    %3060 = vmatprep.subr.bf16.mxu0 0
    %3061 = vmatpush1.bf16.msra.mxu0 %v2690
    %3062 = vmatprep.subr.bf16.mxu0 0
    %3063 = vmatpush1.bf16.msra.mxu0 %v2691
    %3064 = vmatprep.mubr.bf16.mxu0 %v1833
    %3065 = vmatmul.mubr.bf16.gmra.mrb[0].mxu0 %v1832
    %v3066 = vpop.f32.mrb[0].mxu0
    %v3067 = vadd.f32 %v3026, %v3066
    %v3068 = vpop.f32.mrb[0].mxu0
    %v3069 = vpop.f32.mrb[0].mxu0
    %v3070 = vadd.f32 %v3029, %v3069
    %v3071 = vpop.f32.mrb[0].mxu0
    %3072 = vdwg.mxu0
    %3073 = vmatprep.subr.bf16.mxu0 0
    %3074 = vmatpush1.bf16.msra.mxu0 %v2692
    %3075 = vmatprep.subr.bf16.mxu0 0
    %3076 = vmatpush1.bf16.msra.mxu0 %v2693
    %3077 = vmatprep.subr.bf16.mxu0 0
    %3078 = vmatpush1.bf16.msra.mxu0 %v2694
    %3079 = vmatprep.subr.bf16.mxu0 0
    %3080 = vmatpush1.bf16.msra.mxu0 %v2695
    %3081 = vmatprep.subr.bf16.mxu0 0
    %3082 = vmatpush1.bf16.msra.mxu0 %v2696
    %3083 = vmatprep.subr.bf16.mxu0 0
    %3084 = vmatpush1.bf16.msra.mxu0 %v2697
    %3085 = vmatprep.subr.bf16.mxu0 0
    %3086 = vmatpush1.bf16.msra.mxu0 %v2698
    %3087 = vmatprep.subr.bf16.mxu0 0
    %3088 = vmatpush1.bf16.msra.mxu0 %v2699
    %3089 = vmatprep.subr.bf16.mxu0 0
    %3090 = vmatpush1.bf16.msra.mxu0 %v2700
    %3091 = vmatprep.subr.bf16.mxu0 0
    %3092 = vmatpush1.bf16.msra.mxu0 %v2701
    %3093 = vmatprep.subr.bf16.mxu0 0
    %3094 = vmatpush1.bf16.msra.mxu0 %v2702
    %3095 = vmatprep.subr.bf16.mxu0 0
    %3096 = vmatpush1.bf16.msra.mxu0 %v2703
    %3097 = vmatprep.subr.bf16.mxu0 0
    %3098 = vmatpush1.bf16.msra.mxu0 %v2704
    %3099 = vmatprep.subr.bf16.mxu0 0
    %3100 = vmatpush1.bf16.msra.mxu0 %v2705
    %3101 = vmatprep.subr.bf16.mxu0 0
    %3102 = vmatpush1.bf16.msra.mxu0 %v2706
    %3103 = vmatprep.subr.bf16.mxu0 0
    %3104 = vmatpush1.bf16.msra.mxu0 %v2707
    %3105 = vmatprep.mubr.bf16.mxu0 %v1835
    %3106 = vmatmul.mubr.bf16.gmra.mrb[0].mxu0 %v1834
    %v3107 = vpop.f32.mrb[0].mxu0
    %v3108 = vadd.f32 %v3067, %v3107
    %v3109 = vpop.f32.mrb[0].mxu0
    %v3110 = vpop.f32.mrb[0].mxu0
    %v3111 = vadd.f32 %v3070, %v3110
    %v3112 = vpop.f32.mrb[0].mxu0
    %3113 = vdwg.mxu0
    %3114 = vmatprep.subr.bf16.mxu0 0
    %3115 = vmatpush1.bf16.msra.mxu0 %v2708
    %3116 = vmatprep.subr.bf16.mxu0 0
    %3117 = vmatpush1.bf16.msra.mxu0 %v2709
    %3118 = vmatprep.subr.bf16.mxu0 0
    %3119 = vmatpush1.bf16.msra.mxu0 %v2710
    %3120 = vmatprep.subr.bf16.mxu0 0
    %3121 = vmatpush1.bf16.msra.mxu0 %v2711
    %3122 = vmatprep.subr.bf16.mxu0 0
    %3123 = vmatpush1.bf16.msra.mxu0 %v2712
    %3124 = vmatprep.subr.bf16.mxu0 0
    %3125 = vmatpush1.bf16.msra.mxu0 %v2713
    %3126 = vmatprep.subr.bf16.mxu0 0
    %3127 = vmatpush1.bf16.msra.mxu0 %v2714
    %3128 = vmatprep.subr.bf16.mxu0 0
    %3129 = vmatpush1.bf16.msra.mxu0 %v2715
    %3130 = vmatprep.subr.bf16.mxu0 0
    %3131 = vmatpush1.bf16.msra.mxu0 %v2716
    %3132 = vmatprep.subr.bf16.mxu0 0
    %3133 = vmatpush1.bf16.msra.mxu0 %v2717
    %3134 = vmatprep.subr.bf16.mxu0 0
    %3135 = vmatpush1.bf16.msra.mxu0 %v2718
    %3136 = vmatprep.subr.bf16.mxu0 0
    %3137 = vmatpush1.bf16.msra.mxu0 %v2719
    %3138 = vmatprep.subr.bf16.mxu0 0
    %3139 = vmatpush1.bf16.msra.mxu0 %v2720
    %3140 = vmatprep.subr.bf16.mxu0 0
    %3141 = vmatpush1.bf16.msra.mxu0 %v2721
    %3142 = vmatprep.subr.bf16.mxu0 0
    %3143 = vmatpush1.bf16.msra.mxu0 %v2722
    %3144 = vmatprep.subr.bf16.mxu0 0
    %3145 = vmatpush1.bf16.msra.mxu0 %v2723
    %3146 = vmatprep.mubr.bf16.mxu0 %v1837
    %3147 = vmatmul.mubr.bf16.gmra.mrb[0].mxu0 %v1836
    %v3148 = vpop.f32.mrb[0].mxu0
    %v3149 = vadd.f32 %v3108, %v3148
    %v3150 = vpop.f32.mrb[0].mxu0
    %v3151 = vpop.f32.mrb[0].mxu0
    %v3152 = vadd.f32 %v3111, %v3151
    %v3153 = vpop.f32.mrb[0].mxu0
    %3154 = vdwg.mxu0
    %3155 = vmatprep.subr.bf16.mxu0 0
    %3156 = vmatpush1.bf16.msra.mxu0 %v2724
    %3157 = vmatprep.subr.bf16.mxu0 0
    %3158 = vmatpush1.bf16.msra.mxu0 %v2725
    %3159 = vmatprep.subr.bf16.mxu0 0
    %3160 = vmatpush1.bf16.msra.mxu0 %v2726
    %3161 = vmatprep.subr.bf16.mxu0 0
    %3162 = vmatpush1.bf16.msra.mxu0 %v2727
    %3163 = vmatprep.subr.bf16.mxu0 0
    %3164 = vmatpush1.bf16.msra.mxu0 %v2728
    %3165 = vmatprep.subr.bf16.mxu0 0
    %3166 = vmatpush1.bf16.msra.mxu0 %v2729
    %3167 = vmatprep.subr.bf16.mxu0 0
    %3168 = vmatpush1.bf16.msra.mxu0 %v2730
    %3169 = vmatprep.subr.bf16.mxu0 0
    %3170 = vmatpush1.bf16.msra.mxu0 %v2731
    %3171 = vmatprep.subr.bf16.mxu0 0
    %3172 = vmatpush1.bf16.msra.mxu0 %v2732
    %3173 = vmatprep.subr.bf16.mxu0 0
    %3174 = vmatpush1.bf16.msra.mxu0 %v2733
    %3175 = vmatprep.subr.bf16.mxu0 0
    %3176 = vmatpush1.bf16.msra.mxu0 %v2734
    %3177 = vmatprep.subr.bf16.mxu0 0
    %3178 = vmatpush1.bf16.msra.mxu0 %v2735
    %3179 = vmatprep.subr.bf16.mxu0 0
    %3180 = vmatpush1.bf16.msra.mxu0 %v2736
    %3181 = vmatprep.subr.bf16.mxu0 0
    %3182 = vmatpush1.bf16.msra.mxu0 %v2737
    %3183 = vmatprep.subr.bf16.mxu0 0
    %3184 = vmatpush1.bf16.msra.mxu0 %v2738
    %3185 = vmatprep.subr.bf16.mxu0 0
    %3186 = vmatpush1.bf16.msra.mxu0 %v2739
    %3187 = vmatprep.mubr.bf16.mxu0 %v1839
    %3188 = vmatmul.mubr.bf16.gmra.mrb[0].mxu0 %v1838
    %v3189 = vpop.f32.mrb[0].mxu0
    %v3190 = vadd.f32 %v3149, %v3189
    %v3191 = vpop.f32.mrb[0].mxu0
    %v3192 = vpop.f32.mrb[0].mxu0
    %v3193 = vadd.f32 %v3152, %v3192
    %v3194 = vpop.f32.mrb[0].mxu0
    %3195 = vdwg.mxu0
    %v3196 = vadd.f32 %v1166, %v3190
    %v3197 = vadd.f32 %v1167, %v3193
    %v3198 = vsel %vm75, %v3196, 0.0
    %3199 = vadd.xlane.f32.xlu0 %v3198
    %v3200 = vpop.xlane.xlu0 %3199
    %v3201 = vsel %vm75, %v3197, 0.0
    %3202 = vadd.xlane.f32.xlu0 %v3201
    %v3203 = vpop.xlane.xlu0 %3202
    %v3204 = vmul.f32 %v3200, %v1135
    %v3205 = vmul.f32 %v3203, %v1135
    %v3206 = vsub.f32 %v3196, %v3204
    %v3207 = vsub.f32 %v3197, %v3205
    %v3208 = vmul.f32 %v3206, %v3206
    %v3209 = vmul.f32 %v3207, %v3207
    %v3210 = vsel %vm75, %v3208, 0.0
    %3211 = vadd.xlane.f32.xlu0 %v3210
    %v3212 = vpop.xlane.xlu0 %3211
    %v3213 = vsel %vm75, %v3209, 0.0
    %3214 = vadd.xlane.f32.xlu0 %v3213
    %v3215 = vpop.xlane.xlu0 %3214
    %v3216 = vmul.f32 %v3212, %v1135
    %v3217 = vmul.f32 %v3215, %v1135
    %v3218 = vadd.f32 %v3216, 1e-05
    %v3219 = vadd.f32 %v3217, 1e-05
    %v3220 = vrsqrt.pop %v3218
    %v3221 = vrsqrt.pop %v3219
    %v3222 = vmul.f32 %v3206, %v3220
    %v3223 = vmul.f32 %v3207, %v3221
    %v3224 = vlaneseq
    %v3225 = vshrl.u32 %v3224, 7
    %v3226 = vsub.s32 4, %v3225
    %v3227 = vrot.slane %v50, %v3226
    %v3228 = vmul.f32 %v3222, %v3227
    %v3229 = vmul.f32 %v3223, %v3227
    %v3230 = vlaneseq
    %v3231 = vshrl.u32 %v3230, 7
    %v3232 = vsub.s32 5, %v3231
    %v3233 = vrot.slane %v50, %v3232
    %v3234 = vadd.f32 %v3228, %v3233
    %v3235 = vadd.f32 %v3229, %v3233
    %s3236 = scalar_lea.vmem %s5, 8
    %v3237 = vld [vmem:[%s3236] sm:$0xff]
    %v3238 = vpack.c.bf16 %v3235, %v3234
    %s3239 = scalar_lea.vmem %s2, 16
    %v3240 = vld [vmem:[%s3239] sm:$0xf]
    %v3241 = vld [vmem:[%s3239 + $0x4] sm:$0xf]
    %v3242 = vld [vmem:[%s3239 + $0x8] sm:$0xf]
    %v3243 = vld [vmem:[%s3239 + $0xc] sm:$0xf]
    %s3244 = scalar_lea.vmem %s3, 1
    %v3245 = vld [vmem:[%s3244] sm:$0x1]
    %v3247 = vlaneseq
    %v3248 = vshrl.u32 %v3247, 7
    %v3249 = vsub.s32 0, %v3248
    %v3250 = vrot.slane %v3245, %v3249
    %v3256 = vunpack.c.l.b16 %v3240
    %v3257 = vunpack.c.l.b16 %v3241
    %v3258 = vunpack.c.l.b16 %v3242
    %v3259 = vunpack.c.l.b16 %v3243
    %v3260 = vpack.c.b16 %v3257, %v3256
    %v3261 = vpack.c.b16 %v3259, %v3258
    %v3265 = vsel %vm75, %v3238, 0
    %3267 = vmatprep.subr.bf16.mxu0 0
    %3268 = vmatpush1.bf16.msra.mxu0 %v3260
    %3269 = vmatprep.subr.bf16.mxu0 0
    %3270 = vmatpush1.bf16.msra.mxu0 %v3261
    %3271 = vmatprep.subr.bf16.mxu0 0
    %3272 = vmatpush1.bf16.msra.mxu0 0
    %3273 = vmatprep.subr.bf16.mxu0 0
    %3274 = vmatpush1.bf16.msra.mxu0 0
    %3275 = vmatprep.subr.bf16.mxu0 0
    %3276 = vmatpush1.bf16.msra.mxu0 0
    %3277 = vmatprep.subr.bf16.mxu0 0
    %3278 = vmatpush1.bf16.msra.mxu0 0
    %3279 = vmatprep.subr.bf16.mxu0 0
    %3280 = vmatpush1.bf16.msra.mxu0 0
    %3281 = vmatprep.subr.bf16.mxu0 0
    %3282 = vmatpush1.bf16.msra.mxu0 0
    %3283 = vmatprep.subr.bf16.mxu0 0
    %3284 = vmatpush1.bf16.msra.mxu0 0
    %3285 = vmatprep.subr.bf16.mxu0 0
    %3286 = vmatpush1.bf16.msra.mxu0 0
    %3287 = vmatprep.subr.bf16.mxu0 0
    %3288 = vmatpush1.bf16.msra.mxu0 0
    %3289 = vmatprep.subr.bf16.mxu0 0
    %3290 = vmatpush1.bf16.msra.mxu0 0
    %3291 = vmatprep.subr.bf16.mxu0 0
    %3292 = vmatpush1.bf16.msra.mxu0 0
    %3293 = vmatprep.subr.bf16.mxu0 0
    %3294 = vmatpush1.bf16.msra.mxu0 0
    %3295 = vmatprep.subr.bf16.mxu0 0
    %3296 = vmatpush1.bf16.msra.mxu0 0
    %3297 = vmatprep.subr.bf16.mxu0 0
    %3298 = vmatpush1.bf16.msra.mxu0 0
    %3299 = vmatprep.mubr.bf16.mxu0 0
    %3300 = vmatmul.mubr.bf16.gmra.mrb[0].mxu0 %v3265
    %v3301 = vpop.f32.mrb[0].mxu0
    %v3302 = vadd.f32 %v3250, %v3301
    %v3303 = vpop.f32.mrb[0].mxu0
    %v3304 = vpop.f32.mrb[0].mxu0
    %v3305 = vadd.f32 %v3250, %v3304
    %v3306 = vpop.f32.mrb[0].mxu0
    %3307 = vdwg.mxu0
    %v3308 = vpack.c.bf16 %v3302, %v3302
    %v3309 = vpack.c.bf16 %v3305, %v3305
    %3312 = vrot.lane.b32.xlu0 %v3308, 120
    %v3313 = vpop.permute.xlu0 %3312
    %3314 = vrot.lane.b32.xlu0 %v3309, 120
    %v3315 = vpop.permute.xlu0 %3314
    %3316 = vrot.lane.b32.xlu0 %v3308, 112
    %v3317 = vpop.permute.xlu0 %3316
    %3318 = vrot.lane.b32.xlu0 %v3309, 112
    %v3319 = vpop.permute.xlu0 %3318
    %3320 = vrot.lane.b32.xlu0 %v3308, 104
    %v3321 = vpop.permute.xlu0 %3320
    %3322 = vrot.lane.b32.xlu0 %v3309, 104
    %v3323 = vpop.permute.xlu0 %3322
    %3324 = vrot.lane.b32.xlu0 %v3308, 96
    %v3325 = vpop.permute.xlu0 %3324
    %v3327 = vsel %vm138, %v3308, 0
    %v3330 = vsel %vm138, %v3325, 0
    %3332 = vmatprep.subr.bf16.mxu0 0
    %3333 = vmatpush1.bf16.xpose.msra.mxu0 %v3330
    %3334 = vmatprep.subr.bf16.mxu0 0
    %3335 = vmatpush1.bf16.xpose.msra.mxu0 0
    %3336 = vmatprep.subr.bf16.mxu0 0
    %3337 = vmatpush1.bf16.xpose.msra.mxu0 0
    %3338 = vmatprep.subr.bf16.mxu0 0
    %3339 = vmatpush1.bf16.xpose.msra.mxu0 0
    %3340 = vmatprep.subr.bf16.mxu0 0
    %3341 = vmatpush1.bf16.xpose.msra.mxu0 0
    %3342 = vmatprep.subr.bf16.mxu0 0
    %3343 = vmatpush1.bf16.xpose.msra.mxu0 0
    %3344 = vmatprep.subr.bf16.mxu0 0
    %3345 = vmatpush1.bf16.xpose.msra.mxu0 0
    %3346 = vmatprep.subr.bf16.mxu0 0
    %3347 = vmatpush1.bf16.xpose.msra.mxu0 0
    %3348 = vmatprep.subr.bf16.mxu0 0
    %3349 = vmatpush1.bf16.xpose.msra.mxu0 0
    %3350 = vmatprep.subr.bf16.mxu0 0
    %3351 = vmatpush1.bf16.xpose.msra.mxu0 0
    %3352 = vmatprep.subr.bf16.mxu0 0
    %3353 = vmatpush1.bf16.xpose.msra.mxu0 0
    %3354 = vmatprep.subr.bf16.mxu0 0
    %3355 = vmatpush1.bf16.xpose.msra.mxu0 0
    %3356 = vmatprep.subr.bf16.mxu0 0
    %3357 = vmatpush1.bf16.xpose.msra.mxu0 0
    %3358 = vmatprep.subr.bf16.mxu0 0
    %3359 = vmatpush1.bf16.xpose.msra.mxu0 0
    %3360 = vmatprep.subr.bf16.mxu0 0
    %3361 = vmatpush1.bf16.xpose.msra.mxu0 0
    %3362 = vmatprep.subr.bf16.mxu0 0
    %3363 = vmatpush1.bf16.xpose.msra.mxu0 0
    %3364 = vmatprep.mubr.bf16.mxu0 0
    %3365 = vmatmul.mubr.bf16.gmra.mrb[0].mxu0 %v3327
    %v3366 = vpop.f32.mrb[0].mxu0
    %v3367 = vadd.f32 0.0, %v3366
    %v3368 = vpop.f32.mrb[0].mxu0
    %v3369 = vpop.f32.mrb[0].mxu0
    %v3370 = vpop.f32.mrb[0].mxu0
    %3371 = vdwg.mxu0
    %3372 = vrot.lane.b32.xlu0 %v3309, 96
    %v3373 = vpop.permute.xlu0 %3372
    %v3375 = vsel %vm138, %v3309, 0
    %v3378 = vsel %vm138, %v3373, 0
    %3380 = vmatprep.subr.bf16.mxu0 0
    %3381 = vmatpush1.bf16.xpose.msra.mxu0 %v3378
    %3382 = vmatprep.subr.bf16.mxu0 0
    %3383 = vmatpush1.bf16.xpose.msra.mxu0 0
    %3384 = vmatprep.subr.bf16.mxu0 0
    %3385 = vmatpush1.bf16.xpose.msra.mxu0 0
    %3386 = vmatprep.subr.bf16.mxu0 0
    %3387 = vmatpush1.bf16.xpose.msra.mxu0 0
    %3388 = vmatprep.subr.bf16.mxu0 0
    %3389 = vmatpush1.bf16.xpose.msra.mxu0 0
    %3390 = vmatprep.subr.bf16.mxu0 0
    %3391 = vmatpush1.bf16.xpose.msra.mxu0 0
    %3392 = vmatprep.subr.bf16.mxu0 0
    %3393 = vmatpush1.bf16.xpose.msra.mxu0 0
    %3394 = vmatprep.subr.bf16.mxu0 0
    %3395 = vmatpush1.bf16.xpose.msra.mxu0 0
    %3396 = vmatprep.subr.bf16.mxu0 0
    %3397 = vmatpush1.bf16.xpose.msra.mxu0 0
    %3398 = vmatprep.subr.bf16.mxu0 0
    %3399 = vmatpush1.bf16.xpose.msra.mxu0 0
    %3400 = vmatprep.subr.bf16.mxu0 0
    %3401 = vmatpush1.bf16.xpose.msra.mxu0 0
    %3402 = vmatprep.subr.bf16.mxu0 0
    %3403 = vmatpush1.bf16.xpose.msra.mxu0 0
    %3404 = vmatprep.subr.bf16.mxu0 0
    %3405 = vmatpush1.bf16.xpose.msra.mxu0 0
    %3406 = vmatprep.subr.bf16.mxu0 0
    %3407 = vmatpush1.bf16.xpose.msra.mxu0 0
    %3408 = vmatprep.subr.bf16.mxu0 0
    %3409 = vmatpush1.bf16.xpose.msra.mxu0 0
    %3410 = vmatprep.subr.bf16.mxu0 0
    %3411 = vmatpush1.bf16.xpose.msra.mxu0 0
    %3412 = vmatprep.mubr.bf16.mxu0 0
    %3413 = vmatmul.mubr.bf16.gmra.mrb[0].mxu0 %v3375
    %v3414 = vpop.f32.mrb[0].mxu0
    %v3415 = vadd.f32 0.0, %v3414
    %v3416 = vpop.f32.mrb[0].mxu0
    %v3417 = vpop.f32.mrb[0].mxu0
    %v3418 = vpop.f32.mrb[0].mxu0
    %3419 = vdwg.mxu0
    %3420 = vrot.lane.b32.xlu0 %v3313, 96
    %v3421 = vpop.permute.xlu0 %3420
    %v3423 = vsel %vm138, %v3313, 0
    %v3426 = vsel %vm138, %v3421, 0
    %3428 = vmatprep.subr.bf16.mxu0 0
    %3429 = vmatpush1.bf16.xpose.msra.mxu0 %v3426
    %3430 = vmatprep.subr.bf16.mxu0 0
    %3431 = vmatpush1.bf16.xpose.msra.mxu0 0
    %3432 = vmatprep.subr.bf16.mxu0 0
    %3433 = vmatpush1.bf16.xpose.msra.mxu0 0
    %3434 = vmatprep.subr.bf16.mxu0 0
    %3435 = vmatpush1.bf16.xpose.msra.mxu0 0
    %3436 = vmatprep.subr.bf16.mxu0 0
    %3437 = vmatpush1.bf16.xpose.msra.mxu0 0
    %3438 = vmatprep.subr.bf16.mxu0 0
    %3439 = vmatpush1.bf16.xpose.msra.mxu0 0
    %3440 = vmatprep.subr.bf16.mxu0 0
    %3441 = vmatpush1.bf16.xpose.msra.mxu0 0
    %3442 = vmatprep.subr.bf16.mxu0 0
    %3443 = vmatpush1.bf16.xpose.msra.mxu0 0
    %3444 = vmatprep.subr.bf16.mxu0 0
    %3445 = vmatpush1.bf16.xpose.msra.mxu0 0
    %3446 = vmatprep.subr.bf16.mxu0 0
    %3447 = vmatpush1.bf16.xpose.msra.mxu0 0
    %3448 = vmatprep.subr.bf16.mxu0 0
    %3449 = vmatpush1.bf16.xpose.msra.mxu0 0
    %3450 = vmatprep.subr.bf16.mxu0 0
    %3451 = vmatpush1.bf16.xpose.msra.mxu0 0
    %3452 = vmatprep.subr.bf16.mxu0 0
    %3453 = vmatpush1.bf16.xpose.msra.mxu0 0
    %3454 = vmatprep.subr.bf16.mxu0 0
    %3455 = vmatpush1.bf16.xpose.msra.mxu0 0
    %3456 = vmatprep.subr.bf16.mxu0 0
    %3457 = vmatpush1.bf16.xpose.msra.mxu0 0
    %3458 = vmatprep.subr.bf16.mxu0 0
    %3459 = vmatpush1.bf16.xpose.msra.mxu0 0
    %3460 = vmatprep.mubr.bf16.mxu0 0
    %3461 = vmatmul.mubr.bf16.gmra.mrb[0].mxu0 %v3423
    %v3462 = vpop.f32.mrb[0].mxu0
    %v3463 = vadd.f32 0.0, %v3462
    %v3464 = vpop.f32.mrb[0].mxu0
    %v3465 = vpop.f32.mrb[0].mxu0
    %v3466 = vpop.f32.mrb[0].mxu0
    %3467 = vdwg.mxu0
    %3468 = vrot.lane.b32.xlu0 %v3315, 96
    %v3469 = vpop.permute.xlu0 %3468
    %v3471 = vsel %vm138, %v3315, 0
    %v3474 = vsel %vm138, %v3469, 0
    %3476 = vmatprep.subr.bf16.mxu0 0
    %3477 = vmatpush1.bf16.xpose.msra.mxu0 %v3474
    %3478 = vmatprep.subr.bf16.mxu0 0
    %3479 = vmatpush1.bf16.xpose.msra.mxu0 0
    %3480 = vmatprep.subr.bf16.mxu0 0
    %3481 = vmatpush1.bf16.xpose.msra.mxu0 0
    %3482 = vmatprep.subr.bf16.mxu0 0
    %3483 = vmatpush1.bf16.xpose.msra.mxu0 0
    %3484 = vmatprep.subr.bf16.mxu0 0
    %3485 = vmatpush1.bf16.xpose.msra.mxu0 0
    %3486 = vmatprep.subr.bf16.mxu0 0
    %3487 = vmatpush1.bf16.xpose.msra.mxu0 0
    %3488 = vmatprep.subr.bf16.mxu0 0
    %3489 = vmatpush1.bf16.xpose.msra.mxu0 0
    %3490 = vmatprep.subr.bf16.mxu0 0
    %3491 = vmatpush1.bf16.xpose.msra.mxu0 0
    %3492 = vmatprep.subr.bf16.mxu0 0
    %3493 = vmatpush1.bf16.xpose.msra.mxu0 0
    %3494 = vmatprep.subr.bf16.mxu0 0
    %3495 = vmatpush1.bf16.xpose.msra.mxu0 0
    %3496 = vmatprep.subr.bf16.mxu0 0
    %3497 = vmatpush1.bf16.xpose.msra.mxu0 0
    %3498 = vmatprep.subr.bf16.mxu0 0
    %3499 = vmatpush1.bf16.xpose.msra.mxu0 0
    %3500 = vmatprep.subr.bf16.mxu0 0
    %3501 = vmatpush1.bf16.xpose.msra.mxu0 0
    %3502 = vmatprep.subr.bf16.mxu0 0
    %3503 = vmatpush1.bf16.xpose.msra.mxu0 0
    %3504 = vmatprep.subr.bf16.mxu0 0
    %3505 = vmatpush1.bf16.xpose.msra.mxu0 0
    %3506 = vmatprep.subr.bf16.mxu0 0
    %3507 = vmatpush1.bf16.xpose.msra.mxu0 0
    %3508 = vmatprep.mubr.bf16.mxu0 0
    %3509 = vmatmul.mubr.bf16.gmra.mrb[0].mxu0 %v3471
    %v3510 = vpop.f32.mrb[0].mxu0
    %v3511 = vadd.f32 0.0, %v3510
    %v3512 = vpop.f32.mrb[0].mxu0
    %v3513 = vpop.f32.mrb[0].mxu0
    %v3514 = vpop.f32.mrb[0].mxu0
    %3515 = vdwg.mxu0
    %3516 = vrot.lane.b32.xlu0 %v3317, 96
    %v3517 = vpop.permute.xlu0 %3516
    %v3519 = vsel %vm138, %v3317, 0
    %v3522 = vsel %vm138, %v3517, 0
    %3524 = vmatprep.subr.bf16.mxu0 0
    %3525 = vmatpush1.bf16.xpose.msra.mxu0 %v3522
    %3526 = vmatprep.subr.bf16.mxu0 0
    %3527 = vmatpush1.bf16.xpose.msra.mxu0 0
    %3528 = vmatprep.subr.bf16.mxu0 0
    %3529 = vmatpush1.bf16.xpose.msra.mxu0 0
    %3530 = vmatprep.subr.bf16.mxu0 0
    %3531 = vmatpush1.bf16.xpose.msra.mxu0 0
    %3532 = vmatprep.subr.bf16.mxu0 0
    %3533 = vmatpush1.bf16.xpose.msra.mxu0 0
    %3534 = vmatprep.subr.bf16.mxu0 0
    %3535 = vmatpush1.bf16.xpose.msra.mxu0 0
    %3536 = vmatprep.subr.bf16.mxu0 0
    %3537 = vmatpush1.bf16.xpose.msra.mxu0 0
    %3538 = vmatprep.subr.bf16.mxu0 0
    %3539 = vmatpush1.bf16.xpose.msra.mxu0 0
    %3540 = vmatprep.subr.bf16.mxu0 0
    %3541 = vmatpush1.bf16.xpose.msra.mxu0 0
    %3542 = vmatprep.subr.bf16.mxu0 0
    %3543 = vmatpush1.bf16.xpose.msra.mxu0 0
    %3544 = vmatprep.subr.bf16.mxu0 0
    %3545 = vmatpush1.bf16.xpose.msra.mxu0 0
    %3546 = vmatprep.subr.bf16.mxu0 0
    %3547 = vmatpush1.bf16.xpose.msra.mxu0 0
    %3548 = vmatprep.subr.bf16.mxu0 0
    %3549 = vmatpush1.bf16.xpose.msra.mxu0 0
    %3550 = vmatprep.subr.bf16.mxu0 0
    %3551 = vmatpush1.bf16.xpose.msra.mxu0 0
    %3552 = vmatprep.subr.bf16.mxu0 0
    %3553 = vmatpush1.bf16.xpose.msra.mxu0 0
    %3554 = vmatprep.subr.bf16.mxu0 0
    %3555 = vmatpush1.bf16.xpose.msra.mxu0 0
    %3556 = vmatprep.mubr.bf16.mxu0 0
    %3557 = vmatmul.mubr.bf16.gmra.mrb[0].mxu0 %v3519
    %v3558 = vpop.f32.mrb[0].mxu0
    %v3559 = vadd.f32 0.0, %v3558
    %v3560 = vpop.f32.mrb[0].mxu0
    %v3561 = vpop.f32.mrb[0].mxu0
    %v3562 = vpop.f32.mrb[0].mxu0
    %3563 = vdwg.mxu0
    %3564 = vrot.lane.b32.xlu0 %v3319, 96
    %v3565 = vpop.permute.xlu0 %3564
    %v3567 = vsel %vm138, %v3319, 0
    %v3570 = vsel %vm138, %v3565, 0
    %3572 = vmatprep.subr.bf16.mxu0 0
    %3573 = vmatpush1.bf16.xpose.msra.mxu0 %v3570
    %3574 = vmatprep.subr.bf16.mxu0 0
    %3575 = vmatpush1.bf16.xpose.msra.mxu0 0
    %3576 = vmatprep.subr.bf16.mxu0 0
    %3577 = vmatpush1.bf16.xpose.msra.mxu0 0
    %3578 = vmatprep.subr.bf16.mxu0 0
    %3579 = vmatpush1.bf16.xpose.msra.mxu0 0
    %3580 = vmatprep.subr.bf16.mxu0 0
    %3581 = vmatpush1.bf16.xpose.msra.mxu0 0
    %3582 = vmatprep.subr.bf16.mxu0 0
    %3583 = vmatpush1.bf16.xpose.msra.mxu0 0
    %3584 = vmatprep.subr.bf16.mxu0 0
    %3585 = vmatpush1.bf16.xpose.msra.mxu0 0
    %3586 = vmatprep.subr.bf16.mxu0 0
    %3587 = vmatpush1.bf16.xpose.msra.mxu0 0
    %3588 = vmatprep.subr.bf16.mxu0 0
    %3589 = vmatpush1.bf16.xpose.msra.mxu0 0
    %3590 = vmatprep.subr.bf16.mxu0 0
    %3591 = vmatpush1.bf16.xpose.msra.mxu0 0
    %3592 = vmatprep.subr.bf16.mxu0 0
    %3593 = vmatpush1.bf16.xpose.msra.mxu0 0
    %3594 = vmatprep.subr.bf16.mxu0 0
    %3595 = vmatpush1.bf16.xpose.msra.mxu0 0
    %3596 = vmatprep.subr.bf16.mxu0 0
    %3597 = vmatpush1.bf16.xpose.msra.mxu0 0
    %3598 = vmatprep.subr.bf16.mxu0 0
    %3599 = vmatpush1.bf16.xpose.msra.mxu0 0
    %3600 = vmatprep.subr.bf16.mxu0 0
    %3601 = vmatpush1.bf16.xpose.msra.mxu0 0
    %3602 = vmatprep.subr.bf16.mxu0 0
    %3603 = vmatpush1.bf16.xpose.msra.mxu0 0
    %3604 = vmatprep.mubr.bf16.mxu0 0
    %3605 = vmatmul.mubr.bf16.gmra.mrb[0].mxu0 %v3567
    %v3606 = vpop.f32.mrb[0].mxu0
    %v3607 = vadd.f32 0.0, %v3606
    %v3608 = vpop.f32.mrb[0].mxu0
    %v3609 = vpop.f32.mrb[0].mxu0
    %v3610 = vpop.f32.mrb[0].mxu0
    %3611 = vdwg.mxu0
    %3612 = vrot.lane.b32.xlu0 %v3321, 96
    %v3613 = vpop.permute.xlu0 %3612
    %v3615 = vsel %vm138, %v3321, 0
    %v3618 = vsel %vm138, %v3613, 0
    %3620 = vmatprep.subr.bf16.mxu0 0
    %3621 = vmatpush1.bf16.xpose.msra.mxu0 %v3618
    %3622 = vmatprep.subr.bf16.mxu0 0
    %3623 = vmatpush1.bf16.xpose.msra.mxu0 0
    %3624 = vmatprep.subr.bf16.mxu0 0
    %3625 = vmatpush1.bf16.xpose.msra.mxu0 0
    %3626 = vmatprep.subr.bf16.mxu0 0
    %3627 = vmatpush1.bf16.xpose.msra.mxu0 0
    %3628 = vmatprep.subr.bf16.mxu0 0
    %3629 = vmatpush1.bf16.xpose.msra.mxu0 0
    %3630 = vmatprep.subr.bf16.mxu0 0
    %3631 = vmatpush1.bf16.xpose.msra.mxu0 0
    %3632 = vmatprep.subr.bf16.mxu0 0
    %3633 = vmatpush1.bf16.xpose.msra.mxu0 0
    %3634 = vmatprep.subr.bf16.mxu0 0
    %3635 = vmatpush1.bf16.xpose.msra.mxu0 0
    %3636 = vmatprep.subr.bf16.mxu0 0
    %3637 = vmatpush1.bf16.xpose.msra.mxu0 0
    %3638 = vmatprep.subr.bf16.mxu0 0
    %3639 = vmatpush1.bf16.xpose.msra.mxu0 0
    %3640 = vmatprep.subr.bf16.mxu0 0
    %3641 = vmatpush1.bf16.xpose.msra.mxu0 0
    %3642 = vmatprep.subr.bf16.mxu0 0
    %3643 = vmatpush1.bf16.xpose.msra.mxu0 0
    %3644 = vmatprep.subr.bf16.mxu0 0
    %3645 = vmatpush1.bf16.xpose.msra.mxu0 0
    %3646 = vmatprep.subr.bf16.mxu0 0
    %3647 = vmatpush1.bf16.xpose.msra.mxu0 0
    %3648 = vmatprep.subr.bf16.mxu0 0
    %3649 = vmatpush1.bf16.xpose.msra.mxu0 0
    %3650 = vmatprep.subr.bf16.mxu0 0
    %3651 = vmatpush1.bf16.xpose.msra.mxu0 0
    %3652 = vmatprep.mubr.bf16.mxu0 0
    %3653 = vmatmul.mubr.bf16.gmra.mrb[0].mxu0 %v3615
    %v3654 = vpop.f32.mrb[0].mxu0
    %v3655 = vadd.f32 0.0, %v3654
    %v3656 = vpop.f32.mrb[0].mxu0
    %v3657 = vpop.f32.mrb[0].mxu0
    %v3658 = vpop.f32.mrb[0].mxu0
    %3659 = vdwg.mxu0
    %3660 = vrot.lane.b32.xlu0 %v3323, 96
    %v3661 = vpop.permute.xlu0 %3660
    %v3663 = vsel %vm138, %v3323, 0
    %v3666 = vsel %vm138, %v3661, 0
    %3668 = vmatprep.subr.bf16.mxu0 0
    %3669 = vmatpush1.bf16.xpose.msra.mxu0 %v3666
    %3670 = vmatprep.subr.bf16.mxu0 0
    %3671 = vmatpush1.bf16.xpose.msra.mxu0 0
    %3672 = vmatprep.subr.bf16.mxu0 0
    %3673 = vmatpush1.bf16.xpose.msra.mxu0 0
    %3674 = vmatprep.subr.bf16.mxu0 0
    %3675 = vmatpush1.bf16.xpose.msra.mxu0 0
    %3676 = vmatprep.subr.bf16.mxu0 0
    %3677 = vmatpush1.bf16.xpose.msra.mxu0 0
    %3678 = vmatprep.subr.bf16.mxu0 0
    %3679 = vmatpush1.bf16.xpose.msra.mxu0 0
    %3680 = vmatprep.subr.bf16.mxu0 0
    %3681 = vmatpush1.bf16.xpose.msra.mxu0 0
    %3682 = vmatprep.subr.bf16.mxu0 0
    %3683 = vmatpush1.bf16.xpose.msra.mxu0 0
    %3684 = vmatprep.subr.bf16.mxu0 0
    %3685 = vmatpush1.bf16.xpose.msra.mxu0 0
    %3686 = vmatprep.subr.bf16.mxu0 0
    %3687 = vmatpush1.bf16.xpose.msra.mxu0 0
    %3688 = vmatprep.subr.bf16.mxu0 0
    %3689 = vmatpush1.bf16.xpose.msra.mxu0 0
    %3690 = vmatprep.subr.bf16.mxu0 0
    %3691 = vmatpush1.bf16.xpose.msra.mxu0 0
    %3692 = vmatprep.subr.bf16.mxu0 0
    %3693 = vmatpush1.bf16.xpose.msra.mxu0 0
    %3694 = vmatprep.subr.bf16.mxu0 0
    %3695 = vmatpush1.bf16.xpose.msra.mxu0 0
    %3696 = vmatprep.subr.bf16.mxu0 0
    %3697 = vmatpush1.bf16.xpose.msra.mxu0 0
    %3698 = vmatprep.subr.bf16.mxu0 0
    %3699 = vmatpush1.bf16.xpose.msra.mxu0 0
    %3700 = vmatprep.mubr.bf16.mxu0 0
    %3701 = vmatmul.mubr.bf16.gmra.mrb[0].mxu0 %v3663
    %v3702 = vpop.f32.mrb[0].mxu0
    %v3703 = vadd.f32 0.0, %v3702
    %v3704 = vpop.f32.mrb[0].mxu0
    %v3705 = vpop.f32.mrb[0].mxu0
    %v3706 = vpop.f32.mrb[0].mxu0
    %3707 = vdwg.mxu0
    %v3708 = vmul.f32 %v3367, 0.35355338
    %v3709 = vmul.f32 %v3415, 0.35355338
    %v3710 = vmul.f32 %v3463, 0.35355338
    %v3711 = vmul.f32 %v3511, 0.35355338
    %v3712 = vmul.f32 %v3559, 0.35355338
    %v3713 = vmul.f32 %v3607, 0.35355338
    %v3714 = vmul.f32 %v3655, 0.35355338
    %v3715 = vmul.f32 %v3703, 0.35355338
    %v3716 = vadd.f32 %v3708, %v534
    %v3717 = vadd.f32 %v3709, %v538
    %v3718 = vadd.f32 %v3710, %v534
    %v3719 = vadd.f32 %v3711, %v538
    %v3720 = vadd.f32 %v3712, %v534
    %v3721 = vadd.f32 %v3713, %v538
    %v3722 = vadd.f32 %v3714, %v534
    %v3723 = vadd.f32 %v3715, %v538
    %v3724 = vsel %vm138, %v3716, -inf
    %3725 = vmax.xlane.f32.xlu0 %v3724
    %v3726 = vpop.xlane.xlu0 %3725
    %v3727 = vsel %vm138, %v3717, -inf
    %3728 = vmax.xlane.f32.xlu0 %v3727
    %v3729 = vpop.xlane.xlu0 %3728
    %v3730 = vsel %vm138, %v3718, -inf
    %3731 = vmax.xlane.f32.xlu0 %v3730
    %v3732 = vpop.xlane.xlu0 %3731
    %v3733 = vsel %vm138, %v3719, -inf
    %3734 = vmax.xlane.f32.xlu0 %v3733
    %v3735 = vpop.xlane.xlu0 %3734
    %v3736 = vsel %vm138, %v3720, -inf
    %3737 = vmax.xlane.f32.xlu0 %v3736
    %v3738 = vpop.xlane.xlu0 %3737
    %v3739 = vsel %vm138, %v3721, -inf
    %3740 = vmax.xlane.f32.xlu0 %v3739
    %v3741 = vpop.xlane.xlu0 %3740
    %v3742 = vsel %vm138, %v3722, -inf
    %3743 = vmax.xlane.f32.xlu0 %v3742
    %v3744 = vpop.xlane.xlu0 %3743
    %v3745 = vsel %vm138, %v3723, -inf
    %3746 = vmax.xlane.f32.xlu0 %v3745
    %v3747 = vpop.xlane.xlu0 %3746
    %v3748 = vsub.f32 %v3716, %v3726
    %v3749 = vsub.f32 %v3717, %v3729
    %v3750 = vsub.f32 %v3718, %v3732
    %v3751 = vsub.f32 %v3719, %v3735
    %v3752 = vsub.f32 %v3720, %v3738
    %v3753 = vsub.f32 %v3721, %v3741
    %v3754 = vsub.f32 %v3722, %v3744
    %v3755 = vsub.f32 %v3723, %v3747
    %v3756 = vmul.f32 %v3748, 1.442695
    %v3757 = vpow.pop %v3756
    %v3758 = vmul.f32 %v3749, 1.442695
    %v3759 = vpow.pop %v3758
    %v3760 = vmul.f32 %v3750, 1.442695
    %v3761 = vpow.pop %v3760
    %v3762 = vmul.f32 %v3751, 1.442695
    %v3763 = vpow.pop %v3762
    %v3764 = vmul.f32 %v3752, 1.442695
    %v3765 = vpow.pop %v3764
    %v3766 = vmul.f32 %v3753, 1.442695
    %v3767 = vpow.pop %v3766
    %v3768 = vmul.f32 %v3754, 1.442695
    %v3769 = vpow.pop %v3768
    %v3770 = vmul.f32 %v3755, 1.442695
    %v3771 = vpow.pop %v3770
    %v3772 = vsel %vm138, %v3757, 0.0
    %3773 = vadd.xlane.f32.xlu0 %v3772
    %v3774 = vpop.xlane.xlu0 %3773
    %v3775 = vsel %vm138, %v3759, 0.0
    %3776 = vadd.xlane.f32.xlu0 %v3775
    %v3777 = vpop.xlane.xlu0 %3776
    %v3778 = vsel %vm138, %v3761, 0.0
    %3779 = vadd.xlane.f32.xlu0 %v3778
    %v3780 = vpop.xlane.xlu0 %3779
    %v3781 = vsel %vm138, %v3763, 0.0
    %3782 = vadd.xlane.f32.xlu0 %v3781
    %v3783 = vpop.xlane.xlu0 %3782
    %v3784 = vsel %vm138, %v3765, 0.0
    %3785 = vadd.xlane.f32.xlu0 %v3784
    %v3786 = vpop.xlane.xlu0 %3785
    %v3787 = vsel %vm138, %v3767, 0.0
    %3788 = vadd.xlane.f32.xlu0 %v3787
    %v3789 = vpop.xlane.xlu0 %3788
    %v3790 = vsel %vm138, %v3769, 0.0
    %3791 = vadd.xlane.f32.xlu0 %v3790
    %v3792 = vpop.xlane.xlu0 %3791
    %v3793 = vsel %vm138, %v3771, 0.0
    %3794 = vadd.xlane.f32.xlu0 %v3793
    %v3795 = vpop.xlane.xlu0 %3794
    %v3796 = vrcp.pop %v3774
    %v3797 = vrcp.pop %v3777
    %v3798 = vrcp.pop %v3780
    %v3799 = vrcp.pop %v3783
    %v3800 = vrcp.pop %v3786
    %v3801 = vrcp.pop %v3789
    %v3802 = vrcp.pop %v3792
    %v3803 = vrcp.pop %v3795
    %v3804 = vmul.f32 %v3757, %v3796
    %v3805 = vmul.f32 %v3759, %v3797
    %v3806 = vmul.f32 %v3761, %v3798
    %v3807 = vmul.f32 %v3763, %v3799
    %v3808 = vmul.f32 %v3765, %v3800
    %v3809 = vmul.f32 %v3767, %v3801
    %v3810 = vmul.f32 %v3769, %v3802
    %v3811 = vmul.f32 %v3771, %v3803
    %v3812 = vpack.c.bf16 %v3804, %v3804
    %v3813 = vpack.c.bf16 %v3805, %v3805
    %v3814 = vpack.c.bf16 %v3806, %v3806
    %v3815 = vpack.c.bf16 %v3807, %v3807
    %v3816 = vpack.c.bf16 %v3808, %v3808
    %v3817 = vpack.c.bf16 %v3809, %v3809
    %v3818 = vpack.c.bf16 %v3810, %v3810
    %v3819 = vpack.c.bf16 %v3811, %v3811
    %3820 = vrot.lane.b32.xlu0 %v3308, 64
    %v3821 = vpop.permute.xlu0 %3820
    %v3823 = vsel %vm138, %v3812, 0
    %v3826 = vsel %vm650, %v3821, 0
    %3828 = vmatprep.subr.bf16.mxu0 0
    %3829 = vmatpush1.bf16.msra.mxu0 %v3826
    %3830 = vmatprep.subr.bf16.mxu0 0
    %3831 = vmatpush1.bf16.msra.mxu0 0
    %3832 = vmatprep.subr.bf16.mxu0 0
    %3833 = vmatpush1.bf16.msra.mxu0 0
    %3834 = vmatprep.subr.bf16.mxu0 0
    %3835 = vmatpush1.bf16.msra.mxu0 0
    %3836 = vmatprep.subr.bf16.mxu0 0
    %3837 = vmatpush1.bf16.msra.mxu0 0
    %3838 = vmatprep.subr.bf16.mxu0 0
    %3839 = vmatpush1.bf16.msra.mxu0 0
    %3840 = vmatprep.subr.bf16.mxu0 0
    %3841 = vmatpush1.bf16.msra.mxu0 0
    %3842 = vmatprep.subr.bf16.mxu0 0
    %3843 = vmatpush1.bf16.msra.mxu0 0
    %3844 = vmatprep.subr.bf16.mxu0 0
    %3845 = vmatpush1.bf16.msra.mxu0 0
    %3846 = vmatprep.subr.bf16.mxu0 0
    %3847 = vmatpush1.bf16.msra.mxu0 0
    %3848 = vmatprep.subr.bf16.mxu0 0
    %3849 = vmatpush1.bf16.msra.mxu0 0
    %3850 = vmatprep.subr.bf16.mxu0 0
    %3851 = vmatpush1.bf16.msra.mxu0 0
    %3852 = vmatprep.subr.bf16.mxu0 0
    %3853 = vmatpush1.bf16.msra.mxu0 0
    %3854 = vmatprep.subr.bf16.mxu0 0
    %3855 = vmatpush1.bf16.msra.mxu0 0
    %3856 = vmatprep.subr.bf16.mxu0 0
    %3857 = vmatpush1.bf16.msra.mxu0 0
    %3858 = vmatprep.subr.bf16.mxu0 0
    %3859 = vmatpush1.bf16.msra.mxu0 0
    %3860 = vmatprep.mubr.bf16.mxu0 0
    %3861 = vmatmul.mubr.bf16.gmra.mrb[0].mxu0 %v3823
    %v3862 = vpop.f32.mrb[0].mxu0
    %v3863 = vadd.f32 0.0, %v3862
    %v3864 = vpop.f32.mrb[0].mxu0
    %v3865 = vpop.f32.mrb[0].mxu0
    %v3866 = vpop.f32.mrb[0].mxu0
    %3867 = vdwg.mxu0
    %3868 = vrot.lane.b32.xlu0 %v3309, 64
    %v3869 = vpop.permute.xlu0 %3868
    %v3871 = vsel %vm138, %v3813, 0
    %v3874 = vsel %vm650, %v3869, 0
    %3876 = vmatprep.subr.bf16.mxu0 0
    %3877 = vmatpush1.bf16.msra.mxu0 %v3874
    %3878 = vmatprep.subr.bf16.mxu0 0
    %3879 = vmatpush1.bf16.msra.mxu0 0
    %3880 = vmatprep.subr.bf16.mxu0 0
    %3881 = vmatpush1.bf16.msra.mxu0 0
    %3882 = vmatprep.subr.bf16.mxu0 0
    %3883 = vmatpush1.bf16.msra.mxu0 0
    %3884 = vmatprep.subr.bf16.mxu0 0
    %3885 = vmatpush1.bf16.msra.mxu0 0
    %3886 = vmatprep.subr.bf16.mxu0 0
    %3887 = vmatpush1.bf16.msra.mxu0 0
    %3888 = vmatprep.subr.bf16.mxu0 0
    %3889 = vmatpush1.bf16.msra.mxu0 0
    %3890 = vmatprep.subr.bf16.mxu0 0
    %3891 = vmatpush1.bf16.msra.mxu0 0
    %3892 = vmatprep.subr.bf16.mxu0 0
    %3893 = vmatpush1.bf16.msra.mxu0 0
    %3894 = vmatprep.subr.bf16.mxu0 0
    %3895 = vmatpush1.bf16.msra.mxu0 0
    %3896 = vmatprep.subr.bf16.mxu0 0
    %3897 = vmatpush1.bf16.msra.mxu0 0
    %3898 = vmatprep.subr.bf16.mxu0 0
    %3899 = vmatpush1.bf16.msra.mxu0 0
    %3900 = vmatprep.subr.bf16.mxu0 0
    %3901 = vmatpush1.bf16.msra.mxu0 0
    %3902 = vmatprep.subr.bf16.mxu0 0
    %3903 = vmatpush1.bf16.msra.mxu0 0
    %3904 = vmatprep.subr.bf16.mxu0 0
    %3905 = vmatpush1.bf16.msra.mxu0 0
    %3906 = vmatprep.subr.bf16.mxu0 0
    %3907 = vmatpush1.bf16.msra.mxu0 0
    %3908 = vmatprep.mubr.bf16.mxu0 0
    %3909 = vmatmul.mubr.bf16.gmra.mrb[0].mxu0 %v3871
    %v3910 = vpop.f32.mrb[0].mxu0
    %v3911 = vadd.f32 0.0, %v3910
    %v3912 = vpop.f32.mrb[0].mxu0
    %v3913 = vpop.f32.mrb[0].mxu0
    %v3914 = vpop.f32.mrb[0].mxu0
    %3915 = vdwg.mxu0
    %3916 = vrot.lane.b32.xlu0 %v3313, 64
    %v3917 = vpop.permute.xlu0 %3916
    %v3919 = vsel %vm138, %v3814, 0
    %v3922 = vsel %vm650, %v3917, 0
    %3924 = vmatprep.subr.bf16.mxu0 0
    %3925 = vmatpush1.bf16.msra.mxu0 %v3922
    %3926 = vmatprep.subr.bf16.mxu0 0
    %3927 = vmatpush1.bf16.msra.mxu0 0
    %3928 = vmatprep.subr.bf16.mxu0 0
    %3929 = vmatpush1.bf16.msra.mxu0 0
    %3930 = vmatprep.subr.bf16.mxu0 0
    %3931 = vmatpush1.bf16.msra.mxu0 0
    %3932 = vmatprep.subr.bf16.mxu0 0
    %3933 = vmatpush1.bf16.msra.mxu0 0
    %3934 = vmatprep.subr.bf16.mxu0 0
    %3935 = vmatpush1.bf16.msra.mxu0 0
    %3936 = vmatprep.subr.bf16.mxu0 0
    %3937 = vmatpush1.bf16.msra.mxu0 0
    %3938 = vmatprep.subr.bf16.mxu0 0
    %3939 = vmatpush1.bf16.msra.mxu0 0
    %3940 = vmatprep.subr.bf16.mxu0 0
    %3941 = vmatpush1.bf16.msra.mxu0 0
    %3942 = vmatprep.subr.bf16.mxu0 0
    %3943 = vmatpush1.bf16.msra.mxu0 0
    %3944 = vmatprep.subr.bf16.mxu0 0
    %3945 = vmatpush1.bf16.msra.mxu0 0
    %3946 = vmatprep.subr.bf16.mxu0 0
    %3947 = vmatpush1.bf16.msra.mxu0 0
    %3948 = vmatprep.subr.bf16.mxu0 0
    %3949 = vmatpush1.bf16.msra.mxu0 0
    %3950 = vmatprep.subr.bf16.mxu0 0
    %3951 = vmatpush1.bf16.msra.mxu0 0
    %3952 = vmatprep.subr.bf16.mxu0 0
    %3953 = vmatpush1.bf16.msra.mxu0 0
    %3954 = vmatprep.subr.bf16.mxu0 0
    %3955 = vmatpush1.bf16.msra.mxu0 0
    %3956 = vmatprep.mubr.bf16.mxu0 0
    %3957 = vmatmul.mubr.bf16.gmra.mrb[0].mxu0 %v3919
    %v3958 = vpop.f32.mrb[0].mxu0
    %v3959 = vadd.f32 0.0, %v3958
    %v3960 = vpop.f32.mrb[0].mxu0
    %v3961 = vpop.f32.mrb[0].mxu0
    %v3962 = vpop.f32.mrb[0].mxu0
    %3963 = vdwg.mxu0
    %3964 = vrot.lane.b32.xlu0 %v3315, 64
    %v3965 = vpop.permute.xlu0 %3964
    %v3967 = vsel %vm138, %v3815, 0
    %v3970 = vsel %vm650, %v3965, 0
    %3972 = vmatprep.subr.bf16.mxu0 0
    %3973 = vmatpush1.bf16.msra.mxu0 %v3970
    %3974 = vmatprep.subr.bf16.mxu0 0
    %3975 = vmatpush1.bf16.msra.mxu0 0
    %3976 = vmatprep.subr.bf16.mxu0 0
    %3977 = vmatpush1.bf16.msra.mxu0 0
    %3978 = vmatprep.subr.bf16.mxu0 0
    %3979 = vmatpush1.bf16.msra.mxu0 0
    %3980 = vmatprep.subr.bf16.mxu0 0
    %3981 = vmatpush1.bf16.msra.mxu0 0
    %3982 = vmatprep.subr.bf16.mxu0 0
    %3983 = vmatpush1.bf16.msra.mxu0 0
    %3984 = vmatprep.subr.bf16.mxu0 0
    %3985 = vmatpush1.bf16.msra.mxu0 0
    %3986 = vmatprep.subr.bf16.mxu0 0
    %3987 = vmatpush1.bf16.msra.mxu0 0
    %3988 = vmatprep.subr.bf16.mxu0 0
    %3989 = vmatpush1.bf16.msra.mxu0 0
    %3990 = vmatprep.subr.bf16.mxu0 0
    %3991 = vmatpush1.bf16.msra.mxu0 0
    %3992 = vmatprep.subr.bf16.mxu0 0
    %3993 = vmatpush1.bf16.msra.mxu0 0
    %3994 = vmatprep.subr.bf16.mxu0 0
    %3995 = vmatpush1.bf16.msra.mxu0 0
    %3996 = vmatprep.subr.bf16.mxu0 0
    %3997 = vmatpush1.bf16.msra.mxu0 0
    %3998 = vmatprep.subr.bf16.mxu0 0
    %3999 = vmatpush1.bf16.msra.mxu0 0
    %4000 = vmatprep.subr.bf16.mxu0 0
    %4001 = vmatpush1.bf16.msra.mxu0 0
    %4002 = vmatprep.subr.bf16.mxu0 0
    %4003 = vmatpush1.bf16.msra.mxu0 0
    %4004 = vmatprep.mubr.bf16.mxu0 0
    %4005 = vmatmul.mubr.bf16.gmra.mrb[0].mxu0 %v3967
    %v4006 = vpop.f32.mrb[0].mxu0
    %v4007 = vadd.f32 0.0, %v4006
    %v4008 = vpop.f32.mrb[0].mxu0
    %v4009 = vpop.f32.mrb[0].mxu0
    %v4010 = vpop.f32.mrb[0].mxu0
    %4011 = vdwg.mxu0
    %4012 = vrot.lane.b32.xlu0 %v3317, 64
    %v4013 = vpop.permute.xlu0 %4012
    %v4015 = vsel %vm138, %v3816, 0
    %v4018 = vsel %vm650, %v4013, 0
    %4020 = vmatprep.subr.bf16.mxu0 0
    %4021 = vmatpush1.bf16.msra.mxu0 %v4018
    %4022 = vmatprep.subr.bf16.mxu0 0
    %4023 = vmatpush1.bf16.msra.mxu0 0
    %4024 = vmatprep.subr.bf16.mxu0 0
    %4025 = vmatpush1.bf16.msra.mxu0 0
    %4026 = vmatprep.subr.bf16.mxu0 0
    %4027 = vmatpush1.bf16.msra.mxu0 0
    %4028 = vmatprep.subr.bf16.mxu0 0
    %4029 = vmatpush1.bf16.msra.mxu0 0
    %4030 = vmatprep.subr.bf16.mxu0 0
    %4031 = vmatpush1.bf16.msra.mxu0 0
    %4032 = vmatprep.subr.bf16.mxu0 0
    %4033 = vmatpush1.bf16.msra.mxu0 0
    %4034 = vmatprep.subr.bf16.mxu0 0
    %4035 = vmatpush1.bf16.msra.mxu0 0
    %4036 = vmatprep.subr.bf16.mxu0 0
    %4037 = vmatpush1.bf16.msra.mxu0 0
    %4038 = vmatprep.subr.bf16.mxu0 0
    %4039 = vmatpush1.bf16.msra.mxu0 0
    %4040 = vmatprep.subr.bf16.mxu0 0
    %4041 = vmatpush1.bf16.msra.mxu0 0
    %4042 = vmatprep.subr.bf16.mxu0 0
    %4043 = vmatpush1.bf16.msra.mxu0 0
    %4044 = vmatprep.subr.bf16.mxu0 0
    %4045 = vmatpush1.bf16.msra.mxu0 0
    %4046 = vmatprep.subr.bf16.mxu0 0
    %4047 = vmatpush1.bf16.msra.mxu0 0
    %4048 = vmatprep.subr.bf16.mxu0 0
    %4049 = vmatpush1.bf16.msra.mxu0 0
    %4050 = vmatprep.subr.bf16.mxu0 0
    %4051 = vmatpush1.bf16.msra.mxu0 0
    %4052 = vmatprep.mubr.bf16.mxu0 0
    %4053 = vmatmul.mubr.bf16.gmra.mrb[0].mxu0 %v4015
    %v4054 = vpop.f32.mrb[0].mxu0
    %v4055 = vadd.f32 0.0, %v4054
    %v4056 = vpop.f32.mrb[0].mxu0
    %v4057 = vpop.f32.mrb[0].mxu0
    %v4058 = vpop.f32.mrb[0].mxu0
    %4059 = vdwg.mxu0
    %4060 = vrot.lane.b32.xlu0 %v3319, 64
    %v4061 = vpop.permute.xlu0 %4060
    %v4063 = vsel %vm138, %v3817, 0
    %v4066 = vsel %vm650, %v4061, 0
    %4068 = vmatprep.subr.bf16.mxu0 0
    %4069 = vmatpush1.bf16.msra.mxu0 %v4066
    %4070 = vmatprep.subr.bf16.mxu0 0
    %4071 = vmatpush1.bf16.msra.mxu0 0
    %4072 = vmatprep.subr.bf16.mxu0 0
    %4073 = vmatpush1.bf16.msra.mxu0 0
    %4074 = vmatprep.subr.bf16.mxu0 0
    %4075 = vmatpush1.bf16.msra.mxu0 0
    %4076 = vmatprep.subr.bf16.mxu0 0
    %4077 = vmatpush1.bf16.msra.mxu0 0
    %4078 = vmatprep.subr.bf16.mxu0 0
    %4079 = vmatpush1.bf16.msra.mxu0 0
    %4080 = vmatprep.subr.bf16.mxu0 0
    %4081 = vmatpush1.bf16.msra.mxu0 0
    %4082 = vmatprep.subr.bf16.mxu0 0
    %4083 = vmatpush1.bf16.msra.mxu0 0
    %4084 = vmatprep.subr.bf16.mxu0 0
    %4085 = vmatpush1.bf16.msra.mxu0 0
    %4086 = vmatprep.subr.bf16.mxu0 0
    %4087 = vmatpush1.bf16.msra.mxu0 0
    %4088 = vmatprep.subr.bf16.mxu0 0
    %4089 = vmatpush1.bf16.msra.mxu0 0
    %4090 = vmatprep.subr.bf16.mxu0 0
    %4091 = vmatpush1.bf16.msra.mxu0 0
    %4092 = vmatprep.subr.bf16.mxu0 0
    %4093 = vmatpush1.bf16.msra.mxu0 0
    %4094 = vmatprep.subr.bf16.mxu0 0
    %4095 = vmatpush1.bf16.msra.mxu0 0
    %4096 = vmatprep.subr.bf16.mxu0 0
    %4097 = vmatpush1.bf16.msra.mxu0 0
    %4098 = vmatprep.subr.bf16.mxu0 0
    %4099 = vmatpush1.bf16.msra.mxu0 0
    %4100 = vmatprep.mubr.bf16.mxu0 0
    %4101 = vmatmul.mubr.bf16.gmra.mrb[0].mxu0 %v4063
    %v4102 = vpop.f32.mrb[0].mxu0
    %v4103 = vadd.f32 0.0, %v4102
    %v4104 = vpop.f32.mrb[0].mxu0
    %v4105 = vpop.f32.mrb[0].mxu0
    %v4106 = vpop.f32.mrb[0].mxu0
    %4107 = vdwg.mxu0
    %4108 = vrot.lane.b32.xlu0 %v3321, 64
    %v4109 = vpop.permute.xlu0 %4108
    %v4111 = vsel %vm138, %v3818, 0
    %v4114 = vsel %vm650, %v4109, 0
    %4116 = vmatprep.subr.bf16.mxu0 0
    %4117 = vmatpush1.bf16.msra.mxu0 %v4114
    %4118 = vmatprep.subr.bf16.mxu0 0
    %4119 = vmatpush1.bf16.msra.mxu0 0
    %4120 = vmatprep.subr.bf16.mxu0 0
    %4121 = vmatpush1.bf16.msra.mxu0 0
    %4122 = vmatprep.subr.bf16.mxu0 0
    %4123 = vmatpush1.bf16.msra.mxu0 0
    %4124 = vmatprep.subr.bf16.mxu0 0
    %4125 = vmatpush1.bf16.msra.mxu0 0
    %4126 = vmatprep.subr.bf16.mxu0 0
    %4127 = vmatpush1.bf16.msra.mxu0 0
    %4128 = vmatprep.subr.bf16.mxu0 0
    %4129 = vmatpush1.bf16.msra.mxu0 0
    %4130 = vmatprep.subr.bf16.mxu0 0
    %4131 = vmatpush1.bf16.msra.mxu0 0
    %4132 = vmatprep.subr.bf16.mxu0 0
    %4133 = vmatpush1.bf16.msra.mxu0 0
    %4134 = vmatprep.subr.bf16.mxu0 0
    %4135 = vmatpush1.bf16.msra.mxu0 0
    %4136 = vmatprep.subr.bf16.mxu0 0
    %4137 = vmatpush1.bf16.msra.mxu0 0
    %4138 = vmatprep.subr.bf16.mxu0 0
    %4139 = vmatpush1.bf16.msra.mxu0 0
    %4140 = vmatprep.subr.bf16.mxu0 0
    %4141 = vmatpush1.bf16.msra.mxu0 0
    %4142 = vmatprep.subr.bf16.mxu0 0
    %4143 = vmatpush1.bf16.msra.mxu0 0
    %4144 = vmatprep.subr.bf16.mxu0 0
    %4145 = vmatpush1.bf16.msra.mxu0 0
    %4146 = vmatprep.subr.bf16.mxu0 0
    %4147 = vmatpush1.bf16.msra.mxu0 0
    %4148 = vmatprep.mubr.bf16.mxu0 0
    %4149 = vmatmul.mubr.bf16.gmra.mrb[0].mxu0 %v4111
    %v4150 = vpop.f32.mrb[0].mxu0
    %v4151 = vadd.f32 0.0, %v4150
    %v4152 = vpop.f32.mrb[0].mxu0
    %v4153 = vpop.f32.mrb[0].mxu0
    %v4154 = vpop.f32.mrb[0].mxu0
    %4155 = vdwg.mxu0
    %4156 = vrot.lane.b32.xlu0 %v3323, 64
    %v4157 = vpop.permute.xlu0 %4156
    %v4159 = vsel %vm138, %v3819, 0
    %v4162 = vsel %vm650, %v4157, 0
    %4164 = vmatprep.subr.bf16.mxu0 0
    %4165 = vmatpush1.bf16.msra.mxu0 %v4162
    %4166 = vmatprep.subr.bf16.mxu0 0
    %4167 = vmatpush1.bf16.msra.mxu0 0
    %4168 = vmatprep.subr.bf16.mxu0 0
    %4169 = vmatpush1.bf16.msra.mxu0 0
    %4170 = vmatprep.subr.bf16.mxu0 0
    %4171 = vmatpush1.bf16.msra.mxu0 0
    %4172 = vmatprep.subr.bf16.mxu0 0
    %4173 = vmatpush1.bf16.msra.mxu0 0
    %4174 = vmatprep.subr.bf16.mxu0 0
    %4175 = vmatpush1.bf16.msra.mxu0 0
    %4176 = vmatprep.subr.bf16.mxu0 0
    %4177 = vmatpush1.bf16.msra.mxu0 0
    %4178 = vmatprep.subr.bf16.mxu0 0
    %4179 = vmatpush1.bf16.msra.mxu0 0
    %4180 = vmatprep.subr.bf16.mxu0 0
    %4181 = vmatpush1.bf16.msra.mxu0 0
    %4182 = vmatprep.subr.bf16.mxu0 0
    %4183 = vmatpush1.bf16.msra.mxu0 0
    %4184 = vmatprep.subr.bf16.mxu0 0
    %4185 = vmatpush1.bf16.msra.mxu0 0
    %4186 = vmatprep.subr.bf16.mxu0 0
    %4187 = vmatpush1.bf16.msra.mxu0 0
    %4188 = vmatprep.subr.bf16.mxu0 0
    %4189 = vmatpush1.bf16.msra.mxu0 0
    %4190 = vmatprep.subr.bf16.mxu0 0
    %4191 = vmatpush1.bf16.msra.mxu0 0
    %4192 = vmatprep.subr.bf16.mxu0 0
    %4193 = vmatpush1.bf16.msra.mxu0 0
    %4194 = vmatprep.subr.bf16.mxu0 0
    %4195 = vmatpush1.bf16.msra.mxu0 0
    %4196 = vmatprep.mubr.bf16.mxu0 0
    %4197 = vmatmul.mubr.bf16.gmra.mrb[0].mxu0 %v4159
    %v4198 = vpop.f32.mrb[0].mxu0
    %v4199 = vadd.f32 0.0, %v4198
    %v4200 = vpop.f32.mrb[0].mxu0
    %v4201 = vpop.f32.mrb[0].mxu0
    %v4202 = vpop.f32.mrb[0].mxu0
    %4203 = vdwg.mxu0
    %4206 = vrot.lane.b32.xlu0 %v3959, 8
    %v4207 = vpop.permute.xlu0 %4206
    %4208 = vrot.lane.b32.xlu0 %v4007, 8
    %v4209 = vpop.permute.xlu0 %4208
    %4214 = vrot.lane.b32.xlu0 %v4055, 16
    %v4215 = vpop.permute.xlu0 %4214
    %4216 = vrot.lane.b32.xlu0 %v4103, 16
    %v4217 = vpop.permute.xlu0 %4216
    %4222 = vrot.lane.b32.xlu0 %v4151, 24
    %v4223 = vpop.permute.xlu0 %4222
    %4224 = vrot.lane.b32.xlu0 %v4199, 24
    %v4225 = vpop.permute.xlu0 %4224
    %v4228 = vsel %vm138, %v3863, %v4207
    %v4229 = vsel %vm138, %v3911, %v4209
    %v4230 = vsel %vm1056, %v4228, %v4215
    %v4231 = vsel %vm1056, %v4229, %v4217
    %v4232 = vsel %vm1059, %v4230, %v4223
    %v4233 = vsel %vm1059, %v4231, %v4225
    %v4234 = vpack.c.bf16 %v4233, %v4232
    %s4235 = scalar_lea.vmem %s4, 16
    %v4236 = vld [vmem:[%s4235] sm:$0xf]
    %v4237 = vld [vmem:[%s4235 + $0x4] sm:$0xf]
    %v4238 = vld [vmem:[%s4235 + $0x8] sm:$0xf]
    %v4239 = vld [vmem:[%s4235 + $0xc] sm:$0xf]
    %v4240 = vlaneseq
    %v4241 = vshrl.u32 %v4240, 7
    %v4242 = vsub.s32 0, %v4241
    %v4243 = vrot.slane %v3237, %v4242
    %v4248 = vunpack.c.l.b16 %v4236
    %v4249 = vunpack.c.l.b16 %v4237
    %v4250 = vunpack.c.l.b16 %v4238
    %v4251 = vunpack.c.l.b16 %v4239
    %v4252 = vpack.c.b16 %v4249, %v4248
    %v4253 = vpack.c.b16 %v4251, %v4250
    %v4257 = vsel %vm75, %v4234, 0
    %4259 = vmatprep.subr.bf16.mxu0 0
    %4260 = vmatpush1.bf16.msra.mxu0 %v4252
    %4261 = vmatprep.subr.bf16.mxu0 0
    %4262 = vmatpush1.bf16.msra.mxu0 %v4253
    %4263 = vmatprep.subr.bf16.mxu0 0
    %4264 = vmatpush1.bf16.msra.mxu0 0
    %4265 = vmatprep.subr.bf16.mxu0 0
    %4266 = vmatpush1.bf16.msra.mxu0 0
    %4267 = vmatprep.subr.bf16.mxu0 0
    %4268 = vmatpush1.bf16.msra.mxu0 0
    %4269 = vmatprep.subr.bf16.mxu0 0
    %4270 = vmatpush1.bf16.msra.mxu0 0
    %4271 = vmatprep.subr.bf16.mxu0 0
    %4272 = vmatpush1.bf16.msra.mxu0 0
    %4273 = vmatprep.subr.bf16.mxu0 0
    %4274 = vmatpush1.bf16.msra.mxu0 0
    %4275 = vmatprep.subr.bf16.mxu0 0
    %4276 = vmatpush1.bf16.msra.mxu0 0
    %4277 = vmatprep.subr.bf16.mxu0 0
    %4278 = vmatpush1.bf16.msra.mxu0 0
    %4279 = vmatprep.subr.bf16.mxu0 0
    %4280 = vmatpush1.bf16.msra.mxu0 0
    %4281 = vmatprep.subr.bf16.mxu0 0
    %4282 = vmatpush1.bf16.msra.mxu0 0
    %4283 = vmatprep.subr.bf16.mxu0 0
    %4284 = vmatpush1.bf16.msra.mxu0 0
    %4285 = vmatprep.subr.bf16.mxu0 0
    %4286 = vmatpush1.bf16.msra.mxu0 0
    %4287 = vmatprep.subr.bf16.mxu0 0
    %4288 = vmatpush1.bf16.msra.mxu0 0
    %4289 = vmatprep.subr.bf16.mxu0 0
    %4290 = vmatpush1.bf16.msra.mxu0 0
    %4291 = vmatprep.mubr.bf16.mxu0 0
    %4292 = vmatmul.mubr.bf16.gmra.mrb[0].mxu0 %v4257
    %v4293 = vpop.f32.mrb[0].mxu0
    %v4294 = vadd.f32 %v4243, %v4293
    %v4295 = vpop.f32.mrb[0].mxu0
    %v4296 = vpop.f32.mrb[0].mxu0
    %v4297 = vadd.f32 %v4243, %v4296
    %v4298 = vpop.f32.mrb[0].mxu0
    %4299 = vdwg.mxu0
    %v4300 = vadd.f32 %v3234, %v4294
    %v4301 = vadd.f32 %v3235, %v4297
    %v4302 = vsel %vm75, %v4300, 0.0
    %4303 = vadd.xlane.f32.xlu0 %v4302
    %v4304 = vpop.xlane.xlu0 %4303
    %v4305 = vsel %vm75, %v4301, 0.0
    %4306 = vadd.xlane.f32.xlu0 %v4305
    %v4307 = vpop.xlane.xlu0 %4306
    %v4308 = vmul.f32 %v4304, %v1135
    %v4309 = vmul.f32 %v4307, %v1135
    %v4310 = vsub.f32 %v4300, %v4308
    %v4311 = vsub.f32 %v4301, %v4309
    %v4312 = vmul.f32 %v4310, %v4310
    %v4313 = vmul.f32 %v4311, %v4311
    %v4314 = vsel %vm75, %v4312, 0.0
    %4315 = vadd.xlane.f32.xlu0 %v4314
    %v4316 = vpop.xlane.xlu0 %4315
    %v4317 = vsel %vm75, %v4313, 0.0
    %4318 = vadd.xlane.f32.xlu0 %v4317
    %v4319 = vpop.xlane.xlu0 %4318
    %v4320 = vmul.f32 %v4316, %v1135
    %v4321 = vmul.f32 %v4319, %v1135
    %v4322 = vadd.f32 %v4320, 1e-05
    %v4323 = vadd.f32 %v4321, 1e-05
    %v4324 = vrsqrt.pop %v4322
    %v4325 = vrsqrt.pop %v4323
    %v4326 = vmul.f32 %v4310, %v4324
    %v4327 = vmul.f32 %v4311, %v4325
    %v4328 = vlaneseq
    %v4329 = vshrl.u32 %v4328, 7
    %v4330 = vsub.s32 1, %v4329
    %v4331 = vrot.slane %v3237, %v4330
    %v4332 = vmul.f32 %v4326, %v4331
    %v4333 = vmul.f32 %v4327, %v4331
    %v4334 = vlaneseq
    %v4335 = vshrl.u32 %v4334, 7
    %v4336 = vsub.s32 2, %v4335
    %v4337 = vrot.slane %v3237, %v4336
    %v4338 = vadd.f32 %v4332, %v4337
    %v4339 = vadd.f32 %v4333, %v4337
    %v4340 = vpack.c.bf16 %v4339, %v4338
    %s4341 = scalar_lea.vmem %s6, 256
    %v4342 = vld [vmem:[%s4341] sm:$0xff]
    %v4343 = vld [vmem:[%s4341 + $0x8] sm:$0xff]
    %v4344 = vld [vmem:[%s4341 + $0x10] sm:$0xff]
    %v4345 = vld [vmem:[%s4341 + $0x18] sm:$0xff]
    %v4346 = vld [vmem:[%s4341 + $0x20] sm:$0xff]
    %v4347 = vld [vmem:[%s4341 + $0x28] sm:$0xff]
    %v4348 = vld [vmem:[%s4341 + $0x30] sm:$0xff]
    %v4349 = vld [vmem:[%s4341 + $0x38] sm:$0xff]
    %v4350 = vld [vmem:[%s4341 + $0x40] sm:$0xff]
    %v4351 = vld [vmem:[%s4341 + $0x48] sm:$0xff]
    %v4352 = vld [vmem:[%s4341 + $0x50] sm:$0xff]
    %v4353 = vld [vmem:[%s4341 + $0x58] sm:$0xff]
    %v4354 = vld [vmem:[%s4341 + $0x60] sm:$0xff]
    %v4355 = vld [vmem:[%s4341 + $0x68] sm:$0xff]
    %v4356 = vld [vmem:[%s4341 + $0x70] sm:$0xff]
    %v4357 = vld [vmem:[%s4341 + $0x78] sm:$0xff]
    %v4358 = vld [vmem:[%s4341 + $0x80] sm:$0xff]
    %v4359 = vld [vmem:[%s4341 + $0x88] sm:$0xff]
    %v4360 = vld [vmem:[%s4341 + $0x90] sm:$0xff]
    %v4361 = vld [vmem:[%s4341 + $0x98] sm:$0xff]
    %v4362 = vld [vmem:[%s4341 + $0xa0] sm:$0xff]
    %v4363 = vld [vmem:[%s4341 + $0xa8] sm:$0xff]
    %v4364 = vld [vmem:[%s4341 + $0xb0] sm:$0xff]
    %v4365 = vld [vmem:[%s4341 + $0xb8] sm:$0xff]
    %v4366 = vld [vmem:[%s4341 + $0xc0] sm:$0xff]
    %v4367 = vld [vmem:[%s4341 + $0xc8] sm:$0xff]
    %v4368 = vld [vmem:[%s4341 + $0xd0] sm:$0xff]
    %v4369 = vld [vmem:[%s4341 + $0xd8] sm:$0xff]
    %v4370 = vld [vmem:[%s4341 + $0xe0] sm:$0xff]
    %v4371 = vld [vmem:[%s4341 + $0xe8] sm:$0xff]
    %v4372 = vld [vmem:[%s4341 + $0xf0] sm:$0xff]
    %v4373 = vld [vmem:[%s4341 + $0xf8] sm:$0xff]
    %s4374 = scalar_lea.vmem %s7, 16
    %v4375 = vld [vmem:[%s4374] sm:$0xff]
    %v4376 = vld [vmem:[%s4374 + $0x8] sm:$0xff]
    %v4379 = vlaneseq
    %v4380 = vshrl.u32 %v4379, 7
    %v4381 = vsub.s32 0, %v4380
    %v4382 = vrot.slane %v4375, %v4381
    %v4383 = vlaneseq
    %v4384 = vshrl.u32 %v4383, 7
    %v4385 = vsub.s32 1, %v4384
    %v4386 = vrot.slane %v4375, %v4385
    %v4387 = vlaneseq
    %v4388 = vshrl.u32 %v4387, 7
    %v4389 = vsub.s32 2, %v4388
    %v4390 = vrot.slane %v4375, %v4389
    %v4391 = vlaneseq
    %v4392 = vshrl.u32 %v4391, 7
    %v4393 = vsub.s32 3, %v4392
    %v4394 = vrot.slane %v4375, %v4393
    %v4395 = vlaneseq
    %v4396 = vshrl.u32 %v4395, 7
    %v4397 = vsub.s32 4, %v4396
    %v4398 = vrot.slane %v4375, %v4397
    %v4399 = vlaneseq
    %v4400 = vshrl.u32 %v4399, 7
    %v4401 = vsub.s32 5, %v4400
    %v4402 = vrot.slane %v4375, %v4401
    %v4403 = vlaneseq
    %v4404 = vshrl.u32 %v4403, 7
    %v4405 = vsub.s32 6, %v4404
    %v4406 = vrot.slane %v4375, %v4405
    %v4407 = vlaneseq
    %v4408 = vshrl.u32 %v4407, 7
    %v4409 = vsub.s32 7, %v4408
    %v4410 = vrot.slane %v4375, %v4409
    %v4411 = vlaneseq
    %v4412 = vshrl.u32 %v4411, 7
    %v4413 = vsub.s32 0, %v4412
    %v4414 = vrot.slane %v4376, %v4413
    %v4415 = vlaneseq
    %v4416 = vshrl.u32 %v4415, 7
    %v4417 = vsub.s32 1, %v4416
    %v4418 = vrot.slane %v4376, %v4417
    %v4419 = vlaneseq
    %v4420 = vshrl.u32 %v4419, 7
    %v4421 = vsub.s32 2, %v4420
    %v4422 = vrot.slane %v4376, %v4421
    %v4423 = vlaneseq
    %v4424 = vshrl.u32 %v4423, 7
    %v4425 = vsub.s32 3, %v4424
    %v4426 = vrot.slane %v4376, %v4425
    %v4427 = vlaneseq
    %v4428 = vshrl.u32 %v4427, 7
    %v4429 = vsub.s32 4, %v4428
    %v4430 = vrot.slane %v4376, %v4429
    %v4431 = vlaneseq
    %v4432 = vshrl.u32 %v4431, 7
    %v4433 = vsub.s32 5, %v4432
    %v4434 = vrot.slane %v4376, %v4433
    %v4435 = vlaneseq
    %v4436 = vshrl.u32 %v4435, 7
    %v4437 = vsub.s32 6, %v4436
    %v4438 = vrot.slane %v4376, %v4437
    %v4439 = vlaneseq
    %v4440 = vshrl.u32 %v4439, 7
    %v4441 = vsub.s32 7, %v4440
    %v4442 = vrot.slane %v4376, %v4441
    %v4491 = vunpack.c.l.b16 %v4342
    %v4492 = vunpack.c.h.b16 %v4342
    %v4493 = vunpack.c.l.b16 %v4343
    %v4494 = vunpack.c.h.b16 %v4343
    %v4495 = vunpack.c.l.b16 %v4344
    %v4496 = vunpack.c.h.b16 %v4344
    %v4497 = vunpack.c.l.b16 %v4345
    %v4498 = vunpack.c.h.b16 %v4345
    %v4499 = vunpack.c.l.b16 %v4346
    %v4500 = vunpack.c.h.b16 %v4346
    %v4501 = vunpack.c.l.b16 %v4347
    %v4502 = vunpack.c.h.b16 %v4347
    %v4503 = vunpack.c.l.b16 %v4348
    %v4504 = vunpack.c.h.b16 %v4348
    %v4505 = vunpack.c.l.b16 %v4349
    %v4506 = vunpack.c.h.b16 %v4349
    %v4507 = vunpack.c.l.b16 %v4350
    %v4508 = vunpack.c.h.b16 %v4350
    %v4509 = vunpack.c.l.b16 %v4351
    %v4510 = vunpack.c.h.b16 %v4351
    %v4511 = vunpack.c.l.b16 %v4352
    %v4512 = vunpack.c.h.b16 %v4352
    %v4513 = vunpack.c.l.b16 %v4353
    %v4514 = vunpack.c.h.b16 %v4353
    %v4515 = vunpack.c.l.b16 %v4354
    %v4516 = vunpack.c.h.b16 %v4354
    %v4517 = vunpack.c.l.b16 %v4355
    %v4518 = vunpack.c.h.b16 %v4355
    %v4519 = vunpack.c.l.b16 %v4356
    %v4520 = vunpack.c.h.b16 %v4356
    %v4521 = vunpack.c.l.b16 %v4357
    %v4522 = vunpack.c.h.b16 %v4357
    %v4523 = vunpack.c.l.b16 %v4358
    %v4524 = vunpack.c.h.b16 %v4358
    %v4525 = vunpack.c.l.b16 %v4359
    %v4526 = vunpack.c.h.b16 %v4359
    %v4527 = vunpack.c.l.b16 %v4360
    %v4528 = vunpack.c.h.b16 %v4360
    %v4529 = vunpack.c.l.b16 %v4361
    %v4530 = vunpack.c.h.b16 %v4361
    %v4531 = vunpack.c.l.b16 %v4362
    %v4532 = vunpack.c.h.b16 %v4362
    %v4533 = vunpack.c.l.b16 %v4363
    %v4534 = vunpack.c.h.b16 %v4363
    %v4535 = vunpack.c.l.b16 %v4364
    %v4536 = vunpack.c.h.b16 %v4364
    %v4537 = vunpack.c.l.b16 %v4365
    %v4538 = vunpack.c.h.b16 %v4365
    %v4539 = vunpack.c.l.b16 %v4366
    %v4540 = vunpack.c.h.b16 %v4366
    %v4541 = vunpack.c.l.b16 %v4367
    %v4542 = vunpack.c.h.b16 %v4367
    %v4543 = vunpack.c.l.b16 %v4368
    %v4544 = vunpack.c.h.b16 %v4368
    %v4545 = vunpack.c.l.b16 %v4369
    %v4546 = vunpack.c.h.b16 %v4369
    %v4547 = vunpack.c.l.b16 %v4370
    %v4548 = vunpack.c.h.b16 %v4370
    %v4549 = vunpack.c.l.b16 %v4371
    %v4550 = vunpack.c.h.b16 %v4371
    %v4551 = vunpack.c.l.b16 %v4372
    %v4552 = vunpack.c.h.b16 %v4372
    %v4553 = vunpack.c.l.b16 %v4373
    %v4554 = vunpack.c.h.b16 %v4373
    %v4555 = vpack.c.b16 %v4507, %v4491
    %v4556 = vpack.c.b16 %v4508, %v4492
    %v4557 = vpack.c.b16 %v4509, %v4493
    %v4558 = vpack.c.b16 %v4510, %v4494
    %v4559 = vpack.c.b16 %v4511, %v4495
    %v4560 = vpack.c.b16 %v4512, %v4496
    %v4561 = vpack.c.b16 %v4513, %v4497
    %v4562 = vpack.c.b16 %v4514, %v4498
    %v4563 = vpack.c.b16 %v4515, %v4499
    %v4564 = vpack.c.b16 %v4516, %v4500
    %v4565 = vpack.c.b16 %v4517, %v4501
    %v4566 = vpack.c.b16 %v4518, %v4502
    %v4567 = vpack.c.b16 %v4519, %v4503
    %v4568 = vpack.c.b16 %v4520, %v4504
    %v4569 = vpack.c.b16 %v4521, %v4505
    %v4570 = vpack.c.b16 %v4522, %v4506
    %v4571 = vpack.c.b16 %v4539, %v4523
    %v4572 = vpack.c.b16 %v4540, %v4524
    %v4573 = vpack.c.b16 %v4541, %v4525
    %v4574 = vpack.c.b16 %v4542, %v4526
    %v4575 = vpack.c.b16 %v4543, %v4527
    %v4576 = vpack.c.b16 %v4544, %v4528
    %v4577 = vpack.c.b16 %v4545, %v4529
    %v4578 = vpack.c.b16 %v4546, %v4530
    %v4579 = vpack.c.b16 %v4547, %v4531
    %v4580 = vpack.c.b16 %v4548, %v4532
    %v4581 = vpack.c.b16 %v4549, %v4533
    %v4582 = vpack.c.b16 %v4550, %v4534
    %v4583 = vpack.c.b16 %v4551, %v4535
    %v4584 = vpack.c.b16 %v4552, %v4536
    %v4585 = vpack.c.b16 %v4553, %v4537
    %v4586 = vpack.c.b16 %v4554, %v4538
    %v4620 = vsel %vm75, %v4340, 0
    %4622 = vmatprep.subr.bf16.mxu0 %v4556
    %4623 = vmatpush1.bf16.msra.mxu0 %v4555
    %4624 = vmatprep.subr.bf16.mxu0 %v4572
    %4625 = vmatpush1.bf16.msra.mxu0 %v4571
    %4626 = vmatprep.subr.bf16.mxu0 0
    %4627 = vmatpush1.bf16.msra.mxu0 0
    %4628 = vmatprep.subr.bf16.mxu0 0
    %4629 = vmatpush1.bf16.msra.mxu0 0
    %4630 = vmatprep.subr.bf16.mxu0 0
    %4631 = vmatpush1.bf16.msra.mxu0 0
    %4632 = vmatprep.subr.bf16.mxu0 0
    %4633 = vmatpush1.bf16.msra.mxu0 0
    %4634 = vmatprep.subr.bf16.mxu0 0
    %4635 = vmatpush1.bf16.msra.mxu0 0
    %4636 = vmatprep.subr.bf16.mxu0 0
    %4637 = vmatpush1.bf16.msra.mxu0 0
    %4638 = vmatprep.subr.bf16.mxu0 0
    %4639 = vmatpush1.bf16.msra.mxu0 0
    %4640 = vmatprep.subr.bf16.mxu0 0
    %4641 = vmatpush1.bf16.msra.mxu0 0
    %4642 = vmatprep.subr.bf16.mxu0 0
    %4643 = vmatpush1.bf16.msra.mxu0 0
    %4644 = vmatprep.subr.bf16.mxu0 0
    %4645 = vmatpush1.bf16.msra.mxu0 0
    %4646 = vmatprep.subr.bf16.mxu0 0
    %4647 = vmatpush1.bf16.msra.mxu0 0
    %4648 = vmatprep.subr.bf16.mxu0 0
    %4649 = vmatpush1.bf16.msra.mxu0 0
    %4650 = vmatprep.subr.bf16.mxu0 0
    %4651 = vmatpush1.bf16.msra.mxu0 0
    %4652 = vmatprep.subr.bf16.mxu0 0
    %4653 = vmatpush1.bf16.msra.mxu0 0
    %4654 = vmatprep.mubr.bf16.mxu0 0
    %4655 = vmatmul.mubr.bf16.gmra.mrb[0].mxu0 %v4620
    %v4656 = vpop.f32.mrb[0].mxu0
    %v4657 = vadd.f32 %v4382, %v4656
    %v4658 = vpop.f32.mrb[0].mxu0
    %v4659 = vadd.f32 %v4386, %v4658
    %v4660 = vpop.f32.mrb[0].mxu0
    %v4661 = vadd.f32 %v4382, %v4660
    %v4662 = vpop.f32.mrb[0].mxu0
    %v4663 = vadd.f32 %v4386, %v4662
    %4664 = vdwg.mxu0
    %4665 = vmatprep.subr.bf16.mxu0 %v4558
    %4666 = vmatpush1.bf16.msra.mxu0 %v4557
    %4667 = vmatprep.subr.bf16.mxu0 %v4574
    %4668 = vmatpush1.bf16.msra.mxu0 %v4573
    %4669 = vmatprep.subr.bf16.mxu0 0
    %4670 = vmatpush1.bf16.msra.mxu0 0
    %4671 = vmatprep.subr.bf16.mxu0 0
    %4672 = vmatpush1.bf16.msra.mxu0 0
    %4673 = vmatprep.subr.bf16.mxu0 0
    %4674 = vmatpush1.bf16.msra.mxu0 0
    %4675 = vmatprep.subr.bf16.mxu0 0
    %4676 = vmatpush1.bf16.msra.mxu0 0
    %4677 = vmatprep.subr.bf16.mxu0 0
    %4678 = vmatpush1.bf16.msra.mxu0 0
    %4679 = vmatprep.subr.bf16.mxu0 0
    %4680 = vmatpush1.bf16.msra.mxu0 0
    %4681 = vmatprep.subr.bf16.mxu0 0
    %4682 = vmatpush1.bf16.msra.mxu0 0
    %4683 = vmatprep.subr.bf16.mxu0 0
    %4684 = vmatpush1.bf16.msra.mxu0 0
    %4685 = vmatprep.subr.bf16.mxu0 0
    %4686 = vmatpush1.bf16.msra.mxu0 0
    %4687 = vmatprep.subr.bf16.mxu0 0
    %4688 = vmatpush1.bf16.msra.mxu0 0
    %4689 = vmatprep.subr.bf16.mxu0 0
    %4690 = vmatpush1.bf16.msra.mxu0 0
    %4691 = vmatprep.subr.bf16.mxu0 0
    %4692 = vmatpush1.bf16.msra.mxu0 0
    %4693 = vmatprep.subr.bf16.mxu0 0
    %4694 = vmatpush1.bf16.msra.mxu0 0
    %4695 = vmatprep.subr.bf16.mxu0 0
    %4696 = vmatpush1.bf16.msra.mxu0 0
    %4697 = vmatprep.mubr.bf16.mxu0 0
    %4698 = vmatmul.mubr.bf16.gmra.mrb[0].mxu0 %v4620
    %v4699 = vpop.f32.mrb[0].mxu0
    %v4700 = vadd.f32 %v4390, %v4699
    %v4701 = vpop.f32.mrb[0].mxu0
    %v4702 = vadd.f32 %v4394, %v4701
    %v4703 = vpop.f32.mrb[0].mxu0
    %v4704 = vadd.f32 %v4390, %v4703
    %v4705 = vpop.f32.mrb[0].mxu0
    %v4706 = vadd.f32 %v4394, %v4705
    %4707 = vdwg.mxu0
    %4708 = vmatprep.subr.bf16.mxu0 %v4560
    %4709 = vmatpush1.bf16.msra.mxu0 %v4559
    %4710 = vmatprep.subr.bf16.mxu0 %v4576
    %4711 = vmatpush1.bf16.msra.mxu0 %v4575
    %4712 = vmatprep.subr.bf16.mxu0 0
    %4713 = vmatpush1.bf16.msra.mxu0 0
    %4714 = vmatprep.subr.bf16.mxu0 0
    %4715 = vmatpush1.bf16.msra.mxu0 0
    %4716 = vmatprep.subr.bf16.mxu0 0
    %4717 = vmatpush1.bf16.msra.mxu0 0
    %4718 = vmatprep.subr.bf16.mxu0 0
    %4719 = vmatpush1.bf16.msra.mxu0 0
    %4720 = vmatprep.subr.bf16.mxu0 0
    %4721 = vmatpush1.bf16.msra.mxu0 0
    %4722 = vmatprep.subr.bf16.mxu0 0
    %4723 = vmatpush1.bf16.msra.mxu0 0
    %4724 = vmatprep.subr.bf16.mxu0 0
    %4725 = vmatpush1.bf16.msra.mxu0 0
    %4726 = vmatprep.subr.bf16.mxu0 0
    %4727 = vmatpush1.bf16.msra.mxu0 0
    %4728 = vmatprep.subr.bf16.mxu0 0
    %4729 = vmatpush1.bf16.msra.mxu0 0
    %4730 = vmatprep.subr.bf16.mxu0 0
    %4731 = vmatpush1.bf16.msra.mxu0 0
    %4732 = vmatprep.subr.bf16.mxu0 0
    %4733 = vmatpush1.bf16.msra.mxu0 0
    %4734 = vmatprep.subr.bf16.mxu0 0
    %4735 = vmatpush1.bf16.msra.mxu0 0
    %4736 = vmatprep.subr.bf16.mxu0 0
    %4737 = vmatpush1.bf16.msra.mxu0 0
    %4738 = vmatprep.subr.bf16.mxu0 0
    %4739 = vmatpush1.bf16.msra.mxu0 0
    %4740 = vmatprep.mubr.bf16.mxu0 0
    %4741 = vmatmul.mubr.bf16.gmra.mrb[0].mxu0 %v4620
    %v4742 = vpop.f32.mrb[0].mxu0
    %v4743 = vadd.f32 %v4398, %v4742
    %v4744 = vpop.f32.mrb[0].mxu0
    %v4745 = vadd.f32 %v4402, %v4744
    %v4746 = vpop.f32.mrb[0].mxu0
    %v4747 = vadd.f32 %v4398, %v4746
    %v4748 = vpop.f32.mrb[0].mxu0
    %v4749 = vadd.f32 %v4402, %v4748
    %4750 = vdwg.mxu0
    %4751 = vmatprep.subr.bf16.mxu0 %v4562
    %4752 = vmatpush1.bf16.msra.mxu0 %v4561
    %4753 = vmatprep.subr.bf16.mxu0 %v4578
    %4754 = vmatpush1.bf16.msra.mxu0 %v4577
    %4755 = vmatprep.subr.bf16.mxu0 0
    %4756 = vmatpush1.bf16.msra.mxu0 0
    %4757 = vmatprep.subr.bf16.mxu0 0
    %4758 = vmatpush1.bf16.msra.mxu0 0
    %4759 = vmatprep.subr.bf16.mxu0 0
    %4760 = vmatpush1.bf16.msra.mxu0 0
    %4761 = vmatprep.subr.bf16.mxu0 0
    %4762 = vmatpush1.bf16.msra.mxu0 0
    %4763 = vmatprep.subr.bf16.mxu0 0
    %4764 = vmatpush1.bf16.msra.mxu0 0
    %4765 = vmatprep.subr.bf16.mxu0 0
    %4766 = vmatpush1.bf16.msra.mxu0 0
    %4767 = vmatprep.subr.bf16.mxu0 0
    %4768 = vmatpush1.bf16.msra.mxu0 0
    %4769 = vmatprep.subr.bf16.mxu0 0
    %4770 = vmatpush1.bf16.msra.mxu0 0
    %4771 = vmatprep.subr.bf16.mxu0 0
    %4772 = vmatpush1.bf16.msra.mxu0 0
    %4773 = vmatprep.subr.bf16.mxu0 0
    %4774 = vmatpush1.bf16.msra.mxu0 0
    %4775 = vmatprep.subr.bf16.mxu0 0
    %4776 = vmatpush1.bf16.msra.mxu0 0
    %4777 = vmatprep.subr.bf16.mxu0 0
    %4778 = vmatpush1.bf16.msra.mxu0 0
    %4779 = vmatprep.subr.bf16.mxu0 0
    %4780 = vmatpush1.bf16.msra.mxu0 0
    %4781 = vmatprep.subr.bf16.mxu0 0
    %4782 = vmatpush1.bf16.msra.mxu0 0
    %4783 = vmatprep.mubr.bf16.mxu0 0
    %4784 = vmatmul.mubr.bf16.gmra.mrb[0].mxu0 %v4620
    %v4785 = vpop.f32.mrb[0].mxu0
    %v4786 = vadd.f32 %v4406, %v4785
    %v4787 = vpop.f32.mrb[0].mxu0
    %v4788 = vadd.f32 %v4410, %v4787
    %v4789 = vpop.f32.mrb[0].mxu0
    %v4790 = vadd.f32 %v4406, %v4789
    %v4791 = vpop.f32.mrb[0].mxu0
    %v4792 = vadd.f32 %v4410, %v4791
    %4793 = vdwg.mxu0
    %4794 = vmatprep.subr.bf16.mxu0 %v4564
    %4795 = vmatpush1.bf16.msra.mxu0 %v4563
    %4796 = vmatprep.subr.bf16.mxu0 %v4580
    %4797 = vmatpush1.bf16.msra.mxu0 %v4579
    %4798 = vmatprep.subr.bf16.mxu0 0
    %4799 = vmatpush1.bf16.msra.mxu0 0
    %4800 = vmatprep.subr.bf16.mxu0 0
    %4801 = vmatpush1.bf16.msra.mxu0 0
    %4802 = vmatprep.subr.bf16.mxu0 0
    %4803 = vmatpush1.bf16.msra.mxu0 0
    %4804 = vmatprep.subr.bf16.mxu0 0
    %4805 = vmatpush1.bf16.msra.mxu0 0
    %4806 = vmatprep.subr.bf16.mxu0 0
    %4807 = vmatpush1.bf16.msra.mxu0 0
    %4808 = vmatprep.subr.bf16.mxu0 0
    %4809 = vmatpush1.bf16.msra.mxu0 0
    %4810 = vmatprep.subr.bf16.mxu0 0
    %4811 = vmatpush1.bf16.msra.mxu0 0
    %4812 = vmatprep.subr.bf16.mxu0 0
    %4813 = vmatpush1.bf16.msra.mxu0 0
    %4814 = vmatprep.subr.bf16.mxu0 0
    %4815 = vmatpush1.bf16.msra.mxu0 0
    %4816 = vmatprep.subr.bf16.mxu0 0
    %4817 = vmatpush1.bf16.msra.mxu0 0
    %4818 = vmatprep.subr.bf16.mxu0 0
    %4819 = vmatpush1.bf16.msra.mxu0 0
    %4820 = vmatprep.subr.bf16.mxu0 0
    %4821 = vmatpush1.bf16.msra.mxu0 0
    %4822 = vmatprep.subr.bf16.mxu0 0
    %4823 = vmatpush1.bf16.msra.mxu0 0
    %4824 = vmatprep.subr.bf16.mxu0 0
    %4825 = vmatpush1.bf16.msra.mxu0 0
    %4826 = vmatprep.mubr.bf16.mxu0 0
    %4827 = vmatmul.mubr.bf16.gmra.mrb[0].mxu0 %v4620
    %v4828 = vpop.f32.mrb[0].mxu0
    %v4829 = vadd.f32 %v4414, %v4828
    %v4830 = vpop.f32.mrb[0].mxu0
    %v4831 = vadd.f32 %v4418, %v4830
    %v4832 = vpop.f32.mrb[0].mxu0
    %v4833 = vadd.f32 %v4414, %v4832
    %v4834 = vpop.f32.mrb[0].mxu0
    %v4835 = vadd.f32 %v4418, %v4834
    %4836 = vdwg.mxu0
    %4837 = vmatprep.subr.bf16.mxu0 %v4566
    %4838 = vmatpush1.bf16.msra.mxu0 %v4565
    %4839 = vmatprep.subr.bf16.mxu0 %v4582
    %4840 = vmatpush1.bf16.msra.mxu0 %v4581
    %4841 = vmatprep.subr.bf16.mxu0 0
    %4842 = vmatpush1.bf16.msra.mxu0 0
    %4843 = vmatprep.subr.bf16.mxu0 0
    %4844 = vmatpush1.bf16.msra.mxu0 0
    %4845 = vmatprep.subr.bf16.mxu0 0
    %4846 = vmatpush1.bf16.msra.mxu0 0
    %4847 = vmatprep.subr.bf16.mxu0 0
    %4848 = vmatpush1.bf16.msra.mxu0 0
    %4849 = vmatprep.subr.bf16.mxu0 0
    %4850 = vmatpush1.bf16.msra.mxu0 0
    %4851 = vmatprep.subr.bf16.mxu0 0
    %4852 = vmatpush1.bf16.msra.mxu0 0
    %4853 = vmatprep.subr.bf16.mxu0 0
    %4854 = vmatpush1.bf16.msra.mxu0 0
    %4855 = vmatprep.subr.bf16.mxu0 0
    %4856 = vmatpush1.bf16.msra.mxu0 0
    %4857 = vmatprep.subr.bf16.mxu0 0
    %4858 = vmatpush1.bf16.msra.mxu0 0
    %4859 = vmatprep.subr.bf16.mxu0 0
    %4860 = vmatpush1.bf16.msra.mxu0 0
    %4861 = vmatprep.subr.bf16.mxu0 0
    %4862 = vmatpush1.bf16.msra.mxu0 0
    %4863 = vmatprep.subr.bf16.mxu0 0
    %4864 = vmatpush1.bf16.msra.mxu0 0
    %4865 = vmatprep.subr.bf16.mxu0 0
    %4866 = vmatpush1.bf16.msra.mxu0 0
    %4867 = vmatprep.subr.bf16.mxu0 0
    %4868 = vmatpush1.bf16.msra.mxu0 0
    %4869 = vmatprep.mubr.bf16.mxu0 0
    %4870 = vmatmul.mubr.bf16.gmra.mrb[0].mxu0 %v4620
    %v4871 = vpop.f32.mrb[0].mxu0
    %v4872 = vadd.f32 %v4422, %v4871
    %v4873 = vpop.f32.mrb[0].mxu0
    %v4874 = vadd.f32 %v4426, %v4873
    %v4875 = vpop.f32.mrb[0].mxu0
    %v4876 = vadd.f32 %v4422, %v4875
    %v4877 = vpop.f32.mrb[0].mxu0
    %v4878 = vadd.f32 %v4426, %v4877
    %4879 = vdwg.mxu0
    %4880 = vmatprep.subr.bf16.mxu0 %v4568
    %4881 = vmatpush1.bf16.msra.mxu0 %v4567
    %4882 = vmatprep.subr.bf16.mxu0 %v4584
    %4883 = vmatpush1.bf16.msra.mxu0 %v4583
    %4884 = vmatprep.subr.bf16.mxu0 0
    %4885 = vmatpush1.bf16.msra.mxu0 0
    %4886 = vmatprep.subr.bf16.mxu0 0
    %4887 = vmatpush1.bf16.msra.mxu0 0
    %4888 = vmatprep.subr.bf16.mxu0 0
    %4889 = vmatpush1.bf16.msra.mxu0 0
    %4890 = vmatprep.subr.bf16.mxu0 0
    %4891 = vmatpush1.bf16.msra.mxu0 0
    %4892 = vmatprep.subr.bf16.mxu0 0
    %4893 = vmatpush1.bf16.msra.mxu0 0
    %4894 = vmatprep.subr.bf16.mxu0 0
    %4895 = vmatpush1.bf16.msra.mxu0 0
    %4896 = vmatprep.subr.bf16.mxu0 0
    %4897 = vmatpush1.bf16.msra.mxu0 0
    %4898 = vmatprep.subr.bf16.mxu0 0
    %4899 = vmatpush1.bf16.msra.mxu0 0
    %4900 = vmatprep.subr.bf16.mxu0 0
    %4901 = vmatpush1.bf16.msra.mxu0 0
    %4902 = vmatprep.subr.bf16.mxu0 0
    %4903 = vmatpush1.bf16.msra.mxu0 0
    %4904 = vmatprep.subr.bf16.mxu0 0
    %4905 = vmatpush1.bf16.msra.mxu0 0
    %4906 = vmatprep.subr.bf16.mxu0 0
    %4907 = vmatpush1.bf16.msra.mxu0 0
    %4908 = vmatprep.subr.bf16.mxu0 0
    %4909 = vmatpush1.bf16.msra.mxu0 0
    %4910 = vmatprep.subr.bf16.mxu0 0
    %4911 = vmatpush1.bf16.msra.mxu0 0
    %4912 = vmatprep.mubr.bf16.mxu0 0
    %4913 = vmatmul.mubr.bf16.gmra.mrb[0].mxu0 %v4620
    %v4914 = vpop.f32.mrb[0].mxu0
    %v4915 = vadd.f32 %v4430, %v4914
    %v4916 = vpop.f32.mrb[0].mxu0
    %v4917 = vadd.f32 %v4434, %v4916
    %v4918 = vpop.f32.mrb[0].mxu0
    %v4919 = vadd.f32 %v4430, %v4918
    %v4920 = vpop.f32.mrb[0].mxu0
    %v4921 = vadd.f32 %v4434, %v4920
    %4922 = vdwg.mxu0
    %4923 = vmatprep.subr.bf16.mxu0 %v4570
    %4924 = vmatpush1.bf16.msra.mxu0 %v4569
    %4925 = vmatprep.subr.bf16.mxu0 %v4586
    %4926 = vmatpush1.bf16.msra.mxu0 %v4585
    %4927 = vmatprep.subr.bf16.mxu0 0
    %4928 = vmatpush1.bf16.msra.mxu0 0
    %4929 = vmatprep.subr.bf16.mxu0 0
    %4930 = vmatpush1.bf16.msra.mxu0 0
    %4931 = vmatprep.subr.bf16.mxu0 0
    %4932 = vmatpush1.bf16.msra.mxu0 0
    %4933 = vmatprep.subr.bf16.mxu0 0
    %4934 = vmatpush1.bf16.msra.mxu0 0
    %4935 = vmatprep.subr.bf16.mxu0 0
    %4936 = vmatpush1.bf16.msra.mxu0 0
    %4937 = vmatprep.subr.bf16.mxu0 0
    %4938 = vmatpush1.bf16.msra.mxu0 0
    %4939 = vmatprep.subr.bf16.mxu0 0
    %4940 = vmatpush1.bf16.msra.mxu0 0
    %4941 = vmatprep.subr.bf16.mxu0 0
    %4942 = vmatpush1.bf16.msra.mxu0 0
    %4943 = vmatprep.subr.bf16.mxu0 0
    %4944 = vmatpush1.bf16.msra.mxu0 0
    %4945 = vmatprep.subr.bf16.mxu0 0
    %4946 = vmatpush1.bf16.msra.mxu0 0
    %4947 = vmatprep.subr.bf16.mxu0 0
    %4948 = vmatpush1.bf16.msra.mxu0 0
    %4949 = vmatprep.subr.bf16.mxu0 0
    %4950 = vmatpush1.bf16.msra.mxu0 0
    %4951 = vmatprep.subr.bf16.mxu0 0
    %4952 = vmatpush1.bf16.msra.mxu0 0
    %4953 = vmatprep.subr.bf16.mxu0 0
    %4954 = vmatpush1.bf16.msra.mxu0 0
    %4955 = vmatprep.mubr.bf16.mxu0 0
    %4956 = vmatmul.mubr.bf16.gmra.mrb[0].mxu0 %v4620
    %v4957 = vpop.f32.mrb[0].mxu0
    %v4958 = vadd.f32 %v4438, %v4957
    %v4959 = vpop.f32.mrb[0].mxu0
    %v4960 = vadd.f32 %v4442, %v4959
    %v4961 = vpop.f32.mrb[0].mxu0
    %v4962 = vadd.f32 %v4438, %v4961
    %v4963 = vpop.f32.mrb[0].mxu0
    %v4964 = vadd.f32 %v4442, %v4963
    %4965 = vdwg.mxu0
    %v4966 = vmax.f32 %v4657, 0.0
    %v4967 = vmax.f32 %v4659, 0.0
    %v4968 = vmax.f32 %v4700, 0.0
    %v4969 = vmax.f32 %v4702, 0.0
    %v4970 = vmax.f32 %v4743, 0.0
    %v4971 = vmax.f32 %v4745, 0.0
    %v4972 = vmax.f32 %v4786, 0.0
    %v4973 = vmax.f32 %v4788, 0.0
    %v4974 = vmax.f32 %v4829, 0.0
    %v4975 = vmax.f32 %v4831, 0.0
    %v4976 = vmax.f32 %v4872, 0.0
    %v4977 = vmax.f32 %v4874, 0.0
    %v4978 = vmax.f32 %v4915, 0.0
    %v4979 = vmax.f32 %v4917, 0.0
    %v4980 = vmax.f32 %v4958, 0.0
    %v4981 = vmax.f32 %v4960, 0.0
    %v4982 = vmax.f32 %v4661, 0.0
    %v4983 = vmax.f32 %v4663, 0.0
    %v4984 = vmax.f32 %v4704, 0.0
    %v4985 = vmax.f32 %v4706, 0.0
    %v4986 = vmax.f32 %v4747, 0.0
    %v4987 = vmax.f32 %v4749, 0.0
    %v4988 = vmax.f32 %v4790, 0.0
    %v4989 = vmax.f32 %v4792, 0.0
    %v4990 = vmax.f32 %v4833, 0.0
    %v4991 = vmax.f32 %v4835, 0.0
    %v4992 = vmax.f32 %v4876, 0.0
    %v4993 = vmax.f32 %v4878, 0.0
    %v4994 = vmax.f32 %v4919, 0.0
    %v4995 = vmax.f32 %v4921, 0.0
    %v4996 = vmax.f32 %v4962, 0.0
    %v4997 = vmax.f32 %v4964, 0.0
    %v4998 = vpack.c.bf16 %v4982, %v4966
    %v4999 = vpack.c.bf16 %v4983, %v4967
    %v5000 = vpack.c.bf16 %v4984, %v4968
    %v5001 = vpack.c.bf16 %v4985, %v4969
    %v5002 = vpack.c.bf16 %v4986, %v4970
    %v5003 = vpack.c.bf16 %v4987, %v4971
    %v5004 = vpack.c.bf16 %v4988, %v4972
    %v5005 = vpack.c.bf16 %v4989, %v4973
    %v5006 = vpack.c.bf16 %v4990, %v4974
    %v5007 = vpack.c.bf16 %v4991, %v4975
    %v5008 = vpack.c.bf16 %v4992, %v4976
    %v5009 = vpack.c.bf16 %v4993, %v4977
    %v5010 = vpack.c.bf16 %v4994, %v4978
    %v5011 = vpack.c.bf16 %v4995, %v4979
    %v5012 = vpack.c.bf16 %v4996, %v4980
    %v5013 = vpack.c.bf16 %v4997, %v4981
    %s5014 = scalar_lea.vmem %s8, 1024
    %v5015 = vld [vmem:[%s5014] sm:$0xf]
    %v5016 = vld [vmem:[%s5014 + $0x4] sm:$0xf]
    %v5017 = vld [vmem:[%s5014 + $0x8] sm:$0xf]
    %v5018 = vld [vmem:[%s5014 + $0xc] sm:$0xf]
    %v5019 = vld [vmem:[%s5014 + $0x10] sm:$0xf]
    %v5020 = vld [vmem:[%s5014 + $0x14] sm:$0xf]
    %v5021 = vld [vmem:[%s5014 + $0x18] sm:$0xf]
    %v5022 = vld [vmem:[%s5014 + $0x1c] sm:$0xf]
    %v5023 = vld [vmem:[%s5014 + $0x20] sm:$0xf]
    %v5024 = vld [vmem:[%s5014 + $0x24] sm:$0xf]
    %v5025 = vld [vmem:[%s5014 + $0x28] sm:$0xf]
    %v5026 = vld [vmem:[%s5014 + $0x2c] sm:$0xf]
    %v5027 = vld [vmem:[%s5014 + $0x30] sm:$0xf]
    %v5028 = vld [vmem:[%s5014 + $0x34] sm:$0xf]
    %v5029 = vld [vmem:[%s5014 + $0x38] sm:$0xf]
    %v5030 = vld [vmem:[%s5014 + $0x3c] sm:$0xf]
    %v5031 = vld [vmem:[%s5014 + $0x40] sm:$0xf]
    %v5032 = vld [vmem:[%s5014 + $0x44] sm:$0xf]
    %v5033 = vld [vmem:[%s5014 + $0x48] sm:$0xf]
    %v5034 = vld [vmem:[%s5014 + $0x4c] sm:$0xf]
    %v5035 = vld [vmem:[%s5014 + $0x50] sm:$0xf]
    %v5036 = vld [vmem:[%s5014 + $0x54] sm:$0xf]
    %v5037 = vld [vmem:[%s5014 + $0x58] sm:$0xf]
    %v5038 = vld [vmem:[%s5014 + $0x5c] sm:$0xf]
    %v5039 = vld [vmem:[%s5014 + $0x60] sm:$0xf]
    %v5040 = vld [vmem:[%s5014 + $0x64] sm:$0xf]
    %v5041 = vld [vmem:[%s5014 + $0x68] sm:$0xf]
    %v5042 = vld [vmem:[%s5014 + $0x6c] sm:$0xf]
    %v5043 = vld [vmem:[%s5014 + $0x70] sm:$0xf]
    %v5044 = vld [vmem:[%s5014 + $0x74] sm:$0xf]
    %v5045 = vld [vmem:[%s5014 + $0x78] sm:$0xf]
    %v5046 = vld [vmem:[%s5014 + $0x7c] sm:$0xf]
    %v5047 = vld [vmem:[%s5014 + $0x80] sm:$0xf]
    %v5048 = vld [vmem:[%s5014 + $0x84] sm:$0xf]
    %v5049 = vld [vmem:[%s5014 + $0x88] sm:$0xf]
    %v5050 = vld [vmem:[%s5014 + $0x8c] sm:$0xf]
    %v5051 = vld [vmem:[%s5014 + $0x90] sm:$0xf]
    %v5052 = vld [vmem:[%s5014 + $0x94] sm:$0xf]
    %v5053 = vld [vmem:[%s5014 + $0x98] sm:$0xf]
    %v5054 = vld [vmem:[%s5014 + $0x9c] sm:$0xf]
    %v5055 = vld [vmem:[%s5014 + $0xa0] sm:$0xf]
    %v5056 = vld [vmem:[%s5014 + $0xa4] sm:$0xf]
    %v5057 = vld [vmem:[%s5014 + $0xa8] sm:$0xf]
    %v5058 = vld [vmem:[%s5014 + $0xac] sm:$0xf]
    %v5059 = vld [vmem:[%s5014 + $0xb0] sm:$0xf]
    %v5060 = vld [vmem:[%s5014 + $0xb4] sm:$0xf]
    %v5061 = vld [vmem:[%s5014 + $0xb8] sm:$0xf]
    %v5062 = vld [vmem:[%s5014 + $0xbc] sm:$0xf]
    %v5063 = vld [vmem:[%s5014 + $0xc0] sm:$0xf]
    %v5064 = vld [vmem:[%s5014 + $0xc4] sm:$0xf]
    %v5065 = vld [vmem:[%s5014 + $0xc8] sm:$0xf]
    %v5066 = vld [vmem:[%s5014 + $0xcc] sm:$0xf]
    %v5067 = vld [vmem:[%s5014 + $0xd0] sm:$0xf]
    %v5068 = vld [vmem:[%s5014 + $0xd4] sm:$0xf]
    %v5069 = vld [vmem:[%s5014 + $0xd8] sm:$0xf]
    %v5070 = vld [vmem:[%s5014 + $0xdc] sm:$0xf]
    %v5071 = vld [vmem:[%s5014 + $0xe0] sm:$0xf]
    %v5072 = vld [vmem:[%s5014 + $0xe4] sm:$0xf]
    %v5073 = vld [vmem:[%s5014 + $0xe8] sm:$0xf]
    %v5074 = vld [vmem:[%s5014 + $0xec] sm:$0xf]
    %v5075 = vld [vmem:[%s5014 + $0xf0] sm:$0xf]
    %v5076 = vld [vmem:[%s5014 + $0xf4] sm:$0xf]
    %v5077 = vld [vmem:[%s5014 + $0xf8] sm:$0xf]
    %v5078 = vld [vmem:[%s5014 + $0xfc] sm:$0xf]
    %v5079 = vld [vmem:[%s5014 + $0x100] sm:$0xf]
    %v5080 = vld [vmem:[%s5014 + $0x104] sm:$0xf]
    %v5081 = vld [vmem:[%s5014 + $0x108] sm:$0xf]
    %v5082 = vld [vmem:[%s5014 + $0x10c] sm:$0xf]
    %v5083 = vld [vmem:[%s5014 + $0x110] sm:$0xf]
    %v5084 = vld [vmem:[%s5014 + $0x114] sm:$0xf]
    %v5085 = vld [vmem:[%s5014 + $0x118] sm:$0xf]
    %v5086 = vld [vmem:[%s5014 + $0x11c] sm:$0xf]
    %v5087 = vld [vmem:[%s5014 + $0x120] sm:$0xf]
    %v5088 = vld [vmem:[%s5014 + $0x124] sm:$0xf]
    %v5089 = vld [vmem:[%s5014 + $0x128] sm:$0xf]
    %v5090 = vld [vmem:[%s5014 + $0x12c] sm:$0xf]
    %v5091 = vld [vmem:[%s5014 + $0x130] sm:$0xf]
    %v5092 = vld [vmem:[%s5014 + $0x134] sm:$0xf]
    %v5093 = vld [vmem:[%s5014 + $0x138] sm:$0xf]
    %v5094 = vld [vmem:[%s5014 + $0x13c] sm:$0xf]
    %v5095 = vld [vmem:[%s5014 + $0x140] sm:$0xf]
    %v5096 = vld [vmem:[%s5014 + $0x144] sm:$0xf]
    %v5097 = vld [vmem:[%s5014 + $0x148] sm:$0xf]
    %v5098 = vld [vmem:[%s5014 + $0x14c] sm:$0xf]
    %v5099 = vld [vmem:[%s5014 + $0x150] sm:$0xf]
    %v5100 = vld [vmem:[%s5014 + $0x154] sm:$0xf]
    %v5101 = vld [vmem:[%s5014 + $0x158] sm:$0xf]
    %v5102 = vld [vmem:[%s5014 + $0x15c] sm:$0xf]
    %v5103 = vld [vmem:[%s5014 + $0x160] sm:$0xf]
    %v5104 = vld [vmem:[%s5014 + $0x164] sm:$0xf]
    %v5105 = vld [vmem:[%s5014 + $0x168] sm:$0xf]
    %v5106 = vld [vmem:[%s5014 + $0x16c] sm:$0xf]
    %v5107 = vld [vmem:[%s5014 + $0x170] sm:$0xf]
    %v5108 = vld [vmem:[%s5014 + $0x174] sm:$0xf]
    %v5109 = vld [vmem:[%s5014 + $0x178] sm:$0xf]
    %v5110 = vld [vmem:[%s5014 + $0x17c] sm:$0xf]
    %v5111 = vld [vmem:[%s5014 + $0x180] sm:$0xf]
    %v5112 = vld [vmem:[%s5014 + $0x184] sm:$0xf]
    %v5113 = vld [vmem:[%s5014 + $0x188] sm:$0xf]
    %v5114 = vld [vmem:[%s5014 + $0x18c] sm:$0xf]
    %v5115 = vld [vmem:[%s5014 + $0x190] sm:$0xf]
    %v5116 = vld [vmem:[%s5014 + $0x194] sm:$0xf]
    %v5117 = vld [vmem:[%s5014 + $0x198] sm:$0xf]
    %v5118 = vld [vmem:[%s5014 + $0x19c] sm:$0xf]
    %v5119 = vld [vmem:[%s5014 + $0x1a0] sm:$0xf]
    %v5120 = vld [vmem:[%s5014 + $0x1a4] sm:$0xf]
    %v5121 = vld [vmem:[%s5014 + $0x1a8] sm:$0xf]
    %v5122 = vld [vmem:[%s5014 + $0x1ac] sm:$0xf]
    %v5123 = vld [vmem:[%s5014 + $0x1b0] sm:$0xf]
    %v5124 = vld [vmem:[%s5014 + $0x1b4] sm:$0xf]
    %v5125 = vld [vmem:[%s5014 + $0x1b8] sm:$0xf]
    %v5126 = vld [vmem:[%s5014 + $0x1bc] sm:$0xf]
    %v5127 = vld [vmem:[%s5014 + $0x1c0] sm:$0xf]
    %v5128 = vld [vmem:[%s5014 + $0x1c4] sm:$0xf]
    %v5129 = vld [vmem:[%s5014 + $0x1c8] sm:$0xf]
    %v5130 = vld [vmem:[%s5014 + $0x1cc] sm:$0xf]
    %v5131 = vld [vmem:[%s5014 + $0x1d0] sm:$0xf]
    %v5132 = vld [vmem:[%s5014 + $0x1d4] sm:$0xf]
    %v5133 = vld [vmem:[%s5014 + $0x1d8] sm:$0xf]
    %v5134 = vld [vmem:[%s5014 + $0x1dc] sm:$0xf]
    %v5135 = vld [vmem:[%s5014 + $0x1e0] sm:$0xf]
    %v5136 = vld [vmem:[%s5014 + $0x1e4] sm:$0xf]
    %v5137 = vld [vmem:[%s5014 + $0x1e8] sm:$0xf]
    %v5138 = vld [vmem:[%s5014 + $0x1ec] sm:$0xf]
    %v5139 = vld [vmem:[%s5014 + $0x1f0] sm:$0xf]
    %v5140 = vld [vmem:[%s5014 + $0x1f4] sm:$0xf]
    %v5141 = vld [vmem:[%s5014 + $0x1f8] sm:$0xf]
    %v5142 = vld [vmem:[%s5014 + $0x1fc] sm:$0xf]
    %v5143 = vld [vmem:[%s5014 + $0x200] sm:$0xf]
    %v5144 = vld [vmem:[%s5014 + $0x204] sm:$0xf]
    %v5145 = vld [vmem:[%s5014 + $0x208] sm:$0xf]
    %v5146 = vld [vmem:[%s5014 + $0x20c] sm:$0xf]
    %v5147 = vld [vmem:[%s5014 + $0x210] sm:$0xf]
    %v5148 = vld [vmem:[%s5014 + $0x214] sm:$0xf]
    %v5149 = vld [vmem:[%s5014 + $0x218] sm:$0xf]
    %v5150 = vld [vmem:[%s5014 + $0x21c] sm:$0xf]
    %v5151 = vld [vmem:[%s5014 + $0x220] sm:$0xf]
    %v5152 = vld [vmem:[%s5014 + $0x224] sm:$0xf]
    %v5153 = vld [vmem:[%s5014 + $0x228] sm:$0xf]
    %v5154 = vld [vmem:[%s5014 + $0x22c] sm:$0xf]
    %v5155 = vld [vmem:[%s5014 + $0x230] sm:$0xf]
    %v5156 = vld [vmem:[%s5014 + $0x234] sm:$0xf]
    %v5157 = vld [vmem:[%s5014 + $0x238] sm:$0xf]
    %v5158 = vld [vmem:[%s5014 + $0x23c] sm:$0xf]
    %v5159 = vld [vmem:[%s5014 + $0x240] sm:$0xf]
    %v5160 = vld [vmem:[%s5014 + $0x244] sm:$0xf]
    %v5161 = vld [vmem:[%s5014 + $0x248] sm:$0xf]
    %v5162 = vld [vmem:[%s5014 + $0x24c] sm:$0xf]
    %v5163 = vld [vmem:[%s5014 + $0x250] sm:$0xf]
    %v5164 = vld [vmem:[%s5014 + $0x254] sm:$0xf]
    %v5165 = vld [vmem:[%s5014 + $0x258] sm:$0xf]
    %v5166 = vld [vmem:[%s5014 + $0x25c] sm:$0xf]
    %v5167 = vld [vmem:[%s5014 + $0x260] sm:$0xf]
    %v5168 = vld [vmem:[%s5014 + $0x264] sm:$0xf]
    %v5169 = vld [vmem:[%s5014 + $0x268] sm:$0xf]
    %v5170 = vld [vmem:[%s5014 + $0x26c] sm:$0xf]
    %v5171 = vld [vmem:[%s5014 + $0x270] sm:$0xf]
    %v5172 = vld [vmem:[%s5014 + $0x274] sm:$0xf]
    %v5173 = vld [vmem:[%s5014 + $0x278] sm:$0xf]
    %v5174 = vld [vmem:[%s5014 + $0x27c] sm:$0xf]
    %v5175 = vld [vmem:[%s5014 + $0x280] sm:$0xf]
    %v5176 = vld [vmem:[%s5014 + $0x284] sm:$0xf]
    %v5177 = vld [vmem:[%s5014 + $0x288] sm:$0xf]
    %v5178 = vld [vmem:[%s5014 + $0x28c] sm:$0xf]
    %v5179 = vld [vmem:[%s5014 + $0x290] sm:$0xf]
    %v5180 = vld [vmem:[%s5014 + $0x294] sm:$0xf]
    %v5181 = vld [vmem:[%s5014 + $0x298] sm:$0xf]
    %v5182 = vld [vmem:[%s5014 + $0x29c] sm:$0xf]
    %v5183 = vld [vmem:[%s5014 + $0x2a0] sm:$0xf]
    %v5184 = vld [vmem:[%s5014 + $0x2a4] sm:$0xf]
    %v5185 = vld [vmem:[%s5014 + $0x2a8] sm:$0xf]
    %v5186 = vld [vmem:[%s5014 + $0x2ac] sm:$0xf]
    %v5187 = vld [vmem:[%s5014 + $0x2b0] sm:$0xf]
    %v5188 = vld [vmem:[%s5014 + $0x2b4] sm:$0xf]
    %v5189 = vld [vmem:[%s5014 + $0x2b8] sm:$0xf]
    %v5190 = vld [vmem:[%s5014 + $0x2bc] sm:$0xf]
    %v5191 = vld [vmem:[%s5014 + $0x2c0] sm:$0xf]
    %v5192 = vld [vmem:[%s5014 + $0x2c4] sm:$0xf]
    %v5193 = vld [vmem:[%s5014 + $0x2c8] sm:$0xf]
    %v5194 = vld [vmem:[%s5014 + $0x2cc] sm:$0xf]
    %v5195 = vld [vmem:[%s5014 + $0x2d0] sm:$0xf]
    %v5196 = vld [vmem:[%s5014 + $0x2d4] sm:$0xf]
    %v5197 = vld [vmem:[%s5014 + $0x2d8] sm:$0xf]
    %v5198 = vld [vmem:[%s5014 + $0x2dc] sm:$0xf]
    %v5199 = vld [vmem:[%s5014 + $0x2e0] sm:$0xf]
    %v5200 = vld [vmem:[%s5014 + $0x2e4] sm:$0xf]
    %v5201 = vld [vmem:[%s5014 + $0x2e8] sm:$0xf]
    %v5202 = vld [vmem:[%s5014 + $0x2ec] sm:$0xf]
    %v5203 = vld [vmem:[%s5014 + $0x2f0] sm:$0xf]
    %v5204 = vld [vmem:[%s5014 + $0x2f4] sm:$0xf]
    %v5205 = vld [vmem:[%s5014 + $0x2f8] sm:$0xf]
    %v5206 = vld [vmem:[%s5014 + $0x2fc] sm:$0xf]
    %v5207 = vld [vmem:[%s5014 + $0x300] sm:$0xf]
    %v5208 = vld [vmem:[%s5014 + $0x304] sm:$0xf]
    %v5209 = vld [vmem:[%s5014 + $0x308] sm:$0xf]
    %v5210 = vld [vmem:[%s5014 + $0x30c] sm:$0xf]
    %v5211 = vld [vmem:[%s5014 + $0x310] sm:$0xf]
    %v5212 = vld [vmem:[%s5014 + $0x314] sm:$0xf]
    %v5213 = vld [vmem:[%s5014 + $0x318] sm:$0xf]
    %v5214 = vld [vmem:[%s5014 + $0x31c] sm:$0xf]
    %v5215 = vld [vmem:[%s5014 + $0x320] sm:$0xf]
    %v5216 = vld [vmem:[%s5014 + $0x324] sm:$0xf]
    %v5217 = vld [vmem:[%s5014 + $0x328] sm:$0xf]
    %v5218 = vld [vmem:[%s5014 + $0x32c] sm:$0xf]
    %v5219 = vld [vmem:[%s5014 + $0x330] sm:$0xf]
    %v5220 = vld [vmem:[%s5014 + $0x334] sm:$0xf]
    %v5221 = vld [vmem:[%s5014 + $0x338] sm:$0xf]
    %v5222 = vld [vmem:[%s5014 + $0x33c] sm:$0xf]
    %v5223 = vld [vmem:[%s5014 + $0x340] sm:$0xf]
    %v5224 = vld [vmem:[%s5014 + $0x344] sm:$0xf]
    %v5225 = vld [vmem:[%s5014 + $0x348] sm:$0xf]
    %v5226 = vld [vmem:[%s5014 + $0x34c] sm:$0xf]
    %v5227 = vld [vmem:[%s5014 + $0x350] sm:$0xf]
    %v5228 = vld [vmem:[%s5014 + $0x354] sm:$0xf]
    %v5229 = vld [vmem:[%s5014 + $0x358] sm:$0xf]
    %v5230 = vld [vmem:[%s5014 + $0x35c] sm:$0xf]
    %v5231 = vld [vmem:[%s5014 + $0x360] sm:$0xf]
    %v5232 = vld [vmem:[%s5014 + $0x364] sm:$0xf]
    %v5233 = vld [vmem:[%s5014 + $0x368] sm:$0xf]
    %v5234 = vld [vmem:[%s5014 + $0x36c] sm:$0xf]
    %v5235 = vld [vmem:[%s5014 + $0x370] sm:$0xf]
    %v5236 = vld [vmem:[%s5014 + $0x374] sm:$0xf]
    %v5237 = vld [vmem:[%s5014 + $0x378] sm:$0xf]
    %v5238 = vld [vmem:[%s5014 + $0x37c] sm:$0xf]
    %v5239 = vld [vmem:[%s5014 + $0x380] sm:$0xf]
    %v5240 = vld [vmem:[%s5014 + $0x384] sm:$0xf]
    %v5241 = vld [vmem:[%s5014 + $0x388] sm:$0xf]
    %v5242 = vld [vmem:[%s5014 + $0x38c] sm:$0xf]
    %v5243 = vld [vmem:[%s5014 + $0x390] sm:$0xf]
    %v5244 = vld [vmem:[%s5014 + $0x394] sm:$0xf]
    %v5245 = vld [vmem:[%s5014 + $0x398] sm:$0xf]
    %v5246 = vld [vmem:[%s5014 + $0x39c] sm:$0xf]
    %v5247 = vld [vmem:[%s5014 + $0x3a0] sm:$0xf]
    %v5248 = vld [vmem:[%s5014 + $0x3a4] sm:$0xf]
    %v5249 = vld [vmem:[%s5014 + $0x3a8] sm:$0xf]
    %v5250 = vld [vmem:[%s5014 + $0x3ac] sm:$0xf]
    %v5251 = vld [vmem:[%s5014 + $0x3b0] sm:$0xf]
    %v5252 = vld [vmem:[%s5014 + $0x3b4] sm:$0xf]
    %v5253 = vld [vmem:[%s5014 + $0x3b8] sm:$0xf]
    %v5254 = vld [vmem:[%s5014 + $0x3bc] sm:$0xf]
    %v5255 = vld [vmem:[%s5014 + $0x3c0] sm:$0xf]
    %v5256 = vld [vmem:[%s5014 + $0x3c4] sm:$0xf]
    %v5257 = vld [vmem:[%s5014 + $0x3c8] sm:$0xf]
    %v5258 = vld [vmem:[%s5014 + $0x3cc] sm:$0xf]
    %v5259 = vld [vmem:[%s5014 + $0x3d0] sm:$0xf]
    %v5260 = vld [vmem:[%s5014 + $0x3d4] sm:$0xf]
    %v5261 = vld [vmem:[%s5014 + $0x3d8] sm:$0xf]
    %v5262 = vld [vmem:[%s5014 + $0x3dc] sm:$0xf]
    %v5263 = vld [vmem:[%s5014 + $0x3e0] sm:$0xf]
    %v5264 = vld [vmem:[%s5014 + $0x3e4] sm:$0xf]
    %v5265 = vld [vmem:[%s5014 + $0x3e8] sm:$0xf]
    %v5266 = vld [vmem:[%s5014 + $0x3ec] sm:$0xf]
    %v5267 = vld [vmem:[%s5014 + $0x3f0] sm:$0xf]
    %v5268 = vld [vmem:[%s5014 + $0x3f4] sm:$0xf]
    %v5269 = vld [vmem:[%s5014 + $0x3f8] sm:$0xf]
    %v5270 = vld [vmem:[%s5014 + $0x3fc] sm:$0xf]
    %v5271 = vlaneseq
    %v5272 = vshrl.u32 %v5271, 7
    %v5273 = vsub.s32 3, %v5272
    %v5274 = vrot.slane %v3237, %v5273
    %v5531 = vunpack.c.l.b16 %v5015
    %v5532 = vunpack.c.l.b16 %v5016
    %v5533 = vunpack.c.l.b16 %v5017
    %v5534 = vunpack.c.l.b16 %v5018
    %v5535 = vunpack.c.l.b16 %v5019
    %v5536 = vunpack.c.l.b16 %v5020
    %v5537 = vunpack.c.l.b16 %v5021
    %v5538 = vunpack.c.l.b16 %v5022
    %v5539 = vunpack.c.l.b16 %v5023
    %v5540 = vunpack.c.l.b16 %v5024
    %v5541 = vunpack.c.l.b16 %v5025
    %v5542 = vunpack.c.l.b16 %v5026
    %v5543 = vunpack.c.l.b16 %v5027
    %v5544 = vunpack.c.l.b16 %v5028
    %v5545 = vunpack.c.l.b16 %v5029
    %v5546 = vunpack.c.l.b16 %v5030
    %v5547 = vunpack.c.l.b16 %v5031
    %v5548 = vunpack.c.l.b16 %v5032
    %v5549 = vunpack.c.l.b16 %v5033
    %v5550 = vunpack.c.l.b16 %v5034
    %v5551 = vunpack.c.l.b16 %v5035
    %v5552 = vunpack.c.l.b16 %v5036
    %v5553 = vunpack.c.l.b16 %v5037
    %v5554 = vunpack.c.l.b16 %v5038
    %v5555 = vunpack.c.l.b16 %v5039
    %v5556 = vunpack.c.l.b16 %v5040
    %v5557 = vunpack.c.l.b16 %v5041
    %v5558 = vunpack.c.l.b16 %v5042
    %v5559 = vunpack.c.l.b16 %v5043
    %v5560 = vunpack.c.l.b16 %v5044
    %v5561 = vunpack.c.l.b16 %v5045
    %v5562 = vunpack.c.l.b16 %v5046
    %v5563 = vunpack.c.l.b16 %v5047
    %v5564 = vunpack.c.l.b16 %v5048
    %v5565 = vunpack.c.l.b16 %v5049
    %v5566 = vunpack.c.l.b16 %v5050
    %v5567 = vunpack.c.l.b16 %v5051
    %v5568 = vunpack.c.l.b16 %v5052
    %v5569 = vunpack.c.l.b16 %v5053
    %v5570 = vunpack.c.l.b16 %v5054
    %v5571 = vunpack.c.l.b16 %v5055
    %v5572 = vunpack.c.l.b16 %v5056
    %v5573 = vunpack.c.l.b16 %v5057
    %v5574 = vunpack.c.l.b16 %v5058
    %v5575 = vunpack.c.l.b16 %v5059
    %v5576 = vunpack.c.l.b16 %v5060
    %v5577 = vunpack.c.l.b16 %v5061
    %v5578 = vunpack.c.l.b16 %v5062
    %v5579 = vunpack.c.l.b16 %v5063
    %v5580 = vunpack.c.l.b16 %v5064
    %v5581 = vunpack.c.l.b16 %v5065
    %v5582 = vunpack.c.l.b16 %v5066
    %v5583 = vunpack.c.l.b16 %v5067
    %v5584 = vunpack.c.l.b16 %v5068
    %v5585 = vunpack.c.l.b16 %v5069
    %v5586 = vunpack.c.l.b16 %v5070
    %v5587 = vunpack.c.l.b16 %v5071
    %v5588 = vunpack.c.l.b16 %v5072
    %v5589 = vunpack.c.l.b16 %v5073
    %v5590 = vunpack.c.l.b16 %v5074
    %v5591 = vunpack.c.l.b16 %v5075
    %v5592 = vunpack.c.l.b16 %v5076
    %v5593 = vunpack.c.l.b16 %v5077
    %v5594 = vunpack.c.l.b16 %v5078
    %v5595 = vunpack.c.l.b16 %v5079
    %v5596 = vunpack.c.l.b16 %v5080
    %v5597 = vunpack.c.l.b16 %v5081
    %v5598 = vunpack.c.l.b16 %v5082
    %v5599 = vunpack.c.l.b16 %v5083
    %v5600 = vunpack.c.l.b16 %v5084
    %v5601 = vunpack.c.l.b16 %v5085
    %v5602 = vunpack.c.l.b16 %v5086
    %v5603 = vunpack.c.l.b16 %v5087
    %v5604 = vunpack.c.l.b16 %v5088
    %v5605 = vunpack.c.l.b16 %v5089
    %v5606 = vunpack.c.l.b16 %v5090
    %v5607 = vunpack.c.l.b16 %v5091
    %v5608 = vunpack.c.l.b16 %v5092
    %v5609 = vunpack.c.l.b16 %v5093
    %v5610 = vunpack.c.l.b16 %v5094
    %v5611 = vunpack.c.l.b16 %v5095
    %v5612 = vunpack.c.l.b16 %v5096
    %v5613 = vunpack.c.l.b16 %v5097
    %v5614 = vunpack.c.l.b16 %v5098
    %v5615 = vunpack.c.l.b16 %v5099
    %v5616 = vunpack.c.l.b16 %v5100
    %v5617 = vunpack.c.l.b16 %v5101
    %v5618 = vunpack.c.l.b16 %v5102
    %v5619 = vunpack.c.l.b16 %v5103
    %v5620 = vunpack.c.l.b16 %v5104
    %v5621 = vunpack.c.l.b16 %v5105
    %v5622 = vunpack.c.l.b16 %v5106
    %v5623 = vunpack.c.l.b16 %v5107
    %v5624 = vunpack.c.l.b16 %v5108
    %v5625 = vunpack.c.l.b16 %v5109
    %v5626 = vunpack.c.l.b16 %v5110
    %v5627 = vunpack.c.l.b16 %v5111
    %v5628 = vunpack.c.l.b16 %v5112
    %v5629 = vunpack.c.l.b16 %v5113
    %v5630 = vunpack.c.l.b16 %v5114
    %v5631 = vunpack.c.l.b16 %v5115
    %v5632 = vunpack.c.l.b16 %v5116
    %v5633 = vunpack.c.l.b16 %v5117
    %v5634 = vunpack.c.l.b16 %v5118
    %v5635 = vunpack.c.l.b16 %v5119
    %v5636 = vunpack.c.l.b16 %v5120
    %v5637 = vunpack.c.l.b16 %v5121
    %v5638 = vunpack.c.l.b16 %v5122
    %v5639 = vunpack.c.l.b16 %v5123
    %v5640 = vunpack.c.l.b16 %v5124
    %v5641 = vunpack.c.l.b16 %v5125
    %v5642 = vunpack.c.l.b16 %v5126
    %v5643 = vunpack.c.l.b16 %v5127
    %v5644 = vunpack.c.l.b16 %v5128
    %v5645 = vunpack.c.l.b16 %v5129
    %v5646 = vunpack.c.l.b16 %v5130
    %v5647 = vunpack.c.l.b16 %v5131
    %v5648 = vunpack.c.l.b16 %v5132
    %v5649 = vunpack.c.l.b16 %v5133
    %v5650 = vunpack.c.l.b16 %v5134
    %v5651 = vunpack.c.l.b16 %v5135
    %v5652 = vunpack.c.l.b16 %v5136
    %v5653 = vunpack.c.l.b16 %v5137
    %v5654 = vunpack.c.l.b16 %v5138
    %v5655 = vunpack.c.l.b16 %v5139
    %v5656 = vunpack.c.l.b16 %v5140
    %v5657 = vunpack.c.l.b16 %v5141
    %v5658 = vunpack.c.l.b16 %v5142
    %v5659 = vunpack.c.l.b16 %v5143
    %v5660 = vunpack.c.l.b16 %v5144
    %v5661 = vunpack.c.l.b16 %v5145
    %v5662 = vunpack.c.l.b16 %v5146
    %v5663 = vunpack.c.l.b16 %v5147
    %v5664 = vunpack.c.l.b16 %v5148
    %v5665 = vunpack.c.l.b16 %v5149
    %v5666 = vunpack.c.l.b16 %v5150
    %v5667 = vunpack.c.l.b16 %v5151
    %v5668 = vunpack.c.l.b16 %v5152
    %v5669 = vunpack.c.l.b16 %v5153
    %v5670 = vunpack.c.l.b16 %v5154
    %v5671 = vunpack.c.l.b16 %v5155
    %v5672 = vunpack.c.l.b16 %v5156
    %v5673 = vunpack.c.l.b16 %v5157
    %v5674 = vunpack.c.l.b16 %v5158
    %v5675 = vunpack.c.l.b16 %v5159
    %v5676 = vunpack.c.l.b16 %v5160
    %v5677 = vunpack.c.l.b16 %v5161
    %v5678 = vunpack.c.l.b16 %v5162
    %v5679 = vunpack.c.l.b16 %v5163
    %v5680 = vunpack.c.l.b16 %v5164
    %v5681 = vunpack.c.l.b16 %v5165
    %v5682 = vunpack.c.l.b16 %v5166
    %v5683 = vunpack.c.l.b16 %v5167
    %v5684 = vunpack.c.l.b16 %v5168
    %v5685 = vunpack.c.l.b16 %v5169
    %v5686 = vunpack.c.l.b16 %v5170
    %v5687 = vunpack.c.l.b16 %v5171
    %v5688 = vunpack.c.l.b16 %v5172
    %v5689 = vunpack.c.l.b16 %v5173
    %v5690 = vunpack.c.l.b16 %v5174
    %v5691 = vunpack.c.l.b16 %v5175
    %v5692 = vunpack.c.l.b16 %v5176
    %v5693 = vunpack.c.l.b16 %v5177
    %v5694 = vunpack.c.l.b16 %v5178
    %v5695 = vunpack.c.l.b16 %v5179
    %v5696 = vunpack.c.l.b16 %v5180
    %v5697 = vunpack.c.l.b16 %v5181
    %v5698 = vunpack.c.l.b16 %v5182
    %v5699 = vunpack.c.l.b16 %v5183
    %v5700 = vunpack.c.l.b16 %v5184
    %v5701 = vunpack.c.l.b16 %v5185
    %v5702 = vunpack.c.l.b16 %v5186
    %v5703 = vunpack.c.l.b16 %v5187
    %v5704 = vunpack.c.l.b16 %v5188
    %v5705 = vunpack.c.l.b16 %v5189
    %v5706 = vunpack.c.l.b16 %v5190
    %v5707 = vunpack.c.l.b16 %v5191
    %v5708 = vunpack.c.l.b16 %v5192
    %v5709 = vunpack.c.l.b16 %v5193
    %v5710 = vunpack.c.l.b16 %v5194
    %v5711 = vunpack.c.l.b16 %v5195
    %v5712 = vunpack.c.l.b16 %v5196
    %v5713 = vunpack.c.l.b16 %v5197
    %v5714 = vunpack.c.l.b16 %v5198
    %v5715 = vunpack.c.l.b16 %v5199
    %v5716 = vunpack.c.l.b16 %v5200
    %v5717 = vunpack.c.l.b16 %v5201
    %v5718 = vunpack.c.l.b16 %v5202
    %v5719 = vunpack.c.l.b16 %v5203
    %v5720 = vunpack.c.l.b16 %v5204
    %v5721 = vunpack.c.l.b16 %v5205
    %v5722 = vunpack.c.l.b16 %v5206
    %v5723 = vunpack.c.l.b16 %v5207
    %v5724 = vunpack.c.l.b16 %v5208
    %v5725 = vunpack.c.l.b16 %v5209
    %v5726 = vunpack.c.l.b16 %v5210
    %v5727 = vunpack.c.l.b16 %v5211
    %v5728 = vunpack.c.l.b16 %v5212
    %v5729 = vunpack.c.l.b16 %v5213
    %v5730 = vunpack.c.l.b16 %v5214
    %v5731 = vunpack.c.l.b16 %v5215
    %v5732 = vunpack.c.l.b16 %v5216
    %v5733 = vunpack.c.l.b16 %v5217
    %v5734 = vunpack.c.l.b16 %v5218
    %v5735 = vunpack.c.l.b16 %v5219
    %v5736 = vunpack.c.l.b16 %v5220
    %v5737 = vunpack.c.l.b16 %v5221
    %v5738 = vunpack.c.l.b16 %v5222
    %v5739 = vunpack.c.l.b16 %v5223
    %v5740 = vunpack.c.l.b16 %v5224
    %v5741 = vunpack.c.l.b16 %v5225
    %v5742 = vunpack.c.l.b16 %v5226
    %v5743 = vunpack.c.l.b16 %v5227
    %v5744 = vunpack.c.l.b16 %v5228
    %v5745 = vunpack.c.l.b16 %v5229
    %v5746 = vunpack.c.l.b16 %v5230
    %v5747 = vunpack.c.l.b16 %v5231
    %v5748 = vunpack.c.l.b16 %v5232
    %v5749 = vunpack.c.l.b16 %v5233
    %v5750 = vunpack.c.l.b16 %v5234
    %v5751 = vunpack.c.l.b16 %v5235
    %v5752 = vunpack.c.l.b16 %v5236
    %v5753 = vunpack.c.l.b16 %v5237
    %v5754 = vunpack.c.l.b16 %v5238
    %v5755 = vunpack.c.l.b16 %v5239
    %v5756 = vunpack.c.l.b16 %v5240
    %v5757 = vunpack.c.l.b16 %v5241
    %v5758 = vunpack.c.l.b16 %v5242
    %v5759 = vunpack.c.l.b16 %v5243
    %v5760 = vunpack.c.l.b16 %v5244
    %v5761 = vunpack.c.l.b16 %v5245
    %v5762 = vunpack.c.l.b16 %v5246
    %v5763 = vunpack.c.l.b16 %v5247
    %v5764 = vunpack.c.l.b16 %v5248
    %v5765 = vunpack.c.l.b16 %v5249
    %v5766 = vunpack.c.l.b16 %v5250
    %v5767 = vunpack.c.l.b16 %v5251
    %v5768 = vunpack.c.l.b16 %v5252
    %v5769 = vunpack.c.l.b16 %v5253
    %v5770 = vunpack.c.l.b16 %v5254
    %v5771 = vunpack.c.l.b16 %v5255
    %v5772 = vunpack.c.l.b16 %v5256
    %v5773 = vunpack.c.l.b16 %v5257
    %v5774 = vunpack.c.l.b16 %v5258
    %v5775 = vunpack.c.l.b16 %v5259
    %v5776 = vunpack.c.l.b16 %v5260
    %v5777 = vunpack.c.l.b16 %v5261
    %v5778 = vunpack.c.l.b16 %v5262
    %v5779 = vunpack.c.l.b16 %v5263
    %v5780 = vunpack.c.l.b16 %v5264
    %v5781 = vunpack.c.l.b16 %v5265
    %v5782 = vunpack.c.l.b16 %v5266
    %v5783 = vunpack.c.l.b16 %v5267
    %v5784 = vunpack.c.l.b16 %v5268
    %v5785 = vunpack.c.l.b16 %v5269
    %v5786 = vunpack.c.l.b16 %v5270
    %v5787 = vpack.c.b16 %v5532, %v5531
    %v5788 = vpack.c.b16 %v5534, %v5533
    %v5789 = vpack.c.b16 %v5536, %v5535
    %v5790 = vpack.c.b16 %v5538, %v5537
    %v5791 = vpack.c.b16 %v5540, %v5539
    %v5792 = vpack.c.b16 %v5542, %v5541
    %v5793 = vpack.c.b16 %v5544, %v5543
    %v5794 = vpack.c.b16 %v5546, %v5545
    %v5795 = vpack.c.b16 %v5548, %v5547
    %v5796 = vpack.c.b16 %v5550, %v5549
    %v5797 = vpack.c.b16 %v5552, %v5551
    %v5798 = vpack.c.b16 %v5554, %v5553
    %v5799 = vpack.c.b16 %v5556, %v5555
    %v5800 = vpack.c.b16 %v5558, %v5557
    %v5801 = vpack.c.b16 %v5560, %v5559
    %v5802 = vpack.c.b16 %v5562, %v5561
    %v5803 = vpack.c.b16 %v5564, %v5563
    %v5804 = vpack.c.b16 %v5566, %v5565
    %v5805 = vpack.c.b16 %v5568, %v5567
    %v5806 = vpack.c.b16 %v5570, %v5569
    %v5807 = vpack.c.b16 %v5572, %v5571
    %v5808 = vpack.c.b16 %v5574, %v5573
    %v5809 = vpack.c.b16 %v5576, %v5575
    %v5810 = vpack.c.b16 %v5578, %v5577
    %v5811 = vpack.c.b16 %v5580, %v5579
    %v5812 = vpack.c.b16 %v5582, %v5581
    %v5813 = vpack.c.b16 %v5584, %v5583
    %v5814 = vpack.c.b16 %v5586, %v5585
    %v5815 = vpack.c.b16 %v5588, %v5587
    %v5816 = vpack.c.b16 %v5590, %v5589
    %v5817 = vpack.c.b16 %v5592, %v5591
    %v5818 = vpack.c.b16 %v5594, %v5593
    %v5819 = vpack.c.b16 %v5596, %v5595
    %v5820 = vpack.c.b16 %v5598, %v5597
    %v5821 = vpack.c.b16 %v5600, %v5599
    %v5822 = vpack.c.b16 %v5602, %v5601
    %v5823 = vpack.c.b16 %v5604, %v5603
    %v5824 = vpack.c.b16 %v5606, %v5605
    %v5825 = vpack.c.b16 %v5608, %v5607
    %v5826 = vpack.c.b16 %v5610, %v5609
    %v5827 = vpack.c.b16 %v5612, %v5611
    %v5828 = vpack.c.b16 %v5614, %v5613
    %v5829 = vpack.c.b16 %v5616, %v5615
    %v5830 = vpack.c.b16 %v5618, %v5617
    %v5831 = vpack.c.b16 %v5620, %v5619
    %v5832 = vpack.c.b16 %v5622, %v5621
    %v5833 = vpack.c.b16 %v5624, %v5623
    %v5834 = vpack.c.b16 %v5626, %v5625
    %v5835 = vpack.c.b16 %v5628, %v5627
    %v5836 = vpack.c.b16 %v5630, %v5629
    %v5837 = vpack.c.b16 %v5632, %v5631
    %v5838 = vpack.c.b16 %v5634, %v5633
    %v5839 = vpack.c.b16 %v5636, %v5635
    %v5840 = vpack.c.b16 %v5638, %v5637
    %v5841 = vpack.c.b16 %v5640, %v5639
    %v5842 = vpack.c.b16 %v5642, %v5641
    %v5843 = vpack.c.b16 %v5644, %v5643
    %v5844 = vpack.c.b16 %v5646, %v5645
    %v5845 = vpack.c.b16 %v5648, %v5647
    %v5846 = vpack.c.b16 %v5650, %v5649
    %v5847 = vpack.c.b16 %v5652, %v5651
    %v5848 = vpack.c.b16 %v5654, %v5653
    %v5849 = vpack.c.b16 %v5656, %v5655
    %v5850 = vpack.c.b16 %v5658, %v5657
    %v5851 = vpack.c.b16 %v5660, %v5659
    %v5852 = vpack.c.b16 %v5662, %v5661
    %v5853 = vpack.c.b16 %v5664, %v5663
    %v5854 = vpack.c.b16 %v5666, %v5665
    %v5855 = vpack.c.b16 %v5668, %v5667
    %v5856 = vpack.c.b16 %v5670, %v5669
    %v5857 = vpack.c.b16 %v5672, %v5671
    %v5858 = vpack.c.b16 %v5674, %v5673
    %v5859 = vpack.c.b16 %v5676, %v5675
    %v5860 = vpack.c.b16 %v5678, %v5677
    %v5861 = vpack.c.b16 %v5680, %v5679
    %v5862 = vpack.c.b16 %v5682, %v5681
    %v5863 = vpack.c.b16 %v5684, %v5683
    %v5864 = vpack.c.b16 %v5686, %v5685
    %v5865 = vpack.c.b16 %v5688, %v5687
    %v5866 = vpack.c.b16 %v5690, %v5689
    %v5867 = vpack.c.b16 %v5692, %v5691
    %v5868 = vpack.c.b16 %v5694, %v5693
    %v5869 = vpack.c.b16 %v5696, %v5695
    %v5870 = vpack.c.b16 %v5698, %v5697
    %v5871 = vpack.c.b16 %v5700, %v5699
    %v5872 = vpack.c.b16 %v5702, %v5701
    %v5873 = vpack.c.b16 %v5704, %v5703
    %v5874 = vpack.c.b16 %v5706, %v5705
    %v5875 = vpack.c.b16 %v5708, %v5707
    %v5876 = vpack.c.b16 %v5710, %v5709
    %v5877 = vpack.c.b16 %v5712, %v5711
    %v5878 = vpack.c.b16 %v5714, %v5713
    %v5879 = vpack.c.b16 %v5716, %v5715
    %v5880 = vpack.c.b16 %v5718, %v5717
    %v5881 = vpack.c.b16 %v5720, %v5719
    %v5882 = vpack.c.b16 %v5722, %v5721
    %v5883 = vpack.c.b16 %v5724, %v5723
    %v5884 = vpack.c.b16 %v5726, %v5725
    %v5885 = vpack.c.b16 %v5728, %v5727
    %v5886 = vpack.c.b16 %v5730, %v5729
    %v5887 = vpack.c.b16 %v5732, %v5731
    %v5888 = vpack.c.b16 %v5734, %v5733
    %v5889 = vpack.c.b16 %v5736, %v5735
    %v5890 = vpack.c.b16 %v5738, %v5737
    %v5891 = vpack.c.b16 %v5740, %v5739
    %v5892 = vpack.c.b16 %v5742, %v5741
    %v5893 = vpack.c.b16 %v5744, %v5743
    %v5894 = vpack.c.b16 %v5746, %v5745
    %v5895 = vpack.c.b16 %v5748, %v5747
    %v5896 = vpack.c.b16 %v5750, %v5749
    %v5897 = vpack.c.b16 %v5752, %v5751
    %v5898 = vpack.c.b16 %v5754, %v5753
    %v5899 = vpack.c.b16 %v5756, %v5755
    %v5900 = vpack.c.b16 %v5758, %v5757
    %v5901 = vpack.c.b16 %v5760, %v5759
    %v5902 = vpack.c.b16 %v5762, %v5761
    %v5903 = vpack.c.b16 %v5764, %v5763
    %v5904 = vpack.c.b16 %v5766, %v5765
    %v5905 = vpack.c.b16 %v5768, %v5767
    %v5906 = vpack.c.b16 %v5770, %v5769
    %v5907 = vpack.c.b16 %v5772, %v5771
    %v5908 = vpack.c.b16 %v5774, %v5773
    %v5909 = vpack.c.b16 %v5776, %v5775
    %v5910 = vpack.c.b16 %v5778, %v5777
    %v5911 = vpack.c.b16 %v5780, %v5779
    %v5912 = vpack.c.b16 %v5782, %v5781
    %v5913 = vpack.c.b16 %v5784, %v5783
    %v5914 = vpack.c.b16 %v5786, %v5785
    %6043 = vmatprep.subr.bf16.mxu0 0
    %6044 = vmatpush1.bf16.msra.mxu0 %v5787
    %6045 = vmatprep.subr.bf16.mxu0 0
    %6046 = vmatpush1.bf16.msra.mxu0 %v5788
    %6047 = vmatprep.subr.bf16.mxu0 0
    %6048 = vmatpush1.bf16.msra.mxu0 %v5789
    %6049 = vmatprep.subr.bf16.mxu0 0
    %6050 = vmatpush1.bf16.msra.mxu0 %v5790
    %6051 = vmatprep.subr.bf16.mxu0 0
    %6052 = vmatpush1.bf16.msra.mxu0 %v5791
    %6053 = vmatprep.subr.bf16.mxu0 0
    %6054 = vmatpush1.bf16.msra.mxu0 %v5792
    %6055 = vmatprep.subr.bf16.mxu0 0
    %6056 = vmatpush1.bf16.msra.mxu0 %v5793
    %6057 = vmatprep.subr.bf16.mxu0 0
    %6058 = vmatpush1.bf16.msra.mxu0 %v5794
    %6059 = vmatprep.subr.bf16.mxu0 0
    %6060 = vmatpush1.bf16.msra.mxu0 %v5795
    %6061 = vmatprep.subr.bf16.mxu0 0
    %6062 = vmatpush1.bf16.msra.mxu0 %v5796
    %6063 = vmatprep.subr.bf16.mxu0 0
    %6064 = vmatpush1.bf16.msra.mxu0 %v5797
    %6065 = vmatprep.subr.bf16.mxu0 0
    %6066 = vmatpush1.bf16.msra.mxu0 %v5798
    %6067 = vmatprep.subr.bf16.mxu0 0
    %6068 = vmatpush1.bf16.msra.mxu0 %v5799
    %6069 = vmatprep.subr.bf16.mxu0 0
    %6070 = vmatpush1.bf16.msra.mxu0 %v5800
    %6071 = vmatprep.subr.bf16.mxu0 0
    %6072 = vmatpush1.bf16.msra.mxu0 %v5801
    %6073 = vmatprep.subr.bf16.mxu0 0
    %6074 = vmatpush1.bf16.msra.mxu0 %v5802
    %6075 = vmatprep.mubr.bf16.mxu0 %v4999
    %6076 = vmatmul.mubr.bf16.gmra.mrb[0].mxu0 %v4998
    %v6077 = vpop.f32.mrb[0].mxu0
    %v6078 = vadd.f32 %v5274, %v6077
    %v6079 = vpop.f32.mrb[0].mxu0
    %v6080 = vpop.f32.mrb[0].mxu0
    %v6081 = vadd.f32 %v5274, %v6080
    %v6082 = vpop.f32.mrb[0].mxu0
    %6083 = vdwg.mxu0
    %6084 = vmatprep.subr.bf16.mxu0 0
    %6085 = vmatpush1.bf16.msra.mxu0 %v5803
    %6086 = vmatprep.subr.bf16.mxu0 0
    %6087 = vmatpush1.bf16.msra.mxu0 %v5804
    %6088 = vmatprep.subr.bf16.mxu0 0
    %6089 = vmatpush1.bf16.msra.mxu0 %v5805
    %6090 = vmatprep.subr.bf16.mxu0 0
    %6091 = vmatpush1.bf16.msra.mxu0 %v5806
    %6092 = vmatprep.subr.bf16.mxu0 0
    %6093 = vmatpush1.bf16.msra.mxu0 %v5807
    %6094 = vmatprep.subr.bf16.mxu0 0
    %6095 = vmatpush1.bf16.msra.mxu0 %v5808
    %6096 = vmatprep.subr.bf16.mxu0 0
    %6097 = vmatpush1.bf16.msra.mxu0 %v5809
    %6098 = vmatprep.subr.bf16.mxu0 0
    %6099 = vmatpush1.bf16.msra.mxu0 %v5810
    %6100 = vmatprep.subr.bf16.mxu0 0
    %6101 = vmatpush1.bf16.msra.mxu0 %v5811
    %6102 = vmatprep.subr.bf16.mxu0 0
    %6103 = vmatpush1.bf16.msra.mxu0 %v5812
    %6104 = vmatprep.subr.bf16.mxu0 0
    %6105 = vmatpush1.bf16.msra.mxu0 %v5813
    %6106 = vmatprep.subr.bf16.mxu0 0
    %6107 = vmatpush1.bf16.msra.mxu0 %v5814
    %6108 = vmatprep.subr.bf16.mxu0 0
    %6109 = vmatpush1.bf16.msra.mxu0 %v5815
    %6110 = vmatprep.subr.bf16.mxu0 0
    %6111 = vmatpush1.bf16.msra.mxu0 %v5816
    %6112 = vmatprep.subr.bf16.mxu0 0
    %6113 = vmatpush1.bf16.msra.mxu0 %v5817
    %6114 = vmatprep.subr.bf16.mxu0 0
    %6115 = vmatpush1.bf16.msra.mxu0 %v5818
    %6116 = vmatprep.mubr.bf16.mxu0 %v5001
    %6117 = vmatmul.mubr.bf16.gmra.mrb[0].mxu0 %v5000
    %v6118 = vpop.f32.mrb[0].mxu0
    %v6119 = vadd.f32 %v6078, %v6118
    %v6120 = vpop.f32.mrb[0].mxu0
    %v6121 = vpop.f32.mrb[0].mxu0
    %v6122 = vadd.f32 %v6081, %v6121
    %v6123 = vpop.f32.mrb[0].mxu0
    %6124 = vdwg.mxu0
    %6125 = vmatprep.subr.bf16.mxu0 0
    %6126 = vmatpush1.bf16.msra.mxu0 %v5819
    %6127 = vmatprep.subr.bf16.mxu0 0
    %6128 = vmatpush1.bf16.msra.mxu0 %v5820
    %6129 = vmatprep.subr.bf16.mxu0 0
    %6130 = vmatpush1.bf16.msra.mxu0 %v5821
    %6131 = vmatprep.subr.bf16.mxu0 0
    %6132 = vmatpush1.bf16.msra.mxu0 %v5822
    %6133 = vmatprep.subr.bf16.mxu0 0
    %6134 = vmatpush1.bf16.msra.mxu0 %v5823
    %6135 = vmatprep.subr.bf16.mxu0 0
    %6136 = vmatpush1.bf16.msra.mxu0 %v5824
    %6137 = vmatprep.subr.bf16.mxu0 0
    %6138 = vmatpush1.bf16.msra.mxu0 %v5825
    %6139 = vmatprep.subr.bf16.mxu0 0
    %6140 = vmatpush1.bf16.msra.mxu0 %v5826
    %6141 = vmatprep.subr.bf16.mxu0 0
    %6142 = vmatpush1.bf16.msra.mxu0 %v5827
    %6143 = vmatprep.subr.bf16.mxu0 0
    %6144 = vmatpush1.bf16.msra.mxu0 %v5828
    %6145 = vmatprep.subr.bf16.mxu0 0
    %6146 = vmatpush1.bf16.msra.mxu0 %v5829
    %6147 = vmatprep.subr.bf16.mxu0 0
    %6148 = vmatpush1.bf16.msra.mxu0 %v5830
    %6149 = vmatprep.subr.bf16.mxu0 0
    %6150 = vmatpush1.bf16.msra.mxu0 %v5831
    %6151 = vmatprep.subr.bf16.mxu0 0
    %6152 = vmatpush1.bf16.msra.mxu0 %v5832
    %6153 = vmatprep.subr.bf16.mxu0 0
    %6154 = vmatpush1.bf16.msra.mxu0 %v5833
    %6155 = vmatprep.subr.bf16.mxu0 0
    %6156 = vmatpush1.bf16.msra.mxu0 %v5834
    %6157 = vmatprep.mubr.bf16.mxu0 %v5003
    %6158 = vmatmul.mubr.bf16.gmra.mrb[0].mxu0 %v5002
    %v6159 = vpop.f32.mrb[0].mxu0
    %v6160 = vadd.f32 %v6119, %v6159
    %v6161 = vpop.f32.mrb[0].mxu0
    %v6162 = vpop.f32.mrb[0].mxu0
    %v6163 = vadd.f32 %v6122, %v6162
    %v6164 = vpop.f32.mrb[0].mxu0
    %6165 = vdwg.mxu0
    %6166 = vmatprep.subr.bf16.mxu0 0
    %6167 = vmatpush1.bf16.msra.mxu0 %v5835
    %6168 = vmatprep.subr.bf16.mxu0 0
    %6169 = vmatpush1.bf16.msra.mxu0 %v5836
    %6170 = vmatprep.subr.bf16.mxu0 0
    %6171 = vmatpush1.bf16.msra.mxu0 %v5837
    %6172 = vmatprep.subr.bf16.mxu0 0
    %6173 = vmatpush1.bf16.msra.mxu0 %v5838
    %6174 = vmatprep.subr.bf16.mxu0 0
    %6175 = vmatpush1.bf16.msra.mxu0 %v5839
    %6176 = vmatprep.subr.bf16.mxu0 0
    %6177 = vmatpush1.bf16.msra.mxu0 %v5840
    %6178 = vmatprep.subr.bf16.mxu0 0
    %6179 = vmatpush1.bf16.msra.mxu0 %v5841
    %6180 = vmatprep.subr.bf16.mxu0 0
    %6181 = vmatpush1.bf16.msra.mxu0 %v5842
    %6182 = vmatprep.subr.bf16.mxu0 0
    %6183 = vmatpush1.bf16.msra.mxu0 %v5843
    %6184 = vmatprep.subr.bf16.mxu0 0
    %6185 = vmatpush1.bf16.msra.mxu0 %v5844
    %6186 = vmatprep.subr.bf16.mxu0 0
    %6187 = vmatpush1.bf16.msra.mxu0 %v5845
    %6188 = vmatprep.subr.bf16.mxu0 0
    %6189 = vmatpush1.bf16.msra.mxu0 %v5846
    %6190 = vmatprep.subr.bf16.mxu0 0
    %6191 = vmatpush1.bf16.msra.mxu0 %v5847
    %6192 = vmatprep.subr.bf16.mxu0 0
    %6193 = vmatpush1.bf16.msra.mxu0 %v5848
    %6194 = vmatprep.subr.bf16.mxu0 0
    %6195 = vmatpush1.bf16.msra.mxu0 %v5849
    %6196 = vmatprep.subr.bf16.mxu0 0
    %6197 = vmatpush1.bf16.msra.mxu0 %v5850
    %6198 = vmatprep.mubr.bf16.mxu0 %v5005
    %6199 = vmatmul.mubr.bf16.gmra.mrb[0].mxu0 %v5004
    %v6200 = vpop.f32.mrb[0].mxu0
    %v6201 = vadd.f32 %v6160, %v6200
    %v6202 = vpop.f32.mrb[0].mxu0
    %v6203 = vpop.f32.mrb[0].mxu0
    %v6204 = vadd.f32 %v6163, %v6203
    %v6205 = vpop.f32.mrb[0].mxu0
    %6206 = vdwg.mxu0
    %6207 = vmatprep.subr.bf16.mxu0 0
    %6208 = vmatpush1.bf16.msra.mxu0 %v5851
    %6209 = vmatprep.subr.bf16.mxu0 0
    %6210 = vmatpush1.bf16.msra.mxu0 %v5852
    %6211 = vmatprep.subr.bf16.mxu0 0
    %6212 = vmatpush1.bf16.msra.mxu0 %v5853
    %6213 = vmatprep.subr.bf16.mxu0 0
    %6214 = vmatpush1.bf16.msra.mxu0 %v5854
    %6215 = vmatprep.subr.bf16.mxu0 0
    %6216 = vmatpush1.bf16.msra.mxu0 %v5855
    %6217 = vmatprep.subr.bf16.mxu0 0
    %6218 = vmatpush1.bf16.msra.mxu0 %v5856
    %6219 = vmatprep.subr.bf16.mxu0 0
    %6220 = vmatpush1.bf16.msra.mxu0 %v5857
    %6221 = vmatprep.subr.bf16.mxu0 0
    %6222 = vmatpush1.bf16.msra.mxu0 %v5858
    %6223 = vmatprep.subr.bf16.mxu0 0
    %6224 = vmatpush1.bf16.msra.mxu0 %v5859
    %6225 = vmatprep.subr.bf16.mxu0 0
    %6226 = vmatpush1.bf16.msra.mxu0 %v5860
    %6227 = vmatprep.subr.bf16.mxu0 0
    %6228 = vmatpush1.bf16.msra.mxu0 %v5861
    %6229 = vmatprep.subr.bf16.mxu0 0
    %6230 = vmatpush1.bf16.msra.mxu0 %v5862
    %6231 = vmatprep.subr.bf16.mxu0 0
    %6232 = vmatpush1.bf16.msra.mxu0 %v5863
    %6233 = vmatprep.subr.bf16.mxu0 0
    %6234 = vmatpush1.bf16.msra.mxu0 %v5864
    %6235 = vmatprep.subr.bf16.mxu0 0
    %6236 = vmatpush1.bf16.msra.mxu0 %v5865
    %6237 = vmatprep.subr.bf16.mxu0 0
    %6238 = vmatpush1.bf16.msra.mxu0 %v5866
    %6239 = vmatprep.mubr.bf16.mxu0 %v5007
    %6240 = vmatmul.mubr.bf16.gmra.mrb[0].mxu0 %v5006
    %v6241 = vpop.f32.mrb[0].mxu0
    %v6242 = vadd.f32 %v6201, %v6241
    %v6243 = vpop.f32.mrb[0].mxu0
    %v6244 = vpop.f32.mrb[0].mxu0
    %v6245 = vadd.f32 %v6204, %v6244
    %v6246 = vpop.f32.mrb[0].mxu0
    %6247 = vdwg.mxu0
    %6248 = vmatprep.subr.bf16.mxu0 0
    %6249 = vmatpush1.bf16.msra.mxu0 %v5867
    %6250 = vmatprep.subr.bf16.mxu0 0
    %6251 = vmatpush1.bf16.msra.mxu0 %v5868
    %6252 = vmatprep.subr.bf16.mxu0 0
    %6253 = vmatpush1.bf16.msra.mxu0 %v5869
    %6254 = vmatprep.subr.bf16.mxu0 0
    %6255 = vmatpush1.bf16.msra.mxu0 %v5870
    %6256 = vmatprep.subr.bf16.mxu0 0
    %6257 = vmatpush1.bf16.msra.mxu0 %v5871
    %6258 = vmatprep.subr.bf16.mxu0 0
    %6259 = vmatpush1.bf16.msra.mxu0 %v5872
    %6260 = vmatprep.subr.bf16.mxu0 0
    %6261 = vmatpush1.bf16.msra.mxu0 %v5873
    %6262 = vmatprep.subr.bf16.mxu0 0
    %6263 = vmatpush1.bf16.msra.mxu0 %v5874
    %6264 = vmatprep.subr.bf16.mxu0 0
    %6265 = vmatpush1.bf16.msra.mxu0 %v5875
    %6266 = vmatprep.subr.bf16.mxu0 0
    %6267 = vmatpush1.bf16.msra.mxu0 %v5876
    %6268 = vmatprep.subr.bf16.mxu0 0
    %6269 = vmatpush1.bf16.msra.mxu0 %v5877
    %6270 = vmatprep.subr.bf16.mxu0 0
    %6271 = vmatpush1.bf16.msra.mxu0 %v5878
    %6272 = vmatprep.subr.bf16.mxu0 0
    %6273 = vmatpush1.bf16.msra.mxu0 %v5879
    %6274 = vmatprep.subr.bf16.mxu0 0
    %6275 = vmatpush1.bf16.msra.mxu0 %v5880
    %6276 = vmatprep.subr.bf16.mxu0 0
    %6277 = vmatpush1.bf16.msra.mxu0 %v5881
    %6278 = vmatprep.subr.bf16.mxu0 0
    %6279 = vmatpush1.bf16.msra.mxu0 %v5882
    %6280 = vmatprep.mubr.bf16.mxu0 %v5009
    %6281 = vmatmul.mubr.bf16.gmra.mrb[0].mxu0 %v5008
    %v6282 = vpop.f32.mrb[0].mxu0
    %v6283 = vadd.f32 %v6242, %v6282
    %v6284 = vpop.f32.mrb[0].mxu0
    %v6285 = vpop.f32.mrb[0].mxu0
    %v6286 = vadd.f32 %v6245, %v6285
    %v6287 = vpop.f32.mrb[0].mxu0
    %6288 = vdwg.mxu0
    %6289 = vmatprep.subr.bf16.mxu0 0
    %6290 = vmatpush1.bf16.msra.mxu0 %v5883
    %6291 = vmatprep.subr.bf16.mxu0 0
    %6292 = vmatpush1.bf16.msra.mxu0 %v5884
    %6293 = vmatprep.subr.bf16.mxu0 0
    %6294 = vmatpush1.bf16.msra.mxu0 %v5885
    %6295 = vmatprep.subr.bf16.mxu0 0
    %6296 = vmatpush1.bf16.msra.mxu0 %v5886
    %6297 = vmatprep.subr.bf16.mxu0 0
    %6298 = vmatpush1.bf16.msra.mxu0 %v5887
    %6299 = vmatprep.subr.bf16.mxu0 0
    %6300 = vmatpush1.bf16.msra.mxu0 %v5888
    %6301 = vmatprep.subr.bf16.mxu0 0
    %6302 = vmatpush1.bf16.msra.mxu0 %v5889
    %6303 = vmatprep.subr.bf16.mxu0 0
    %6304 = vmatpush1.bf16.msra.mxu0 %v5890
    %6305 = vmatprep.subr.bf16.mxu0 0
    %6306 = vmatpush1.bf16.msra.mxu0 %v5891
    %6307 = vmatprep.subr.bf16.mxu0 0
    %6308 = vmatpush1.bf16.msra.mxu0 %v5892
    %6309 = vmatprep.subr.bf16.mxu0 0
    %6310 = vmatpush1.bf16.msra.mxu0 %v5893
    %6311 = vmatprep.subr.bf16.mxu0 0
    %6312 = vmatpush1.bf16.msra.mxu0 %v5894
    %6313 = vmatprep.subr.bf16.mxu0 0
    %6314 = vmatpush1.bf16.msra.mxu0 %v5895
    %6315 = vmatprep.subr.bf16.mxu0 0
    %6316 = vmatpush1.bf16.msra.mxu0 %v5896
    %6317 = vmatprep.subr.bf16.mxu0 0
    %6318 = vmatpush1.bf16.msra.mxu0 %v5897
    %6319 = vmatprep.subr.bf16.mxu0 0
    %6320 = vmatpush1.bf16.msra.mxu0 %v5898
    %6321 = vmatprep.mubr.bf16.mxu0 %v5011
    %6322 = vmatmul.mubr.bf16.gmra.mrb[0].mxu0 %v5010
    %v6323 = vpop.f32.mrb[0].mxu0
    %v6324 = vadd.f32 %v6283, %v6323
    %v6325 = vpop.f32.mrb[0].mxu0
    %v6326 = vpop.f32.mrb[0].mxu0
    %v6327 = vadd.f32 %v6286, %v6326
    %v6328 = vpop.f32.mrb[0].mxu0
    %6329 = vdwg.mxu0
    %6330 = vmatprep.subr.bf16.mxu0 0
    %6331 = vmatpush1.bf16.msra.mxu0 %v5899
    %6332 = vmatprep.subr.bf16.mxu0 0
    %6333 = vmatpush1.bf16.msra.mxu0 %v5900
    %6334 = vmatprep.subr.bf16.mxu0 0
    %6335 = vmatpush1.bf16.msra.mxu0 %v5901
    %6336 = vmatprep.subr.bf16.mxu0 0
    %6337 = vmatpush1.bf16.msra.mxu0 %v5902
    %6338 = vmatprep.subr.bf16.mxu0 0
    %6339 = vmatpush1.bf16.msra.mxu0 %v5903
    %6340 = vmatprep.subr.bf16.mxu0 0
    %6341 = vmatpush1.bf16.msra.mxu0 %v5904
    %6342 = vmatprep.subr.bf16.mxu0 0
    %6343 = vmatpush1.bf16.msra.mxu0 %v5905
    %6344 = vmatprep.subr.bf16.mxu0 0
    %6345 = vmatpush1.bf16.msra.mxu0 %v5906
    %6346 = vmatprep.subr.bf16.mxu0 0
    %6347 = vmatpush1.bf16.msra.mxu0 %v5907
    %6348 = vmatprep.subr.bf16.mxu0 0
    %6349 = vmatpush1.bf16.msra.mxu0 %v5908
    %6350 = vmatprep.subr.bf16.mxu0 0
    %6351 = vmatpush1.bf16.msra.mxu0 %v5909
    %6352 = vmatprep.subr.bf16.mxu0 0
    %6353 = vmatpush1.bf16.msra.mxu0 %v5910
    %6354 = vmatprep.subr.bf16.mxu0 0
    %6355 = vmatpush1.bf16.msra.mxu0 %v5911
    %6356 = vmatprep.subr.bf16.mxu0 0
    %6357 = vmatpush1.bf16.msra.mxu0 %v5912
    %6358 = vmatprep.subr.bf16.mxu0 0
    %6359 = vmatpush1.bf16.msra.mxu0 %v5913
    %6360 = vmatprep.subr.bf16.mxu0 0
    %6361 = vmatpush1.bf16.msra.mxu0 %v5914
    %6362 = vmatprep.mubr.bf16.mxu0 %v5013
    %6363 = vmatmul.mubr.bf16.gmra.mrb[0].mxu0 %v5012
    %v6364 = vpop.f32.mrb[0].mxu0
    %v6365 = vadd.f32 %v6324, %v6364
    %v6366 = vpop.f32.mrb[0].mxu0
    %v6367 = vpop.f32.mrb[0].mxu0
    %v6368 = vadd.f32 %v6327, %v6367
    %v6369 = vpop.f32.mrb[0].mxu0
    %6370 = vdwg.mxu0
    %v6371 = vadd.f32 %v4338, %v6365
    %v6372 = vadd.f32 %v4339, %v6368
    %v6373 = vsel %vm75, %v6371, 0.0
    %6374 = vadd.xlane.f32.xlu0 %v6373
    %v6375 = vpop.xlane.xlu0 %6374
    %v6376 = vsel %vm75, %v6372, 0.0
    %6377 = vadd.xlane.f32.xlu0 %v6376
    %v6378 = vpop.xlane.xlu0 %6377
    %v6379 = vmul.f32 %v6375, %v1135
    %v6380 = vmul.f32 %v6378, %v1135
    %v6381 = vsub.f32 %v6371, %v6379
    %v6382 = vsub.f32 %v6372, %v6380
    %v6383 = vmul.f32 %v6381, %v6381
    %v6384 = vmul.f32 %v6382, %v6382
    %v6385 = vsel %vm75, %v6383, 0.0
    %6386 = vadd.xlane.f32.xlu0 %v6385
    %v6387 = vpop.xlane.xlu0 %6386
    %v6388 = vsel %vm75, %v6384, 0.0
    %6389 = vadd.xlane.f32.xlu0 %v6388
    %v6390 = vpop.xlane.xlu0 %6389
    %v6391 = vmul.f32 %v6387, %v1135
    %v6392 = vmul.f32 %v6390, %v1135
    %v6393 = vadd.f32 %v6391, 1e-05
    %v6394 = vadd.f32 %v6392, 1e-05
    %v6395 = vrsqrt.pop %v6393
    %v6396 = vrsqrt.pop %v6394
    %v6397 = vmul.f32 %v6381, %v6395
    %v6398 = vmul.f32 %v6382, %v6396
    %v6399 = vlaneseq
    %v6400 = vshrl.u32 %v6399, 7
    %v6401 = vsub.s32 4, %v6400
    %v6402 = vrot.slane %v3237, %v6401
    %v6403 = vmul.f32 %v6397, %v6402
    %v6404 = vmul.f32 %v6398, %v6402
    %v6405 = vlaneseq
    %v6406 = vshrl.u32 %v6405, 7
    %v6407 = vsub.s32 5, %v6406
    %v6408 = vrot.slane %v3237, %v6407
    %v6409 = vadd.f32 %v6403, %v6408
    %v6410 = vadd.f32 %v6404, %v6408
    %v6411 = vpack.c.bf16 %v6410, %v6409
    %v6412 = vld [vmem:[%s9] sm:$0xff]
    %v6413 = vld [vmem:[%s9 + $0x8] sm:$0xff]
    %v6414 = vld [vmem:[%s9 + $0x10] sm:$0xff]
    %v6415 = vld [vmem:[%s9 + $0x18] sm:$0xff]
    %v6416 = vld [vmem:[%s10] sm:$0x3]
    %v6418 = vlaneseq
    %v6419 = vshrl.u32 %v6418, 7
    %v6420 = vsub.s32 0, %v6419
    %v6421 = vrot.slane %v6416, %v6420
    %v6422 = vlaneseq
    %v6423 = vshrl.u32 %v6422, 7
    %v6424 = vsub.s32 1, %v6423
    %v6425 = vrot.slane %v6416, %v6424
    %v6432 = vunpack.c.l.b16 %v6412
    %v6433 = vunpack.c.h.b16 %v6412
    %v6434 = vunpack.c.l.b16 %v6413
    %v6435 = vunpack.c.h.b16 %v6413
    %v6436 = vunpack.c.l.b16 %v6414
    %v6437 = vunpack.c.h.b16 %v6414
    %v6438 = vunpack.c.l.b16 %v6415
    %v6439 = vunpack.c.h.b16 %v6415
    %v6440 = vpack.c.b16 %v6434, %v6432
    %v6441 = vpack.c.b16 %v6435, %v6433
    %v6442 = vpack.c.b16 %v6438, %v6436
    %v6443 = vpack.c.b16 %v6439, %v6437
    %v6449 = vsel %vm75, %v6411, 0
    %6451 = vmatprep.subr.bf16.mxu0 %v6441
    %6452 = vmatpush1.bf16.msra.mxu0 %v6440
    %6453 = vmatprep.subr.bf16.mxu0 %v6443
    %6454 = vmatpush1.bf16.msra.mxu0 %v6442
    %6455 = vmatprep.subr.bf16.mxu0 0
    %6456 = vmatpush1.bf16.msra.mxu0 0
    %6457 = vmatprep.subr.bf16.mxu0 0
    %6458 = vmatpush1.bf16.msra.mxu0 0
    %6459 = vmatprep.subr.bf16.mxu0 0
    %6460 = vmatpush1.bf16.msra.mxu0 0
    %6461 = vmatprep.subr.bf16.mxu0 0
    %6462 = vmatpush1.bf16.msra.mxu0 0
    %6463 = vmatprep.subr.bf16.mxu0 0
    %6464 = vmatpush1.bf16.msra.mxu0 0
    %6465 = vmatprep.subr.bf16.mxu0 0
    %6466 = vmatpush1.bf16.msra.mxu0 0
    %6467 = vmatprep.subr.bf16.mxu0 0
    %6468 = vmatpush1.bf16.msra.mxu0 0
    %6469 = vmatprep.subr.bf16.mxu0 0
    %6470 = vmatpush1.bf16.msra.mxu0 0
    %6471 = vmatprep.subr.bf16.mxu0 0
    %6472 = vmatpush1.bf16.msra.mxu0 0
    %6473 = vmatprep.subr.bf16.mxu0 0
    %6474 = vmatpush1.bf16.msra.mxu0 0
    %6475 = vmatprep.subr.bf16.mxu0 0
    %6476 = vmatpush1.bf16.msra.mxu0 0
    %6477 = vmatprep.subr.bf16.mxu0 0
    %6478 = vmatpush1.bf16.msra.mxu0 0
    %6479 = vmatprep.subr.bf16.mxu0 0
    %6480 = vmatpush1.bf16.msra.mxu0 0
    %6481 = vmatprep.subr.bf16.mxu0 0
    %6482 = vmatpush1.bf16.msra.mxu0 0
    %6483 = vmatprep.mubr.bf16.mxu0 0
    %6484 = vmatmul.mubr.bf16.gmra.mrb[0].mxu0 %v6449
    %v6485 = vpop.f32.mrb[0].mxu0
    %v6486 = vadd.f32 %v6421, %v6485
    %v6487 = vpop.f32.mrb[0].mxu0
    %v6488 = vadd.f32 %v6425, %v6487
    %v6489 = vpop.f32.mrb[0].mxu0
    %v6490 = vadd.f32 %v6421, %v6489
    %v6491 = vpop.f32.mrb[0].mxu0
    %v6492 = vadd.f32 %v6425, %v6491
    %6493 = vdwg.mxu0
    %v6494 = vmax.f32 %v6486, 0.0
    %v6495 = vmax.f32 %v6488, 0.0
    %v6496 = vmax.f32 %v6490, 0.0
    %v6497 = vmax.f32 %v6492, 0.0
    %v6498 = vpack.c.bf16 %v6496, %v6494
    %v6499 = vpack.c.bf16 %v6497, %v6495
    %v6500 = vld [vmem:[%s11] sm:$0xf]
    %v6501 = vld [vmem:[%s11 + $0x4] sm:$0xf]
    %v6502 = vld [vmem:[%s11 + $0x8] sm:$0xf]
    %v6503 = vld [vmem:[%s11 + $0xc] sm:$0xf]
    %v6504 = vld [vmem:[%s11 + $0x10] sm:$0xf]
    %v6505 = vld [vmem:[%s11 + $0x14] sm:$0xf]
    %v6506 = vld [vmem:[%s11 + $0x18] sm:$0xf]
    %v6507 = vld [vmem:[%s11 + $0x1c] sm:$0xf]
    %v6508 = vld [vmem:[%s11 + $0x20] sm:$0xf]
    %v6509 = vld [vmem:[%s11 + $0x24] sm:$0xf]
    %v6510 = vld [vmem:[%s11 + $0x28] sm:$0xf]
    %v6511 = vld [vmem:[%s11 + $0x2c] sm:$0xf]
    %v6512 = vld [vmem:[%s11 + $0x30] sm:$0xf]
    %v6513 = vld [vmem:[%s11 + $0x34] sm:$0xf]
    %v6514 = vld [vmem:[%s11 + $0x38] sm:$0xf]
    %v6515 = vld [vmem:[%s11 + $0x3c] sm:$0xf]
    %v6516 = vld [vmem:[%s11 + $0x40] sm:$0xf]
    %v6517 = vld [vmem:[%s11 + $0x44] sm:$0xf]
    %v6518 = vld [vmem:[%s11 + $0x48] sm:$0xf]
    %v6519 = vld [vmem:[%s11 + $0x4c] sm:$0xf]
    %v6520 = vld [vmem:[%s11 + $0x50] sm:$0xf]
    %v6521 = vld [vmem:[%s11 + $0x54] sm:$0xf]
    %v6522 = vld [vmem:[%s11 + $0x58] sm:$0xf]
    %v6523 = vld [vmem:[%s11 + $0x5c] sm:$0xf]
    %v6524 = vld [vmem:[%s11 + $0x60] sm:$0xf]
    %v6525 = vld [vmem:[%s11 + $0x64] sm:$0xf]
    %v6526 = vld [vmem:[%s11 + $0x68] sm:$0xf]
    %v6527 = vld [vmem:[%s11 + $0x6c] sm:$0xf]
    %v6528 = vld [vmem:[%s11 + $0x70] sm:$0xf]
    %v6529 = vld [vmem:[%s11 + $0x74] sm:$0xf]
    %v6530 = vld [vmem:[%s11 + $0x78] sm:$0xf]
    %v6531 = vld [vmem:[%s11 + $0x7c] sm:$0xf]
    %v6532 = vld [vmem:[%s12] sm:$0x1]
    %v6534 = vlaneseq
    %v6535 = vshrl.u32 %v6534, 7
    %v6536 = vsub.s32 0, %v6535
    %v6537 = vrot.slane %v6532, %v6536
    %v6571 = vunpack.c.l.b16 %v6500
    %v6572 = vunpack.c.l.b16 %v6501
    %v6573 = vunpack.c.l.b16 %v6502
    %v6574 = vunpack.c.l.b16 %v6503
    %v6575 = vunpack.c.l.b16 %v6504
    %v6576 = vunpack.c.l.b16 %v6505
    %v6577 = vunpack.c.l.b16 %v6506
    %v6578 = vunpack.c.l.b16 %v6507
    %v6579 = vunpack.c.l.b16 %v6508
    %v6580 = vunpack.c.l.b16 %v6509
    %v6581 = vunpack.c.l.b16 %v6510
    %v6582 = vunpack.c.l.b16 %v6511
    %v6583 = vunpack.c.l.b16 %v6512
    %v6584 = vunpack.c.l.b16 %v6513
    %v6585 = vunpack.c.l.b16 %v6514
    %v6586 = vunpack.c.l.b16 %v6515
    %v6587 = vunpack.c.l.b16 %v6516
    %v6588 = vunpack.c.l.b16 %v6517
    %v6589 = vunpack.c.l.b16 %v6518
    %v6590 = vunpack.c.l.b16 %v6519
    %v6591 = vunpack.c.l.b16 %v6520
    %v6592 = vunpack.c.l.b16 %v6521
    %v6593 = vunpack.c.l.b16 %v6522
    %v6594 = vunpack.c.l.b16 %v6523
    %v6595 = vunpack.c.l.b16 %v6524
    %v6596 = vunpack.c.l.b16 %v6525
    %v6597 = vunpack.c.l.b16 %v6526
    %v6598 = vunpack.c.l.b16 %v6527
    %v6599 = vunpack.c.l.b16 %v6528
    %v6600 = vunpack.c.l.b16 %v6529
    %v6601 = vunpack.c.l.b16 %v6530
    %v6602 = vunpack.c.l.b16 %v6531
    %v6603 = vpack.c.b16 %v6572, %v6571
    %v6604 = vpack.c.b16 %v6574, %v6573
    %v6605 = vpack.c.b16 %v6576, %v6575
    %v6606 = vpack.c.b16 %v6578, %v6577
    %v6607 = vpack.c.b16 %v6580, %v6579
    %v6608 = vpack.c.b16 %v6582, %v6581
    %v6609 = vpack.c.b16 %v6584, %v6583
    %v6610 = vpack.c.b16 %v6586, %v6585
    %v6611 = vpack.c.b16 %v6588, %v6587
    %v6612 = vpack.c.b16 %v6590, %v6589
    %v6613 = vpack.c.b16 %v6592, %v6591
    %v6614 = vpack.c.b16 %v6594, %v6593
    %v6615 = vpack.c.b16 %v6596, %v6595
    %v6616 = vpack.c.b16 %v6598, %v6597
    %v6617 = vpack.c.b16 %v6600, %v6599
    %v6618 = vpack.c.b16 %v6602, %v6601
    %6635 = vmatprep.subr.bf16.mxu0 0
    %6636 = vmatpush1.bf16.msra.mxu0 %v6603
    %6637 = vmatprep.subr.bf16.mxu0 0
    %6638 = vmatpush1.bf16.msra.mxu0 %v6604
    %6639 = vmatprep.subr.bf16.mxu0 0
    %6640 = vmatpush1.bf16.msra.mxu0 %v6605
    %6641 = vmatprep.subr.bf16.mxu0 0
    %6642 = vmatpush1.bf16.msra.mxu0 %v6606
    %6643 = vmatprep.subr.bf16.mxu0 0
    %6644 = vmatpush1.bf16.msra.mxu0 %v6607
    %6645 = vmatprep.subr.bf16.mxu0 0
    %6646 = vmatpush1.bf16.msra.mxu0 %v6608
    %6647 = vmatprep.subr.bf16.mxu0 0
    %6648 = vmatpush1.bf16.msra.mxu0 %v6609
    %6649 = vmatprep.subr.bf16.mxu0 0
    %6650 = vmatpush1.bf16.msra.mxu0 %v6610
    %6651 = vmatprep.subr.bf16.mxu0 0
    %6652 = vmatpush1.bf16.msra.mxu0 %v6611
    %6653 = vmatprep.subr.bf16.mxu0 0
    %6654 = vmatpush1.bf16.msra.mxu0 %v6612
    %6655 = vmatprep.subr.bf16.mxu0 0
    %6656 = vmatpush1.bf16.msra.mxu0 %v6613
    %6657 = vmatprep.subr.bf16.mxu0 0
    %6658 = vmatpush1.bf16.msra.mxu0 %v6614
    %6659 = vmatprep.subr.bf16.mxu0 0
    %6660 = vmatpush1.bf16.msra.mxu0 %v6615
    %6661 = vmatprep.subr.bf16.mxu0 0
    %6662 = vmatpush1.bf16.msra.mxu0 %v6616
    %6663 = vmatprep.subr.bf16.mxu0 0
    %6664 = vmatpush1.bf16.msra.mxu0 %v6617
    %6665 = vmatprep.subr.bf16.mxu0 0
    %6666 = vmatpush1.bf16.msra.mxu0 %v6618
    %6667 = vmatprep.mubr.bf16.mxu0 %v6499
    %6668 = vmatmul.mubr.bf16.gmra.mrb[0].mxu0 %v6498
    %v6669 = vpop.f32.mrb[0].mxu0
    %v6670 = vadd.f32 %v6537, %v6669
    %v6671 = vpop.f32.mrb[0].mxu0
    %v6672 = vpop.f32.mrb[0].mxu0
    %v6673 = vadd.f32 %v6537, %v6672
    %v6674 = vpop.f32.mrb[0].mxu0
    %6675 = vdwg.mxu0
    %6676 = vst [vmem:[#allocation2] sm:$0x1] %v6670
    %6677 = vst [vmem:[#allocation2 + $0x1] sm:$0x1] %v6673
    // Predicated region
    $region54: #{tpu_custom_call.1} parent=1 // pred_check
      _
    $region55: #{tpu_custom_call.1} parent=1 // pred_check_branch
      %6679 = sbr.rel (0) target = $region57
    $region56: #{tpu_custom_call.1} parent=1 // pred_region
      %s6681 = ssub.s32 32, 32
      %6682 = vsyncadd [#allocation3], %s6681
      %s6683 = sshll.u32 [#allocation2], 4
      %s6684 = int_to_ptr.vmem [resolvable:$true] %s6683
      %6689 = dma.vmem_to_hbm [thread:$0]  %s6684, 32, %s13, [#allocation3], 16, 16, 1
    $region57: #{tpu_custom_call.1} parent=1 // pred_fallthru
      _
    // Predicated region
    $region58: #{tpu_custom_call.1} parent=1 // pred_check
      _
    $region59: #{tpu_custom_call.1} parent=1 // pred_check_branch
      %6691 = sbr.rel (0) target = $region61
    $region60: #{tpu_custom_call.1} parent=1 // pred_region
      %6692 = dma.done [#allocation3], 32
    $region61: #{tpu_custom_call.1} parent=1 // pred_fallthru
      _
    %6693 = vsyncpa [#allocation3], 1

</llo_original>
